<compile_context>
chip_gen: v7x
topology: tpu7x:2x2x1
jax: 0.10.0
libtpu: 0.0.40
codegen_flags: <defaults>
</compile_context>

<pallas_src>
import functools

import numpy as np

import jax
import jax.numpy as jnp
from jax.experimental import pallas as pl
from jax.experimental.pallas import tpu as pltpu

_K, _STRIDE, _PAD = 5, 2, 2          # all (de)conv layers share these hyper-params
_MAX_PREP_BYTES = 16 * 1024 * 1024   # guard: keep the fused kernel comfortably in VMEM


# ----------------------------------------------------------------------------
# One-time parameter preparation (host numpy; exact, no per-call XLA ops).
# Layout convention for activations inside the kernel:
#   X[(n*H + h), (w*C + c)] == x[n, c, h, w]
# ----------------------------------------------------------------------------
def _conv_row_select(n, hin, hout, k, stride, pad):
    """R[kh, (n,ho), (n,h)] = 1  iff  h == stride*ho - pad + kh  and 0 <= h < hin."""
    r = np.zeros((k, n * hout, n * hin), np.float32)
    for kh in range(k):
        for b in range(n):
            for ho in range(hout):
                h = stride * ho - pad + kh
                if 0 <= h < hin:
                    r[kh, b * hout + ho, b * hin + h] = 1.0
    return r


def _deconv_row_select(n, hin, hout, k, stride, pad):
    """R[kh, (n,yo), (n,yi)] = 1  iff  yo == stride*yi - pad + kh  (PyTorch ConvTranspose2d)."""
    r = np.zeros((k, n * hout, n * hin), np.float32)
    for kh in range(k):
        for b in range(n):
            for yi in range(hin):
                yo = stride * yi - pad + kh
                if 0 <= yo < hout:
                    r[kh, b * hout + yo, b * hin + yi] = 1.0
    return r


def _conv_col_mix(w, win, wout, stride, pad):
    """Conv2d weight [Cout, Cin, k, k] -> G[kh, (wi,ci), (wo,co)] = w[co,ci,kh, wi - stride*wo + pad]."""
    w = np.asarray(w, np.float32)
    cout, cin, k, _ = w.shape
    sel = np.zeros((win, wout, k), np.float32)
    for wo in range(wout):
        for kw in range(k):
            wi = stride * wo - pad + kw
            if 0 <= wi < win:
                sel[wi, wo, kw] = 1.0
    g = np.einsum("xyk,oihk->hxiyo", sel, w)          # [kh, win, cin, wout, cout]
    return np.ascontiguousarray(g.reshape(k, win * cin, wout * cout))


def _deconv_col_mix(w, win, wout, stride, pad):
    """ConvTranspose2d weight [Cin, Cout, k, k] -> G[kh, (xi,ci), (xo,co)] = w[ci,co,kh, xo - stride*xi + pad]."""
    w = np.asarray(w, np.float32)
    cin, cout, k, _ = w.shape
    sel = np.zeros((win, wout, k), np.float32)
    for xi in range(win):
        for kw in range(k):
            xo = stride * xi - pad + kw
            if 0 <= xo < wout:
                sel[xi, xo, kw] = 1.0
    g = np.einsum("xyk,iohk->hxiyo", sel, w)          # [kh, win, cin, wout, cout]
    return np.ascontiguousarray(g.reshape(k, win * cin, wout * cout))


def _gdn_mix(gamma, beta, width):
    """kron(I_W, gamma^T) channel-mixing matrix + width-tiled beta row.
    NOTE: assumes the NonNegative reparametrization of gamma/beta was applied upstream
    (as in gdn.GDN), so beta + gamma @ y^2 >= 0 and rsqrt/sqrt are well defined."""
    gamma = np.asarray(gamma, np.float32)
    beta = np.asarray(beta, np.float32)
    q = np.kron(np.eye(width, dtype=np.float32), gamma.T)
    return q, np.tile(beta, width)[None, :]


def prepare_params(params, x_shape):
    """Build all kernel operands once.  Returns (operands_tuple, static_meta)."""
    n, c, h, w = x_shape
    f = int(params["conv1_w"].shape[0])
    assert h % 8 == 0 and w % 8 == 0, "three stride-2 stages require H, W % 8 == 0"
    h0, w0 = h, w
    h1, w1 = h0 // 2, w0 // 2
    h2, w2 = h1 // 2, w1 // 2
    h3, w3 = h2 // 2, w2 // 2

    ops = []

    def add(kind, wgt, b, hin, win, hout, wout, gamma=None, beta=None):
        if kind == "conv":
            ops.append(_conv_row_select(n, hin, hout, _K, _STRIDE, _PAD))
            ops.append(_conv_col_mix(wgt, win, wout, _STRIDE, _PAD))
        else:
            ops.append(_deconv_row_select(n, hin, hout, _K, _STRIDE, _PAD))
            ops.append(_deconv_col_mix(wgt, win, wout, _STRIDE, _PAD))
        ops.append(np.tile(np.asarray(b, np.float32), wout)[None, :])
        if gamma is not None:
            q, brow = _gdn_mix(gamma, beta, wout)
            ops.append(q)
            ops.append(brow)

    add("conv", params["conv1_w"], params["conv1_b"], h0, w0, h1, w1,
        params["gdn1_gamma"], params["gdn1_beta"])
    add("conv", params["conv2_w"], params["conv2_b"], h1, w1, h2, w2,
        params["gdn2_gamma"], params["gdn2_beta"])
    add("conv", params["conv3_w"], params["conv3_b"], h2, w2, h3, w3)
    add("deconv", params["deconv1_w"], params["deconv1_b"], h3, w3, h2, w2,
        params["igdn1_gamma"], params["igdn1_beta"])
    add("deconv", params["deconv2_w"], params["deconv2_b"], h2, w2, h1, w1,
        params["igdn2_gamma"], params["igdn2_beta"])
    add("deconv", params["deconv3_w"], params["deconv3_b"], h1, w1, h0, w0)

    total_bytes = sum(o.size for o in ops) * 4
    assert total_bytes < _MAX_PREP_BYTES, (
        "fused single-kernel path is sized for VMEM-resident operands; "
        "use a tiled per-layer path for inputs this large")

    operands = tuple(jnp.asarray(o) for o in ops)
    meta = (n, c, h, w, f, h3, w3)
    return operands, meta


# ----------------------------------------------------------------------------
# The single fused Pallas kernel: 6 (de)conv layers + 4 (I)GDNs, all in VMEM.
# ----------------------------------------------------------------------------
def _sae_kernel(x_ref,
                r1, g1, b1, q1, be1,
                r2, g2, b2, q2, be2,
                r3, g3, b3,
                r4, g4, b4, q4, be4,
                r5, g5, b5, q5, be5,
                r6, g6, b6,
                z_ref, xhat_ref):

    def layer(x, r_ref, g_ref, b_ref):
        # OUT = sum_kh  R_kh @ X @ G_kh  + bias_row   (conv or transposed conv)
        acc = jnp.zeros((r_ref.shape[1], g_ref.shape[2]), jnp.float32)
        for t in range(r_ref.shape[0]):            # static unroll over the 5 kernel rows
            acc = acc + jnp.dot(
                jnp.dot(r_ref[t], x, preferred_element_type=jnp.float32),
                g_ref[t], preferred_element_type=jnp.float32)
        return acc + b_ref[...]

    def gdn(y, q_ref, beta_ref, inverse):
        norm = jnp.dot(y * y, q_ref[...], preferred_element_type=jnp.float32) + beta_ref[...]
        if inverse:
            return y * jnp.sqrt(norm)              # IGDN: y * sqrt(beta + gamma y^2)
        return y * jax.lax.rsqrt(norm)             # GDN:  y / sqrt(beta + gamma y^2)

    x = x_ref[...]
    # encode
    y = gdn(layer(x, r1, g1, b1), q1, be1, inverse=False)
    y = gdn(layer(y, r2, g2, b2), q2, be2, inverse=False)
    z = layer(y, r3, g3, b3)
    z_ref[...] = z
    # decode
    d = gdn(layer(z, r4, g4, b4), q4, be4, inverse=True)
    d = gdn(layer(d, r5, g5, b5), q5, be5, inverse=True)
    xhat_ref[...] = layer(d, r6, g6, b6)


def _full_spec(shape):
    nd = len(shape)
    return pl.BlockSpec(shape, lambda i, _nd=nd: (0,) * _nd)


def sae_forward(operands, x_nchw, *, meta):
    """Single-pallas_call forward.  `meta` must be a plain Python tuple (keep it static
    under jit, e.g. via functools.partial)."""
    n, c, h, w, f, h3, w3 = meta
    # Boundary layout adapter: NCHW -> [N*H, W*C] row-major (single transpose+reshape).
    x_rc = x_nchw.astype(jnp.float32).transpose(0, 2, 3, 1).reshape(n * h, w * c)
    args = (x_rc,) + tuple(operands)

    out_shape = (jax.ShapeDtypeStruct((n * h3, w3 * f), jnp.float32),   # z
                 jax.ShapeDtypeStruct((n * h, w * c), jnp.float32))     # xhat
    z_rc, xh_rc = pl.pallas_call(
        _sae_kernel,
        out_shape=out_shape,
        grid=(1,),
        in_specs=[_full_spec(a.shape) for a in args],
        out_specs=(_full_spec((n * h3, w3 * f)), _full_spec((n * h, w * c))),
        compiler_params=pltpu.CompilerParams(dimension_semantics=("arbitrary",)),
    )(*args)

    # Boundary layout adapters back to the PyTorch module's NCHW outputs.
    z = z_rc.reshape(n, h3, w3, f).transpose(0, 3, 1, 2)
    xhat = xh_rc.reshape(n, h, w, c).transpose(0, 3, 1, 2)
    return z, xhat


def forward(params, x_nchw):
    """Convenience one-shot API (prepares parameters eagerly; do NOT jit this with
    traced params — jit sae_forward with prepared operands instead)."""
    operands, meta = prepare_params(params, x_nchw.shape)
    return sae_forward(operands, x_nchw, meta=meta)


# ----------------------------------------------------------------------------
# Deterministic parameter init (synthetic; mirrors the module's shapes)
# ----------------------------------------------------------------------------
def init_params(key, input_channels, num_filters, k=5):
    keys = jax.random.split(key, 12)

    def u(kk, shape, fan_in):
        bound = 1.0 / (fan_in ** 0.5)
        return jax.random.uniform(kk, shape, jnp.float32, -bound, bound)

    c, f = input_channels, num_filters
    p = {}
    # Conv2d weights: [Cout, Cin, k, k]
    p["conv1_w"] = u(keys[0], (f, c, k, k), c * k * k)
    p["conv1_b"] = u(keys[1], (f,), c * k * k)
    p["conv2_w"] = u(keys[2], (f, f, k, k), f * k * k)
    p["conv2_b"] = u(keys[3], (f,), f * k * k)
    p["conv3_w"] = u(keys[4], (f, f, k, k), f * k * k)
    p["conv3_b"] = u(keys[5], (f,), f * k * k)
    # ConvTranspose2d weights: [Cin, Cout, k, k]
    p["deconv1_w"] = u(keys[6], (f, f, k, k), f * k * k)
    p["deconv1_b"] = u(keys[7], (f,), f * k * k)
    p["deconv2_w"] = u(keys[8], (f, f, k, k), f * k * k)
    p["deconv2_b"] = u(keys[9], (f,), f * k * k)
    p["deconv3_w"] = u(keys[10], (f, c, k, k), f * k * k)
    p["deconv3_b"] = u(keys[11], (c,), f * k * k)
    # GDN effective params: standard init beta = 1, gamma = 0.1 * I (already non-negative;
    # the NonNegative reparametrization is an __init__-time detail, not a forward op).
    for name in ("gdn1", "gdn2", "igdn1", "igdn2"):
        p[f"{name}_beta"] = jnp.ones((f,), jnp.float32)
        p[f"{name}_gamma"] = 0.1 * jnp.eye(f, dtype=jnp.float32)
    return p


# ----------------------------------------------------------------------------
# Pure-XLA reference of the PyTorch module (for numerical validation only).
# ----------------------------------------------------------------------------
def reference_forward(params, x):
    hi = jax.lax.Precision.HIGHEST

    def conv(x, w, b):
        y = jax.lax.conv_general_dilated(
            x, w, window_strides=(2, 2), padding=((2, 2), (2, 2)),
            dimension_numbers=("NCHW", "OIHW", "NCHW"), precision=hi)
        return y + b[None, :, None, None]

    def deconv(x, w, b):
        # PyTorch ConvTranspose2d(k=5, s=2, p=2, op=1) == fractionally-strided conv.
        wf = jnp.flip(jnp.transpose(w, (1, 0, 2, 3)), (2, 3))
        y = jax.lax.conv_general_dilated(
            x, wf, window_strides=(1, 1), padding=((2, 3), (2, 3)),
            lhs_dilation=(2, 2),
            dimension_numbers=("NCHW", "OIHW", "NCHW"), precision=hi)
        return y + b[None, :, None, None]

    def gdn(x, gamma, beta, inverse):
        norm = jnp.einsum("cd,ndhw->nchw", gamma, x * x, precision=hi)
        norm = norm + beta[None, :, None, None]
        return x * jnp.sqrt(norm) if inverse else x * jax.lax.rsqrt(norm)

    h = gdn(conv(x, params["conv1_w"], params["conv1_b"]),
            params["gdn1_gamma"], params["gdn1_beta"], False)
    h = gdn(conv(h, params["conv2_w"], params["conv2_b"]),
            params["gdn2_gamma"], params["gdn2_beta"], False)
    z = conv(h, params["conv3_w"], params["conv3_b"])
    d = gdn(deconv(z, params["deconv1_w"], params["deconv1_b"]),
            params["igdn1_gamma"], params["igdn1_beta"], True)
    d = gdn(deconv(d, params["deconv2_w"], params["deconv2_b"]),
            params["igdn2_gamma"], params["igdn2_beta"], True)
    xhat = deconv(d, params["deconv3_w"], params["deconv3_b"])
    return z, xhat


if __name__ == "__main__":
    INPUT_CHANNELS = 4
    NUM_FILTERS = 16
    BATCH = 2
    SPATIAL = 16

    key = jax.random.PRNGKey(0)
    k_params, k_x = jax.random.split(key)
    params = init_params(k_params, INPUT_CHANNELS, NUM_FILTERS)
    x = jax.random.normal(k_x, (BATCH, INPUT_CHANNELS, SPATIAL, SPATIAL), jnp.float32)

    # One-time parameter prep, then a jitted forward with static layout meta.
    operands, meta = prepare_params(params, x.shape)
    fwd = jax.jit(functools.partial(sae_forward, meta=meta))

    z, xhat = fwd(operands, x)
    jax.block_until_ready((z, xhat))

    assert z.shape == (BATCH, NUM_FILTERS, SPATIAL // 8, SPATIAL // 8), z.shape
    assert xhat.shape == x.shape, xhat.shape
    assert z.dtype == jnp.float32 and xhat.dtype == jnp.float32
    assert bool(jnp.all(jnp.isfinite(z))) and bool(jnp.all(jnp.isfinite(xhat)))

    # Numerical validation against the XLA reference of the PyTorch module (addresses the
    # ConvTranspose-lowering correctness concern).  Tolerance is loose enough to be robust
    # to MXU precision modes yet tight enough to catch any tap/stride/padding/layout error.
    z_ref, xhat_ref = jax.jit(reference_forward)(params, x)
    jax.block_until_ready((z_ref, xhat_ref))
    assert bool(jnp.allclose(z, z_ref, atol=2e-2, rtol=2e-2)), \
        float(jnp.max(jnp.abs(z - z_ref)))
    assert bool(jnp.allclose(xhat, xhat_ref, atol=2e-2, rtol=2e-2)), \
        float(jnp.max(jnp.abs(xhat - xhat_ref)))

    print("KERNEL_OK")
</pallas_src>

<mosaic_0001>
module attributes {stable_mosaic.version = 11 : i64} {
  func.func @_sae_kernel(%arg0: i32, %arg1: memref<32x64xf32, #tpu.memory_space<vmem>>, %arg2: memref<5x16x32xf32, #tpu.memory_space<vmem>>, %arg3: memref<5x64x128xf32, #tpu.memory_space<vmem>>, %arg4: memref<1x128xf32, #tpu.memory_space<vmem>>, %arg5: memref<128x128xf32, #tpu.memory_space<vmem>>, %arg6: memref<1x128xf32, #tpu.memory_space<vmem>>, %arg7: memref<5x8x16xf32, #tpu.memory_space<vmem>>, %arg8: memref<5x128x64xf32, #tpu.memory_space<vmem>>, %arg9: memref<1x64xf32, #tpu.memory_space<vmem>>, %arg10: memref<64x64xf32, #tpu.memory_space<vmem>>, %arg11: memref<1x64xf32, #tpu.memory_space<vmem>>, %arg12: memref<5x4x8xf32, #tpu.memory_space<vmem>>, %arg13: memref<5x64x32xf32, #tpu.memory_space<vmem>>, %arg14: memref<1x32xf32, #tpu.memory_space<vmem>>, %arg15: memref<5x8x4xf32, #tpu.memory_space<vmem>>, %arg16: memref<5x32x64xf32, #tpu.memory_space<vmem>>, %arg17: memref<1x64xf32, #tpu.memory_space<vmem>>, %arg18: memref<64x64xf32, #tpu.memory_space<vmem>>, %arg19: memref<1x64xf32, #tpu.memory_space<vmem>>, %arg20: memref<5x16x8xf32, #tpu.memory_space<vmem>>, %arg21: memref<5x64x128xf32, #tpu.memory_space<vmem>>, %arg22: memref<1x128xf32, #tpu.memory_space<vmem>>, %arg23: memref<128x128xf32, #tpu.memory_space<vmem>>, %arg24: memref<1x128xf32, #tpu.memory_space<vmem>>, %arg25: memref<5x32x16xf32, #tpu.memory_space<vmem>>, %arg26: memref<5x128x64xf32, #tpu.memory_space<vmem>>, %arg27: memref<1x64xf32, #tpu.memory_space<vmem>>, %arg28: memref<4x32xf32, #tpu.memory_space<vmem>>, %arg29: memref<32x64xf32, #tpu.memory_space<vmem>>) attributes {dimension_semantics = [#tpu.dimension_semantics<arbitrary>], iteration_bounds = array<i64: 1>, scalar_prefetch = 0 : i64, scratch_operands = 0 : i64, tpu.core_type = #tpu.core_type<tc>, window_params = [{pipeline_mode = #tpu.pipeline_mode<synchronous>, transform_indices = @transform_0, window_bounds = array<i64: 32, 64>}, {pipeline_mode = #tpu.pipeline_mode<synchronous>, transform_indices = @transform_1, window_bounds = array<i64: 5, 16, 32>}, {pipeline_mode = #tpu.pipeline_mode<synchronous>, transform_indices = @transform_2, window_bounds = array<i64: 5, 64, 128>}, {pipeline_mode = #tpu.pipeline_mode<synchronous>, transform_indices = @transform_3, window_bounds = array<i64: 1, 128>}, {pipeline_mode = #tpu.pipeline_mode<synchronous>, transform_indices = @transform_4, window_bounds = array<i64: 128, 128>}, {pipeline_mode = #tpu.pipeline_mode<synchronous>, transform_indices = @transform_5, window_bounds = array<i64: 1, 128>}, {pipeline_mode = #tpu.pipeline_mode<synchronous>, transform_indices = @transform_6, window_bounds = array<i64: 5, 8, 16>}, {pipeline_mode = #tpu.pipeline_mode<synchronous>, transform_indices = @transform_7, window_bounds = array<i64: 5, 128, 64>}, {pipeline_mode = #tpu.pipeline_mode<synchronous>, transform_indices = @transform_8, window_bounds = array<i64: 1, 64>}, {pipeline_mode = #tpu.pipeline_mode<synchronous>, transform_indices = @transform_9, window_bounds = array<i64: 64, 64>}, {pipeline_mode = #tpu.pipeline_mode<synchronous>, transform_indices = @transform_10, window_bounds = array<i64: 1, 64>}, {pipeline_mode = #tpu.pipeline_mode<synchronous>, transform_indices = @transform_11, window_bounds = array<i64: 5, 4, 8>}, {pipeline_mode = #tpu.pipeline_mode<synchronous>, transform_indices = @transform_12, window_bounds = array<i64: 5, 64, 32>}, {pipeline_mode = #tpu.pipeline_mode<synchronous>, transform_indices = @transform_13, window_bounds = array<i64: 1, 32>}, {pipeline_mode = #tpu.pipeline_mode<synchronous>, transform_indices = @transform_14, window_bounds = array<i64: 5, 8, 4>}, {pipeline_mode = #tpu.pipeline_mode<synchronous>, transform_indices = @transform_15, window_bounds = array<i64: 5, 32, 64>}, {pipeline_mode = #tpu.pipeline_mode<synchronous>, transform_indices = @transform_16, window_bounds = array<i64: 1, 64>}, {pipeline_mode = #tpu.pipeline_mode<synchronous>, transform_indices = @transform_17, window_bounds = array<i64: 64, 64>}, {pipeline_mode = #tpu.pipeline_mode<synchronous>, transform_indices = @transform_18, window_bounds = array<i64: 1, 64>}, {pipeline_mode = #tpu.pipeline_mode<synchronous>, transform_indices = @transform_19, window_bounds = array<i64: 5, 16, 8>}, {pipeline_mode = #tpu.pipeline_mode<synchronous>, transform_indices = @transform_20, window_bounds = array<i64: 5, 64, 128>}, {pipeline_mode = #tpu.pipeline_mode<synchronous>, transform_indices = @transform_21, window_bounds = array<i64: 1, 128>}, {pipeline_mode = #tpu.pipeline_mode<synchronous>, transform_indices = @transform_22, window_bounds = array<i64: 128, 128>}, {pipeline_mode = #tpu.pipeline_mode<synchronous>, transform_indices = @transform_23, window_bounds = array<i64: 1, 128>}, {pipeline_mode = #tpu.pipeline_mode<synchronous>, transform_indices = @transform_24, window_bounds = array<i64: 5, 32, 16>}, {pipeline_mode = #tpu.pipeline_mode<synchronous>, transform_indices = @transform_25, window_bounds = array<i64: 5, 128, 64>}, {pipeline_mode = #tpu.pipeline_mode<synchronous>, transform_indices = @transform_26, window_bounds = array<i64: 1, 64>}, {pipeline_mode = #tpu.pipeline_mode<synchronous>, transform_indices = @transform_27, window_bounds = array<i64: 4, 32>}, {pipeline_mode = #tpu.pipeline_mode<synchronous>, transform_indices = @transform_28, window_bounds = array<i64: 32, 64>}]} {
    %c0 = arith.constant 0 : index
    %c0_0 = arith.constant 0 : index
    %0 = vector.load %arg1[%c0, %c0_0] : memref<32x64xf32, #tpu.memory_space<vmem>>, vector<32x64xf32>
    %cst = arith.constant 0.000000e+00 : f32
    %1 = vector.broadcast %cst : f32 to vector<16x128xf32>
    %c0_1 = arith.constant 0 : index
    %c0_2 = arith.constant 0 : index
    %c0_3 = arith.constant 0 : index
    %2 = vector.load %arg2[%c0_1, %c0_2, %c0_3] : memref<5x16x32xf32, #tpu.memory_space<vmem>>, vector<1x16x32xf32>
    %3 = vector.shape_cast %2 : vector<1x16x32xf32> to vector<16x32xf32>
    %cst_4 = arith.constant dense<0.000000e+00> : vector<16x64xf32>
    %4 = tpu.matmul %3, %0, %cst_4 {dimension_numbers = #tpu.dot_dimension_numbers<[1], [0], [0], [1], [0, 0, 1, 1], [], []>} : vector<16x32xf32>, vector<32x64xf32>, vector<16x64xf32> -> vector<16x64xf32>
    %c0_5 = arith.constant 0 : index
    %c0_6 = arith.constant 0 : index
    %c0_7 = arith.constant 0 : index
    %5 = vector.load %arg3[%c0_5, %c0_6, %c0_7] : memref<5x64x128xf32, #tpu.memory_space<vmem>>, vector<1x64x128xf32>
    %6 = vector.shape_cast %5 : vector<1x64x128xf32> to vector<64x128xf32>
    %cst_8 = arith.constant dense<0.000000e+00> : vector<16x128xf32>
    %7 = tpu.matmul %4, %6, %cst_8 {dimension_numbers = #tpu.dot_dimension_numbers<[1], [0], [0], [1], [0, 0, 1, 1], [], []>} : vector<16x64xf32>, vector<64x128xf32>, vector<16x128xf32> -> vector<16x128xf32>
    %8 = arith.addf %1, %7 : vector<16x128xf32>
    %c1 = arith.constant 1 : index
    %c0_9 = arith.constant 0 : index
    %c0_10 = arith.constant 0 : index
    %9 = vector.load %arg2[%c1, %c0_9, %c0_10] : memref<5x16x32xf32, #tpu.memory_space<vmem>>, vector<1x16x32xf32>
    %10 = vector.shape_cast %9 : vector<1x16x32xf32> to vector<16x32xf32>
    %cst_11 = arith.constant dense<0.000000e+00> : vector<16x64xf32>
    %11 = tpu.matmul %10, %0, %cst_11 {dimension_numbers = #tpu.dot_dimension_numbers<[1], [0], [0], [1], [0, 0, 1, 1], [], []>} : vector<16x32xf32>, vector<32x64xf32>, vector<16x64xf32> -> vector<16x64xf32>
    %c1_12 = arith.constant 1 : index
    %c0_13 = arith.constant 0 : index
    %c0_14 = arith.constant 0 : index
    %12 = vector.load %arg3[%c1_12, %c0_13, %c0_14] : memref<5x64x128xf32, #tpu.memory_space<vmem>>, vector<1x64x128xf32>
    %13 = vector.shape_cast %12 : vector<1x64x128xf32> to vector<64x128xf32>
    %cst_15 = arith.constant dense<0.000000e+00> : vector<16x128xf32>
    %14 = tpu.matmul %11, %13, %cst_15 {dimension_numbers = #tpu.dot_dimension_numbers<[1], [0], [0], [1], [0, 0, 1, 1], [], []>} : vector<16x64xf32>, vector<64x128xf32>, vector<16x128xf32> -> vector<16x128xf32>
    %15 = arith.addf %8, %14 : vector<16x128xf32>
    %c2 = arith.constant 2 : index
    %c0_16 = arith.constant 0 : index
    %c0_17 = arith.constant 0 : index
    %16 = vector.load %arg2[%c2, %c0_16, %c0_17] : memref<5x16x32xf32, #tpu.memory_space<vmem>>, vector<1x16x32xf32>
    %17 = vector.shape_cast %16 : vector<1x16x32xf32> to vector<16x32xf32>
    %cst_18 = arith.constant dense<0.000000e+00> : vector<16x64xf32>
    %18 = tpu.matmul %17, %0, %cst_18 {dimension_numbers = #tpu.dot_dimension_numbers<[1], [0], [0], [1], [0, 0, 1, 1], [], []>} : vector<16x32xf32>, vector<32x64xf32>, vector<16x64xf32> -> vector<16x64xf32>
    %c2_19 = arith.constant 2 : index
    %c0_20 = arith.constant 0 : index
    %c0_21 = arith.constant 0 : index
    %19 = vector.load %arg3[%c2_19, %c0_20, %c0_21] : memref<5x64x128xf32, #tpu.memory_space<vmem>>, vector<1x64x128xf32>
    %20 = vector.shape_cast %19 : vector<1x64x128xf32> to vector<64x128xf32>
    %cst_22 = arith.constant dense<0.000000e+00> : vector<16x128xf32>
    %21 = tpu.matmul %18, %20, %cst_22 {dimension_numbers = #tpu.dot_dimension_numbers<[1], [0], [0], [1], [0, 0, 1, 1], [], []>} : vector<16x64xf32>, vector<64x128xf32>, vector<16x128xf32> -> vector<16x128xf32>
    %22 = arith.addf %15, %21 : vector<16x128xf32>
    %c3 = arith.constant 3 : index
    %c0_23 = arith.constant 0 : index
    %c0_24 = arith.constant 0 : index
    %23 = vector.load %arg2[%c3, %c0_23, %c0_24] : memref<5x16x32xf32, #tpu.memory_space<vmem>>, vector<1x16x32xf32>
    %24 = vector.shape_cast %23 : vector<1x16x32xf32> to vector<16x32xf32>
    %cst_25 = arith.constant dense<0.000000e+00> : vector<16x64xf32>
    %25 = tpu.matmul %24, %0, %cst_25 {dimension_numbers = #tpu.dot_dimension_numbers<[1], [0], [0], [1], [0, 0, 1, 1], [], []>} : vector<16x32xf32>, vector<32x64xf32>, vector<16x64xf32> -> vector<16x64xf32>
    %c3_26 = arith.constant 3 : index
    %c0_27 = arith.constant 0 : index
    %c0_28 = arith.constant 0 : index
    %26 = vector.load %arg3[%c3_26, %c0_27, %c0_28] : memref<5x64x128xf32, #tpu.memory_space<vmem>>, vector<1x64x128xf32>
    %27 = vector.shape_cast %26 : vector<1x64x128xf32> to vector<64x128xf32>
    %cst_29 = arith.constant dense<0.000000e+00> : vector<16x128xf32>
    %28 = tpu.matmul %25, %27, %cst_29 {dimension_numbers = #tpu.dot_dimension_numbers<[1], [0], [0], [1], [0, 0, 1, 1], [], []>} : vector<16x64xf32>, vector<64x128xf32>, vector<16x128xf32> -> vector<16x128xf32>
    %29 = arith.addf %22, %28 : vector<16x128xf32>
    %c4 = arith.constant 4 : index
    %c0_30 = arith.constant 0 : index
    %c0_31 = arith.constant 0 : index
    %30 = vector.load %arg2[%c4, %c0_30, %c0_31] : memref<5x16x32xf32, #tpu.memory_space<vmem>>, vector<1x16x32xf32>
    %31 = vector.shape_cast %30 : vector<1x16x32xf32> to vector<16x32xf32>
    %cst_32 = arith.constant dense<0.000000e+00> : vector<16x64xf32>
    %32 = tpu.matmul %31, %0, %cst_32 {dimension_numbers = #tpu.dot_dimension_numbers<[1], [0], [0], [1], [0, 0, 1, 1], [], []>} : vector<16x32xf32>, vector<32x64xf32>, vector<16x64xf32> -> vector<16x64xf32>
    %c4_33 = arith.constant 4 : index
    %c0_34 = arith.constant 0 : index
    %c0_35 = arith.constant 0 : index
    %33 = vector.load %arg3[%c4_33, %c0_34, %c0_35] : memref<5x64x128xf32, #tpu.memory_space<vmem>>, vector<1x64x128xf32>
    %34 = vector.shape_cast %33 : vector<1x64x128xf32> to vector<64x128xf32>
    %cst_36 = arith.constant dense<0.000000e+00> : vector<16x128xf32>
    %35 = tpu.matmul %32, %34, %cst_36 {dimension_numbers = #tpu.dot_dimension_numbers<[1], [0], [0], [1], [0, 0, 1, 1], [], []>} : vector<16x64xf32>, vector<64x128xf32>, vector<16x128xf32> -> vector<16x128xf32>
    %36 = arith.addf %29, %35 : vector<16x128xf32>
    %c0_37 = arith.constant 0 : index
    %c0_38 = arith.constant 0 : index
    %37 = vector.load %arg4[%c0_37, %c0_38] : memref<1x128xf32, #tpu.memory_space<vmem>>, vector<1x128xf32>
    %38 = vector.broadcast %37 : vector<1x128xf32> to vector<16x128xf32>
    %39 = arith.addf %36, %38 : vector<16x128xf32>
    %40 = arith.mulf %39, %39 : vector<16x128xf32>
    %c0_39 = arith.constant 0 : index
    %c0_40 = arith.constant 0 : index
    %41 = vector.load %arg5[%c0_39, %c0_40] : memref<128x128xf32, #tpu.memory_space<vmem>>, vector<128x128xf32>
    %cst_41 = arith.constant dense<0.000000e+00> : vector<16x128xf32>
    %42 = tpu.matmul %40, %41, %cst_41 {dimension_numbers = #tpu.dot_dimension_numbers<[1], [0], [0], [1], [0, 0, 1, 1], [], []>} : vector<16x128xf32>, vector<128x128xf32>, vector<16x128xf32> -> vector<16x128xf32>
    %c0_42 = arith.constant 0 : index
    %c0_43 = arith.constant 0 : index
    %43 = vector.load %arg6[%c0_42, %c0_43] : memref<1x128xf32, #tpu.memory_space<vmem>>, vector<1x128xf32>
    %44 = vector.broadcast %43 : vector<1x128xf32> to vector<16x128xf32>
    %45 = arith.addf %42, %44 : vector<16x128xf32>
    %46 = math.rsqrt %45 : vector<16x128xf32>
    %47 = arith.mulf %39, %46 : vector<16x128xf32>
    %cst_44 = arith.constant 0.000000e+00 : f32
    %48 = vector.broadcast %cst_44 : f32 to vector<8x64xf32>
    %c0_45 = arith.constant 0 : index
    %c0_46 = arith.constant 0 : index
    %c0_47 = arith.constant 0 : index
    %49 = vector.load %arg7[%c0_45, %c0_46, %c0_47] : memref<5x8x16xf32, #tpu.memory_space<vmem>>, vector<1x8x16xf32>
    %50 = vector.shape_cast %49 : vector<1x8x16xf32> to vector<8x16xf32>
    %cst_48 = arith.constant dense<0.000000e+00> : vector<8x128xf32>
    %51 = tpu.matmul %50, %47, %cst_48 {dimension_numbers = #tpu.dot_dimension_numbers<[1], [0], [0], [1], [0, 0, 1, 1], [], []>} : vector<8x16xf32>, vector<16x128xf32>, vector<8x128xf32> -> vector<8x128xf32>
    %c0_49 = arith.constant 0 : index
    %c0_50 = arith.constant 0 : index
    %c0_51 = arith.constant 0 : index
    %52 = vector.load %arg8[%c0_49, %c0_50, %c0_51] : memref<5x128x64xf32, #tpu.memory_space<vmem>>, vector<1x128x64xf32>
    %53 = vector.shape_cast %52 : vector<1x128x64xf32> to vector<128x64xf32>
    %cst_52 = arith.constant dense<0.000000e+00> : vector<8x64xf32>
    %54 = tpu.matmul %51, %53, %cst_52 {dimension_numbers = #tpu.dot_dimension_numbers<[1], [0], [0], [1], [0, 0, 1, 1], [], []>} : vector<8x128xf32>, vector<128x64xf32>, vector<8x64xf32> -> vector<8x64xf32>
    %55 = arith.addf %48, %54 : vector<8x64xf32>
    %c1_53 = arith.constant 1 : index
    %c0_54 = arith.constant 0 : index
    %c0_55 = arith.constant 0 : index
    %56 = vector.load %arg7[%c1_53, %c0_54, %c0_55] : memref<5x8x16xf32, #tpu.memory_space<vmem>>, vector<1x8x16xf32>
    %57 = vector.shape_cast %56 : vector<1x8x16xf32> to vector<8x16xf32>
    %cst_56 = arith.constant dense<0.000000e+00> : vector<8x128xf32>
    %58 = tpu.matmul %57, %47, %cst_56 {dimension_numbers = #tpu.dot_dimension_numbers<[1], [0], [0], [1], [0, 0, 1, 1], [], []>} : vector<8x16xf32>, vector<16x128xf32>, vector<8x128xf32> -> vector<8x128xf32>
    %c1_57 = arith.constant 1 : index
    %c0_58 = arith.constant 0 : index
    %c0_59 = arith.constant 0 : index
    %59 = vector.load %arg8[%c1_57, %c0_58, %c0_59] : memref<5x128x64xf32, #tpu.memory_space<vmem>>, vector<1x128x64xf32>
    %60 = vector.shape_cast %59 : vector<1x128x64xf32> to vector<128x64xf32>
    %cst_60 = arith.constant dense<0.000000e+00> : vector<8x64xf32>
    %61 = tpu.matmul %58, %60, %cst_60 {dimension_numbers = #tpu.dot_dimension_numbers<[1], [0], [0], [1], [0, 0, 1, 1], [], []>} : vector<8x128xf32>, vector<128x64xf32>, vector<8x64xf32> -> vector<8x64xf32>
    %62 = arith.addf %55, %61 : vector<8x64xf32>
    %c2_61 = arith.constant 2 : index
    %c0_62 = arith.constant 0 : index
    %c0_63 = arith.constant 0 : index
    %63 = vector.load %arg7[%c2_61, %c0_62, %c0_63] : memref<5x8x16xf32, #tpu.memory_space<vmem>>, vector<1x8x16xf32>
    %64 = vector.shape_cast %63 : vector<1x8x16xf32> to vector<8x16xf32>
    %cst_64 = arith.constant dense<0.000000e+00> : vector<8x128xf32>
    %65 = tpu.matmul %64, %47, %cst_64 {dimension_numbers = #tpu.dot_dimension_numbers<[1], [0], [0], [1], [0, 0, 1, 1], [], []>} : vector<8x16xf32>, vector<16x128xf32>, vector<8x128xf32> -> vector<8x128xf32>
    %c2_65 = arith.constant 2 : index
    %c0_66 = arith.constant 0 : index
    %c0_67 = arith.constant 0 : index
    %66 = vector.load %arg8[%c2_65, %c0_66, %c0_67] : memref<5x128x64xf32, #tpu.memory_space<vmem>>, vector<1x128x64xf32>
    %67 = vector.shape_cast %66 : vector<1x128x64xf32> to vector<128x64xf32>
    %cst_68 = arith.constant dense<0.000000e+00> : vector<8x64xf32>
    %68 = tpu.matmul %65, %67, %cst_68 {dimension_numbers = #tpu.dot_dimension_numbers<[1], [0], [0], [1], [0, 0, 1, 1], [], []>} : vector<8x128xf32>, vector<128x64xf32>, vector<8x64xf32> -> vector<8x64xf32>
    %69 = arith.addf %62, %68 : vector<8x64xf32>
    %c3_69 = arith.constant 3 : index
    %c0_70 = arith.constant 0 : index
    %c0_71 = arith.constant 0 : index
    %70 = vector.load %arg7[%c3_69, %c0_70, %c0_71] : memref<5x8x16xf32, #tpu.memory_space<vmem>>, vector<1x8x16xf32>
    %71 = vector.shape_cast %70 : vector<1x8x16xf32> to vector<8x16xf32>
    %cst_72 = arith.constant dense<0.000000e+00> : vector<8x128xf32>
    %72 = tpu.matmul %71, %47, %cst_72 {dimension_numbers = #tpu.dot_dimension_numbers<[1], [0], [0], [1], [0, 0, 1, 1], [], []>} : vector<8x16xf32>, vector<16x128xf32>, vector<8x128xf32> -> vector<8x128xf32>
    %c3_73 = arith.constant 3 : index
    %c0_74 = arith.constant 0 : index
    %c0_75 = arith.constant 0 : index
    %73 = vector.load %arg8[%c3_73, %c0_74, %c0_75] : memref<5x128x64xf32, #tpu.memory_space<vmem>>, vector<1x128x64xf32>
    %74 = vector.shape_cast %73 : vector<1x128x64xf32> to vector<128x64xf32>
    %cst_76 = arith.constant dense<0.000000e+00> : vector<8x64xf32>
    %75 = tpu.matmul %72, %74, %cst_76 {dimension_numbers = #tpu.dot_dimension_numbers<[1], [0], [0], [1], [0, 0, 1, 1], [], []>} : vector<8x128xf32>, vector<128x64xf32>, vector<8x64xf32> -> vector<8x64xf32>
    %76 = arith.addf %69, %75 : vector<8x64xf32>
    %c4_77 = arith.constant 4 : index
    %c0_78 = arith.constant 0 : index
    %c0_79 = arith.constant 0 : index
    %77 = vector.load %arg7[%c4_77, %c0_78, %c0_79] : memref<5x8x16xf32, #tpu.memory_space<vmem>>, vector<1x8x16xf32>
    %78 = vector.shape_cast %77 : vector<1x8x16xf32> to vector<8x16xf32>
    %cst_80 = arith.constant dense<0.000000e+00> : vector<8x128xf32>
    %79 = tpu.matmul %78, %47, %cst_80 {dimension_numbers = #tpu.dot_dimension_numbers<[1], [0], [0], [1], [0, 0, 1, 1], [], []>} : vector<8x16xf32>, vector<16x128xf32>, vector<8x128xf32> -> vector<8x128xf32>
    %c4_81 = arith.constant 4 : index
    %c0_82 = arith.constant 0 : index
    %c0_83 = arith.constant 0 : index
    %80 = vector.load %arg8[%c4_81, %c0_82, %c0_83] : memref<5x128x64xf32, #tpu.memory_space<vmem>>, vector<1x128x64xf32>
    %81 = vector.shape_cast %80 : vector<1x128x64xf32> to vector<128x64xf32>
    %cst_84 = arith.constant dense<0.000000e+00> : vector<8x64xf32>
    %82 = tpu.matmul %79, %81, %cst_84 {dimension_numbers = #tpu.dot_dimension_numbers<[1], [0], [0], [1], [0, 0, 1, 1], [], []>} : vector<8x128xf32>, vector<128x64xf32>, vector<8x64xf32> -> vector<8x64xf32>
    %83 = arith.addf %76, %82 : vector<8x64xf32>
    %c0_85 = arith.constant 0 : index
    %c0_86 = arith.constant 0 : index
    %84 = vector.load %arg9[%c0_85, %c0_86] : memref<1x64xf32, #tpu.memory_space<vmem>>, vector<1x64xf32>
    %85 = vector.broadcast %84 : vector<1x64xf32> to vector<8x64xf32>
    %86 = arith.addf %83, %85 : vector<8x64xf32>
    %87 = arith.mulf %86, %86 : vector<8x64xf32>
    %c0_87 = arith.constant 0 : index
    %c0_88 = arith.constant 0 : index
    %88 = vector.load %arg10[%c0_87, %c0_88] : memref<64x64xf32, #tpu.memory_space<vmem>>, vector<64x64xf32>
    %cst_89 = arith.constant dense<0.000000e+00> : vector<8x64xf32>
    %89 = tpu.matmul %87, %88, %cst_89 {dimension_numbers = #tpu.dot_dimension_numbers<[1], [0], [0], [1], [0, 0, 1, 1], [], []>} : vector<8x64xf32>, vector<64x64xf32>, vector<8x64xf32> -> vector<8x64xf32>
    %c0_90 = arith.constant 0 : index
    %c0_91 = arith.constant 0 : index
    %90 = vector.load %arg11[%c0_90, %c0_91] : memref<1x64xf32, #tpu.memory_space<vmem>>, vector<1x64xf32>
    %91 = vector.broadcast %90 : vector<1x64xf32> to vector<8x64xf32>
    %92 = arith.addf %89, %91 : vector<8x64xf32>
    %93 = math.rsqrt %92 : vector<8x64xf32>
    %94 = arith.mulf %86, %93 : vector<8x64xf32>
    %cst_92 = arith.constant 0.000000e+00 : f32
    %95 = vector.broadcast %cst_92 : f32 to vector<4x32xf32>
    %c0_93 = arith.constant 0 : index
    %c0_94 = arith.constant 0 : index
    %c0_95 = arith.constant 0 : index
    %96 = vector.load %arg12[%c0_93, %c0_94, %c0_95] : memref<5x4x8xf32, #tpu.memory_space<vmem>>, vector<1x4x8xf32>
    %97 = vector.shape_cast %96 : vector<1x4x8xf32> to vector<4x8xf32>
    %cst_96 = arith.constant dense<0.000000e+00> : vector<4x64xf32>
    %98 = tpu.matmul %97, %94, %cst_96 {dimension_numbers = #tpu.dot_dimension_numbers<[1], [0], [0], [1], [0, 0, 1, 1], [], []>} : vector<4x8xf32>, vector<8x64xf32>, vector<4x64xf32> -> vector<4x64xf32>
    %c0_97 = arith.constant 0 : index
    %c0_98 = arith.constant 0 : index
    %c0_99 = arith.constant 0 : index
    %99 = vector.load %arg13[%c0_97, %c0_98, %c0_99] : memref<5x64x32xf32, #tpu.memory_space<vmem>>, vector<1x64x32xf32>
    %100 = vector.shape_cast %99 : vector<1x64x32xf32> to vector<64x32xf32>
    %cst_100 = arith.constant dense<0.000000e+00> : vector<4x32xf32>
    %101 = tpu.matmul %98, %100, %cst_100 {dimension_numbers = #tpu.dot_dimension_numbers<[1], [0], [0], [1], [0, 0, 1, 1], [], []>} : vector<4x64xf32>, vector<64x32xf32>, vector<4x32xf32> -> vector<4x32xf32>
    %102 = arith.addf %95, %101 : vector<4x32xf32>
    %c1_101 = arith.constant 1 : index
    %c0_102 = arith.constant 0 : index
    %c0_103 = arith.constant 0 : index
    %103 = vector.load %arg12[%c1_101, %c0_102, %c0_103] : memref<5x4x8xf32, #tpu.memory_space<vmem>>, vector<1x4x8xf32>
    %104 = vector.shape_cast %103 : vector<1x4x8xf32> to vector<4x8xf32>
    %cst_104 = arith.constant dense<0.000000e+00> : vector<4x64xf32>
    %105 = tpu.matmul %104, %94, %cst_104 {dimension_numbers = #tpu.dot_dimension_numbers<[1], [0], [0], [1], [0, 0, 1, 1], [], []>} : vector<4x8xf32>, vector<8x64xf32>, vector<4x64xf32> -> vector<4x64xf32>
    %c1_105 = arith.constant 1 : index
    %c0_106 = arith.constant 0 : index
    %c0_107 = arith.constant 0 : index
    %106 = vector.load %arg13[%c1_105, %c0_106, %c0_107] : memref<5x64x32xf32, #tpu.memory_space<vmem>>, vector<1x64x32xf32>
    %107 = vector.shape_cast %106 : vector<1x64x32xf32> to vector<64x32xf32>
    %cst_108 = arith.constant dense<0.000000e+00> : vector<4x32xf32>
    %108 = tpu.matmul %105, %107, %cst_108 {dimension_numbers = #tpu.dot_dimension_numbers<[1], [0], [0], [1], [0, 0, 1, 1], [], []>} : vector<4x64xf32>, vector<64x32xf32>, vector<4x32xf32> -> vector<4x32xf32>
    %109 = arith.addf %102, %108 : vector<4x32xf32>
    %c2_109 = arith.constant 2 : index
    %c0_110 = arith.constant 0 : index
    %c0_111 = arith.constant 0 : index
    %110 = vector.load %arg12[%c2_109, %c0_110, %c0_111] : memref<5x4x8xf32, #tpu.memory_space<vmem>>, vector<1x4x8xf32>
    %111 = vector.shape_cast %110 : vector<1x4x8xf32> to vector<4x8xf32>
    %cst_112 = arith.constant dense<0.000000e+00> : vector<4x64xf32>
    %112 = tpu.matmul %111, %94, %cst_112 {dimension_numbers = #tpu.dot_dimension_numbers<[1], [0], [0], [1], [0, 0, 1, 1], [], []>} : vector<4x8xf32>, vector<8x64xf32>, vector<4x64xf32> -> vector<4x64xf32>
    %c2_113 = arith.constant 2 : index
    %c0_114 = arith.constant 0 : index
    %c0_115 = arith.constant 0 : index
    %113 = vector.load %arg13[%c2_113, %c0_114, %c0_115] : memref<5x64x32xf32, #tpu.memory_space<vmem>>, vector<1x64x32xf32>
    %114 = vector.shape_cast %113 : vector<1x64x32xf32> to vector<64x32xf32>
    %cst_116 = arith.constant dense<0.000000e+00> : vector<4x32xf32>
    %115 = tpu.matmul %112, %114, %cst_116 {dimension_numbers = #tpu.dot_dimension_numbers<[1], [0], [0], [1], [0, 0, 1, 1], [], []>} : vector<4x64xf32>, vector<64x32xf32>, vector<4x32xf32> -> vector<4x32xf32>
    %116 = arith.addf %109, %115 : vector<4x32xf32>
    %c3_117 = arith.constant 3 : index
    %c0_118 = arith.constant 0 : index
    %c0_119 = arith.constant 0 : index
    %117 = vector.load %arg12[%c3_117, %c0_118, %c0_119] : memref<5x4x8xf32, #tpu.memory_space<vmem>>, vector<1x4x8xf32>
    %118 = vector.shape_cast %117 : vector<1x4x8xf32> to vector<4x8xf32>
    %cst_120 = arith.constant dense<0.000000e+00> : vector<4x64xf32>
    %119 = tpu.matmul %118, %94, %cst_120 {dimension_numbers = #tpu.dot_dimension_numbers<[1], [0], [0], [1], [0, 0, 1, 1], [], []>} : vector<4x8xf32>, vector<8x64xf32>, vector<4x64xf32> -> vector<4x64xf32>
    %c3_121 = arith.constant 3 : index
    %c0_122 = arith.constant 0 : index
    %c0_123 = arith.constant 0 : index
    %120 = vector.load %arg13[%c3_121, %c0_122, %c0_123] : memref<5x64x32xf32, #tpu.memory_space<vmem>>, vector<1x64x32xf32>
    %121 = vector.shape_cast %120 : vector<1x64x32xf32> to vector<64x32xf32>
    %cst_124 = arith.constant dense<0.000000e+00> : vector<4x32xf32>
    %122 = tpu.matmul %119, %121, %cst_124 {dimension_numbers = #tpu.dot_dimension_numbers<[1], [0], [0], [1], [0, 0, 1, 1], [], []>} : vector<4x64xf32>, vector<64x32xf32>, vector<4x32xf32> -> vector<4x32xf32>
    %123 = arith.addf %116, %122 : vector<4x32xf32>
    %c4_125 = arith.constant 4 : index
    %c0_126 = arith.constant 0 : index
    %c0_127 = arith.constant 0 : index
    %124 = vector.load %arg12[%c4_125, %c0_126, %c0_127] : memref<5x4x8xf32, #tpu.memory_space<vmem>>, vector<1x4x8xf32>
    %125 = vector.shape_cast %124 : vector<1x4x8xf32> to vector<4x8xf32>
    %cst_128 = arith.constant dense<0.000000e+00> : vector<4x64xf32>
    %126 = tpu.matmul %125, %94, %cst_128 {dimension_numbers = #tpu.dot_dimension_numbers<[1], [0], [0], [1], [0, 0, 1, 1], [], []>} : vector<4x8xf32>, vector<8x64xf32>, vector<4x64xf32> -> vector<4x64xf32>
    %c4_129 = arith.constant 4 : index
    %c0_130 = arith.constant 0 : index
    %c0_131 = arith.constant 0 : index
    %127 = vector.load %arg13[%c4_129, %c0_130, %c0_131] : memref<5x64x32xf32, #tpu.memory_space<vmem>>, vector<1x64x32xf32>
    %128 = vector.shape_cast %127 : vector<1x64x32xf32> to vector<64x32xf32>
    %cst_132 = arith.constant dense<0.000000e+00> : vector<4x32xf32>
    %129 = tpu.matmul %126, %128, %cst_132 {dimension_numbers = #tpu.dot_dimension_numbers<[1], [0], [0], [1], [0, 0, 1, 1], [], []>} : vector<4x64xf32>, vector<64x32xf32>, vector<4x32xf32> -> vector<4x32xf32>
    %130 = arith.addf %123, %129 : vector<4x32xf32>
    %c0_133 = arith.constant 0 : index
    %c0_134 = arith.constant 0 : index
    %131 = vector.load %arg14[%c0_133, %c0_134] : memref<1x32xf32, #tpu.memory_space<vmem>>, vector<1x32xf32>
    %132 = vector.broadcast %131 : vector<1x32xf32> to vector<4x32xf32>
    %133 = arith.addf %130, %132 : vector<4x32xf32>
    %c0_135 = arith.constant 0 : index
    %c0_136 = arith.constant 0 : index
    %134 = vector.load %arg28[%c0_135, %c0_136] : memref<4x32xf32, #tpu.memory_space<vmem>>, vector<4x32xf32>
    tpu.vector_store %arg28[%c0_135, %c0_136], %133 {strides = array<i32>} : memref<4x32xf32, #tpu.memory_space<vmem>>, vector<4x32xf32>,
    %cst_137 = arith.constant 0.000000e+00 : f32
    %135 = vector.broadcast %cst_137 : f32 to vector<8x64xf32>
    %c0_138 = arith.constant 0 : index
    %c0_139 = arith.constant 0 : index
    %c0_140 = arith.constant 0 : index
    %136 = vector.load %arg15[%c0_138, %c0_139, %c0_140] : memref<5x8x4xf32, #tpu.memory_space<vmem>>, vector<1x8x4xf32>
    %137 = vector.shape_cast %136 : vector<1x8x4xf32> to vector<8x4xf32>
    %cst_141 = arith.constant dense<0.000000e+00> : vector<8x32xf32>
    %138 = tpu.matmul %137, %133, %cst_141 {dimension_numbers = #tpu.dot_dimension_numbers<[1], [0], [0], [1], [0, 0, 1, 1], [], []>} : vector<8x4xf32>, vector<4x32xf32>, vector<8x32xf32> -> vector<8x32xf32>
    %c0_142 = arith.constant 0 : index
    %c0_143 = arith.constant 0 : index
    %c0_144 = arith.constant 0 : index
    %139 = vector.load %arg16[%c0_142, %c0_143, %c0_144] : memref<5x32x64xf32, #tpu.memory_space<vmem>>, vector<1x32x64xf32>
    %140 = vector.shape_cast %139 : vector<1x32x64xf32> to vector<32x64xf32>
    %cst_145 = arith.constant dense<0.000000e+00> : vector<8x64xf32>
    %141 = tpu.matmul %138, %140, %cst_145 {dimension_numbers = #tpu.dot_dimension_numbers<[1], [0], [0], [1], [0, 0, 1, 1], [], []>} : vector<8x32xf32>, vector<32x64xf32>, vector<8x64xf32> -> vector<8x64xf32>
    %142 = arith.addf %135, %141 : vector<8x64xf32>
    %c1_146 = arith.constant 1 : index
    %c0_147 = arith.constant 0 : index
    %c0_148 = arith.constant 0 : index
    %143 = vector.load %arg15[%c1_146, %c0_147, %c0_148] : memref<5x8x4xf32, #tpu.memory_space<vmem>>, vector<1x8x4xf32>
    %144 = vector.shape_cast %143 : vector<1x8x4xf32> to vector<8x4xf32>
    %cst_149 = arith.constant dense<0.000000e+00> : vector<8x32xf32>
    %145 = tpu.matmul %144, %133, %cst_149 {dimension_numbers = #tpu.dot_dimension_numbers<[1], [0], [0], [1], [0, 0, 1, 1], [], []>} : vector<8x4xf32>, vector<4x32xf32>, vector<8x32xf32> -> vector<8x32xf32>
    %c1_150 = arith.constant 1 : index
    %c0_151 = arith.constant 0 : index
    %c0_152 = arith.constant 0 : index
    %146 = vector.load %arg16[%c1_150, %c0_151, %c0_152] : memref<5x32x64xf32, #tpu.memory_space<vmem>>, vector<1x32x64xf32>
    %147 = vector.shape_cast %146 : vector<1x32x64xf32> to vector<32x64xf32>
    %cst_153 = arith.constant dense<0.000000e+00> : vector<8x64xf32>
    %148 = tpu.matmul %145, %147, %cst_153 {dimension_numbers = #tpu.dot_dimension_numbers<[1], [0], [0], [1], [0, 0, 1, 1], [], []>} : vector<8x32xf32>, vector<32x64xf32>, vector<8x64xf32> -> vector<8x64xf32>
    %149 = arith.addf %142, %148 : vector<8x64xf32>
    %c2_154 = arith.constant 2 : index
    %c0_155 = arith.constant 0 : index
    %c0_156 = arith.constant 0 : index
    %150 = vector.load %arg15[%c2_154, %c0_155, %c0_156] : memref<5x8x4xf32, #tpu.memory_space<vmem>>, vector<1x8x4xf32>
    %151 = vector.shape_cast %150 : vector<1x8x4xf32> to vector<8x4xf32>
    %cst_157 = arith.constant dense<0.000000e+00> : vector<8x32xf32>
    %152 = tpu.matmul %151, %133, %cst_157 {dimension_numbers = #tpu.dot_dimension_numbers<[1], [0], [0], [1], [0, 0, 1, 1], [], []>} : vector<8x4xf32>, vector<4x32xf32>, vector<8x32xf32> -> vector<8x32xf32>
    %c2_158 = arith.constant 2 : index
    %c0_159 = arith.constant 0 : index
    %c0_160 = arith.constant 0 : index
    %153 = vector.load %arg16[%c2_158, %c0_159, %c0_160] : memref<5x32x64xf32, #tpu.memory_space<vmem>>, vector<1x32x64xf32>
    %154 = vector.shape_cast %153 : vector<1x32x64xf32> to vector<32x64xf32>
    %cst_161 = arith.constant dense<0.000000e+00> : vector<8x64xf32>
    %155 = tpu.matmul %152, %154, %cst_161 {dimension_numbers = #tpu.dot_dimension_numbers<[1], [0], [0], [1], [0, 0, 1, 1], [], []>} : vector<8x32xf32>, vector<32x64xf32>, vector<8x64xf32> -> vector<8x64xf32>
    %156 = arith.addf %149, %155 : vector<8x64xf32>
    %c3_162 = arith.constant 3 : index
    %c0_163 = arith.constant 0 : index
    %c0_164 = arith.constant 0 : index
    %157 = vector.load %arg15[%c3_162, %c0_163, %c0_164] : memref<5x8x4xf32, #tpu.memory_space<vmem>>, vector<1x8x4xf32>
    %158 = vector.shape_cast %157 : vector<1x8x4xf32> to vector<8x4xf32>
    %cst_165 = arith.constant dense<0.000000e+00> : vector<8x32xf32>
    %159 = tpu.matmul %158, %133, %cst_165 {dimension_numbers = #tpu.dot_dimension_numbers<[1], [0], [0], [1], [0, 0, 1, 1], [], []>} : vector<8x4xf32>, vector<4x32xf32>, vector<8x32xf32> -> vector<8x32xf32>
    %c3_166 = arith.constant 3 : index
    %c0_167 = arith.constant 0 : index
    %c0_168 = arith.constant 0 : index
    %160 = vector.load %arg16[%c3_166, %c0_167, %c0_168] : memref<5x32x64xf32, #tpu.memory_space<vmem>>, vector<1x32x64xf32>
    %161 = vector.shape_cast %160 : vector<1x32x64xf32> to vector<32x64xf32>
    %cst_169 = arith.constant dense<0.000000e+00> : vector<8x64xf32>
    %162 = tpu.matmul %159, %161, %cst_169 {dimension_numbers = #tpu.dot_dimension_numbers<[1], [0], [0], [1], [0, 0, 1, 1], [], []>} : vector<8x32xf32>, vector<32x64xf32>, vector<8x64xf32> -> vector<8x64xf32>
    %163 = arith.addf %156, %162 : vector<8x64xf32>
    %c4_170 = arith.constant 4 : index
    %c0_171 = arith.constant 0 : index
    %c0_172 = arith.constant 0 : index
    %164 = vector.load %arg15[%c4_170, %c0_171, %c0_172] : memref<5x8x4xf32, #tpu.memory_space<vmem>>, vector<1x8x4xf32>
    %165 = vector.shape_cast %164 : vector<1x8x4xf32> to vector<8x4xf32>
    %cst_173 = arith.constant dense<0.000000e+00> : vector<8x32xf32>
    %166 = tpu.matmul %165, %133, %cst_173 {dimension_numbers = #tpu.dot_dimension_numbers<[1], [0], [0], [1], [0, 0, 1, 1], [], []>} : vector<8x4xf32>, vector<4x32xf32>, vector<8x32xf32> -> vector<8x32xf32>
    %c4_174 = arith.constant 4 : index
    %c0_175 = arith.constant 0 : index
    %c0_176 = arith.constant 0 : index
    %167 = vector.load %arg16[%c4_174, %c0_175, %c0_176] : memref<5x32x64xf32, #tpu.memory_space<vmem>>, vector<1x32x64xf32>
    %168 = vector.shape_cast %167 : vector<1x32x64xf32> to vector<32x64xf32>
    %cst_177 = arith.constant dense<0.000000e+00> : vector<8x64xf32>
    %169 = tpu.matmul %166, %168, %cst_177 {dimension_numbers = #tpu.dot_dimension_numbers<[1], [0], [0], [1], [0, 0, 1, 1], [], []>} : vector<8x32xf32>, vector<32x64xf32>, vector<8x64xf32> -> vector<8x64xf32>
    %170 = arith.addf %163, %169 : vector<8x64xf32>
    %c0_178 = arith.constant 0 : index
    %c0_179 = arith.constant 0 : index
    %171 = vector.load %arg17[%c0_178, %c0_179] : memref<1x64xf32, #tpu.memory_space<vmem>>, vector<1x64xf32>
    %172 = vector.broadcast %171 : vector<1x64xf32> to vector<8x64xf32>
    %173 = arith.addf %170, %172 : vector<8x64xf32>
    %174 = arith.mulf %173, %173 : vector<8x64xf32>
    %c0_180 = arith.constant 0 : index
    %c0_181 = arith.constant 0 : index
    %175 = vector.load %arg18[%c0_180, %c0_181] : memref<64x64xf32, #tpu.memory_space<vmem>>, vector<64x64xf32>
    %cst_182 = arith.constant dense<0.000000e+00> : vector<8x64xf32>
    %176 = tpu.matmul %174, %175, %cst_182 {dimension_numbers = #tpu.dot_dimension_numbers<[1], [0], [0], [1], [0, 0, 1, 1], [], []>} : vector<8x64xf32>, vector<64x64xf32>, vector<8x64xf32> -> vector<8x64xf32>
    %c0_183 = arith.constant 0 : index
    %c0_184 = arith.constant 0 : index
    %177 = vector.load %arg19[%c0_183, %c0_184] : memref<1x64xf32, #tpu.memory_space<vmem>>, vector<1x64xf32>
    %178 = vector.broadcast %177 : vector<1x64xf32> to vector<8x64xf32>
    %179 = arith.addf %176, %178 : vector<8x64xf32>
    %180 = math.sqrt %179 : vector<8x64xf32>
    %181 = arith.mulf %173, %180 : vector<8x64xf32>
    %cst_185 = arith.constant 0.000000e+00 : f32
    %182 = vector.broadcast %cst_185 : f32 to vector<16x128xf32>
    %c0_186 = arith.constant 0 : index
    %c0_187 = arith.constant 0 : index
    %c0_188 = arith.constant 0 : index
    %183 = vector.load %arg20[%c0_186, %c0_187, %c0_188] : memref<5x16x8xf32, #tpu.memory_space<vmem>>, vector<1x16x8xf32>
    %184 = vector.shape_cast %183 : vector<1x16x8xf32> to vector<16x8xf32>
    %cst_189 = arith.constant dense<0.000000e+00> : vector<16x64xf32>
    %185 = tpu.matmul %184, %181, %cst_189 {dimension_numbers = #tpu.dot_dimension_numbers<[1], [0], [0], [1], [0, 0, 1, 1], [], []>} : vector<16x8xf32>, vector<8x64xf32>, vector<16x64xf32> -> vector<16x64xf32>
    %c0_190 = arith.constant 0 : index
    %c0_191 = arith.constant 0 : index
    %c0_192 = arith.constant 0 : index
    %186 = vector.load %arg21[%c0_190, %c0_191, %c0_192] : memref<5x64x128xf32, #tpu.memory_space<vmem>>, vector<1x64x128xf32>
    %187 = vector.shape_cast %186 : vector<1x64x128xf32> to vector<64x128xf32>
    %cst_193 = arith.constant dense<0.000000e+00> : vector<16x128xf32>
    %188 = tpu.matmul %185, %187, %cst_193 {dimension_numbers = #tpu.dot_dimension_numbers<[1], [0], [0], [1], [0, 0, 1, 1], [], []>} : vector<16x64xf32>, vector<64x128xf32>, vector<16x128xf32> -> vector<16x128xf32>
    %189 = arith.addf %182, %188 : vector<16x128xf32>
    %c1_194 = arith.constant 1 : index
    %c0_195 = arith.constant 0 : index
    %c0_196 = arith.constant 0 : index
    %190 = vector.load %arg20[%c1_194, %c0_195, %c0_196] : memref<5x16x8xf32, #tpu.memory_space<vmem>>, vector<1x16x8xf32>
    %191 = vector.shape_cast %190 : vector<1x16x8xf32> to vector<16x8xf32>
    %cst_197 = arith.constant dense<0.000000e+00> : vector<16x64xf32>
    %192 = tpu.matmul %191, %181, %cst_197 {dimension_numbers = #tpu.dot_dimension_numbers<[1], [0], [0], [1], [0, 0, 1, 1], [], []>} : vector<16x8xf32>, vector<8x64xf32>, vector<16x64xf32> -> vector<16x64xf32>
    %c1_198 = arith.constant 1 : index
    %c0_199 = arith.constant 0 : index
    %c0_200 = arith.constant 0 : index
    %193 = vector.load %arg21[%c1_198, %c0_199, %c0_200] : memref<5x64x128xf32, #tpu.memory_space<vmem>>, vector<1x64x128xf32>
    %194 = vector.shape_cast %193 : vector<1x64x128xf32> to vector<64x128xf32>
    %cst_201 = arith.constant dense<0.000000e+00> : vector<16x128xf32>
    %195 = tpu.matmul %192, %194, %cst_201 {dimension_numbers = #tpu.dot_dimension_numbers<[1], [0], [0], [1], [0, 0, 1, 1], [], []>} : vector<16x64xf32>, vector<64x128xf32>, vector<16x128xf32> -> vector<16x128xf32>
    %196 = arith.addf %189, %195 : vector<16x128xf32>
    %c2_202 = arith.constant 2 : index
    %c0_203 = arith.constant 0 : index
    %c0_204 = arith.constant 0 : index
    %197 = vector.load %arg20[%c2_202, %c0_203, %c0_204] : memref<5x16x8xf32, #tpu.memory_space<vmem>>, vector<1x16x8xf32>
    %198 = vector.shape_cast %197 : vector<1x16x8xf32> to vector<16x8xf32>
    %cst_205 = arith.constant dense<0.000000e+00> : vector<16x64xf32>
    %199 = tpu.matmul %198, %181, %cst_205 {dimension_numbers = #tpu.dot_dimension_numbers<[1], [0], [0], [1], [0, 0, 1, 1], [], []>} : vector<16x8xf32>, vector<8x64xf32>, vector<16x64xf32> -> vector<16x64xf32>
    %c2_206 = arith.constant 2 : index
    %c0_207 = arith.constant 0 : index
    %c0_208 = arith.constant 0 : index
    %200 = vector.load %arg21[%c2_206, %c0_207, %c0_208] : memref<5x64x128xf32, #tpu.memory_space<vmem>>, vector<1x64x128xf32>
    %201 = vector.shape_cast %200 : vector<1x64x128xf32> to vector<64x128xf32>
    %cst_209 = arith.constant dense<0.000000e+00> : vector<16x128xf32>
    %202 = tpu.matmul %199, %201, %cst_209 {dimension_numbers = #tpu.dot_dimension_numbers<[1], [0], [0], [1], [0, 0, 1, 1], [], []>} : vector<16x64xf32>, vector<64x128xf32>, vector<16x128xf32> -> vector<16x128xf32>
    %203 = arith.addf %196, %202 : vector<16x128xf32>
    %c3_210 = arith.constant 3 : index
    %c0_211 = arith.constant 0 : index
    %c0_212 = arith.constant 0 : index
    %204 = vector.load %arg20[%c3_210, %c0_211, %c0_212] : memref<5x16x8xf32, #tpu.memory_space<vmem>>, vector<1x16x8xf32>
    %205 = vector.shape_cast %204 : vector<1x16x8xf32> to vector<16x8xf32>
    %cst_213 = arith.constant dense<0.000000e+00> : vector<16x64xf32>
    %206 = tpu.matmul %205, %181, %cst_213 {dimension_numbers = #tpu.dot_dimension_numbers<[1], [0], [0], [1], [0, 0, 1, 1], [], []>} : vector<16x8xf32>, vector<8x64xf32>, vector<16x64xf32> -> vector<16x64xf32>
    %c3_214 = arith.constant 3 : index
    %c0_215 = arith.constant 0 : index
    %c0_216 = arith.constant 0 : index
    %207 = vector.load %arg21[%c3_214, %c0_215, %c0_216] : memref<5x64x128xf32, #tpu.memory_space<vmem>>, vector<1x64x128xf32>
    %208 = vector.shape_cast %207 : vector<1x64x128xf32> to vector<64x128xf32>
    %cst_217 = arith.constant dense<0.000000e+00> : vector<16x128xf32>
    %209 = tpu.matmul %206, %208, %cst_217 {dimension_numbers = #tpu.dot_dimension_numbers<[1], [0], [0], [1], [0, 0, 1, 1], [], []>} : vector<16x64xf32>, vector<64x128xf32>, vector<16x128xf32> -> vector<16x128xf32>
    %210 = arith.addf %203, %209 : vector<16x128xf32>
    %c4_218 = arith.constant 4 : index
    %c0_219 = arith.constant 0 : index
    %c0_220 = arith.constant 0 : index
    %211 = vector.load %arg20[%c4_218, %c0_219, %c0_220] : memref<5x16x8xf32, #tpu.memory_space<vmem>>, vector<1x16x8xf32>
    %212 = vector.shape_cast %211 : vector<1x16x8xf32> to vector<16x8xf32>
    %cst_221 = arith.constant dense<0.000000e+00> : vector<16x64xf32>
    %213 = tpu.matmul %212, %181, %cst_221 {dimension_numbers = #tpu.dot_dimension_numbers<[1], [0], [0], [1], [0, 0, 1, 1], [], []>} : vector<16x8xf32>, vector<8x64xf32>, vector<16x64xf32> -> vector<16x64xf32>
    %c4_222 = arith.constant 4 : index
    %c0_223 = arith.constant 0 : index
    %c0_224 = arith.constant 0 : index
    %214 = vector.load %arg21[%c4_222, %c0_223, %c0_224] : memref<5x64x128xf32, #tpu.memory_space<vmem>>, vector<1x64x128xf32>
    %215 = vector.shape_cast %214 : vector<1x64x128xf32> to vector<64x128xf32>
    %cst_225 = arith.constant dense<0.000000e+00> : vector<16x128xf32>
    %216 = tpu.matmul %213, %215, %cst_225 {dimension_numbers = #tpu.dot_dimension_numbers<[1], [0], [0], [1], [0, 0, 1, 1], [], []>} : vector<16x64xf32>, vector<64x128xf32>, vector<16x128xf32> -> vector<16x128xf32>
    %217 = arith.addf %210, %216 : vector<16x128xf32>
    %c0_226 = arith.constant 0 : index
    %c0_227 = arith.constant 0 : index
    %218 = vector.load %arg22[%c0_226, %c0_227] : memref<1x128xf32, #tpu.memory_space<vmem>>, vector<1x128xf32>
    %219 = vector.broadcast %218 : vector<1x128xf32> to vector<16x128xf32>
    %220 = arith.addf %217, %219 : vector<16x128xf32>
    %221 = arith.mulf %220, %220 : vector<16x128xf32>
    %c0_228 = arith.constant 0 : index
    %c0_229 = arith.constant 0 : index
    %222 = vector.load %arg23[%c0_228, %c0_229] : memref<128x128xf32, #tpu.memory_space<vmem>>, vector<128x128xf32>
    %cst_230 = arith.constant dense<0.000000e+00> : vector<16x128xf32>
    %223 = tpu.matmul %221, %222, %cst_230 {dimension_numbers = #tpu.dot_dimension_numbers<[1], [0], [0], [1], [0, 0, 1, 1], [], []>} : vector<16x128xf32>, vector<128x128xf32>, vector<16x128xf32> -> vector<16x128xf32>
    %c0_231 = arith.constant 0 : index
    %c0_232 = arith.constant 0 : index
    %224 = vector.load %arg24[%c0_231, %c0_232] : memref<1x128xf32, #tpu.memory_space<vmem>>, vector<1x128xf32>
    %225 = vector.broadcast %224 : vector<1x128xf32> to vector<16x128xf32>
    %226 = arith.addf %223, %225 : vector<16x128xf32>
    %227 = math.sqrt %226 : vector<16x128xf32>
    %228 = arith.mulf %220, %227 : vector<16x128xf32>
    %cst_233 = arith.constant 0.000000e+00 : f32
    %229 = vector.broadcast %cst_233 : f32 to vector<32x64xf32>
    %c0_234 = arith.constant 0 : index
    %c0_235 = arith.constant 0 : index
    %c0_236 = arith.constant 0 : index
    %230 = vector.load %arg25[%c0_234, %c0_235, %c0_236] : memref<5x32x16xf32, #tpu.memory_space<vmem>>, vector<1x32x16xf32>
    %231 = vector.shape_cast %230 : vector<1x32x16xf32> to vector<32x16xf32>
    %cst_237 = arith.constant dense<0.000000e+00> : vector<32x128xf32>
    %232 = tpu.matmul %231, %228, %cst_237 {dimension_numbers = #tpu.dot_dimension_numbers<[1], [0], [0], [1], [0, 0, 1, 1], [], []>} : vector<32x16xf32>, vector<16x128xf32>, vector<32x128xf32> -> vector<32x128xf32>
    %c0_238 = arith.constant 0 : index
    %c0_239 = arith.constant 0 : index
    %c0_240 = arith.constant 0 : index
    %233 = vector.load %arg26[%c0_238, %c0_239, %c0_240] : memref<5x128x64xf32, #tpu.memory_space<vmem>>, vector<1x128x64xf32>
    %234 = vector.shape_cast %233 : vector<1x128x64xf32> to vector<128x64xf32>
    %cst_241 = arith.constant dense<0.000000e+00> : vector<32x64xf32>
    %235 = tpu.matmul %232, %234, %cst_241 {dimension_numbers = #tpu.dot_dimension_numbers<[1], [0], [0], [1], [0, 0, 1, 1], [], []>} : vector<32x128xf32>, vector<128x64xf32>, vector<32x64xf32> -> vector<32x64xf32>
    %236 = arith.addf %229, %235 : vector<32x64xf32>
    %c1_242 = arith.constant 1 : index
    %c0_243 = arith.constant 0 : index
    %c0_244 = arith.constant 0 : index
    %237 = vector.load %arg25[%c1_242, %c0_243, %c0_244] : memref<5x32x16xf32, #tpu.memory_space<vmem>>, vector<1x32x16xf32>
    %238 = vector.shape_cast %237 : vector<1x32x16xf32> to vector<32x16xf32>
    %cst_245 = arith.constant dense<0.000000e+00> : vector<32x128xf32>
    %239 = tpu.matmul %238, %228, %cst_245 {dimension_numbers = #tpu.dot_dimension_numbers<[1], [0], [0], [1], [0, 0, 1, 1], [], []>} : vector<32x16xf32>, vector<16x128xf32>, vector<32x128xf32> -> vector<32x128xf32>
    %c1_246 = arith.constant 1 : index
    %c0_247 = arith.constant 0 : index
    %c0_248 = arith.constant 0 : index
    %240 = vector.load %arg26[%c1_246, %c0_247, %c0_248] : memref<5x128x64xf32, #tpu.memory_space<vmem>>, vector<1x128x64xf32>
    %241 = vector.shape_cast %240 : vector<1x128x64xf32> to vector<128x64xf32>
    %cst_249 = arith.constant dense<0.000000e+00> : vector<32x64xf32>
    %242 = tpu.matmul %239, %241, %cst_249 {dimension_numbers = #tpu.dot_dimension_numbers<[1], [0], [0], [1], [0, 0, 1, 1], [], []>} : vector<32x128xf32>, vector<128x64xf32>, vector<32x64xf32> -> vector<32x64xf32>
    %243 = arith.addf %236, %242 : vector<32x64xf32>
    %c2_250 = arith.constant 2 : index
    %c0_251 = arith.constant 0 : index
    %c0_252 = arith.constant 0 : index
    %244 = vector.load %arg25[%c2_250, %c0_251, %c0_252] : memref<5x32x16xf32, #tpu.memory_space<vmem>>, vector<1x32x16xf32>
    %245 = vector.shape_cast %244 : vector<1x32x16xf32> to vector<32x16xf32>
    %cst_253 = arith.constant dense<0.000000e+00> : vector<32x128xf32>
    %246 = tpu.matmul %245, %228, %cst_253 {dimension_numbers = #tpu.dot_dimension_numbers<[1], [0], [0], [1], [0, 0, 1, 1], [], []>} : vector<32x16xf32>, vector<16x128xf32>, vector<32x128xf32> -> vector<32x128xf32>
    %c2_254 = arith.constant 2 : index
    %c0_255 = arith.constant 0 : index
    %c0_256 = arith.constant 0 : index
    %247 = vector.load %arg26[%c2_254, %c0_255, %c0_256] : memref<5x128x64xf32, #tpu.memory_space<vmem>>, vector<1x128x64xf32>
    %248 = vector.shape_cast %247 : vector<1x128x64xf32> to vector<128x64xf32>
    %cst_257 = arith.constant dense<0.000000e+00> : vector<32x64xf32>
    %249 = tpu.matmul %246, %248, %cst_257 {dimension_numbers = #tpu.dot_dimension_numbers<[1], [0], [0], [1], [0, 0, 1, 1], [], []>} : vector<32x128xf32>, vector<128x64xf32>, vector<32x64xf32> -> vector<32x64xf32>
    %250 = arith.addf %243, %249 : vector<32x64xf32>
    %c3_258 = arith.constant 3 : index
    %c0_259 = arith.constant 0 : index
    %c0_260 = arith.constant 0 : index
    %251 = vector.load %arg25[%c3_258, %c0_259, %c0_260] : memref<5x32x16xf32, #tpu.memory_space<vmem>>, vector<1x32x16xf32>
    %252 = vector.shape_cast %251 : vector<1x32x16xf32> to vector<32x16xf32>
    %cst_261 = arith.constant dense<0.000000e+00> : vector<32x128xf32>
    %253 = tpu.matmul %252, %228, %cst_261 {dimension_numbers = #tpu.dot_dimension_numbers<[1], [0], [0], [1], [0, 0, 1, 1], [], []>} : vector<32x16xf32>, vector<16x128xf32>, vector<32x128xf32> -> vector<32x128xf32>
    %c3_262 = arith.constant 3 : index
    %c0_263 = arith.constant 0 : index
    %c0_264 = arith.constant 0 : index
    %254 = vector.load %arg26[%c3_262, %c0_263, %c0_264] : memref<5x128x64xf32, #tpu.memory_space<vmem>>, vector<1x128x64xf32>
    %255 = vector.shape_cast %254 : vector<1x128x64xf32> to vector<128x64xf32>
    %cst_265 = arith.constant dense<0.000000e+00> : vector<32x64xf32>
    %256 = tpu.matmul %253, %255, %cst_265 {dimension_numbers = #tpu.dot_dimension_numbers<[1], [0], [0], [1], [0, 0, 1, 1], [], []>} : vector<32x128xf32>, vector<128x64xf32>, vector<32x64xf32> -> vector<32x64xf32>
    %257 = arith.addf %250, %256 : vector<32x64xf32>
    %c4_266 = arith.constant 4 : index
    %c0_267 = arith.constant 0 : index
    %c0_268 = arith.constant 0 : index
    %258 = vector.load %arg25[%c4_266, %c0_267, %c0_268] : memref<5x32x16xf32, #tpu.memory_space<vmem>>, vector<1x32x16xf32>
    %259 = vector.shape_cast %258 : vector<1x32x16xf32> to vector<32x16xf32>
    %cst_269 = arith.constant dense<0.000000e+00> : vector<32x128xf32>
    %260 = tpu.matmul %259, %228, %cst_269 {dimension_numbers = #tpu.dot_dimension_numbers<[1], [0], [0], [1], [0, 0, 1, 1], [], []>} : vector<32x16xf32>, vector<16x128xf32>, vector<32x128xf32> -> vector<32x128xf32>
    %c4_270 = arith.constant 4 : index
    %c0_271 = arith.constant 0 : index
    %c0_272 = arith.constant 0 : index
    %261 = vector.load %arg26[%c4_270, %c0_271, %c0_272] : memref<5x128x64xf32, #tpu.memory_space<vmem>>, vector<1x128x64xf32>
    %262 = vector.shape_cast %261 : vector<1x128x64xf32> to vector<128x64xf32>
    %cst_273 = arith.constant dense<0.000000e+00> : vector<32x64xf32>
    %263 = tpu.matmul %260, %262, %cst_273 {dimension_numbers = #tpu.dot_dimension_numbers<[1], [0], [0], [1], [0, 0, 1, 1], [], []>} : vector<32x128xf32>, vector<128x64xf32>, vector<32x64xf32> -> vector<32x64xf32>
    %264 = arith.addf %257, %263 : vector<32x64xf32>
    %c0_274 = arith.constant 0 : index
    %c0_275 = arith.constant 0 : index
    %265 = vector.load %arg27[%c0_274, %c0_275] : memref<1x64xf32, #tpu.memory_space<vmem>>, vector<1x64xf32>
    %266 = vector.broadcast %265 : vector<1x64xf32> to vector<32x64xf32>
    %267 = arith.addf %264, %266 : vector<32x64xf32>
    %c0_276 = arith.constant 0 : index
    %c0_277 = arith.constant 0 : index
    %268 = vector.load %arg29[%c0_276, %c0_277] : memref<32x64xf32, #tpu.memory_space<vmem>>, vector<32x64xf32>
    tpu.vector_store %arg29[%c0_276, %c0_277], %267 {strides = array<i32>} : memref<32x64xf32, #tpu.memory_space<vmem>>, vector<32x64xf32>,
    return
  }
  func.func @transform_0(%arg0: i32) -> (i32, i32) {
    %c0_i32 = arith.constant 0 : i32
    %c0_i32_0 = arith.constant 0 : i32
    %c0_i32_1 = arith.constant 0 : i32
    return %c0_i32, %c0_i32_0 : i32, i32
  }
  func.func @transform_1(%arg0: i32) -> (i32, i32, i32) {
    %c0_i32 = arith.constant 0 : i32
    %c0_i32_0 = arith.constant 0 : i32
    %c0_i32_1 = arith.constant 0 : i32
    %c0_i32_2 = arith.constant 0 : i32
    return %c0_i32, %c0_i32_0, %c0_i32_1 : i32, i32, i32
  }
  func.func @transform_2(%arg0: i32) -> (i32, i32, i32) {
    %c0_i32 = arith.constant 0 : i32
    %c0_i32_0 = arith.constant 0 : i32
    %c0_i32_1 = arith.constant 0 : i32
    %c0_i32_2 = arith.constant 0 : i32
    return %c0_i32, %c0_i32_0, %c0_i32_1 : i32, i32, i32
  }
  func.func @transform_3(%arg0: i32) -> (i32, i32) {
    %c0_i32 = arith.constant 0 : i32
    %c0_i32_0 = arith.constant 0 : i32
    %c0_i32_1 = arith.constant 0 : i32
    return %c0_i32, %c0_i32_0 : i32, i32
  }
  func.func @transform_4(%arg0: i32) -> (i32, i32) {
    %c0_i32 = arith.constant 0 : i32
    %c0_i32_0 = arith.constant 0 : i32
    %c0_i32_1 = arith.constant 0 : i32
    return %c0_i32, %c0_i32_0 : i32, i32
  }
  func.func @transform_5(%arg0: i32) -> (i32, i32) {
    %c0_i32 = arith.constant 0 : i32
    %c0_i32_0 = arith.constant 0 : i32
    %c0_i32_1 = arith.constant 0 : i32
    return %c0_i32, %c0_i32_0 : i32, i32
  }
  func.func @transform_6(%arg0: i32) -> (i32, i32, i32) {
    %c0_i32 = arith.constant 0 : i32
    %c0_i32_0 = arith.constant 0 : i32
    %c0_i32_1 = arith.constant 0 : i32
    %c0_i32_2 = arith.constant 0 : i32
    return %c0_i32, %c0_i32_0, %c0_i32_1 : i32, i32, i32
  }
  func.func @transform_7(%arg0: i32) -> (i32, i32, i32) {
    %c0_i32 = arith.constant 0 : i32
    %c0_i32_0 = arith.constant 0 : i32
    %c0_i32_1 = arith.constant 0 : i32
    %c0_i32_2 = arith.constant 0 : i32
    return %c0_i32, %c0_i32_0, %c0_i32_1 : i32, i32, i32
  }
  func.func @transform_8(%arg0: i32) -> (i32, i32) {
    %c0_i32 = arith.constant 0 : i32
    %c0_i32_0 = arith.constant 0 : i32
    %c0_i32_1 = arith.constant 0 : i32
    return %c0_i32, %c0_i32_0 : i32, i32
  }
  func.func @transform_9(%arg0: i32) -> (i32, i32) {
    %c0_i32 = arith.constant 0 : i32
    %c0_i32_0 = arith.constant 0 : i32
    %c0_i32_1 = arith.constant 0 : i32
    return %c0_i32, %c0_i32_0 : i32, i32
  }
  func.func @transform_10(%arg0: i32) -> (i32, i32) {
    %c0_i32 = arith.constant 0 : i32
    %c0_i32_0 = arith.constant 0 : i32
    %c0_i32_1 = arith.constant 0 : i32
    return %c0_i32, %c0_i32_0 : i32, i32
  }
  func.func @transform_11(%arg0: i32) -> (i32, i32, i32) {
    %c0_i32 = arith.constant 0 : i32
    %c0_i32_0 = arith.constant 0 : i32
    %c0_i32_1 = arith.constant 0 : i32
    %c0_i32_2 = arith.constant 0 : i32
    return %c0_i32, %c0_i32_0, %c0_i32_1 : i32, i32, i32
  }
  func.func @transform_12(%arg0: i32) -> (i32, i32, i32) {
    %c0_i32 = arith.constant 0 : i32
    %c0_i32_0 = arith.constant 0 : i32
    %c0_i32_1 = arith.constant 0 : i32
    %c0_i32_2 = arith.constant 0 : i32
    return %c0_i32, %c0_i32_0, %c0_i32_1 : i32, i32, i32
  }
  func.func @transform_13(%arg0: i32) -> (i32, i32) {
    %c0_i32 = arith.constant 0 : i32
    %c0_i32_0 = arith.constant 0 : i32
    %c0_i32_1 = arith.constant 0 : i32
    return %c0_i32, %c0_i32_0 : i32, i32
  }
  func.func @transform_14(%arg0: i32) -> (i32, i32, i32) {
    %c0_i32 = arith.constant 0 : i32
    %c0_i32_0 = arith.constant 0 : i32
    %c0_i32_1 = arith.constant 0 : i32
    %c0_i32_2 = arith.constant 0 : i32
    return %c0_i32, %c0_i32_0, %c0_i32_1 : i32, i32, i32
  }
  func.func @transform_15(%arg0: i32) -> (i32, i32, i32) {
    %c0_i32 = arith.constant 0 : i32
    %c0_i32_0 = arith.constant 0 : i32
    %c0_i32_1 = arith.constant 0 : i32
    %c0_i32_2 = arith.constant 0 : i32
    return %c0_i32, %c0_i32_0, %c0_i32_1 : i32, i32, i32
  }
  func.func @transform_16(%arg0: i32) -> (i32, i32) {
    %c0_i32 = arith.constant 0 : i32
    %c0_i32_0 = arith.constant 0 : i32
    %c0_i32_1 = arith.constant 0 : i32
    return %c0_i32, %c0_i32_0 : i32, i32
  }
  func.func @transform_17(%arg0: i32) -> (i32, i32) {
    %c0_i32 = arith.constant 0 : i32
    %c0_i32_0 = arith.constant 0 : i32
    %c0_i32_1 = arith.constant 0 : i32
    return %c0_i32, %c0_i32_0 : i32, i32
  }
  func.func @transform_18(%arg0: i32) -> (i32, i32) {
    %c0_i32 = arith.constant 0 : i32
    %c0_i32_0 = arith.constant 0 : i32
    %c0_i32_1 = arith.constant 0 : i32
    return %c0_i32, %c0_i32_0 : i32, i32
  }
  func.func @transform_19(%arg0: i32) -> (i32, i32, i32) {
    %c0_i32 = arith.constant 0 : i32
    %c0_i32_0 = arith.constant 0 : i32
    %c0_i32_1 = arith.constant 0 : i32
    %c0_i32_2 = arith.constant 0 : i32
    return %c0_i32, %c0_i32_0, %c0_i32_1 : i32, i32, i32
  }
  func.func @transform_20(%arg0: i32) -> (i32, i32, i32) {
    %c0_i32 = arith.constant 0 : i32
    %c0_i32_0 = arith.constant 0 : i32
    %c0_i32_1 = arith.constant 0 : i32
    %c0_i32_2 = arith.constant 0 : i32
    return %c0_i32, %c0_i32_0, %c0_i32_1 : i32, i32, i32
  }
  func.func @transform_21(%arg0: i32) -> (i32, i32) {
    %c0_i32 = arith.constant 0 : i32
    %c0_i32_0 = arith.constant 0 : i32
    %c0_i32_1 = arith.constant 0 : i32
    return %c0_i32, %c0_i32_0 : i32, i32
  }
  func.func @transform_22(%arg0: i32) -> (i32, i32) {
    %c0_i32 = arith.constant 0 : i32
    %c0_i32_0 = arith.constant 0 : i32
    %c0_i32_1 = arith.constant 0 : i32
    return %c0_i32, %c0_i32_0 : i32, i32
  }
  func.func @transform_23(%arg0: i32) -> (i32, i32) {
    %c0_i32 = arith.constant 0 : i32
    %c0_i32_0 = arith.constant 0 : i32
    %c0_i32_1 = arith.constant 0 : i32
    return %c0_i32, %c0_i32_0 : i32, i32
  }
  func.func @transform_24(%arg0: i32) -> (i32, i32, i32) {
    %c0_i32 = arith.constant 0 : i32
    %c0_i32_0 = arith.constant 0 : i32
    %c0_i32_1 = arith.constant 0 : i32
    %c0_i32_2 = arith.constant 0 : i32
    return %c0_i32, %c0_i32_0, %c0_i32_1 : i32, i32, i32
  }
  func.func @transform_25(%arg0: i32) -> (i32, i32, i32) {
    %c0_i32 = arith.constant 0 : i32
    %c0_i32_0 = arith.constant 0 : i32
    %c0_i32_1 = arith.constant 0 : i32
    %c0_i32_2 = arith.constant 0 : i32
    return %c0_i32, %c0_i32_0, %c0_i32_1 : i32, i32, i32
  }
  func.func @transform_26(%arg0: i32) -> (i32, i32) {
    %c0_i32 = arith.constant 0 : i32
    %c0_i32_0 = arith.constant 0 : i32
    %c0_i32_1 = arith.constant 0 : i32
    return %c0_i32, %c0_i32_0 : i32, i32
  }
  func.func @transform_27(%arg0: i32) -> (i32, i32) {
    %c0_i32 = arith.constant 0 : i32
    %c0_i32_0 = arith.constant 0 : i32
    %c0_i32_1 = arith.constant 0 : i32
    return %c0_i32, %c0_i32_0 : i32, i32
  }
  func.func @transform_28(%arg0: i32) -> (i32, i32) {
    %c0_i32 = arith.constant 0 : i32
    %c0_i32_0 = arith.constant 0 : i32
    %c0_i32_1 = arith.constant 0 : i32
    return %c0_i32, %c0_i32_0 : i32, i32
  }
}

</mosaic_0001>

<llo_original>
// kernel: sae_forward.1
$region0: #{sae_forward.1}
  #allocation0 [shape = 'u32[]', space=smem, size = 0x4, offset = 0x4, fixed_abs, tag = 'smem constant byte address 0x4 - core index']
  #allocation1 [shape = 'u32[144,128]{1,0:T(1,128)}', space=vmem, size = 0x12000, scoped, tag = 'internal scratch']
  %s0 = inlined_call_operand.vmem [shape: f32[32,64], index: 0, kind: input, shape index: {}]
  %s1 = inlined_call_operand.vmem [shape: f32[5,16,32], index: 1, kind: input, shape index: {}]
  %s2 = inlined_call_operand.vmem [shape: f32[5,64,128], index: 2, kind: input, shape index: {}]
  %s3 = inlined_call_operand.vmem [shape: f32[1,128], index: 3, kind: input, shape index: {}]
  %s4 = inlined_call_operand.vmem [shape: f32[128,128], index: 4, kind: input, shape index: {}]
  %s5 = inlined_call_operand.vmem [shape: f32[1,128], index: 5, kind: input, shape index: {}]
  %s6 = inlined_call_operand.vmem [shape: f32[5,8,16], index: 6, kind: input, shape index: {}]
  %s7 = inlined_call_operand.vmem [shape: f32[5,128,64], index: 7, kind: input, shape index: {}]
  %s8 = inlined_call_operand.vmem [shape: f32[1,64], index: 8, kind: input, shape index: {}]
  %s9 = inlined_call_operand.vmem [shape: f32[64,64], index: 9, kind: input, shape index: {}]
  %s10 = inlined_call_operand.vmem [shape: f32[1,64], index: 10, kind: input, shape index: {}]
  %s11 = inlined_call_operand.vmem [shape: f32[5,4,8], index: 11, kind: input, shape index: {}]
  %s12 = inlined_call_operand.vmem [shape: f32[5,64,32], index: 12, kind: input, shape index: {}]
  %s13 = inlined_call_operand.vmem [shape: f32[1,32], index: 13, kind: input, shape index: {}]
  %s14 = inlined_call_operand.vmem [shape: f32[5,8,4], index: 14, kind: input, shape index: {}]
  %s15 = inlined_call_operand.vmem [shape: f32[5,32,64], index: 15, kind: input, shape index: {}]
  %s16 = inlined_call_operand.vmem [shape: f32[1,64], index: 16, kind: input, shape index: {}]
  %s17 = inlined_call_operand.vmem [shape: f32[64,64], index: 17, kind: input, shape index: {}]
  %s18 = inlined_call_operand.vmem [shape: f32[1,64], index: 18, kind: input, shape index: {}]
  %s19 = inlined_call_operand.vmem [shape: f32[5,16,8], index: 19, kind: input, shape index: {}]
  %s20 = inlined_call_operand.vmem [shape: f32[5,64,128], index: 20, kind: input, shape index: {}]
  %s21 = inlined_call_operand.vmem [shape: f32[1,128], index: 21, kind: input, shape index: {}]
  %s22 = inlined_call_operand.vmem [shape: f32[128,128], index: 22, kind: input, shape index: {}]
  %s23 = inlined_call_operand.vmem [shape: f32[1,128], index: 23, kind: input, shape index: {}]
  %s24 = inlined_call_operand.vmem [shape: f32[5,32,16], index: 24, kind: input, shape index: {}]
  %s25 = inlined_call_operand.vmem [shape: f32[5,128,64], index: 25, kind: input, shape index: {}]
  %s26 = inlined_call_operand.vmem [shape: f32[1,64], index: 26, kind: input, shape index: {}]
  %s27 = inlined_call_operand.vmem [shape: f32[4,32], index: 27, kind: output, shape index: {0}]
  %s28 = inlined_call_operand.vmem [shape: f32[32,64], index: 28, kind: output, shape index: {1}]
  %29 = xla_tuple %s27, %s28
  %s30 = sld [smem:[#allocation0]]
  $region126: #{sae_forward.1} parent=0
    _
  %s32 = ssub.s32 1, %s30
  %s33 = scalar_select 0, %s32, %s30
  // Predicated region
  $region2: #{sae_forward.1} parent=0 // pred_check
    _
  $region3: #{sae_forward.1} parent=0 // pred_check_branch
    %35 = sbr.rel (0) target = $region5
  $region4: #{sae_forward.1} parent=0 // pred_region
    _
  $region5: #{sae_forward.1} parent=0 // pred_fallthru
    _
  // Predicated region
  $region6: #{sae_forward.1} parent=0 // pred_check
    _
  $region7: #{sae_forward.1} parent=0 // pred_check_branch
    %37 = sbr.rel (0) target = $region9
  $region8: #{sae_forward.1} parent=0 // pred_region
    _
  $region9: #{sae_forward.1} parent=0 // pred_fallthru
    _
  // Predicated region
  $region10: #{sae_forward.1} parent=0 // pred_check
    _
  $region11: #{sae_forward.1} parent=0 // pred_check_branch
    %39 = sbr.rel (0) target = $region13
  $region12: #{sae_forward.1} parent=0 // pred_region
    _
  $region13: #{sae_forward.1} parent=0 // pred_fallthru
    _
  // Predicated region
  $region14: #{sae_forward.1} parent=0 // pred_check
    _
  $region15: #{sae_forward.1} parent=0 // pred_check_branch
    %41 = sbr.rel (0) target = $region17
  $region16: #{sae_forward.1} parent=0 // pred_region
    _
  $region17: #{sae_forward.1} parent=0 // pred_fallthru
    _
  // Predicated region
  $region18: #{sae_forward.1} parent=0 // pred_check
    _
  $region19: #{sae_forward.1} parent=0 // pred_check_branch
    %43 = sbr.rel (0) target = $region21
  $region20: #{sae_forward.1} parent=0 // pred_region
    _
  $region21: #{sae_forward.1} parent=0 // pred_fallthru
    _
  // Predicated region
  $region22: #{sae_forward.1} parent=0 // pred_check
    _
  $region23: #{sae_forward.1} parent=0 // pred_check_branch
    %45 = sbr.rel (0) target = $region25
  $region24: #{sae_forward.1} parent=0 // pred_region
    _
  $region25: #{sae_forward.1} parent=0 // pred_fallthru
    _
  // Predicated region
  $region26: #{sae_forward.1} parent=0 // pred_check
    _
  $region27: #{sae_forward.1} parent=0 // pred_check_branch
    %47 = sbr.rel (0) target = $region29
  $region28: #{sae_forward.1} parent=0 // pred_region
    _
  $region29: #{sae_forward.1} parent=0 // pred_fallthru
    _
  // Predicated region
  $region30: #{sae_forward.1} parent=0 // pred_check
    _
  $region31: #{sae_forward.1} parent=0 // pred_check_branch
    %49 = sbr.rel (0) target = $region33
  $region32: #{sae_forward.1} parent=0 // pred_region
    _
  $region33: #{sae_forward.1} parent=0 // pred_fallthru
    _
  // Predicated region
  $region34: #{sae_forward.1} parent=0 // pred_check
    _
  $region35: #{sae_forward.1} parent=0 // pred_check_branch
    %51 = sbr.rel (0) target = $region37
  $region36: #{sae_forward.1} parent=0 // pred_region
    _
  $region37: #{sae_forward.1} parent=0 // pred_fallthru
    _
  // Predicated region
  $region38: #{sae_forward.1} parent=0 // pred_check
    _
  $region39: #{sae_forward.1} parent=0 // pred_check_branch
    %53 = sbr.rel (0) target = $region41
  $region40: #{sae_forward.1} parent=0 // pred_region
    _
  $region41: #{sae_forward.1} parent=0 // pred_fallthru
    _
  // Predicated region
  $region42: #{sae_forward.1} parent=0 // pred_check
    _
  $region43: #{sae_forward.1} parent=0 // pred_check_branch
    %55 = sbr.rel (0) target = $region45
  $region44: #{sae_forward.1} parent=0 // pred_region
    _
  $region45: #{sae_forward.1} parent=0 // pred_fallthru
    _
  // Predicated region
  $region46: #{sae_forward.1} parent=0 // pred_check
    _
  $region47: #{sae_forward.1} parent=0 // pred_check_branch
    %57 = sbr.rel (0) target = $region49
  $region48: #{sae_forward.1} parent=0 // pred_region
    _
  $region49: #{sae_forward.1} parent=0 // pred_fallthru
    _
  // Predicated region
  $region50: #{sae_forward.1} parent=0 // pred_check
    _
  $region51: #{sae_forward.1} parent=0 // pred_check_branch
    %59 = sbr.rel (0) target = $region53
  $region52: #{sae_forward.1} parent=0 // pred_region
    _
  $region53: #{sae_forward.1} parent=0 // pred_fallthru
    _
  // Predicated region
  $region54: #{sae_forward.1} parent=0 // pred_check
    _
  $region55: #{sae_forward.1} parent=0 // pred_check_branch
    %61 = sbr.rel (0) target = $region57
  $region56: #{sae_forward.1} parent=0 // pred_region
    _
  $region57: #{sae_forward.1} parent=0 // pred_fallthru
    _
  // Predicated region
  $region58: #{sae_forward.1} parent=0 // pred_check
    _
  $region59: #{sae_forward.1} parent=0 // pred_check_branch
    %63 = sbr.rel (0) target = $region61
  $region60: #{sae_forward.1} parent=0 // pred_region
    _
  $region61: #{sae_forward.1} parent=0 // pred_fallthru
    _
  // Predicated region
  $region62: #{sae_forward.1} parent=0 // pred_check
    _
  $region63: #{sae_forward.1} parent=0 // pred_check_branch
    %65 = sbr.rel (0) target = $region65
  $region64: #{sae_forward.1} parent=0 // pred_region
    _
  $region65: #{sae_forward.1} parent=0 // pred_fallthru
    _
  // Predicated region
  $region66: #{sae_forward.1} parent=0 // pred_check
    _
  $region67: #{sae_forward.1} parent=0 // pred_check_branch
    %67 = sbr.rel (0) target = $region69
  $region68: #{sae_forward.1} parent=0 // pred_region
    _
  $region69: #{sae_forward.1} parent=0 // pred_fallthru
    _
  // Predicated region
  $region70: #{sae_forward.1} parent=0 // pred_check
    _
  $region71: #{sae_forward.1} parent=0 // pred_check_branch
    %69 = sbr.rel (0) target = $region73
  $region72: #{sae_forward.1} parent=0 // pred_region
    _
  $region73: #{sae_forward.1} parent=0 // pred_fallthru
    _
  // Predicated region
  $region74: #{sae_forward.1} parent=0 // pred_check
    _
  $region75: #{sae_forward.1} parent=0 // pred_check_branch
    %71 = sbr.rel (0) target = $region77
  $region76: #{sae_forward.1} parent=0 // pred_region
    _
  $region77: #{sae_forward.1} parent=0 // pred_fallthru
    _
  // Predicated region
  $region78: #{sae_forward.1} parent=0 // pred_check
    _
  $region79: #{sae_forward.1} parent=0 // pred_check_branch
    %73 = sbr.rel (0) target = $region81
  $region80: #{sae_forward.1} parent=0 // pred_region
    _
  $region81: #{sae_forward.1} parent=0 // pred_fallthru
    _
  // Predicated region
  $region82: #{sae_forward.1} parent=0 // pred_check
    _
  $region83: #{sae_forward.1} parent=0 // pred_check_branch
    %75 = sbr.rel (0) target = $region85
  $region84: #{sae_forward.1} parent=0 // pred_region
    _
  $region85: #{sae_forward.1} parent=0 // pred_fallthru
    _
  // Predicated region
  $region86: #{sae_forward.1} parent=0 // pred_check
    _
  $region87: #{sae_forward.1} parent=0 // pred_check_branch
    %77 = sbr.rel (0) target = $region89
  $region88: #{sae_forward.1} parent=0 // pred_region
    _
  $region89: #{sae_forward.1} parent=0 // pred_fallthru
    _
  // Predicated region
  $region90: #{sae_forward.1} parent=0 // pred_check
    _
  $region91: #{sae_forward.1} parent=0 // pred_check_branch
    %79 = sbr.rel (0) target = $region93
  $region92: #{sae_forward.1} parent=0 // pred_region
    _
  $region93: #{sae_forward.1} parent=0 // pred_fallthru
    _
  // Predicated region
  $region94: #{sae_forward.1} parent=0 // pred_check
    _
  $region95: #{sae_forward.1} parent=0 // pred_check_branch
    %81 = sbr.rel (0) target = $region97
  $region96: #{sae_forward.1} parent=0 // pred_region
    _
  $region97: #{sae_forward.1} parent=0 // pred_fallthru
    _
  // Predicated region
  $region98: #{sae_forward.1} parent=0 // pred_check
    _
  $region99: #{sae_forward.1} parent=0 // pred_check_branch
    %83 = sbr.rel (0) target = $region101
  $region100: #{sae_forward.1} parent=0 // pred_region
    _
  $region101: #{sae_forward.1} parent=0 // pred_fallthru
    _
  // Predicated region
  $region102: #{sae_forward.1} parent=0 // pred_check
    _
  $region103: #{sae_forward.1} parent=0 // pred_check_branch
    %85 = sbr.rel (0) target = $region105
  $region104: #{sae_forward.1} parent=0 // pred_region
    _
  $region105: #{sae_forward.1} parent=0 // pred_fallthru
    _
  // Predicated region
  $region106: #{sae_forward.1} parent=0 // pred_check
    _
  $region107: #{sae_forward.1} parent=0 // pred_check_branch
    %87 = sbr.rel (0) target = $region109
  $region108: #{sae_forward.1} parent=0 // pred_region
    _
  $region109: #{sae_forward.1} parent=0 // pred_fallthru
    _
  %v88 = vld [vmem:[%s0] sm:$0xff]
  %v89 = vld [vmem:[%s0 + $0x8] sm:$0xff]
  %v90 = vld [vmem:[%s0 + $0x10] sm:$0xff]
  %v91 = vld [vmem:[%s0 + $0x18] sm:$0xff]
  %v92 = vld [vmem:[%s1] sm:$0xff]
  %v93 = vld [vmem:[%s1 + $0x8] sm:$0xff]
  %vm94 = vcmask 261120
  %v96 = vsel %vm94, %v92, 0
  %v99 = vsel %vm94, %v93, 0
  %101 = vmatprep.subr.mxu0 0.0
  %102 = vmatpush1.msra.mxu0 %v88
  %103 = vmatprep.subr.mxu0 0.0
  %104 = vmatpush1.msra.mxu0 %v89
  %105 = vmatprep.subr.mxu0 0.0
  %106 = vmatpush1.msra.mxu0 %v90
  %107 = vmatprep.subr.mxu0 0.0
  %108 = vmatpush1.msra.mxu0 %v91
  %109 = vmatprep.subr.mxu0 0.0
  %110 = vmatpush1.msra.mxu0 0.0
  %111 = vmatprep.subr.mxu0 0.0
  %112 = vmatpush1.msra.mxu0 0.0
  %113 = vmatprep.subr.mxu0 0.0
  %114 = vmatpush1.msra.mxu0 0.0
  %115 = vmatprep.subr.mxu0 0.0
  %116 = vmatpush1.msra.mxu0 0.0
  %117 = vmatprep.subr.mxu0 0.0
  %118 = vmatpush1.msra.mxu0 0.0
  %119 = vmatprep.subr.mxu0 0.0
  %120 = vmatpush1.msra.mxu0 0.0
  %121 = vmatprep.subr.mxu0 0.0
  %122 = vmatpush1.msra.mxu0 0.0
  %123 = vmatprep.subr.mxu0 0.0
  %124 = vmatpush1.msra.mxu0 0.0
  %125 = vmatprep.subr.mxu0 0.0
  %126 = vmatpush1.msra.mxu0 0.0
  %127 = vmatprep.subr.mxu0 0.0
  %128 = vmatpush1.msra.mxu0 0.0
  %129 = vmatprep.subr.mxu0 0.0
  %130 = vmatpush1.msra.mxu0 0.0
  %131 = vmatprep.subr.mxu0 0.0
  %132 = vmatpush1.msra.mxu0 0.0
  %133 = vmatprep.subr.mxu0 0.0
  %134 = vmatpush1.msra.mxu0 0.0
  %135 = vmatprep.subr.mxu0 0.0
  %136 = vmatpush1.msra.mxu0 0.0
  %137 = vmatprep.subr.mxu0 0.0
  %138 = vmatpush1.msra.mxu0 0.0
  %139 = vmatprep.subr.mxu0 0.0
  %140 = vmatpush1.msra.mxu0 0.0
  %141 = vmatprep.subr.mxu0 0.0
  %142 = vmatpush1.msra.mxu0 0.0
  %143 = vmatprep.subr.mxu0 0.0
  %144 = vmatpush1.msra.mxu0 0.0
  %145 = vmatprep.subr.mxu0 0.0
  %146 = vmatpush1.msra.mxu0 0.0
  %147 = vmatprep.subr.mxu0 0.0
  %148 = vmatpush1.msra.mxu0 0.0
  %149 = vmatprep.subr.mxu0 0.0
  %150 = vmatpush1.msra.mxu0 0.0
  %151 = vmatprep.subr.mxu0 0.0
  %152 = vmatpush1.msra.mxu0 0.0
  %153 = vmatprep.subr.mxu0 0.0
  %154 = vmatpush1.msra.mxu0 0.0
  %155 = vmatprep.subr.mxu0 0.0
  %156 = vmatpush1.msra.mxu0 0.0
  %157 = vmatprep.subr.mxu0 0.0
  %158 = vmatpush1.msra.mxu0 0.0
  %159 = vmatprep.subr.mxu0 0.0
  %160 = vmatpush1.msra.mxu0 0.0
  %161 = vmatprep.subr.mxu0 0.0
  %162 = vmatpush1.msra.mxu0 0.0
  %163 = vmatprep.subr.mxu0 0.0
  %164 = vmatpush1.msra.mxu0 0.0
  %165 = vmatprep.mubr.f32.mxu0 0.0
  %166 = vmatmul.mubr.f32.gmra.mrb[0].mxu0 %v96
  %v167 = vpop.f32.mrb[0].mxu0
  %v168 = vadd.f32 0.0, %v167
  %v169 = vpop.f32.mrb[0].mxu0
  %170 = vmatprep.mubr.f32.mxu0 0.0
  %171 = vmatmul.mubr.f32.gmra.mrb[0].mxu0 %v99
  %v172 = vpop.f32.mrb[0].mxu0
  %v173 = vadd.f32 0.0, %v172
  %v174 = vpop.f32.mrb[0].mxu0
  %175 = vdwg.mxu0
  %v176 = vld [vmem:[%s2] sm:$0xff]
  %v177 = vld [vmem:[%s2 + $0x8] sm:$0xff]
  %v178 = vld [vmem:[%s2 + $0x10] sm:$0xff]
  %v179 = vld [vmem:[%s2 + $0x18] sm:$0xff]
  %v180 = vld [vmem:[%s2 + $0x20] sm:$0xff]
  %v181 = vld [vmem:[%s2 + $0x28] sm:$0xff]
  %v182 = vld [vmem:[%s2 + $0x30] sm:$0xff]
  %v183 = vld [vmem:[%s2 + $0x38] sm:$0xff]
  %s184 = scalar_lea.vmem %s1, 16
  %v185 = vld [vmem:[%s184] sm:$0xff]
  %v186 = vld [vmem:[%s184 + $0x8] sm:$0xff]
  %v188 = vsel %vm94, %v185, 0
  %v191 = vsel %vm94, %v186, 0
  %193 = vmatprep.subr.mxu0 0.0
  %194 = vmatpush1.msra.mxu0 %v88
  %195 = vmatprep.subr.mxu0 0.0
  %196 = vmatpush1.msra.mxu0 %v89
  %197 = vmatprep.subr.mxu0 0.0
  %198 = vmatpush1.msra.mxu0 %v90
  %199 = vmatprep.subr.mxu0 0.0
  %200 = vmatpush1.msra.mxu0 %v91
  %201 = vmatprep.subr.mxu0 0.0
  %202 = vmatpush1.msra.mxu0 0.0
  %203 = vmatprep.subr.mxu0 0.0
  %204 = vmatpush1.msra.mxu0 0.0
  %205 = vmatprep.subr.mxu0 0.0
  %206 = vmatpush1.msra.mxu0 0.0
  %207 = vmatprep.subr.mxu0 0.0
  %208 = vmatpush1.msra.mxu0 0.0
  %209 = vmatprep.subr.mxu0 0.0
  %210 = vmatpush1.msra.mxu0 0.0
  %211 = vmatprep.subr.mxu0 0.0
  %212 = vmatpush1.msra.mxu0 0.0
  %213 = vmatprep.subr.mxu0 0.0
  %214 = vmatpush1.msra.mxu0 0.0
  %215 = vmatprep.subr.mxu0 0.0
  %216 = vmatpush1.msra.mxu0 0.0
  %217 = vmatprep.subr.mxu0 0.0
  %218 = vmatpush1.msra.mxu0 0.0
  %219 = vmatprep.subr.mxu0 0.0
  %220 = vmatpush1.msra.mxu0 0.0
  %221 = vmatprep.subr.mxu0 0.0
  %222 = vmatpush1.msra.mxu0 0.0
  %223 = vmatprep.subr.mxu0 0.0
  %224 = vmatpush1.msra.mxu0 0.0
  %225 = vmatprep.subr.mxu0 0.0
  %226 = vmatpush1.msra.mxu0 0.0
  %227 = vmatprep.subr.mxu0 0.0
  %228 = vmatpush1.msra.mxu0 0.0
  %229 = vmatprep.subr.mxu0 0.0
  %230 = vmatpush1.msra.mxu0 0.0
  %231 = vmatprep.subr.mxu0 0.0
  %232 = vmatpush1.msra.mxu0 0.0
  %233 = vmatprep.subr.mxu0 0.0
  %234 = vmatpush1.msra.mxu0 0.0
  %235 = vmatprep.subr.mxu0 0.0
  %236 = vmatpush1.msra.mxu0 0.0
  %237 = vmatprep.subr.mxu0 0.0
  %238 = vmatpush1.msra.mxu0 0.0
  %239 = vmatprep.subr.mxu0 0.0
  %240 = vmatpush1.msra.mxu0 0.0
  %241 = vmatprep.subr.mxu0 0.0
  %242 = vmatpush1.msra.mxu0 0.0
  %243 = vmatprep.subr.mxu0 0.0
  %244 = vmatpush1.msra.mxu0 0.0
  %245 = vmatprep.subr.mxu0 0.0
  %246 = vmatpush1.msra.mxu0 0.0
  %247 = vmatprep.subr.mxu0 0.0
  %248 = vmatpush1.msra.mxu0 0.0
  %249 = vmatprep.subr.mxu0 0.0
  %250 = vmatpush1.msra.mxu0 0.0
  %251 = vmatprep.subr.mxu0 0.0
  %252 = vmatpush1.msra.mxu0 0.0
  %253 = vmatprep.subr.mxu0 0.0
  %254 = vmatpush1.msra.mxu0 0.0
  %255 = vmatprep.subr.mxu0 0.0
  %256 = vmatpush1.msra.mxu0 0.0
  %257 = vmatprep.mubr.f32.mxu0 0.0
  %258 = vmatmul.mubr.f32.gmra.mrb[0].mxu0 %v188
  %v259 = vpop.f32.mrb[0].mxu0
  %v260 = vadd.f32 0.0, %v259
  %v261 = vpop.f32.mrb[0].mxu0
  %262 = vmatprep.mubr.f32.mxu0 0.0
  %263 = vmatmul.mubr.f32.gmra.mrb[0].mxu0 %v191
  %v264 = vpop.f32.mrb[0].mxu0
  %v265 = vadd.f32 0.0, %v264
  %v266 = vpop.f32.mrb[0].mxu0
  %267 = vdwg.mxu0
  %s268 = scalar_lea.vmem %s2, 64
  %v269 = vld [vmem:[%s268] sm:$0xff]
  %v270 = vld [vmem:[%s268 + $0x8] sm:$0xff]
  %v271 = vld [vmem:[%s268 + $0x10] sm:$0xff]
  %v272 = vld [vmem:[%s268 + $0x18] sm:$0xff]
  %v273 = vld [vmem:[%s268 + $0x20] sm:$0xff]
  %v274 = vld [vmem:[%s268 + $0x28] sm:$0xff]
  %v275 = vld [vmem:[%s268 + $0x30] sm:$0xff]
  %v276 = vld [vmem:[%s268 + $0x38] sm:$0xff]
  %vm277 = vcmask 523264
  %v279 = vsel %vm277, %v260, 0
  %v282 = vsel %vm277, %v265, 0
  %284 = vmatprep.subr.mxu0 0.0
  %285 = vmatpush1.msra.mxu0 %v269
  %286 = vmatprep.subr.mxu0 0.0
  %287 = vmatpush1.msra.mxu0 %v270
  %288 = vmatprep.subr.mxu0 0.0
  %289 = vmatpush1.msra.mxu0 %v271
  %290 = vmatprep.subr.mxu0 0.0
  %291 = vmatpush1.msra.mxu0 %v272
  %292 = vmatprep.subr.mxu0 0.0
  %293 = vmatpush1.msra.mxu0 %v273
  %294 = vmatprep.subr.mxu0 0.0
  %295 = vmatpush1.msra.mxu0 %v274
  %296 = vmatprep.subr.mxu0 0.0
  %297 = vmatpush1.msra.mxu0 %v275
  %298 = vmatprep.subr.mxu0 0.0
  %299 = vmatpush1.msra.mxu0 %v276
  %300 = vmatprep.subr.mxu0 0.0
  %301 = vmatpush1.msra.mxu0 0.0
  %302 = vmatprep.subr.mxu0 0.0
  %303 = vmatpush1.msra.mxu0 0.0
  %304 = vmatprep.subr.mxu0 0.0
  %305 = vmatpush1.msra.mxu0 0.0
  %306 = vmatprep.subr.mxu0 0.0
  %307 = vmatpush1.msra.mxu0 0.0
  %308 = vmatprep.subr.mxu0 0.0
  %309 = vmatpush1.msra.mxu0 0.0
  %310 = vmatprep.subr.mxu0 0.0
  %311 = vmatpush1.msra.mxu0 0.0
  %312 = vmatprep.subr.mxu0 0.0
  %313 = vmatpush1.msra.mxu0 0.0
  %314 = vmatprep.subr.mxu0 0.0
  %315 = vmatpush1.msra.mxu0 0.0
  %316 = vmatprep.subr.mxu0 0.0
  %317 = vmatpush1.msra.mxu0 0.0
  %318 = vmatprep.subr.mxu0 0.0
  %319 = vmatpush1.msra.mxu0 0.0
  %320 = vmatprep.subr.mxu0 0.0
  %321 = vmatpush1.msra.mxu0 0.0
  %322 = vmatprep.subr.mxu0 0.0
  %323 = vmatpush1.msra.mxu0 0.0
  %324 = vmatprep.subr.mxu0 0.0
  %325 = vmatpush1.msra.mxu0 0.0
  %326 = vmatprep.subr.mxu0 0.0
  %327 = vmatpush1.msra.mxu0 0.0
  %328 = vmatprep.subr.mxu0 0.0
  %329 = vmatpush1.msra.mxu0 0.0
  %330 = vmatprep.subr.mxu0 0.0
  %331 = vmatpush1.msra.mxu0 0.0
  %332 = vmatprep.subr.mxu0 0.0
  %333 = vmatpush1.msra.mxu0 0.0
  %334 = vmatprep.subr.mxu0 0.0
  %335 = vmatpush1.msra.mxu0 0.0
  %336 = vmatprep.subr.mxu0 0.0
  %337 = vmatpush1.msra.mxu0 0.0
  %338 = vmatprep.subr.mxu0 0.0
  %339 = vmatpush1.msra.mxu0 0.0
  %340 = vmatprep.subr.mxu0 0.0
  %341 = vmatpush1.msra.mxu0 0.0
  %342 = vmatprep.subr.mxu0 0.0
  %343 = vmatpush1.msra.mxu0 0.0
  %344 = vmatprep.subr.mxu0 0.0
  %345 = vmatpush1.msra.mxu0 0.0
  %346 = vmatprep.subr.mxu0 0.0
  %347 = vmatpush1.msra.mxu0 0.0
  %348 = vmatprep.mubr.f32.mxu0 0.0
  %349 = vmatmul.mubr.f32.gmra.mrb[0].mxu0 %v279
  %v350 = vpop.f32.mrb[0].mxu0
  %v351 = vadd.f32 0.0, %v350
  %v352 = vpop.f32.mrb[0].mxu0
  %353 = vmatprep.mubr.f32.mxu0 0.0
  %354 = vmatmul.mubr.f32.gmra.mrb[0].mxu0 %v282
  %v355 = vpop.f32.mrb[0].mxu0
  %v356 = vadd.f32 0.0, %v355
  %v357 = vpop.f32.mrb[0].mxu0
  %358 = vdwg.mxu0
  %v360 = vsel %vm277, %v168, 0
  %v363 = vsel %vm277, %v173, 0
  %365 = vmatprep.subr.mxu0 0.0
  %366 = vmatpush1.msra.mxu0 %v176
  %367 = vmatprep.subr.mxu0 0.0
  %368 = vmatpush1.msra.mxu0 %v177
  %369 = vmatprep.subr.mxu0 0.0
  %370 = vmatpush1.msra.mxu0 %v178
  %371 = vmatprep.subr.mxu0 0.0
  %372 = vmatpush1.msra.mxu0 %v179
  %373 = vmatprep.subr.mxu0 0.0
  %374 = vmatpush1.msra.mxu0 %v180
  %375 = vmatprep.subr.mxu0 0.0
  %376 = vmatpush1.msra.mxu0 %v181
  %377 = vmatprep.subr.mxu0 0.0
  %378 = vmatpush1.msra.mxu0 %v182
  %379 = vmatprep.subr.mxu0 0.0
  %380 = vmatpush1.msra.mxu0 %v183
  %381 = vmatprep.subr.mxu0 0.0
  %382 = vmatpush1.msra.mxu0 0.0
  %383 = vmatprep.subr.mxu0 0.0
  %384 = vmatpush1.msra.mxu0 0.0
  %385 = vmatprep.subr.mxu0 0.0
  %386 = vmatpush1.msra.mxu0 0.0
  %387 = vmatprep.subr.mxu0 0.0
  %388 = vmatpush1.msra.mxu0 0.0
  %389 = vmatprep.subr.mxu0 0.0
  %390 = vmatpush1.msra.mxu0 0.0
  %391 = vmatprep.subr.mxu0 0.0
  %392 = vmatpush1.msra.mxu0 0.0
  %393 = vmatprep.subr.mxu0 0.0
  %394 = vmatpush1.msra.mxu0 0.0
  %395 = vmatprep.subr.mxu0 0.0
  %396 = vmatpush1.msra.mxu0 0.0
  %397 = vmatprep.subr.mxu0 0.0
  %398 = vmatpush1.msra.mxu0 0.0
  %399 = vmatprep.subr.mxu0 0.0
  %400 = vmatpush1.msra.mxu0 0.0
  %401 = vmatprep.subr.mxu0 0.0
  %402 = vmatpush1.msra.mxu0 0.0
  %403 = vmatprep.subr.mxu0 0.0
  %404 = vmatpush1.msra.mxu0 0.0
  %405 = vmatprep.subr.mxu0 0.0
  %406 = vmatpush1.msra.mxu0 0.0
  %407 = vmatprep.subr.mxu0 0.0
  %408 = vmatpush1.msra.mxu0 0.0
  %409 = vmatprep.subr.mxu0 0.0
  %410 = vmatpush1.msra.mxu0 0.0
  %411 = vmatprep.subr.mxu0 0.0
  %412 = vmatpush1.msra.mxu0 0.0
  %413 = vmatprep.subr.mxu0 0.0
  %414 = vmatpush1.msra.mxu0 0.0
  %415 = vmatprep.subr.mxu0 0.0
  %416 = vmatpush1.msra.mxu0 0.0
  %417 = vmatprep.subr.mxu0 0.0
  %418 = vmatpush1.msra.mxu0 0.0
  %419 = vmatprep.subr.mxu0 0.0
  %420 = vmatpush1.msra.mxu0 0.0
  %421 = vmatprep.subr.mxu0 0.0
  %422 = vmatpush1.msra.mxu0 0.0
  %423 = vmatprep.subr.mxu0 0.0
  %424 = vmatpush1.msra.mxu0 0.0
  %425 = vmatprep.subr.mxu0 0.0
  %426 = vmatpush1.msra.mxu0 0.0
  %427 = vmatprep.subr.mxu0 0.0
  %428 = vmatpush1.msra.mxu0 0.0
  %429 = vmatprep.mubr.f32.mxu0 0.0
  %430 = vmatmul.mubr.f32.gmra.mrb[0].mxu0 %v360
  %v431 = vpop.f32.mrb[0].mxu0
  %v432 = vadd.f32 %v351, %v431
  %v433 = vpop.f32.mrb[0].mxu0
  %434 = vmatprep.mubr.f32.mxu0 0.0
  %435 = vmatmul.mubr.f32.gmra.mrb[0].mxu0 %v363
  %v436 = vpop.f32.mrb[0].mxu0
  %v437 = vadd.f32 %v356, %v436
  %v438 = vpop.f32.mrb[0].mxu0
  %439 = vdwg.mxu0
  %s440 = scalar_lea.vmem %s1, 32
  %v441 = vld [vmem:[%s440] sm:$0xff]
  %v442 = vld [vmem:[%s440 + $0x8] sm:$0xff]
  %v444 = vsel %vm94, %v441, 0
  %v447 = vsel %vm94, %v442, 0
  %449 = vmatprep.subr.mxu0 0.0
  %450 = vmatpush1.msra.mxu0 %v88
  %451 = vmatprep.subr.mxu0 0.0
  %452 = vmatpush1.msra.mxu0 %v89
  %453 = vmatprep.subr.mxu0 0.0
  %454 = vmatpush1.msra.mxu0 %v90
  %455 = vmatprep.subr.mxu0 0.0
  %456 = vmatpush1.msra.mxu0 %v91
  %457 = vmatprep.subr.mxu0 0.0
  %458 = vmatpush1.msra.mxu0 0.0
  %459 = vmatprep.subr.mxu0 0.0
  %460 = vmatpush1.msra.mxu0 0.0
  %461 = vmatprep.subr.mxu0 0.0
  %462 = vmatpush1.msra.mxu0 0.0
  %463 = vmatprep.subr.mxu0 0.0
  %464 = vmatpush1.msra.mxu0 0.0
  %465 = vmatprep.subr.mxu0 0.0
  %466 = vmatpush1.msra.mxu0 0.0
  %467 = vmatprep.subr.mxu0 0.0
  %468 = vmatpush1.msra.mxu0 0.0
  %469 = vmatprep.subr.mxu0 0.0
  %470 = vmatpush1.msra.mxu0 0.0
  %471 = vmatprep.subr.mxu0 0.0
  %472 = vmatpush1.msra.mxu0 0.0
  %473 = vmatprep.subr.mxu0 0.0
  %474 = vmatpush1.msra.mxu0 0.0
  %475 = vmatprep.subr.mxu0 0.0
  %476 = vmatpush1.msra.mxu0 0.0
  %477 = vmatprep.subr.mxu0 0.0
  %478 = vmatpush1.msra.mxu0 0.0
  %479 = vmatprep.subr.mxu0 0.0
  %480 = vmatpush1.msra.mxu0 0.0
  %481 = vmatprep.subr.mxu0 0.0
  %482 = vmatpush1.msra.mxu0 0.0
  %483 = vmatprep.subr.mxu0 0.0
  %484 = vmatpush1.msra.mxu0 0.0
  %485 = vmatprep.subr.mxu0 0.0
  %486 = vmatpush1.msra.mxu0 0.0
  %487 = vmatprep.subr.mxu0 0.0
  %488 = vmatpush1.msra.mxu0 0.0
  %489 = vmatprep.subr.mxu0 0.0
  %490 = vmatpush1.msra.mxu0 0.0
  %491 = vmatprep.subr.mxu0 0.0
  %492 = vmatpush1.msra.mxu0 0.0
  %493 = vmatprep.subr.mxu0 0.0
  %494 = vmatpush1.msra.mxu0 0.0
  %495 = vmatprep.subr.mxu0 0.0
  %496 = vmatpush1.msra.mxu0 0.0
  %497 = vmatprep.subr.mxu0 0.0
  %498 = vmatpush1.msra.mxu0 0.0
  %499 = vmatprep.subr.mxu0 0.0
  %500 = vmatpush1.msra.mxu0 0.0
  %501 = vmatprep.subr.mxu0 0.0
  %502 = vmatpush1.msra.mxu0 0.0
  %503 = vmatprep.subr.mxu0 0.0
  %504 = vmatpush1.msra.mxu0 0.0
  %505 = vmatprep.subr.mxu0 0.0
  %506 = vmatpush1.msra.mxu0 0.0
  %507 = vmatprep.subr.mxu0 0.0
  %508 = vmatpush1.msra.mxu0 0.0
  %509 = vmatprep.subr.mxu0 0.0
  %510 = vmatpush1.msra.mxu0 0.0
  %511 = vmatprep.subr.mxu0 0.0
  %512 = vmatpush1.msra.mxu0 0.0
  %513 = vmatprep.mubr.f32.mxu0 0.0
  %514 = vmatmul.mubr.f32.gmra.mrb[0].mxu0 %v444
  %v515 = vpop.f32.mrb[0].mxu0
  %v516 = vadd.f32 0.0, %v515
  %v517 = vpop.f32.mrb[0].mxu0
  %518 = vmatprep.mubr.f32.mxu0 0.0
  %519 = vmatmul.mubr.f32.gmra.mrb[0].mxu0 %v447
  %v520 = vpop.f32.mrb[0].mxu0
  %v521 = vadd.f32 0.0, %v520
  %v522 = vpop.f32.mrb[0].mxu0
  %523 = vdwg.mxu0
  %s524 = scalar_lea.vmem %s2, 128
  %v525 = vld [vmem:[%s524] sm:$0xff]
  %v526 = vld [vmem:[%s524 + $0x8] sm:$0xff]
  %v527 = vld [vmem:[%s524 + $0x10] sm:$0xff]
  %v528 = vld [vmem:[%s524 + $0x18] sm:$0xff]
  %v529 = vld [vmem:[%s524 + $0x20] sm:$0xff]
  %v530 = vld [vmem:[%s524 + $0x28] sm:$0xff]
  %v531 = vld [vmem:[%s524 + $0x30] sm:$0xff]
  %v532 = vld [vmem:[%s524 + $0x38] sm:$0xff]
  %v534 = vsel %vm277, %v516, 0
  %v537 = vsel %vm277, %v521, 0
  %539 = vmatprep.subr.mxu0 0.0
  %540 = vmatpush1.msra.mxu0 %v525
  %541 = vmatprep.subr.mxu0 0.0
  %542 = vmatpush1.msra.mxu0 %v526
  %543 = vmatprep.subr.mxu0 0.0
  %544 = vmatpush1.msra.mxu0 %v527
  %545 = vmatprep.subr.mxu0 0.0
  %546 = vmatpush1.msra.mxu0 %v528
  %547 = vmatprep.subr.mxu0 0.0
  %548 = vmatpush1.msra.mxu0 %v529
  %549 = vmatprep.subr.mxu0 0.0
  %550 = vmatpush1.msra.mxu0 %v530
  %551 = vmatprep.subr.mxu0 0.0
  %552 = vmatpush1.msra.mxu0 %v531
  %553 = vmatprep.subr.mxu0 0.0
  %554 = vmatpush1.msra.mxu0 %v532
  %555 = vmatprep.subr.mxu0 0.0
  %556 = vmatpush1.msra.mxu0 0.0
  %557 = vmatprep.subr.mxu0 0.0
  %558 = vmatpush1.msra.mxu0 0.0
  %559 = vmatprep.subr.mxu0 0.0
  %560 = vmatpush1.msra.mxu0 0.0
  %561 = vmatprep.subr.mxu0 0.0
  %562 = vmatpush1.msra.mxu0 0.0
  %563 = vmatprep.subr.mxu0 0.0
  %564 = vmatpush1.msra.mxu0 0.0
  %565 = vmatprep.subr.mxu0 0.0
  %566 = vmatpush1.msra.mxu0 0.0
  %567 = vmatprep.subr.mxu0 0.0
  %568 = vmatpush1.msra.mxu0 0.0
  %569 = vmatprep.subr.mxu0 0.0
  %570 = vmatpush1.msra.mxu0 0.0
  %571 = vmatprep.subr.mxu0 0.0
  %572 = vmatpush1.msra.mxu0 0.0
  %573 = vmatprep.subr.mxu0 0.0
  %574 = vmatpush1.msra.mxu0 0.0
  %575 = vmatprep.subr.mxu0 0.0
  %576 = vmatpush1.msra.mxu0 0.0
  %577 = vmatprep.subr.mxu0 0.0
  %578 = vmatpush1.msra.mxu0 0.0
  %579 = vmatprep.subr.mxu0 0.0
  %580 = vmatpush1.msra.mxu0 0.0
  %581 = vmatprep.subr.mxu0 0.0
  %582 = vmatpush1.msra.mxu0 0.0
  %583 = vmatprep.subr.mxu0 0.0
  %584 = vmatpush1.msra.mxu0 0.0
  %585 = vmatprep.subr.mxu0 0.0
  %586 = vmatpush1.msra.mxu0 0.0
  %587 = vmatprep.subr.mxu0 0.0
  %588 = vmatpush1.msra.mxu0 0.0
  %589 = vmatprep.subr.mxu0 0.0
  %590 = vmatpush1.msra.mxu0 0.0
  %591 = vmatprep.subr.mxu0 0.0
  %592 = vmatpush1.msra.mxu0 0.0
  %593 = vmatprep.subr.mxu0 0.0
  %594 = vmatpush1.msra.mxu0 0.0
  %595 = vmatprep.subr.mxu0 0.0
  %596 = vmatpush1.msra.mxu0 0.0
  %597 = vmatprep.subr.mxu0 0.0
  %598 = vmatpush1.msra.mxu0 0.0
  %599 = vmatprep.subr.mxu0 0.0
  %600 = vmatpush1.msra.mxu0 0.0
  %601 = vmatprep.subr.mxu0 0.0
  %602 = vmatpush1.msra.mxu0 0.0
  %603 = vmatprep.mubr.f32.mxu0 0.0
  %604 = vmatmul.mubr.f32.gmra.mrb[0].mxu0 %v534
  %v605 = vpop.f32.mrb[0].mxu0
  %v606 = vadd.f32 0.0, %v605
  %v607 = vpop.f32.mrb[0].mxu0
  %608 = vmatprep.mubr.f32.mxu0 0.0
  %609 = vmatmul.mubr.f32.gmra.mrb[0].mxu0 %v537
  %v610 = vpop.f32.mrb[0].mxu0
  %v611 = vadd.f32 0.0, %v610
  %v612 = vpop.f32.mrb[0].mxu0
  %613 = vdwg.mxu0
  %v614 = vadd.f32 %v432, %v606
  %v615 = vadd.f32 %v437, %v611
  %s616 = scalar_lea.vmem %s1, 48
  %v617 = vld [vmem:[%s616] sm:$0xff]
  %v618 = vld [vmem:[%s616 + $0x8] sm:$0xff]
  %v620 = vsel %vm94, %v617, 0
  %v623 = vsel %vm94, %v618, 0
  %625 = vmatprep.subr.mxu0 0.0
  %626 = vmatpush1.msra.mxu0 %v88
  %627 = vmatprep.subr.mxu0 0.0
  %628 = vmatpush1.msra.mxu0 %v89
  %629 = vmatprep.subr.mxu0 0.0
  %630 = vmatpush1.msra.mxu0 %v90
  %631 = vmatprep.subr.mxu0 0.0
  %632 = vmatpush1.msra.mxu0 %v91
  %633 = vmatprep.subr.mxu0 0.0
  %634 = vmatpush1.msra.mxu0 0.0
  %635 = vmatprep.subr.mxu0 0.0
  %636 = vmatpush1.msra.mxu0 0.0
  %637 = vmatprep.subr.mxu0 0.0
  %638 = vmatpush1.msra.mxu0 0.0
  %639 = vmatprep.subr.mxu0 0.0
  %640 = vmatpush1.msra.mxu0 0.0
  %641 = vmatprep.subr.mxu0 0.0
  %642 = vmatpush1.msra.mxu0 0.0
  %643 = vmatprep.subr.mxu0 0.0
  %644 = vmatpush1.msra.mxu0 0.0
  %645 = vmatprep.subr.mxu0 0.0
  %646 = vmatpush1.msra.mxu0 0.0
  %647 = vmatprep.subr.mxu0 0.0
  %648 = vmatpush1.msra.mxu0 0.0
  %649 = vmatprep.subr.mxu0 0.0
  %650 = vmatpush1.msra.mxu0 0.0
  %651 = vmatprep.subr.mxu0 0.0
  %652 = vmatpush1.msra.mxu0 0.0
  %653 = vmatprep.subr.mxu0 0.0
  %654 = vmatpush1.msra.mxu0 0.0
  %655 = vmatprep.subr.mxu0 0.0
  %656 = vmatpush1.msra.mxu0 0.0
  %657 = vmatprep.subr.mxu0 0.0
  %658 = vmatpush1.msra.mxu0 0.0
  %659 = vmatprep.subr.mxu0 0.0
  %660 = vmatpush1.msra.mxu0 0.0
  %661 = vmatprep.subr.mxu0 0.0
  %662 = vmatpush1.msra.mxu0 0.0
  %663 = vmatprep.subr.mxu0 0.0
  %664 = vmatpush1.msra.mxu0 0.0
  %665 = vmatprep.subr.mxu0 0.0
  %666 = vmatpush1.msra.mxu0 0.0
  %667 = vmatprep.subr.mxu0 0.0
  %668 = vmatpush1.msra.mxu0 0.0
  %669 = vmatprep.subr.mxu0 0.0
  %670 = vmatpush1.msra.mxu0 0.0
  %671 = vmatprep.subr.mxu0 0.0
  %672 = vmatpush1.msra.mxu0 0.0
  %673 = vmatprep.subr.mxu0 0.0
  %674 = vmatpush1.msra.mxu0 0.0
  %675 = vmatprep.subr.mxu0 0.0
  %676 = vmatpush1.msra.mxu0 0.0
  %677 = vmatprep.subr.mxu0 0.0
  %678 = vmatpush1.msra.mxu0 0.0
  %679 = vmatprep.subr.mxu0 0.0
  %680 = vmatpush1.msra.mxu0 0.0
  %681 = vmatprep.subr.mxu0 0.0
  %682 = vmatpush1.msra.mxu0 0.0
  %683 = vmatprep.subr.mxu0 0.0
  %684 = vmatpush1.msra.mxu0 0.0
  %685 = vmatprep.subr.mxu0 0.0
  %686 = vmatpush1.msra.mxu0 0.0
  %687 = vmatprep.subr.mxu0 0.0
  %688 = vmatpush1.msra.mxu0 0.0
  %689 = vmatprep.mubr.f32.mxu0 0.0
  %690 = vmatmul.mubr.f32.gmra.mrb[0].mxu0 %v620
  %v691 = vpop.f32.mrb[0].mxu0
  %v692 = vadd.f32 0.0, %v691
  %v693 = vpop.f32.mrb[0].mxu0
  %694 = vmatprep.mubr.f32.mxu0 0.0
  %695 = vmatmul.mubr.f32.gmra.mrb[0].mxu0 %v623
  %v696 = vpop.f32.mrb[0].mxu0
  %v697 = vadd.f32 0.0, %v696
  %v698 = vpop.f32.mrb[0].mxu0
  %699 = vdwg.mxu0
  %s700 = scalar_lea.vmem %s2, 192
  %v701 = vld [vmem:[%s700] sm:$0xff]
  %v702 = vld [vmem:[%s700 + $0x8] sm:$0xff]
  %v703 = vld [vmem:[%s700 + $0x10] sm:$0xff]
  %v704 = vld [vmem:[%s700 + $0x18] sm:$0xff]
  %v705 = vld [vmem:[%s700 + $0x20] sm:$0xff]
  %v706 = vld [vmem:[%s700 + $0x28] sm:$0xff]
  %v707 = vld [vmem:[%s700 + $0x30] sm:$0xff]
  %v708 = vld [vmem:[%s700 + $0x38] sm:$0xff]
  %v710 = vsel %vm277, %v692, 0
  %v713 = vsel %vm277, %v697, 0
  %715 = vmatprep.subr.mxu0 0.0
  %716 = vmatpush1.msra.mxu0 %v701
  %717 = vmatprep.subr.mxu0 0.0
  %718 = vmatpush1.msra.mxu0 %v702
  %719 = vmatprep.subr.mxu0 0.0
  %720 = vmatpush1.msra.mxu0 %v703
  %721 = vmatprep.subr.mxu0 0.0
  %722 = vmatpush1.msra.mxu0 %v704
  %723 = vmatprep.subr.mxu0 0.0
  %724 = vmatpush1.msra.mxu0 %v705
  %725 = vmatprep.subr.mxu0 0.0
  %726 = vmatpush1.msra.mxu0 %v706
  %727 = vmatprep.subr.mxu0 0.0
  %728 = vmatpush1.msra.mxu0 %v707
  %729 = vmatprep.subr.mxu0 0.0
  %730 = vmatpush1.msra.mxu0 %v708
  %731 = vmatprep.subr.mxu0 0.0
  %732 = vmatpush1.msra.mxu0 0.0
  %733 = vmatprep.subr.mxu0 0.0
  %734 = vmatpush1.msra.mxu0 0.0
  %735 = vmatprep.subr.mxu0 0.0
  %736 = vmatpush1.msra.mxu0 0.0
  %737 = vmatprep.subr.mxu0 0.0
  %738 = vmatpush1.msra.mxu0 0.0
  %739 = vmatprep.subr.mxu0 0.0
  %740 = vmatpush1.msra.mxu0 0.0
  %741 = vmatprep.subr.mxu0 0.0
  %742 = vmatpush1.msra.mxu0 0.0
  %743 = vmatprep.subr.mxu0 0.0
  %744 = vmatpush1.msra.mxu0 0.0
  %745 = vmatprep.subr.mxu0 0.0
  %746 = vmatpush1.msra.mxu0 0.0
  %747 = vmatprep.subr.mxu0 0.0
  %748 = vmatpush1.msra.mxu0 0.0
  %749 = vmatprep.subr.mxu0 0.0
  %750 = vmatpush1.msra.mxu0 0.0
  %751 = vmatprep.subr.mxu0 0.0
  %752 = vmatpush1.msra.mxu0 0.0
  %753 = vmatprep.subr.mxu0 0.0
  %754 = vmatpush1.msra.mxu0 0.0
  %755 = vmatprep.subr.mxu0 0.0
  %756 = vmatpush1.msra.mxu0 0.0
  %757 = vmatprep.subr.mxu0 0.0
  %758 = vmatpush1.msra.mxu0 0.0
  %759 = vmatprep.subr.mxu0 0.0
  %760 = vmatpush1.msra.mxu0 0.0
  %761 = vmatprep.subr.mxu0 0.0
  %762 = vmatpush1.msra.mxu0 0.0
  %763 = vmatprep.subr.mxu0 0.0
  %764 = vmatpush1.msra.mxu0 0.0
  %765 = vmatprep.subr.mxu0 0.0
  %766 = vmatpush1.msra.mxu0 0.0
  %767 = vmatprep.subr.mxu0 0.0
  %768 = vmatpush1.msra.mxu0 0.0
  %769 = vmatprep.subr.mxu0 0.0
  %770 = vmatpush1.msra.mxu0 0.0
  %771 = vmatprep.subr.mxu0 0.0
  %772 = vmatpush1.msra.mxu0 0.0
  %773 = vmatprep.subr.mxu0 0.0
  %774 = vmatpush1.msra.mxu0 0.0
  %775 = vmatprep.subr.mxu0 0.0
  %776 = vmatpush1.msra.mxu0 0.0
  %777 = vmatprep.subr.mxu0 0.0
  %778 = vmatpush1.msra.mxu0 0.0
  %779 = vmatprep.mubr.f32.mxu0 0.0
  %780 = vmatmul.mubr.f32.gmra.mrb[0].mxu0 %v710
  %v781 = vpop.f32.mrb[0].mxu0
  %v782 = vadd.f32 0.0, %v781
  %v783 = vpop.f32.mrb[0].mxu0
  %784 = vmatprep.mubr.f32.mxu0 0.0
  %785 = vmatmul.mubr.f32.gmra.mrb[0].mxu0 %v713
  %v786 = vpop.f32.mrb[0].mxu0
  %v787 = vadd.f32 0.0, %v786
  %v788 = vpop.f32.mrb[0].mxu0
  %789 = vdwg.mxu0
  %v790 = vadd.f32 %v614, %v782
  %v791 = vadd.f32 %v615, %v787
  %s792 = scalar_lea.vmem %s1, 64
  %v793 = vld [vmem:[%s792] sm:$0xff]
  %v794 = vld [vmem:[%s792 + $0x8] sm:$0xff]
  %v796 = vsel %vm94, %v793, 0
  %v799 = vsel %vm94, %v794, 0
  %801 = vmatprep.subr.mxu0 0.0
  %802 = vmatpush1.msra.mxu0 %v88
  %803 = vmatprep.subr.mxu0 0.0
  %804 = vmatpush1.msra.mxu0 %v89
  %805 = vmatprep.subr.mxu0 0.0
  %806 = vmatpush1.msra.mxu0 %v90
  %807 = vmatprep.subr.mxu0 0.0
  %808 = vmatpush1.msra.mxu0 %v91
  %809 = vmatprep.subr.mxu0 0.0
  %810 = vmatpush1.msra.mxu0 0.0
  %811 = vmatprep.subr.mxu0 0.0
  %812 = vmatpush1.msra.mxu0 0.0
  %813 = vmatprep.subr.mxu0 0.0
  %814 = vmatpush1.msra.mxu0 0.0
  %815 = vmatprep.subr.mxu0 0.0
  %816 = vmatpush1.msra.mxu0 0.0
  %817 = vmatprep.subr.mxu0 0.0
  %818 = vmatpush1.msra.mxu0 0.0
  %819 = vmatprep.subr.mxu0 0.0
  %820 = vmatpush1.msra.mxu0 0.0
  %821 = vmatprep.subr.mxu0 0.0
  %822 = vmatpush1.msra.mxu0 0.0
  %823 = vmatprep.subr.mxu0 0.0
  %824 = vmatpush1.msra.mxu0 0.0
  %825 = vmatprep.subr.mxu0 0.0
  %826 = vmatpush1.msra.mxu0 0.0
  %827 = vmatprep.subr.mxu0 0.0
  %828 = vmatpush1.msra.mxu0 0.0
  %829 = vmatprep.subr.mxu0 0.0
  %830 = vmatpush1.msra.mxu0 0.0
  %831 = vmatprep.subr.mxu0 0.0
  %832 = vmatpush1.msra.mxu0 0.0
  %833 = vmatprep.subr.mxu0 0.0
  %834 = vmatpush1.msra.mxu0 0.0
  %835 = vmatprep.subr.mxu0 0.0
  %836 = vmatpush1.msra.mxu0 0.0
  %837 = vmatprep.subr.mxu0 0.0
  %838 = vmatpush1.msra.mxu0 0.0
  %839 = vmatprep.subr.mxu0 0.0
  %840 = vmatpush1.msra.mxu0 0.0
  %841 = vmatprep.subr.mxu0 0.0
  %842 = vmatpush1.msra.mxu0 0.0
  %843 = vmatprep.subr.mxu0 0.0
  %844 = vmatpush1.msra.mxu0 0.0
  %845 = vmatprep.subr.mxu0 0.0
  %846 = vmatpush1.msra.mxu0 0.0
  %847 = vmatprep.subr.mxu0 0.0
  %848 = vmatpush1.msra.mxu0 0.0
  %849 = vmatprep.subr.mxu0 0.0
  %850 = vmatpush1.msra.mxu0 0.0
  %851 = vmatprep.subr.mxu0 0.0
  %852 = vmatpush1.msra.mxu0 0.0
  %853 = vmatprep.subr.mxu0 0.0
  %854 = vmatpush1.msra.mxu0 0.0
  %855 = vmatprep.subr.mxu0 0.0
  %856 = vmatpush1.msra.mxu0 0.0
  %857 = vmatprep.subr.mxu0 0.0
  %858 = vmatpush1.msra.mxu0 0.0
  %859 = vmatprep.subr.mxu0 0.0
  %860 = vmatpush1.msra.mxu0 0.0
  %861 = vmatprep.subr.mxu0 0.0
  %862 = vmatpush1.msra.mxu0 0.0
  %863 = vmatprep.subr.mxu0 0.0
  %864 = vmatpush1.msra.mxu0 0.0
  %865 = vmatprep.mubr.f32.mxu0 0.0
  %866 = vmatmul.mubr.f32.gmra.mrb[0].mxu0 %v796
  %v867 = vpop.f32.mrb[0].mxu0
  %v868 = vadd.f32 0.0, %v867
  %v869 = vpop.f32.mrb[0].mxu0
  %870 = vmatprep.mubr.f32.mxu0 0.0
  %871 = vmatmul.mubr.f32.gmra.mrb[0].mxu0 %v799
  %v872 = vpop.f32.mrb[0].mxu0
  %v873 = vadd.f32 0.0, %v872
  %v874 = vpop.f32.mrb[0].mxu0
  %875 = vdwg.mxu0
  %s876 = scalar_lea.vmem %s2, 256
  %v877 = vld [vmem:[%s876] sm:$0xff]
  %v878 = vld [vmem:[%s876 + $0x8] sm:$0xff]
  %v879 = vld [vmem:[%s876 + $0x10] sm:$0xff]
  %v880 = vld [vmem:[%s876 + $0x18] sm:$0xff]
  %v881 = vld [vmem:[%s876 + $0x20] sm:$0xff]
  %v882 = vld [vmem:[%s876 + $0x28] sm:$0xff]
  %v883 = vld [vmem:[%s876 + $0x30] sm:$0xff]
  %v884 = vld [vmem:[%s876 + $0x38] sm:$0xff]
  %v886 = vsel %vm277, %v868, 0
  %v889 = vsel %vm277, %v873, 0
  %891 = vmatprep.subr.mxu0 0.0
  %892 = vmatpush1.msra.mxu0 %v877
  %893 = vmatprep.subr.mxu0 0.0
  %894 = vmatpush1.msra.mxu0 %v878
  %895 = vmatprep.subr.mxu0 0.0
  %896 = vmatpush1.msra.mxu0 %v879
  %897 = vmatprep.subr.mxu0 0.0
  %898 = vmatpush1.msra.mxu0 %v880
  %899 = vmatprep.subr.mxu0 0.0
  %900 = vmatpush1.msra.mxu0 %v881
  %901 = vmatprep.subr.mxu0 0.0
  %902 = vmatpush1.msra.mxu0 %v882
  %903 = vmatprep.subr.mxu0 0.0
  %904 = vmatpush1.msra.mxu0 %v883
  %905 = vmatprep.subr.mxu0 0.0
  %906 = vmatpush1.msra.mxu0 %v884
  %907 = vmatprep.subr.mxu0 0.0
  %908 = vmatpush1.msra.mxu0 0.0
  %909 = vmatprep.subr.mxu0 0.0
  %910 = vmatpush1.msra.mxu0 0.0
  %911 = vmatprep.subr.mxu0 0.0
  %912 = vmatpush1.msra.mxu0 0.0
  %913 = vmatprep.subr.mxu0 0.0
  %914 = vmatpush1.msra.mxu0 0.0
  %915 = vmatprep.subr.mxu0 0.0
  %916 = vmatpush1.msra.mxu0 0.0
  %917 = vmatprep.subr.mxu0 0.0
  %918 = vmatpush1.msra.mxu0 0.0
  %919 = vmatprep.subr.mxu0 0.0
  %920 = vmatpush1.msra.mxu0 0.0
  %921 = vmatprep.subr.mxu0 0.0
  %922 = vmatpush1.msra.mxu0 0.0
  %923 = vmatprep.subr.mxu0 0.0
  %924 = vmatpush1.msra.mxu0 0.0
  %925 = vmatprep.subr.mxu0 0.0
  %926 = vmatpush1.msra.mxu0 0.0
  %927 = vmatprep.subr.mxu0 0.0
  %928 = vmatpush1.msra.mxu0 0.0
  %929 = vmatprep.subr.mxu0 0.0
  %930 = vmatpush1.msra.mxu0 0.0
  %931 = vmatprep.subr.mxu0 0.0
  %932 = vmatpush1.msra.mxu0 0.0
  %933 = vmatprep.subr.mxu0 0.0
  %934 = vmatpush1.msra.mxu0 0.0
  %935 = vmatprep.subr.mxu0 0.0
  %936 = vmatpush1.msra.mxu0 0.0
  %937 = vmatprep.subr.mxu0 0.0
  %938 = vmatpush1.msra.mxu0 0.0
  %939 = vmatprep.subr.mxu0 0.0
  %940 = vmatpush1.msra.mxu0 0.0
  %941 = vmatprep.subr.mxu0 0.0
  %942 = vmatpush1.msra.mxu0 0.0
  %943 = vmatprep.subr.mxu0 0.0
  %944 = vmatpush1.msra.mxu0 0.0
  %945 = vmatprep.subr.mxu0 0.0
  %946 = vmatpush1.msra.mxu0 0.0
  %947 = vmatprep.subr.mxu0 0.0
  %948 = vmatpush1.msra.mxu0 0.0
  %949 = vmatprep.subr.mxu0 0.0
  %950 = vmatpush1.msra.mxu0 0.0
  %951 = vmatprep.subr.mxu0 0.0
  %952 = vmatpush1.msra.mxu0 0.0
  %953 = vmatprep.subr.mxu0 0.0
  %954 = vmatpush1.msra.mxu0 0.0
  %955 = vmatprep.mubr.f32.mxu0 0.0
  %956 = vmatmul.mubr.f32.gmra.mrb[0].mxu0 %v886
  %v957 = vpop.f32.mrb[0].mxu0
  %v958 = vadd.f32 0.0, %v957
  %v959 = vpop.f32.mrb[0].mxu0
  %960 = vmatprep.mubr.f32.mxu0 0.0
  %961 = vmatmul.mubr.f32.gmra.mrb[0].mxu0 %v889
  %v962 = vpop.f32.mrb[0].mxu0
  %v963 = vadd.f32 0.0, %v962
  %v964 = vpop.f32.mrb[0].mxu0
  %965 = vdwg.mxu0
  %v966 = vadd.f32 %v790, %v958
  %v967 = vadd.f32 %v791, %v963
  %v968 = vld [vmem:[%s3] sm:$0x1]
  %v970 = vlaneseq
  %v971 = vshrl.u32 %v970, 7
  %v972 = vsub.s32 0, %v971
  %v973 = vrot.slane %v968, %v972
  %v975 = vadd.f32 %v966, %v973
  %v976 = vadd.f32 %v967, %v973
  %v977 = vmul.f32 %v975, %v975
  %v978 = vmul.f32 %v976, %v976
  %v979 = vld [vmem:[%s4] sm:$0xff]
  %v980 = vld [vmem:[%s4 + $0x8] sm:$0xff]
  %v981 = vld [vmem:[%s4 + $0x10] sm:$0xff]
  %v982 = vld [vmem:[%s4 + $0x18] sm:$0xff]
  %v983 = vld [vmem:[%s4 + $0x20] sm:$0xff]
  %v984 = vld [vmem:[%s4 + $0x28] sm:$0xff]
  %v985 = vld [vmem:[%s4 + $0x30] sm:$0xff]
  %v986 = vld [vmem:[%s4 + $0x38] sm:$0xff]
  %v987 = vld [vmem:[%s4 + $0x40] sm:$0xff]
  %v988 = vld [vmem:[%s4 + $0x48] sm:$0xff]
  %v989 = vld [vmem:[%s4 + $0x50] sm:$0xff]
  %v990 = vld [vmem:[%s4 + $0x58] sm:$0xff]
  %v991 = vld [vmem:[%s4 + $0x60] sm:$0xff]
  %v992 = vld [vmem:[%s4 + $0x68] sm:$0xff]
  %v993 = vld [vmem:[%s4 + $0x70] sm:$0xff]
  %v994 = vld [vmem:[%s4 + $0x78] sm:$0xff]
  %v995 = vld [vmem:[%s5] sm:$0x1]
  %v997 = vlaneseq
  %v998 = vshrl.u32 %v997, 7
  %v999 = vsub.s32 0, %v998
  %v1000 = vrot.slane %v995, %v999
  %1002 = vmatprep.subr.mxu0 0.0
  %1003 = vmatpush1.msra.mxu0 %v979
  %1004 = vmatprep.subr.mxu0 0.0
  %1005 = vmatpush1.msra.mxu0 %v980
  %1006 = vmatprep.subr.mxu0 0.0
  %1007 = vmatpush1.msra.mxu0 %v981
  %1008 = vmatprep.subr.mxu0 0.0
  %1009 = vmatpush1.msra.mxu0 %v982
  %1010 = vmatprep.subr.mxu0 0.0
  %1011 = vmatpush1.msra.mxu0 %v983
  %1012 = vmatprep.subr.mxu0 0.0
  %1013 = vmatpush1.msra.mxu0 %v984
  %1014 = vmatprep.subr.mxu0 0.0
  %1015 = vmatpush1.msra.mxu0 %v985
  %1016 = vmatprep.subr.mxu0 0.0
  %1017 = vmatpush1.msra.mxu0 %v986
  %1018 = vmatprep.subr.mxu0 0.0
  %1019 = vmatpush1.msra.mxu0 %v987
  %1020 = vmatprep.subr.mxu0 0.0
  %1021 = vmatpush1.msra.mxu0 %v988
  %1022 = vmatprep.subr.mxu0 0.0
  %1023 = vmatpush1.msra.mxu0 %v989
  %1024 = vmatprep.subr.mxu0 0.0
  %1025 = vmatpush1.msra.mxu0 %v990
  %1026 = vmatprep.subr.mxu0 0.0
  %1027 = vmatpush1.msra.mxu0 %v991
  %1028 = vmatprep.subr.mxu0 0.0
  %1029 = vmatpush1.msra.mxu0 %v992
  %1030 = vmatprep.subr.mxu0 0.0
  %1031 = vmatpush1.msra.mxu0 %v993
  %1032 = vmatprep.subr.mxu0 0.0
  %1033 = vmatpush1.msra.mxu0 %v994
  %1034 = vmatprep.subr.mxu0 0.0
  %1035 = vmatpush1.msra.mxu0 0.0
  %1036 = vmatprep.subr.mxu0 0.0
  %1037 = vmatpush1.msra.mxu0 0.0
  %1038 = vmatprep.subr.mxu0 0.0
  %1039 = vmatpush1.msra.mxu0 0.0
  %1040 = vmatprep.subr.mxu0 0.0
  %1041 = vmatpush1.msra.mxu0 0.0
  %1042 = vmatprep.subr.mxu0 0.0
  %1043 = vmatpush1.msra.mxu0 0.0
  %1044 = vmatprep.subr.mxu0 0.0
  %1045 = vmatpush1.msra.mxu0 0.0
  %1046 = vmatprep.subr.mxu0 0.0
  %1047 = vmatpush1.msra.mxu0 0.0
  %1048 = vmatprep.subr.mxu0 0.0
  %1049 = vmatpush1.msra.mxu0 0.0
  %1050 = vmatprep.subr.mxu0 0.0
  %1051 = vmatpush1.msra.mxu0 0.0
  %1052 = vmatprep.subr.mxu0 0.0
  %1053 = vmatpush1.msra.mxu0 0.0
  %1054 = vmatprep.subr.mxu0 0.0
  %1055 = vmatpush1.msra.mxu0 0.0
  %1056 = vmatprep.subr.mxu0 0.0
  %1057 = vmatpush1.msra.mxu0 0.0
  %1058 = vmatprep.subr.mxu0 0.0
  %1059 = vmatpush1.msra.mxu0 0.0
  %1060 = vmatprep.subr.mxu0 0.0
  %1061 = vmatpush1.msra.mxu0 0.0
  %1062 = vmatprep.subr.mxu0 0.0
  %1063 = vmatpush1.msra.mxu0 0.0
  %1064 = vmatprep.subr.mxu0 0.0
  %1065 = vmatpush1.msra.mxu0 0.0
  %1066 = vmatprep.mubr.f32.mxu0 0.0
  %1067 = vmatmul.mubr.f32.gmra.mrb[0].mxu0 %v977
  %v1068 = vpop.f32.mrb[0].mxu0
  %v1069 = vadd.f32 %v1000, %v1068
  %v1070 = vpop.f32.mrb[0].mxu0
  %1071 = vmatprep.mubr.f32.mxu0 0.0
  %1072 = vmatmul.mubr.f32.gmra.mrb[0].mxu0 %v978
  %v1073 = vpop.f32.mrb[0].mxu0
  %v1074 = vadd.f32 %v1000, %v1073
  %v1075 = vpop.f32.mrb[0].mxu0
  %1076 = vdwg.mxu0
  %v1077 = vrsqrt.pop %v1069
  %v1078 = vrsqrt.pop %v1074
  %v1079 = vmul.f32 %v975, %v1077
  %v1080 = vmul.f32 %v976, %v1078
  %v1081 = vld [vmem:[%s6] sm:$0xff]
  %vm1082 = vcmask 130048
  %v1084 = vsel %vm1082, %v1081, 0
  %1086 = vmatprep.subr.mxu0 0.0
  %1087 = vmatpush1.msra.mxu0 %v1079
  %1088 = vmatprep.subr.mxu0 0.0
  %1089 = vmatpush1.msra.mxu0 %v1080
  %1090 = vmatprep.subr.mxu0 0.0
  %1091 = vmatpush1.msra.mxu0 0.0
  %1092 = vmatprep.subr.mxu0 0.0
  %1093 = vmatpush1.msra.mxu0 0.0
  %1094 = vmatprep.subr.mxu0 0.0
  %1095 = vmatpush1.msra.mxu0 0.0
  %1096 = vmatprep.subr.mxu0 0.0
  %1097 = vmatpush1.msra.mxu0 0.0
  %1098 = vmatprep.subr.mxu0 0.0
  %1099 = vmatpush1.msra.mxu0 0.0
  %1100 = vmatprep.subr.mxu0 0.0
  %1101 = vmatpush1.msra.mxu0 0.0
  %1102 = vmatprep.subr.mxu0 0.0
  %1103 = vmatpush1.msra.mxu0 0.0
  %1104 = vmatprep.subr.mxu0 0.0
  %1105 = vmatpush1.msra.mxu0 0.0
  %1106 = vmatprep.subr.mxu0 0.0
  %1107 = vmatpush1.msra.mxu0 0.0
  %1108 = vmatprep.subr.mxu0 0.0
  %1109 = vmatpush1.msra.mxu0 0.0
  %1110 = vmatprep.subr.mxu0 0.0
  %1111 = vmatpush1.msra.mxu0 0.0
  %1112 = vmatprep.subr.mxu0 0.0
  %1113 = vmatpush1.msra.mxu0 0.0
  %1114 = vmatprep.subr.mxu0 0.0
  %1115 = vmatpush1.msra.mxu0 0.0
  %1116 = vmatprep.subr.mxu0 0.0
  %1117 = vmatpush1.msra.mxu0 0.0
  %1118 = vmatprep.subr.mxu0 0.0
  %1119 = vmatpush1.msra.mxu0 0.0
  %1120 = vmatprep.subr.mxu0 0.0
  %1121 = vmatpush1.msra.mxu0 0.0
  %1122 = vmatprep.subr.mxu0 0.0
  %1123 = vmatpush1.msra.mxu0 0.0
  %1124 = vmatprep.subr.mxu0 0.0
  %1125 = vmatpush1.msra.mxu0 0.0
  %1126 = vmatprep.subr.mxu0 0.0
  %1127 = vmatpush1.msra.mxu0 0.0
  %1128 = vmatprep.subr.mxu0 0.0
  %1129 = vmatpush1.msra.mxu0 0.0
  %1130 = vmatprep.subr.mxu0 0.0
  %1131 = vmatpush1.msra.mxu0 0.0
  %1132 = vmatprep.subr.mxu0 0.0
  %1133 = vmatpush1.msra.mxu0 0.0
  %1134 = vmatprep.subr.mxu0 0.0
  %1135 = vmatpush1.msra.mxu0 0.0
  %1136 = vmatprep.subr.mxu0 0.0
  %1137 = vmatpush1.msra.mxu0 0.0
  %1138 = vmatprep.subr.mxu0 0.0
  %1139 = vmatpush1.msra.mxu0 0.0
  %1140 = vmatprep.subr.mxu0 0.0
  %1141 = vmatpush1.msra.mxu0 0.0
  %1142 = vmatprep.subr.mxu0 0.0
  %1143 = vmatpush1.msra.mxu0 0.0
  %1144 = vmatprep.subr.mxu0 0.0
  %1145 = vmatpush1.msra.mxu0 0.0
  %1146 = vmatprep.subr.mxu0 0.0
  %1147 = vmatpush1.msra.mxu0 0.0
  %1148 = vmatprep.subr.mxu0 0.0
  %1149 = vmatpush1.msra.mxu0 0.0
  %1150 = vmatprep.mubr.f32.mxu0 0.0
  %1151 = vmatmul.mubr.f32.gmra.mrb[0].mxu0 %v1084
  %v1152 = vpop.f32.mrb[0].mxu0
  %v1153 = vadd.f32 0.0, %v1152
  %v1154 = vpop.f32.mrb[0].mxu0
  %1155 = vdwg.mxu0
  %v1156 = vld [vmem:[%s7] sm:$0xff]
  %v1157 = vld [vmem:[%s7 + $0x8] sm:$0xff]
  %v1158 = vld [vmem:[%s7 + $0x10] sm:$0xff]
  %v1159 = vld [vmem:[%s7 + $0x18] sm:$0xff]
  %v1160 = vld [vmem:[%s7 + $0x20] sm:$0xff]
  %v1161 = vld [vmem:[%s7 + $0x28] sm:$0xff]
  %v1162 = vld [vmem:[%s7 + $0x30] sm:$0xff]
  %v1163 = vld [vmem:[%s7 + $0x38] sm:$0xff]
  %v1164 = vld [vmem:[%s7 + $0x40] sm:$0xff]
  %v1165 = vld [vmem:[%s7 + $0x48] sm:$0xff]
  %v1166 = vld [vmem:[%s7 + $0x50] sm:$0xff]
  %v1167 = vld [vmem:[%s7 + $0x58] sm:$0xff]
  %v1168 = vld [vmem:[%s7 + $0x60] sm:$0xff]
  %v1169 = vld [vmem:[%s7 + $0x68] sm:$0xff]
  %v1170 = vld [vmem:[%s7 + $0x70] sm:$0xff]
  %v1171 = vld [vmem:[%s7 + $0x78] sm:$0xff]
  %s1172 = scalar_lea.vmem %s6, 8
  %v1173 = vld [vmem:[%s1172] sm:$0xff]
  %v1175 = vsel %vm1082, %v1173, 0
  %1177 = vmatprep.subr.mxu0 0.0
  %1178 = vmatpush1.msra.mxu0 %v1079
  %1179 = vmatprep.subr.mxu0 0.0
  %1180 = vmatpush1.msra.mxu0 %v1080
  %1181 = vmatprep.subr.mxu0 0.0
  %1182 = vmatpush1.msra.mxu0 0.0
  %1183 = vmatprep.subr.mxu0 0.0
  %1184 = vmatpush1.msra.mxu0 0.0
  %1185 = vmatprep.subr.mxu0 0.0
  %1186 = vmatpush1.msra.mxu0 0.0
  %1187 = vmatprep.subr.mxu0 0.0
  %1188 = vmatpush1.msra.mxu0 0.0
  %1189 = vmatprep.subr.mxu0 0.0
  %1190 = vmatpush1.msra.mxu0 0.0
  %1191 = vmatprep.subr.mxu0 0.0
  %1192 = vmatpush1.msra.mxu0 0.0
  %1193 = vmatprep.subr.mxu0 0.0
  %1194 = vmatpush1.msra.mxu0 0.0
  %1195 = vmatprep.subr.mxu0 0.0
  %1196 = vmatpush1.msra.mxu0 0.0
  %1197 = vmatprep.subr.mxu0 0.0
  %1198 = vmatpush1.msra.mxu0 0.0
  %1199 = vmatprep.subr.mxu0 0.0
  %1200 = vmatpush1.msra.mxu0 0.0
  %1201 = vmatprep.subr.mxu0 0.0
  %1202 = vmatpush1.msra.mxu0 0.0
  %1203 = vmatprep.subr.mxu0 0.0
  %1204 = vmatpush1.msra.mxu0 0.0
  %1205 = vmatprep.subr.mxu0 0.0
  %1206 = vmatpush1.msra.mxu0 0.0
  %1207 = vmatprep.subr.mxu0 0.0
  %1208 = vmatpush1.msra.mxu0 0.0
  %1209 = vmatprep.subr.mxu0 0.0
  %1210 = vmatpush1.msra.mxu0 0.0
  %1211 = vmatprep.subr.mxu0 0.0
  %1212 = vmatpush1.msra.mxu0 0.0
  %1213 = vmatprep.subr.mxu0 0.0
  %1214 = vmatpush1.msra.mxu0 0.0
  %1215 = vmatprep.subr.mxu0 0.0
  %1216 = vmatpush1.msra.mxu0 0.0
  %1217 = vmatprep.subr.mxu0 0.0
  %1218 = vmatpush1.msra.mxu0 0.0
  %1219 = vmatprep.subr.mxu0 0.0
  %1220 = vmatpush1.msra.mxu0 0.0
  %1221 = vmatprep.subr.mxu0 0.0
  %1222 = vmatpush1.msra.mxu0 0.0
  %1223 = vmatprep.subr.mxu0 0.0
  %1224 = vmatpush1.msra.mxu0 0.0
  %1225 = vmatprep.subr.mxu0 0.0
  %1226 = vmatpush1.msra.mxu0 0.0
  %1227 = vmatprep.subr.mxu0 0.0
  %1228 = vmatpush1.msra.mxu0 0.0
  %1229 = vmatprep.subr.mxu0 0.0
  %1230 = vmatpush1.msra.mxu0 0.0
  %1231 = vmatprep.subr.mxu0 0.0
  %1232 = vmatpush1.msra.mxu0 0.0
  %1233 = vmatprep.subr.mxu0 0.0
  %1234 = vmatpush1.msra.mxu0 0.0
  %1235 = vmatprep.subr.mxu0 0.0
  %1236 = vmatpush1.msra.mxu0 0.0
  %1237 = vmatprep.subr.mxu0 0.0
  %1238 = vmatpush1.msra.mxu0 0.0
  %1239 = vmatprep.subr.mxu0 0.0
  %1240 = vmatpush1.msra.mxu0 0.0
  %1241 = vmatprep.mubr.f32.mxu0 0.0
  %1242 = vmatmul.mubr.f32.gmra.mrb[0].mxu0 %v1175
  %v1243 = vpop.f32.mrb[0].mxu0
  %v1244 = vadd.f32 0.0, %v1243
  %v1245 = vpop.f32.mrb[0].mxu0
  %1246 = vdwg.mxu0
  %s1247 = scalar_lea.vmem %s7, 128
  %v1248 = vld [vmem:[%s1247] sm:$0xff]
  %v1249 = vld [vmem:[%s1247 + $0x8] sm:$0xff]
  %v1250 = vld [vmem:[%s1247 + $0x10] sm:$0xff]
  %v1251 = vld [vmem:[%s1247 + $0x18] sm:$0xff]
  %v1252 = vld [vmem:[%s1247 + $0x20] sm:$0xff]
  %v1253 = vld [vmem:[%s1247 + $0x28] sm:$0xff]
  %v1254 = vld [vmem:[%s1247 + $0x30] sm:$0xff]
  %v1255 = vld [vmem:[%s1247 + $0x38] sm:$0xff]
  %v1256 = vld [vmem:[%s1247 + $0x40] sm:$0xff]
  %v1257 = vld [vmem:[%s1247 + $0x48] sm:$0xff]
  %v1258 = vld [vmem:[%s1247 + $0x50] sm:$0xff]
  %v1259 = vld [vmem:[%s1247 + $0x58] sm:$0xff]
  %v1260 = vld [vmem:[%s1247 + $0x60] sm:$0xff]
  %v1261 = vld [vmem:[%s1247 + $0x68] sm:$0xff]
  %v1262 = vld [vmem:[%s1247 + $0x70] sm:$0xff]
  %v1263 = vld [vmem:[%s1247 + $0x78] sm:$0xff]
  %1264 = vmatprep.subr.mxu0 0.0
  %1265 = vmatpush1.msra.mxu0 %v1248
  %1266 = vmatprep.subr.mxu0 0.0
  %1267 = vmatpush1.msra.mxu0 %v1249
  %1268 = vmatprep.subr.mxu0 0.0
  %1269 = vmatpush1.msra.mxu0 %v1250
  %1270 = vmatprep.subr.mxu0 0.0
  %1271 = vmatpush1.msra.mxu0 %v1251
  %1272 = vmatprep.subr.mxu0 0.0
  %1273 = vmatpush1.msra.mxu0 %v1252
  %1274 = vmatprep.subr.mxu0 0.0
  %1275 = vmatpush1.msra.mxu0 %v1253
  %1276 = vmatprep.subr.mxu0 0.0
  %1277 = vmatpush1.msra.mxu0 %v1254
  %1278 = vmatprep.subr.mxu0 0.0
  %1279 = vmatpush1.msra.mxu0 %v1255
  %1280 = vmatprep.subr.mxu0 0.0
  %1281 = vmatpush1.msra.mxu0 %v1256
  %1282 = vmatprep.subr.mxu0 0.0
  %1283 = vmatpush1.msra.mxu0 %v1257
  %1284 = vmatprep.subr.mxu0 0.0
  %1285 = vmatpush1.msra.mxu0 %v1258
  %1286 = vmatprep.subr.mxu0 0.0
  %1287 = vmatpush1.msra.mxu0 %v1259
  %1288 = vmatprep.subr.mxu0 0.0
  %1289 = vmatpush1.msra.mxu0 %v1260
  %1290 = vmatprep.subr.mxu0 0.0
  %1291 = vmatpush1.msra.mxu0 %v1261
  %1292 = vmatprep.subr.mxu0 0.0
  %1293 = vmatpush1.msra.mxu0 %v1262
  %1294 = vmatprep.subr.mxu0 0.0
  %1295 = vmatpush1.msra.mxu0 %v1263
  %1296 = vmatprep.subr.mxu0 0.0
  %1297 = vmatpush1.msra.mxu0 0.0
  %1298 = vmatprep.subr.mxu0 0.0
  %1299 = vmatpush1.msra.mxu0 0.0
  %1300 = vmatprep.subr.mxu0 0.0
  %1301 = vmatpush1.msra.mxu0 0.0
  %1302 = vmatprep.subr.mxu0 0.0
  %1303 = vmatpush1.msra.mxu0 0.0
  %1304 = vmatprep.subr.mxu0 0.0
  %1305 = vmatpush1.msra.mxu0 0.0
  %1306 = vmatprep.subr.mxu0 0.0
  %1307 = vmatpush1.msra.mxu0 0.0
  %1308 = vmatprep.subr.mxu0 0.0
  %1309 = vmatpush1.msra.mxu0 0.0
  %1310 = vmatprep.subr.mxu0 0.0
  %1311 = vmatpush1.msra.mxu0 0.0
  %1312 = vmatprep.subr.mxu0 0.0
  %1313 = vmatpush1.msra.mxu0 0.0
  %1314 = vmatprep.subr.mxu0 0.0
  %1315 = vmatpush1.msra.mxu0 0.0
  %1316 = vmatprep.subr.mxu0 0.0
  %1317 = vmatpush1.msra.mxu0 0.0
  %1318 = vmatprep.subr.mxu0 0.0
  %1319 = vmatpush1.msra.mxu0 0.0
  %1320 = vmatprep.subr.mxu0 0.0
  %1321 = vmatpush1.msra.mxu0 0.0
  %1322 = vmatprep.subr.mxu0 0.0
  %1323 = vmatpush1.msra.mxu0 0.0
  %1324 = vmatprep.subr.mxu0 0.0
  %1325 = vmatpush1.msra.mxu0 0.0
  %1326 = vmatprep.subr.mxu0 0.0
  %1327 = vmatpush1.msra.mxu0 0.0
  %1328 = vmatprep.mubr.f32.mxu0 0.0
  %1329 = vmatmul.mubr.f32.gmra.mrb[0].mxu0 %v1244
  %v1330 = vpop.f32.mrb[0].mxu0
  %v1331 = vadd.f32 0.0, %v1330
  %v1332 = vpop.f32.mrb[0].mxu0
  %1333 = vdwg.mxu0
  %1334 = vmatprep.subr.mxu0 0.0
  %1335 = vmatpush1.msra.mxu0 %v1156
  %1336 = vmatprep.subr.mxu0 0.0
  %1337 = vmatpush1.msra.mxu0 %v1157
  %1338 = vmatprep.subr.mxu0 0.0
  %1339 = vmatpush1.msra.mxu0 %v1158
  %1340 = vmatprep.subr.mxu0 0.0
  %1341 = vmatpush1.msra.mxu0 %v1159
  %1342 = vmatprep.subr.mxu0 0.0
  %1343 = vmatpush1.msra.mxu0 %v1160
  %1344 = vmatprep.subr.mxu0 0.0
  %1345 = vmatpush1.msra.mxu0 %v1161
  %1346 = vmatprep.subr.mxu0 0.0
  %1347 = vmatpush1.msra.mxu0 %v1162
  %1348 = vmatprep.subr.mxu0 0.0
  %1349 = vmatpush1.msra.mxu0 %v1163
  %1350 = vmatprep.subr.mxu0 0.0
  %1351 = vmatpush1.msra.mxu0 %v1164
  %1352 = vmatprep.subr.mxu0 0.0
  %1353 = vmatpush1.msra.mxu0 %v1165
  %1354 = vmatprep.subr.mxu0 0.0
  %1355 = vmatpush1.msra.mxu0 %v1166
  %1356 = vmatprep.subr.mxu0 0.0
  %1357 = vmatpush1.msra.mxu0 %v1167
  %1358 = vmatprep.subr.mxu0 0.0
  %1359 = vmatpush1.msra.mxu0 %v1168
  %1360 = vmatprep.subr.mxu0 0.0
  %1361 = vmatpush1.msra.mxu0 %v1169
  %1362 = vmatprep.subr.mxu0 0.0
  %1363 = vmatpush1.msra.mxu0 %v1170
  %1364 = vmatprep.subr.mxu0 0.0
  %1365 = vmatpush1.msra.mxu0 %v1171
  %1366 = vmatprep.subr.mxu0 0.0
  %1367 = vmatpush1.msra.mxu0 0.0
  %1368 = vmatprep.subr.mxu0 0.0
  %1369 = vmatpush1.msra.mxu0 0.0
  %1370 = vmatprep.subr.mxu0 0.0
  %1371 = vmatpush1.msra.mxu0 0.0
  %1372 = vmatprep.subr.mxu0 0.0
  %1373 = vmatpush1.msra.mxu0 0.0
  %1374 = vmatprep.subr.mxu0 0.0
  %1375 = vmatpush1.msra.mxu0 0.0
  %1376 = vmatprep.subr.mxu0 0.0
  %1377 = vmatpush1.msra.mxu0 0.0
  %1378 = vmatprep.subr.mxu0 0.0
  %1379 = vmatpush1.msra.mxu0 0.0
  %1380 = vmatprep.subr.mxu0 0.0
  %1381 = vmatpush1.msra.mxu0 0.0
  %1382 = vmatprep.subr.mxu0 0.0
  %1383 = vmatpush1.msra.mxu0 0.0
  %1384 = vmatprep.subr.mxu0 0.0
  %1385 = vmatpush1.msra.mxu0 0.0
  %1386 = vmatprep.subr.mxu0 0.0
  %1387 = vmatpush1.msra.mxu0 0.0
  %1388 = vmatprep.subr.mxu0 0.0
  %1389 = vmatpush1.msra.mxu0 0.0
  %1390 = vmatprep.subr.mxu0 0.0
  %1391 = vmatpush1.msra.mxu0 0.0
  %1392 = vmatprep.subr.mxu0 0.0
  %1393 = vmatpush1.msra.mxu0 0.0
  %1394 = vmatprep.subr.mxu0 0.0
  %1395 = vmatpush1.msra.mxu0 0.0
  %1396 = vmatprep.subr.mxu0 0.0
  %1397 = vmatpush1.msra.mxu0 0.0
  %1398 = vmatprep.mubr.f32.mxu0 0.0
  %1399 = vmatmul.mubr.f32.gmra.mrb[0].mxu0 %v1153
  %v1400 = vpop.f32.mrb[0].mxu0
  %v1401 = vadd.f32 %v1331, %v1400
  %v1402 = vpop.f32.mrb[0].mxu0
  %1403 = vdwg.mxu0
  %s1404 = scalar_lea.vmem %s6, 16
  %v1405 = vld [vmem:[%s1404] sm:$0xff]
  %v1407 = vsel %vm1082, %v1405, 0
  %1409 = vmatprep.subr.mxu0 0.0
  %1410 = vmatpush1.msra.mxu0 %v1079
  %1411 = vmatprep.subr.mxu0 0.0
  %1412 = vmatpush1.msra.mxu0 %v1080
  %1413 = vmatprep.subr.mxu0 0.0
  %1414 = vmatpush1.msra.mxu0 0.0
  %1415 = vmatprep.subr.mxu0 0.0
  %1416 = vmatpush1.msra.mxu0 0.0
  %1417 = vmatprep.subr.mxu0 0.0
  %1418 = vmatpush1.msra.mxu0 0.0
  %1419 = vmatprep.subr.mxu0 0.0
  %1420 = vmatpush1.msra.mxu0 0.0
  %1421 = vmatprep.subr.mxu0 0.0
  %1422 = vmatpush1.msra.mxu0 0.0
  %1423 = vmatprep.subr.mxu0 0.0
  %1424 = vmatpush1.msra.mxu0 0.0
  %1425 = vmatprep.subr.mxu0 0.0
  %1426 = vmatpush1.msra.mxu0 0.0
  %1427 = vmatprep.subr.mxu0 0.0
  %1428 = vmatpush1.msra.mxu0 0.0
  %1429 = vmatprep.subr.mxu0 0.0
  %1430 = vmatpush1.msra.mxu0 0.0
  %1431 = vmatprep.subr.mxu0 0.0
  %1432 = vmatpush1.msra.mxu0 0.0
  %1433 = vmatprep.subr.mxu0 0.0
  %1434 = vmatpush1.msra.mxu0 0.0
  %1435 = vmatprep.subr.mxu0 0.0
  %1436 = vmatpush1.msra.mxu0 0.0
  %1437 = vmatprep.subr.mxu0 0.0
  %1438 = vmatpush1.msra.mxu0 0.0
  %1439 = vmatprep.subr.mxu0 0.0
  %1440 = vmatpush1.msra.mxu0 0.0
  %1441 = vmatprep.subr.mxu0 0.0
  %1442 = vmatpush1.msra.mxu0 0.0
  %1443 = vmatprep.subr.mxu0 0.0
  %1444 = vmatpush1.msra.mxu0 0.0
  %1445 = vmatprep.subr.mxu0 0.0
  %1446 = vmatpush1.msra.mxu0 0.0
  %1447 = vmatprep.subr.mxu0 0.0
  %1448 = vmatpush1.msra.mxu0 0.0
  %1449 = vmatprep.subr.mxu0 0.0
  %1450 = vmatpush1.msra.mxu0 0.0
  %1451 = vmatprep.subr.mxu0 0.0
  %1452 = vmatpush1.msra.mxu0 0.0
  %1453 = vmatprep.subr.mxu0 0.0
  %1454 = vmatpush1.msra.mxu0 0.0
  %1455 = vmatprep.subr.mxu0 0.0
  %1456 = vmatpush1.msra.mxu0 0.0
  %1457 = vmatprep.subr.mxu0 0.0
  %1458 = vmatpush1.msra.mxu0 0.0
  %1459 = vmatprep.subr.mxu0 0.0
  %1460 = vmatpush1.msra.mxu0 0.0
  %1461 = vmatprep.subr.mxu0 0.0
  %1462 = vmatpush1.msra.mxu0 0.0
  %1463 = vmatprep.subr.mxu0 0.0
  %1464 = vmatpush1.msra.mxu0 0.0
  %1465 = vmatprep.subr.mxu0 0.0
  %1466 = vmatpush1.msra.mxu0 0.0
  %1467 = vmatprep.subr.mxu0 0.0
  %1468 = vmatpush1.msra.mxu0 0.0
  %1469 = vmatprep.subr.mxu0 0.0
  %1470 = vmatpush1.msra.mxu0 0.0
  %1471 = vmatprep.subr.mxu0 0.0
  %1472 = vmatpush1.msra.mxu0 0.0
  %1473 = vmatprep.mubr.f32.mxu0 0.0
  %1474 = vmatmul.mubr.f32.gmra.mrb[0].mxu0 %v1407
  %v1475 = vpop.f32.mrb[0].mxu0
  %v1476 = vadd.f32 0.0, %v1475
  %v1477 = vpop.f32.mrb[0].mxu0
  %1478 = vdwg.mxu0
  %s1479 = scalar_lea.vmem %s7, 256
  %v1480 = vld [vmem:[%s1479] sm:$0xff]
  %v1481 = vld [vmem:[%s1479 + $0x8] sm:$0xff]
  %v1482 = vld [vmem:[%s1479 + $0x10] sm:$0xff]
  %v1483 = vld [vmem:[%s1479 + $0x18] sm:$0xff]
  %v1484 = vld [vmem:[%s1479 + $0x20] sm:$0xff]
  %v1485 = vld [vmem:[%s1479 + $0x28] sm:$0xff]
  %v1486 = vld [vmem:[%s1479 + $0x30] sm:$0xff]
  %v1487 = vld [vmem:[%s1479 + $0x38] sm:$0xff]
  %v1488 = vld [vmem:[%s1479 + $0x40] sm:$0xff]
  %v1489 = vld [vmem:[%s1479 + $0x48] sm:$0xff]
  %v1490 = vld [vmem:[%s1479 + $0x50] sm:$0xff]
  %v1491 = vld [vmem:[%s1479 + $0x58] sm:$0xff]
  %v1492 = vld [vmem:[%s1479 + $0x60] sm:$0xff]
  %v1493 = vld [vmem:[%s1479 + $0x68] sm:$0xff]
  %v1494 = vld [vmem:[%s1479 + $0x70] sm:$0xff]
  %v1495 = vld [vmem:[%s1479 + $0x78] sm:$0xff]
  %1496 = vmatprep.subr.mxu0 0.0
  %1497 = vmatpush1.msra.mxu0 %v1480
  %1498 = vmatprep.subr.mxu0 0.0
  %1499 = vmatpush1.msra.mxu0 %v1481
  %1500 = vmatprep.subr.mxu0 0.0
  %1501 = vmatpush1.msra.mxu0 %v1482
  %1502 = vmatprep.subr.mxu0 0.0
  %1503 = vmatpush1.msra.mxu0 %v1483
  %1504 = vmatprep.subr.mxu0 0.0
  %1505 = vmatpush1.msra.mxu0 %v1484
  %1506 = vmatprep.subr.mxu0 0.0
  %1507 = vmatpush1.msra.mxu0 %v1485
  %1508 = vmatprep.subr.mxu0 0.0
  %1509 = vmatpush1.msra.mxu0 %v1486
  %1510 = vmatprep.subr.mxu0 0.0
  %1511 = vmatpush1.msra.mxu0 %v1487
  %1512 = vmatprep.subr.mxu0 0.0
  %1513 = vmatpush1.msra.mxu0 %v1488
  %1514 = vmatprep.subr.mxu0 0.0
  %1515 = vmatpush1.msra.mxu0 %v1489
  %1516 = vmatprep.subr.mxu0 0.0
  %1517 = vmatpush1.msra.mxu0 %v1490
  %1518 = vmatprep.subr.mxu0 0.0
  %1519 = vmatpush1.msra.mxu0 %v1491
  %1520 = vmatprep.subr.mxu0 0.0
  %1521 = vmatpush1.msra.mxu0 %v1492
  %1522 = vmatprep.subr.mxu0 0.0
  %1523 = vmatpush1.msra.mxu0 %v1493
  %1524 = vmatprep.subr.mxu0 0.0
  %1525 = vmatpush1.msra.mxu0 %v1494
  %1526 = vmatprep.subr.mxu0 0.0
  %1527 = vmatpush1.msra.mxu0 %v1495
  %1528 = vmatprep.subr.mxu0 0.0
  %1529 = vmatpush1.msra.mxu0 0.0
  %1530 = vmatprep.subr.mxu0 0.0
  %1531 = vmatpush1.msra.mxu0 0.0
  %1532 = vmatprep.subr.mxu0 0.0
  %1533 = vmatpush1.msra.mxu0 0.0
  %1534 = vmatprep.subr.mxu0 0.0
  %1535 = vmatpush1.msra.mxu0 0.0
  %1536 = vmatprep.subr.mxu0 0.0
  %1537 = vmatpush1.msra.mxu0 0.0
  %1538 = vmatprep.subr.mxu0 0.0
  %1539 = vmatpush1.msra.mxu0 0.0
  %1540 = vmatprep.subr.mxu0 0.0
  %1541 = vmatpush1.msra.mxu0 0.0
  %1542 = vmatprep.subr.mxu0 0.0
  %1543 = vmatpush1.msra.mxu0 0.0
  %1544 = vmatprep.subr.mxu0 0.0
  %1545 = vmatpush1.msra.mxu0 0.0
  %1546 = vmatprep.subr.mxu0 0.0
  %1547 = vmatpush1.msra.mxu0 0.0
  %1548 = vmatprep.subr.mxu0 0.0
  %1549 = vmatpush1.msra.mxu0 0.0
  %1550 = vmatprep.subr.mxu0 0.0
  %1551 = vmatpush1.msra.mxu0 0.0
  %1552 = vmatprep.subr.mxu0 0.0
  %1553 = vmatpush1.msra.mxu0 0.0
  %1554 = vmatprep.subr.mxu0 0.0
  %1555 = vmatpush1.msra.mxu0 0.0
  %1556 = vmatprep.subr.mxu0 0.0
  %1557 = vmatpush1.msra.mxu0 0.0
  %1558 = vmatprep.subr.mxu0 0.0
  %1559 = vmatpush1.msra.mxu0 0.0
  %1560 = vmatprep.mubr.f32.mxu0 0.0
  %1561 = vmatmul.mubr.f32.gmra.mrb[0].mxu0 %v1476
  %v1562 = vpop.f32.mrb[0].mxu0
  %v1563 = vadd.f32 0.0, %v1562
  %v1564 = vpop.f32.mrb[0].mxu0
  %1565 = vdwg.mxu0
  %v1566 = vadd.f32 %v1401, %v1563
  %s1567 = scalar_lea.vmem %s6, 24
  %v1568 = vld [vmem:[%s1567] sm:$0xff]
  %v1570 = vsel %vm1082, %v1568, 0
  %1572 = vmatprep.subr.mxu0 0.0
  %1573 = vmatpush1.msra.mxu0 %v1079
  %1574 = vmatprep.subr.mxu0 0.0
  %1575 = vmatpush1.msra.mxu0 %v1080
  %1576 = vmatprep.subr.mxu0 0.0
  %1577 = vmatpush1.msra.mxu0 0.0
  %1578 = vmatprep.subr.mxu0 0.0
  %1579 = vmatpush1.msra.mxu0 0.0
  %1580 = vmatprep.subr.mxu0 0.0
  %1581 = vmatpush1.msra.mxu0 0.0
  %1582 = vmatprep.subr.mxu0 0.0
  %1583 = vmatpush1.msra.mxu0 0.0
  %1584 = vmatprep.subr.mxu0 0.0
  %1585 = vmatpush1.msra.mxu0 0.0
  %1586 = vmatprep.subr.mxu0 0.0
  %1587 = vmatpush1.msra.mxu0 0.0
  %1588 = vmatprep.subr.mxu0 0.0
  %1589 = vmatpush1.msra.mxu0 0.0
  %1590 = vmatprep.subr.mxu0 0.0
  %1591 = vmatpush1.msra.mxu0 0.0
  %1592 = vmatprep.subr.mxu0 0.0
  %1593 = vmatpush1.msra.mxu0 0.0
  %1594 = vmatprep.subr.mxu0 0.0
  %1595 = vmatpush1.msra.mxu0 0.0
  %1596 = vmatprep.subr.mxu0 0.0
  %1597 = vmatpush1.msra.mxu0 0.0
  %1598 = vmatprep.subr.mxu0 0.0
  %1599 = vmatpush1.msra.mxu0 0.0
  %1600 = vmatprep.subr.mxu0 0.0
  %1601 = vmatpush1.msra.mxu0 0.0
  %1602 = vmatprep.subr.mxu0 0.0
  %1603 = vmatpush1.msra.mxu0 0.0
  %1604 = vmatprep.subr.mxu0 0.0
  %1605 = vmatpush1.msra.mxu0 0.0
  %1606 = vmatprep.subr.mxu0 0.0
  %1607 = vmatpush1.msra.mxu0 0.0
  %1608 = vmatprep.subr.mxu0 0.0
  %1609 = vmatpush1.msra.mxu0 0.0
  %1610 = vmatprep.subr.mxu0 0.0
  %1611 = vmatpush1.msra.mxu0 0.0
  %1612 = vmatprep.subr.mxu0 0.0
  %1613 = vmatpush1.msra.mxu0 0.0
  %1614 = vmatprep.subr.mxu0 0.0
  %1615 = vmatpush1.msra.mxu0 0.0
  %1616 = vmatprep.subr.mxu0 0.0
  %1617 = vmatpush1.msra.mxu0 0.0
  %1618 = vmatprep.subr.mxu0 0.0
  %1619 = vmatpush1.msra.mxu0 0.0
  %1620 = vmatprep.subr.mxu0 0.0
  %1621 = vmatpush1.msra.mxu0 0.0
  %1622 = vmatprep.subr.mxu0 0.0
  %1623 = vmatpush1.msra.mxu0 0.0
  %1624 = vmatprep.subr.mxu0 0.0
  %1625 = vmatpush1.msra.mxu0 0.0
  %1626 = vmatprep.subr.mxu0 0.0
  %1627 = vmatpush1.msra.mxu0 0.0
  %1628 = vmatprep.subr.mxu0 0.0
  %1629 = vmatpush1.msra.mxu0 0.0
  %1630 = vmatprep.subr.mxu0 0.0
  %1631 = vmatpush1.msra.mxu0 0.0
  %1632 = vmatprep.subr.mxu0 0.0
  %1633 = vmatpush1.msra.mxu0 0.0
  %1634 = vmatprep.subr.mxu0 0.0
  %1635 = vmatpush1.msra.mxu0 0.0
  %1636 = vmatprep.mubr.f32.mxu0 0.0
  %1637 = vmatmul.mubr.f32.gmra.mrb[0].mxu0 %v1570
  %v1638 = vpop.f32.mrb[0].mxu0
  %v1639 = vadd.f32 0.0, %v1638
  %v1640 = vpop.f32.mrb[0].mxu0
  %1641 = vdwg.mxu0
  %s1642 = scalar_lea.vmem %s7, 384
  %v1643 = vld [vmem:[%s1642] sm:$0xff]
  %v1644 = vld [vmem:[%s1642 + $0x8] sm:$0xff]
  %v1645 = vld [vmem:[%s1642 + $0x10] sm:$0xff]
  %v1646 = vld [vmem:[%s1642 + $0x18] sm:$0xff]
  %v1647 = vld [vmem:[%s1642 + $0x20] sm:$0xff]
  %v1648 = vld [vmem:[%s1642 + $0x28] sm:$0xff]
  %v1649 = vld [vmem:[%s1642 + $0x30] sm:$0xff]
  %v1650 = vld [vmem:[%s1642 + $0x38] sm:$0xff]
  %v1651 = vld [vmem:[%s1642 + $0x40] sm:$0xff]
  %v1652 = vld [vmem:[%s1642 + $0x48] sm:$0xff]
  %v1653 = vld [vmem:[%s1642 + $0x50] sm:$0xff]
  %v1654 = vld [vmem:[%s1642 + $0x58] sm:$0xff]
  %v1655 = vld [vmem:[%s1642 + $0x60] sm:$0xff]
  %v1656 = vld [vmem:[%s1642 + $0x68] sm:$0xff]
  %v1657 = vld [vmem:[%s1642 + $0x70] sm:$0xff]
  %v1658 = vld [vmem:[%s1642 + $0x78] sm:$0xff]
  %1659 = vmatprep.subr.mxu0 0.0
  %1660 = vmatpush1.msra.mxu0 %v1643
  %1661 = vmatprep.subr.mxu0 0.0
  %1662 = vmatpush1.msra.mxu0 %v1644
  %1663 = vmatprep.subr.mxu0 0.0
  %1664 = vmatpush1.msra.mxu0 %v1645
  %1665 = vmatprep.subr.mxu0 0.0
  %1666 = vmatpush1.msra.mxu0 %v1646
  %1667 = vmatprep.subr.mxu0 0.0
  %1668 = vmatpush1.msra.mxu0 %v1647
  %1669 = vmatprep.subr.mxu0 0.0
  %1670 = vmatpush1.msra.mxu0 %v1648
  %1671 = vmatprep.subr.mxu0 0.0
  %1672 = vmatpush1.msra.mxu0 %v1649
  %1673 = vmatprep.subr.mxu0 0.0
  %1674 = vmatpush1.msra.mxu0 %v1650
  %1675 = vmatprep.subr.mxu0 0.0
  %1676 = vmatpush1.msra.mxu0 %v1651
  %1677 = vmatprep.subr.mxu0 0.0
  %1678 = vmatpush1.msra.mxu0 %v1652
  %1679 = vmatprep.subr.mxu0 0.0
  %1680 = vmatpush1.msra.mxu0 %v1653
  %1681 = vmatprep.subr.mxu0 0.0
  %1682 = vmatpush1.msra.mxu0 %v1654
  %1683 = vmatprep.subr.mxu0 0.0
  %1684 = vmatpush1.msra.mxu0 %v1655
  %1685 = vmatprep.subr.mxu0 0.0
  %1686 = vmatpush1.msra.mxu0 %v1656
  %1687 = vmatprep.subr.mxu0 0.0
  %1688 = vmatpush1.msra.mxu0 %v1657
  %1689 = vmatprep.subr.mxu0 0.0
  %1690 = vmatpush1.msra.mxu0 %v1658
  %1691 = vmatprep.subr.mxu0 0.0
  %1692 = vmatpush1.msra.mxu0 0.0
  %1693 = vmatprep.subr.mxu0 0.0
  %1694 = vmatpush1.msra.mxu0 0.0
  %1695 = vmatprep.subr.mxu0 0.0
  %1696 = vmatpush1.msra.mxu0 0.0
  %1697 = vmatprep.subr.mxu0 0.0
  %1698 = vmatpush1.msra.mxu0 0.0
  %1699 = vmatprep.subr.mxu0 0.0
  %1700 = vmatpush1.msra.mxu0 0.0
  %1701 = vmatprep.subr.mxu0 0.0
  %1702 = vmatpush1.msra.mxu0 0.0
  %1703 = vmatprep.subr.mxu0 0.0
  %1704 = vmatpush1.msra.mxu0 0.0
  %1705 = vmatprep.subr.mxu0 0.0
  %1706 = vmatpush1.msra.mxu0 0.0
  %1707 = vmatprep.subr.mxu0 0.0
  %1708 = vmatpush1.msra.mxu0 0.0
  %1709 = vmatprep.subr.mxu0 0.0
  %1710 = vmatpush1.msra.mxu0 0.0
  %1711 = vmatprep.subr.mxu0 0.0
  %1712 = vmatpush1.msra.mxu0 0.0
  %1713 = vmatprep.subr.mxu0 0.0
  %1714 = vmatpush1.msra.mxu0 0.0
  %1715 = vmatprep.subr.mxu0 0.0
  %1716 = vmatpush1.msra.mxu0 0.0
  %1717 = vmatprep.subr.mxu0 0.0
  %1718 = vmatpush1.msra.mxu0 0.0
  %1719 = vmatprep.subr.mxu0 0.0
  %1720 = vmatpush1.msra.mxu0 0.0
  %1721 = vmatprep.subr.mxu0 0.0
  %1722 = vmatpush1.msra.mxu0 0.0
  %1723 = vmatprep.mubr.f32.mxu0 0.0
  %1724 = vmatmul.mubr.f32.gmra.mrb[0].mxu0 %v1639
  %v1725 = vpop.f32.mrb[0].mxu0
  %v1726 = vadd.f32 0.0, %v1725
  %v1727 = vpop.f32.mrb[0].mxu0
  %1728 = vdwg.mxu0
  %v1729 = vadd.f32 %v1566, %v1726
  %s1730 = scalar_lea.vmem %s6, 32
  %v1731 = vld [vmem:[%s1730] sm:$0xff]
  %v1733 = vsel %vm1082, %v1731, 0
  %1735 = vmatprep.subr.mxu0 0.0
  %1736 = vmatpush1.msra.mxu0 %v1079
  %1737 = vmatprep.subr.mxu0 0.0
  %1738 = vmatpush1.msra.mxu0 %v1080
  %1739 = vmatprep.subr.mxu0 0.0
  %1740 = vmatpush1.msra.mxu0 0.0
  %1741 = vmatprep.subr.mxu0 0.0
  %1742 = vmatpush1.msra.mxu0 0.0
  %1743 = vmatprep.subr.mxu0 0.0
  %1744 = vmatpush1.msra.mxu0 0.0
  %1745 = vmatprep.subr.mxu0 0.0
  %1746 = vmatpush1.msra.mxu0 0.0
  %1747 = vmatprep.subr.mxu0 0.0
  %1748 = vmatpush1.msra.mxu0 0.0
  %1749 = vmatprep.subr.mxu0 0.0
  %1750 = vmatpush1.msra.mxu0 0.0
  %1751 = vmatprep.subr.mxu0 0.0
  %1752 = vmatpush1.msra.mxu0 0.0
  %1753 = vmatprep.subr.mxu0 0.0
  %1754 = vmatpush1.msra.mxu0 0.0
  %1755 = vmatprep.subr.mxu0 0.0
  %1756 = vmatpush1.msra.mxu0 0.0
  %1757 = vmatprep.subr.mxu0 0.0
  %1758 = vmatpush1.msra.mxu0 0.0
  %1759 = vmatprep.subr.mxu0 0.0
  %1760 = vmatpush1.msra.mxu0 0.0
  %1761 = vmatprep.subr.mxu0 0.0
  %1762 = vmatpush1.msra.mxu0 0.0
  %1763 = vmatprep.subr.mxu0 0.0
  %1764 = vmatpush1.msra.mxu0 0.0
  %1765 = vmatprep.subr.mxu0 0.0
  %1766 = vmatpush1.msra.mxu0 0.0
  %1767 = vmatprep.subr.mxu0 0.0
  %1768 = vmatpush1.msra.mxu0 0.0
  %1769 = vmatprep.subr.mxu0 0.0
  %1770 = vmatpush1.msra.mxu0 0.0
  %1771 = vmatprep.subr.mxu0 0.0
  %1772 = vmatpush1.msra.mxu0 0.0
  %1773 = vmatprep.subr.mxu0 0.0
  %1774 = vmatpush1.msra.mxu0 0.0
  %1775 = vmatprep.subr.mxu0 0.0
  %1776 = vmatpush1.msra.mxu0 0.0
  %1777 = vmatprep.subr.mxu0 0.0
  %1778 = vmatpush1.msra.mxu0 0.0
  %1779 = vmatprep.subr.mxu0 0.0
  %1780 = vmatpush1.msra.mxu0 0.0
  %1781 = vmatprep.subr.mxu0 0.0
  %1782 = vmatpush1.msra.mxu0 0.0
  %1783 = vmatprep.subr.mxu0 0.0
  %1784 = vmatpush1.msra.mxu0 0.0
  %1785 = vmatprep.subr.mxu0 0.0
  %1786 = vmatpush1.msra.mxu0 0.0
  %1787 = vmatprep.subr.mxu0 0.0
  %1788 = vmatpush1.msra.mxu0 0.0
  %1789 = vmatprep.subr.mxu0 0.0
  %1790 = vmatpush1.msra.mxu0 0.0
  %1791 = vmatprep.subr.mxu0 0.0
  %1792 = vmatpush1.msra.mxu0 0.0
  %1793 = vmatprep.subr.mxu0 0.0
  %1794 = vmatpush1.msra.mxu0 0.0
  %1795 = vmatprep.subr.mxu0 0.0
  %1796 = vmatpush1.msra.mxu0 0.0
  %1797 = vmatprep.subr.mxu0 0.0
  %1798 = vmatpush1.msra.mxu0 0.0
  %1799 = vmatprep.mubr.f32.mxu0 0.0
  %1800 = vmatmul.mubr.f32.gmra.mrb[0].mxu0 %v1733
  %v1801 = vpop.f32.mrb[0].mxu0
  %v1802 = vadd.f32 0.0, %v1801
  %v1803 = vpop.f32.mrb[0].mxu0
  %1804 = vdwg.mxu0
  %s1805 = scalar_lea.vmem %s7, 512
  %v1806 = vld [vmem:[%s1805] sm:$0xff]
  %v1807 = vld [vmem:[%s1805 + $0x8] sm:$0xff]
  %v1808 = vld [vmem:[%s1805 + $0x10] sm:$0xff]
  %v1809 = vld [vmem:[%s1805 + $0x18] sm:$0xff]
  %v1810 = vld [vmem:[%s1805 + $0x20] sm:$0xff]
  %v1811 = vld [vmem:[%s1805 + $0x28] sm:$0xff]
  %v1812 = vld [vmem:[%s1805 + $0x30] sm:$0xff]
  %v1813 = vld [vmem:[%s1805 + $0x38] sm:$0xff]
  %v1814 = vld [vmem:[%s1805 + $0x40] sm:$0xff]
  %v1815 = vld [vmem:[%s1805 + $0x48] sm:$0xff]
  %v1816 = vld [vmem:[%s1805 + $0x50] sm:$0xff]
  %v1817 = vld [vmem:[%s1805 + $0x58] sm:$0xff]
  %v1818 = vld [vmem:[%s1805 + $0x60] sm:$0xff]
  %v1819 = vld [vmem:[%s1805 + $0x68] sm:$0xff]
  %v1820 = vld [vmem:[%s1805 + $0x70] sm:$0xff]
  %v1821 = vld [vmem:[%s1805 + $0x78] sm:$0xff]
  %1822 = vmatprep.subr.mxu0 0.0
  %1823 = vmatpush1.msra.mxu0 %v1806
  %1824 = vmatprep.subr.mxu0 0.0
  %1825 = vmatpush1.msra.mxu0 %v1807
  %1826 = vmatprep.subr.mxu0 0.0
  %1827 = vmatpush1.msra.mxu0 %v1808
  %1828 = vmatprep.subr.mxu0 0.0
  %1829 = vmatpush1.msra.mxu0 %v1809
  %1830 = vmatprep.subr.mxu0 0.0
  %1831 = vmatpush1.msra.mxu0 %v1810
  %1832 = vmatprep.subr.mxu0 0.0
  %1833 = vmatpush1.msra.mxu0 %v1811
  %1834 = vmatprep.subr.mxu0 0.0
  %1835 = vmatpush1.msra.mxu0 %v1812
  %1836 = vmatprep.subr.mxu0 0.0
  %1837 = vmatpush1.msra.mxu0 %v1813
  %1838 = vmatprep.subr.mxu0 0.0
  %1839 = vmatpush1.msra.mxu0 %v1814
  %1840 = vmatprep.subr.mxu0 0.0
  %1841 = vmatpush1.msra.mxu0 %v1815
  %1842 = vmatprep.subr.mxu0 0.0
  %1843 = vmatpush1.msra.mxu0 %v1816
  %1844 = vmatprep.subr.mxu0 0.0
  %1845 = vmatpush1.msra.mxu0 %v1817
  %1846 = vmatprep.subr.mxu0 0.0
  %1847 = vmatpush1.msra.mxu0 %v1818
  %1848 = vmatprep.subr.mxu0 0.0
  %1849 = vmatpush1.msra.mxu0 %v1819
  %1850 = vmatprep.subr.mxu0 0.0
  %1851 = vmatpush1.msra.mxu0 %v1820
  %1852 = vmatprep.subr.mxu0 0.0
  %1853 = vmatpush1.msra.mxu0 %v1821
  %1854 = vmatprep.subr.mxu0 0.0
  %1855 = vmatpush1.msra.mxu0 0.0
  %1856 = vmatprep.subr.mxu0 0.0
  %1857 = vmatpush1.msra.mxu0 0.0
  %1858 = vmatprep.subr.mxu0 0.0
  %1859 = vmatpush1.msra.mxu0 0.0
  %1860 = vmatprep.subr.mxu0 0.0
  %1861 = vmatpush1.msra.mxu0 0.0
  %1862 = vmatprep.subr.mxu0 0.0
  %1863 = vmatpush1.msra.mxu0 0.0
  %1864 = vmatprep.subr.mxu0 0.0
  %1865 = vmatpush1.msra.mxu0 0.0
  %1866 = vmatprep.subr.mxu0 0.0
  %1867 = vmatpush1.msra.mxu0 0.0
  %1868 = vmatprep.subr.mxu0 0.0
  %1869 = vmatpush1.msra.mxu0 0.0
  %1870 = vmatprep.subr.mxu0 0.0
  %1871 = vmatpush1.msra.mxu0 0.0
  %1872 = vmatprep.subr.mxu0 0.0
  %1873 = vmatpush1.msra.mxu0 0.0
  %1874 = vmatprep.subr.mxu0 0.0
  %1875 = vmatpush1.msra.mxu0 0.0
  %1876 = vmatprep.subr.mxu0 0.0
  %1877 = vmatpush1.msra.mxu0 0.0
  %1878 = vmatprep.subr.mxu0 0.0
  %1879 = vmatpush1.msra.mxu0 0.0
  %1880 = vmatprep.subr.mxu0 0.0
  %1881 = vmatpush1.msra.mxu0 0.0
  %1882 = vmatprep.subr.mxu0 0.0
  %1883 = vmatpush1.msra.mxu0 0.0
  %1884 = vmatprep.subr.mxu0 0.0
  %1885 = vmatpush1.msra.mxu0 0.0
  %1886 = vmatprep.mubr.f32.mxu0 0.0
  %1887 = vmatmul.mubr.f32.gmra.mrb[0].mxu0 %v1802
  %v1888 = vpop.f32.mrb[0].mxu0
  %v1889 = vadd.f32 0.0, %v1888
  %v1890 = vpop.f32.mrb[0].mxu0
  %1891 = vdwg.mxu0
  %v1892 = vadd.f32 %v1729, %v1889
  %v1893 = vld [vmem:[%s8] sm:$0x1]
  %v1895 = vlaneseq
  %v1896 = vshrl.u32 %v1895, 7
  %v1897 = vsub.s32 0, %v1896
  %v1898 = vrot.slane %v1893, %v1897
  %v1900 = vadd.f32 %v1892, %v1898
  %v1901 = vmul.f32 %v1900, %v1900
  %v1902 = vld [vmem:[%s9] sm:$0xff]
  %v1903 = vld [vmem:[%s9 + $0x8] sm:$0xff]
  %v1904 = vld [vmem:[%s9 + $0x10] sm:$0xff]
  %v1905 = vld [vmem:[%s9 + $0x18] sm:$0xff]
  %v1906 = vld [vmem:[%s9 + $0x20] sm:$0xff]
  %v1907 = vld [vmem:[%s9 + $0x28] sm:$0xff]
  %v1908 = vld [vmem:[%s9 + $0x30] sm:$0xff]
  %v1909 = vld [vmem:[%s9 + $0x38] sm:$0xff]
  %v1910 = vld [vmem:[%s10] sm:$0x1]
  %v1912 = vlaneseq
  %v1913 = vshrl.u32 %v1912, 7
  %v1914 = vsub.s32 0, %v1913
  %v1915 = vrot.slane %v1910, %v1914
  %v1918 = vsel %vm277, %v1901, 0
  %1920 = vmatprep.subr.mxu0 0.0
  %1921 = vmatpush1.msra.mxu0 %v1902
  %1922 = vmatprep.subr.mxu0 0.0
  %1923 = vmatpush1.msra.mxu0 %v1903
  %1924 = vmatprep.subr.mxu0 0.0
  %1925 = vmatpush1.msra.mxu0 %v1904
  %1926 = vmatprep.subr.mxu0 0.0
  %1927 = vmatpush1.msra.mxu0 %v1905
  %1928 = vmatprep.subr.mxu0 0.0
  %1929 = vmatpush1.msra.mxu0 %v1906
  %1930 = vmatprep.subr.mxu0 0.0
  %1931 = vmatpush1.msra.mxu0 %v1907
  %1932 = vmatprep.subr.mxu0 0.0
  %1933 = vmatpush1.msra.mxu0 %v1908
  %1934 = vmatprep.subr.mxu0 0.0
  %1935 = vmatpush1.msra.mxu0 %v1909
  %1936 = vmatprep.subr.mxu0 0.0
  %1937 = vmatpush1.msra.mxu0 0.0
  %1938 = vmatprep.subr.mxu0 0.0
  %1939 = vmatpush1.msra.mxu0 0.0
  %1940 = vmatprep.subr.mxu0 0.0
  %1941 = vmatpush1.msra.mxu0 0.0
  %1942 = vmatprep.subr.mxu0 0.0
  %1943 = vmatpush1.msra.mxu0 0.0
  %1944 = vmatprep.subr.mxu0 0.0
  %1945 = vmatpush1.msra.mxu0 0.0
  %1946 = vmatprep.subr.mxu0 0.0
  %1947 = vmatpush1.msra.mxu0 0.0
  %1948 = vmatprep.subr.mxu0 0.0
  %1949 = vmatpush1.msra.mxu0 0.0
  %1950 = vmatprep.subr.mxu0 0.0
  %1951 = vmatpush1.msra.mxu0 0.0
  %1952 = vmatprep.subr.mxu0 0.0
  %1953 = vmatpush1.msra.mxu0 0.0
  %1954 = vmatprep.subr.mxu0 0.0
  %1955 = vmatpush1.msra.mxu0 0.0
  %1956 = vmatprep.subr.mxu0 0.0
  %1957 = vmatpush1.msra.mxu0 0.0
  %1958 = vmatprep.subr.mxu0 0.0
  %1959 = vmatpush1.msra.mxu0 0.0
  %1960 = vmatprep.subr.mxu0 0.0
  %1961 = vmatpush1.msra.mxu0 0.0
  %1962 = vmatprep.subr.mxu0 0.0
  %1963 = vmatpush1.msra.mxu0 0.0
  %1964 = vmatprep.subr.mxu0 0.0
  %1965 = vmatpush1.msra.mxu0 0.0
  %1966 = vmatprep.subr.mxu0 0.0
  %1967 = vmatpush1.msra.mxu0 0.0
  %1968 = vmatprep.subr.mxu0 0.0
  %1969 = vmatpush1.msra.mxu0 0.0
  %1970 = vmatprep.subr.mxu0 0.0
  %1971 = vmatpush1.msra.mxu0 0.0
  %1972 = vmatprep.subr.mxu0 0.0
  %1973 = vmatpush1.msra.mxu0 0.0
  %1974 = vmatprep.subr.mxu0 0.0
  %1975 = vmatpush1.msra.mxu0 0.0
  %1976 = vmatprep.subr.mxu0 0.0
  %1977 = vmatpush1.msra.mxu0 0.0
  %1978 = vmatprep.subr.mxu0 0.0
  %1979 = vmatpush1.msra.mxu0 0.0
  %1980 = vmatprep.subr.mxu0 0.0
  %1981 = vmatpush1.msra.mxu0 0.0
  %1982 = vmatprep.subr.mxu0 0.0
  %1983 = vmatpush1.msra.mxu0 0.0
  %1984 = vmatprep.mubr.f32.mxu0 0.0
  %1985 = vmatmul.mubr.f32.gmra.mrb[0].mxu0 %v1918
  %v1986 = vpop.f32.mrb[0].mxu0
  %v1987 = vadd.f32 %v1915, %v1986
  %v1988 = vpop.f32.mrb[0].mxu0
  %1989 = vdwg.mxu0
  %v1990 = vrsqrt.pop %v1987
  %v1991 = vmul.f32 %v1900, %v1990
  %v1992 = vld [vmem:[%s11] sm:$0xf]
  %vm1993 = vcmask 64512
  %v1995 = vsel %vm1993, %v1992, 0
  %1997 = vmatprep.subr.mxu0 0.0
  %1998 = vmatpush1.msra.mxu0 %v1991
  %1999 = vmatprep.subr.mxu0 0.0
  %2000 = vmatpush1.msra.mxu0 0.0
  %2001 = vmatprep.subr.mxu0 0.0
  %2002 = vmatpush1.msra.mxu0 0.0
  %2003 = vmatprep.subr.mxu0 0.0
  %2004 = vmatpush1.msra.mxu0 0.0
  %2005 = vmatprep.subr.mxu0 0.0
  %2006 = vmatpush1.msra.mxu0 0.0
  %2007 = vmatprep.subr.mxu0 0.0
  %2008 = vmatpush1.msra.mxu0 0.0
  %2009 = vmatprep.subr.mxu0 0.0
  %2010 = vmatpush1.msra.mxu0 0.0
  %2011 = vmatprep.subr.mxu0 0.0
  %2012 = vmatpush1.msra.mxu0 0.0
  %2013 = vmatprep.subr.mxu0 0.0
  %2014 = vmatpush1.msra.mxu0 0.0
  %2015 = vmatprep.subr.mxu0 0.0
  %2016 = vmatpush1.msra.mxu0 0.0
  %2017 = vmatprep.subr.mxu0 0.0
  %2018 = vmatpush1.msra.mxu0 0.0
  %2019 = vmatprep.subr.mxu0 0.0
  %2020 = vmatpush1.msra.mxu0 0.0
  %2021 = vmatprep.subr.mxu0 0.0
  %2022 = vmatpush1.msra.mxu0 0.0
  %2023 = vmatprep.subr.mxu0 0.0
  %2024 = vmatpush1.msra.mxu0 0.0
  %2025 = vmatprep.subr.mxu0 0.0
  %2026 = vmatpush1.msra.mxu0 0.0
  %2027 = vmatprep.subr.mxu0 0.0
  %2028 = vmatpush1.msra.mxu0 0.0
  %2029 = vmatprep.subr.mxu0 0.0
  %2030 = vmatpush1.msra.mxu0 0.0
  %2031 = vmatprep.subr.mxu0 0.0
  %2032 = vmatpush1.msra.mxu0 0.0
  %2033 = vmatprep.subr.mxu0 0.0
  %2034 = vmatpush1.msra.mxu0 0.0
  %2035 = vmatprep.subr.mxu0 0.0
  %2036 = vmatpush1.msra.mxu0 0.0
  %2037 = vmatprep.subr.mxu0 0.0
  %2038 = vmatpush1.msra.mxu0 0.0
  %2039 = vmatprep.subr.mxu0 0.0
  %2040 = vmatpush1.msra.mxu0 0.0
  %2041 = vmatprep.subr.mxu0 0.0
  %2042 = vmatpush1.msra.mxu0 0.0
  %2043 = vmatprep.subr.mxu0 0.0
  %2044 = vmatpush1.msra.mxu0 0.0
  %2045 = vmatprep.subr.mxu0 0.0
  %2046 = vmatpush1.msra.mxu0 0.0
  %2047 = vmatprep.subr.mxu0 0.0
  %2048 = vmatpush1.msra.mxu0 0.0
  %2049 = vmatprep.subr.mxu0 0.0
  %2050 = vmatpush1.msra.mxu0 0.0
  %2051 = vmatprep.subr.mxu0 0.0
  %2052 = vmatpush1.msra.mxu0 0.0
  %2053 = vmatprep.subr.mxu0 0.0
  %2054 = vmatpush1.msra.mxu0 0.0
  %2055 = vmatprep.subr.mxu0 0.0
  %2056 = vmatpush1.msra.mxu0 0.0
  %2057 = vmatprep.subr.mxu0 0.0
  %2058 = vmatpush1.msra.mxu0 0.0
  %2059 = vmatprep.subr.mxu0 0.0
  %2060 = vmatpush1.msra.mxu0 0.0
  %2061 = vmatprep.mubr.f32.mxu0 0.0
  %2062 = vmatmul.mubr.f32.gmra.mrb[0].mxu0 %v1995
  %v2063 = vpop.f32.mrb[0].mxu0
  %v2064 = vadd.f32 0.0, %v2063
  %v2065 = vpop.f32.mrb[0].mxu0
  %2066 = vdwg.mxu0
  %v2067 = vld [vmem:[%s12] sm:$0xff]
  %v2068 = vld [vmem:[%s12 + $0x8] sm:$0xff]
  %v2069 = vld [vmem:[%s12 + $0x10] sm:$0xff]
  %v2070 = vld [vmem:[%s12 + $0x18] sm:$0xff]
  %v2071 = vld [vmem:[%s12 + $0x20] sm:$0xff]
  %v2072 = vld [vmem:[%s12 + $0x28] sm:$0xff]
  %v2073 = vld [vmem:[%s12 + $0x30] sm:$0xff]
  %v2074 = vld [vmem:[%s12 + $0x38] sm:$0xff]
  %s2075 = scalar_lea.vmem %s11, 4
  %v2076 = vld [vmem:[%s2075] sm:$0xf]
  %v2078 = vsel %vm1993, %v2076, 0
  %2080 = vmatprep.subr.mxu0 0.0
  %2081 = vmatpush1.msra.mxu0 %v1991
  %2082 = vmatprep.subr.mxu0 0.0
  %2083 = vmatpush1.msra.mxu0 0.0
  %2084 = vmatprep.subr.mxu0 0.0
  %2085 = vmatpush1.msra.mxu0 0.0
  %2086 = vmatprep.subr.mxu0 0.0
  %2087 = vmatpush1.msra.mxu0 0.0
  %2088 = vmatprep.subr.mxu0 0.0
  %2089 = vmatpush1.msra.mxu0 0.0
  %2090 = vmatprep.subr.mxu0 0.0
  %2091 = vmatpush1.msra.mxu0 0.0
  %2092 = vmatprep.subr.mxu0 0.0
  %2093 = vmatpush1.msra.mxu0 0.0
  %2094 = vmatprep.subr.mxu0 0.0
  %2095 = vmatpush1.msra.mxu0 0.0
  %2096 = vmatprep.subr.mxu0 0.0
  %2097 = vmatpush1.msra.mxu0 0.0
  %2098 = vmatprep.subr.mxu0 0.0
  %2099 = vmatpush1.msra.mxu0 0.0
  %2100 = vmatprep.subr.mxu0 0.0
  %2101 = vmatpush1.msra.mxu0 0.0
  %2102 = vmatprep.subr.mxu0 0.0
  %2103 = vmatpush1.msra.mxu0 0.0
  %2104 = vmatprep.subr.mxu0 0.0
  %2105 = vmatpush1.msra.mxu0 0.0
  %2106 = vmatprep.subr.mxu0 0.0
  %2107 = vmatpush1.msra.mxu0 0.0
  %2108 = vmatprep.subr.mxu0 0.0
  %2109 = vmatpush1.msra.mxu0 0.0
  %2110 = vmatprep.subr.mxu0 0.0
  %2111 = vmatpush1.msra.mxu0 0.0
  %2112 = vmatprep.subr.mxu0 0.0
  %2113 = vmatpush1.msra.mxu0 0.0
  %2114 = vmatprep.subr.mxu0 0.0
  %2115 = vmatpush1.msra.mxu0 0.0
  %2116 = vmatprep.subr.mxu0 0.0
  %2117 = vmatpush1.msra.mxu0 0.0
  %2118 = vmatprep.subr.mxu0 0.0
  %2119 = vmatpush1.msra.mxu0 0.0
  %2120 = vmatprep.subr.mxu0 0.0
  %2121 = vmatpush1.msra.mxu0 0.0
  %2122 = vmatprep.subr.mxu0 0.0
  %2123 = vmatpush1.msra.mxu0 0.0
  %2124 = vmatprep.subr.mxu0 0.0
  %2125 = vmatpush1.msra.mxu0 0.0
  %2126 = vmatprep.subr.mxu0 0.0
  %2127 = vmatpush1.msra.mxu0 0.0
  %2128 = vmatprep.subr.mxu0 0.0
  %2129 = vmatpush1.msra.mxu0 0.0
  %2130 = vmatprep.subr.mxu0 0.0
  %2131 = vmatpush1.msra.mxu0 0.0
  %2132 = vmatprep.subr.mxu0 0.0
  %2133 = vmatpush1.msra.mxu0 0.0
  %2134 = vmatprep.subr.mxu0 0.0
  %2135 = vmatpush1.msra.mxu0 0.0
  %2136 = vmatprep.subr.mxu0 0.0
  %2137 = vmatpush1.msra.mxu0 0.0
  %2138 = vmatprep.subr.mxu0 0.0
  %2139 = vmatpush1.msra.mxu0 0.0
  %2140 = vmatprep.subr.mxu0 0.0
  %2141 = vmatpush1.msra.mxu0 0.0
  %2142 = vmatprep.subr.mxu0 0.0
  %2143 = vmatpush1.msra.mxu0 0.0
  %2144 = vmatprep.mubr.f32.mxu0 0.0
  %2145 = vmatmul.mubr.f32.gmra.mrb[0].mxu0 %v2078
  %v2146 = vpop.f32.mrb[0].mxu0
  %v2147 = vadd.f32 0.0, %v2146
  %v2148 = vpop.f32.mrb[0].mxu0
  %2149 = vdwg.mxu0
  %s2150 = scalar_lea.vmem %s12, 64
  %v2151 = vld [vmem:[%s2150] sm:$0xff]
  %v2152 = vld [vmem:[%s2150 + $0x8] sm:$0xff]
  %v2153 = vld [vmem:[%s2150 + $0x10] sm:$0xff]
  %v2154 = vld [vmem:[%s2150 + $0x18] sm:$0xff]
  %v2155 = vld [vmem:[%s2150 + $0x20] sm:$0xff]
  %v2156 = vld [vmem:[%s2150 + $0x28] sm:$0xff]
  %v2157 = vld [vmem:[%s2150 + $0x30] sm:$0xff]
  %v2158 = vld [vmem:[%s2150 + $0x38] sm:$0xff]
  %v2160 = vsel %vm277, %v2147, 0
  %2162 = vmatprep.subr.mxu0 0.0
  %2163 = vmatpush1.msra.mxu0 %v2151
  %2164 = vmatprep.subr.mxu0 0.0
  %2165 = vmatpush1.msra.mxu0 %v2152
  %2166 = vmatprep.subr.mxu0 0.0
  %2167 = vmatpush1.msra.mxu0 %v2153
  %2168 = vmatprep.subr.mxu0 0.0
  %2169 = vmatpush1.msra.mxu0 %v2154
  %2170 = vmatprep.subr.mxu0 0.0
  %2171 = vmatpush1.msra.mxu0 %v2155
  %2172 = vmatprep.subr.mxu0 0.0
  %2173 = vmatpush1.msra.mxu0 %v2156
  %2174 = vmatprep.subr.mxu0 0.0
  %2175 = vmatpush1.msra.mxu0 %v2157
  %2176 = vmatprep.subr.mxu0 0.0
  %2177 = vmatpush1.msra.mxu0 %v2158
  %2178 = vmatprep.subr.mxu0 0.0
  %2179 = vmatpush1.msra.mxu0 0.0
  %2180 = vmatprep.subr.mxu0 0.0
  %2181 = vmatpush1.msra.mxu0 0.0
  %2182 = vmatprep.subr.mxu0 0.0
  %2183 = vmatpush1.msra.mxu0 0.0
  %2184 = vmatprep.subr.mxu0 0.0
  %2185 = vmatpush1.msra.mxu0 0.0
  %2186 = vmatprep.subr.mxu0 0.0
  %2187 = vmatpush1.msra.mxu0 0.0
  %2188 = vmatprep.subr.mxu0 0.0
  %2189 = vmatpush1.msra.mxu0 0.0
  %2190 = vmatprep.subr.mxu0 0.0
  %2191 = vmatpush1.msra.mxu0 0.0
  %2192 = vmatprep.subr.mxu0 0.0
  %2193 = vmatpush1.msra.mxu0 0.0
  %2194 = vmatprep.subr.mxu0 0.0
  %2195 = vmatpush1.msra.mxu0 0.0
  %2196 = vmatprep.subr.mxu0 0.0
  %2197 = vmatpush1.msra.mxu0 0.0
  %2198 = vmatprep.subr.mxu0 0.0
  %2199 = vmatpush1.msra.mxu0 0.0
  %2200 = vmatprep.subr.mxu0 0.0
  %2201 = vmatpush1.msra.mxu0 0.0
  %2202 = vmatprep.subr.mxu0 0.0
  %2203 = vmatpush1.msra.mxu0 0.0
  %2204 = vmatprep.subr.mxu0 0.0
  %2205 = vmatpush1.msra.mxu0 0.0
  %2206 = vmatprep.subr.mxu0 0.0
  %2207 = vmatpush1.msra.mxu0 0.0
  %2208 = vmatprep.subr.mxu0 0.0
  %2209 = vmatpush1.msra.mxu0 0.0
  %2210 = vmatprep.subr.mxu0 0.0
  %2211 = vmatpush1.msra.mxu0 0.0
  %2212 = vmatprep.subr.mxu0 0.0
  %2213 = vmatpush1.msra.mxu0 0.0
  %2214 = vmatprep.subr.mxu0 0.0
  %2215 = vmatpush1.msra.mxu0 0.0
  %2216 = vmatprep.subr.mxu0 0.0
  %2217 = vmatpush1.msra.mxu0 0.0
  %2218 = vmatprep.subr.mxu0 0.0
  %2219 = vmatpush1.msra.mxu0 0.0
  %2220 = vmatprep.subr.mxu0 0.0
  %2221 = vmatpush1.msra.mxu0 0.0
  %2222 = vmatprep.subr.mxu0 0.0
  %2223 = vmatpush1.msra.mxu0 0.0
  %2224 = vmatprep.subr.mxu0 0.0
  %2225 = vmatpush1.msra.mxu0 0.0
  %2226 = vmatprep.mubr.f32.mxu0 0.0
  %2227 = vmatmul.mubr.f32.gmra.mrb[0].mxu0 %v2160
  %v2228 = vpop.f32.mrb[0].mxu0
  %v2229 = vadd.f32 0.0, %v2228
  %v2230 = vpop.f32.mrb[0].mxu0
  %2231 = vdwg.mxu0
  %v2233 = vsel %vm277, %v2064, 0
  %2235 = vmatprep.subr.mxu0 0.0
  %2236 = vmatpush1.msra.mxu0 %v2067
  %2237 = vmatprep.subr.mxu0 0.0
  %2238 = vmatpush1.msra.mxu0 %v2068
  %2239 = vmatprep.subr.mxu0 0.0
  %2240 = vmatpush1.msra.mxu0 %v2069
  %2241 = vmatprep.subr.mxu0 0.0
  %2242 = vmatpush1.msra.mxu0 %v2070
  %2243 = vmatprep.subr.mxu0 0.0
  %2244 = vmatpush1.msra.mxu0 %v2071
  %2245 = vmatprep.subr.mxu0 0.0
  %2246 = vmatpush1.msra.mxu0 %v2072
  %2247 = vmatprep.subr.mxu0 0.0
  %2248 = vmatpush1.msra.mxu0 %v2073
  %2249 = vmatprep.subr.mxu0 0.0
  %2250 = vmatpush1.msra.mxu0 %v2074
  %2251 = vmatprep.subr.mxu0 0.0
  %2252 = vmatpush1.msra.mxu0 0.0
  %2253 = vmatprep.subr.mxu0 0.0
  %2254 = vmatpush1.msra.mxu0 0.0
  %2255 = vmatprep.subr.mxu0 0.0
  %2256 = vmatpush1.msra.mxu0 0.0
  %2257 = vmatprep.subr.mxu0 0.0
  %2258 = vmatpush1.msra.mxu0 0.0
  %2259 = vmatprep.subr.mxu0 0.0
  %2260 = vmatpush1.msra.mxu0 0.0
  %2261 = vmatprep.subr.mxu0 0.0
  %2262 = vmatpush1.msra.mxu0 0.0
  %2263 = vmatprep.subr.mxu0 0.0
  %2264 = vmatpush1.msra.mxu0 0.0
  %2265 = vmatprep.subr.mxu0 0.0
  %2266 = vmatpush1.msra.mxu0 0.0
  %2267 = vmatprep.subr.mxu0 0.0
  %2268 = vmatpush1.msra.mxu0 0.0
  %2269 = vmatprep.subr.mxu0 0.0
  %2270 = vmatpush1.msra.mxu0 0.0
  %2271 = vmatprep.subr.mxu0 0.0
  %2272 = vmatpush1.msra.mxu0 0.0
  %2273 = vmatprep.subr.mxu0 0.0
  %2274 = vmatpush1.msra.mxu0 0.0
  %2275 = vmatprep.subr.mxu0 0.0
  %2276 = vmatpush1.msra.mxu0 0.0
  %2277 = vmatprep.subr.mxu0 0.0
  %2278 = vmatpush1.msra.mxu0 0.0
  %2279 = vmatprep.subr.mxu0 0.0
  %2280 = vmatpush1.msra.mxu0 0.0
  %2281 = vmatprep.subr.mxu0 0.0
  %2282 = vmatpush1.msra.mxu0 0.0
  %2283 = vmatprep.subr.mxu0 0.0
  %2284 = vmatpush1.msra.mxu0 0.0
  %2285 = vmatprep.subr.mxu0 0.0
  %2286 = vmatpush1.msra.mxu0 0.0
  %2287 = vmatprep.subr.mxu0 0.0
  %2288 = vmatpush1.msra.mxu0 0.0
  %2289 = vmatprep.subr.mxu0 0.0
  %2290 = vmatpush1.msra.mxu0 0.0
  %2291 = vmatprep.subr.mxu0 0.0
  %2292 = vmatpush1.msra.mxu0 0.0
  %2293 = vmatprep.subr.mxu0 0.0
  %2294 = vmatpush1.msra.mxu0 0.0
  %2295 = vmatprep.subr.mxu0 0.0
  %2296 = vmatpush1.msra.mxu0 0.0
  %2297 = vmatprep.subr.mxu0 0.0
  %2298 = vmatpush1.msra.mxu0 0.0
  %2299 = vmatprep.mubr.f32.mxu0 0.0
  %2300 = vmatmul.mubr.f32.gmra.mrb[0].mxu0 %v2233
  %v2301 = vpop.f32.mrb[0].mxu0
  %v2302 = vadd.f32 %v2229, %v2301
  %v2303 = vpop.f32.mrb[0].mxu0
  %2304 = vdwg.mxu0
  %s2305 = scalar_lea.vmem %s11, 8
  %v2306 = vld [vmem:[%s2305] sm:$0xf]
  %v2308 = vsel %vm1993, %v2306, 0
  %2310 = vmatprep.subr.mxu0 0.0
  %2311 = vmatpush1.msra.mxu0 %v1991
  %2312 = vmatprep.subr.mxu0 0.0
  %2313 = vmatpush1.msra.mxu0 0.0
  %2314 = vmatprep.subr.mxu0 0.0
  %2315 = vmatpush1.msra.mxu0 0.0
  %2316 = vmatprep.subr.mxu0 0.0
  %2317 = vmatpush1.msra.mxu0 0.0
  %2318 = vmatprep.subr.mxu0 0.0
  %2319 = vmatpush1.msra.mxu0 0.0
  %2320 = vmatprep.subr.mxu0 0.0
  %2321 = vmatpush1.msra.mxu0 0.0
  %2322 = vmatprep.subr.mxu0 0.0
  %2323 = vmatpush1.msra.mxu0 0.0
  %2324 = vmatprep.subr.mxu0 0.0
  %2325 = vmatpush1.msra.mxu0 0.0
  %2326 = vmatprep.subr.mxu0 0.0
  %2327 = vmatpush1.msra.mxu0 0.0
  %2328 = vmatprep.subr.mxu0 0.0
  %2329 = vmatpush1.msra.mxu0 0.0
  %2330 = vmatprep.subr.mxu0 0.0
  %2331 = vmatpush1.msra.mxu0 0.0
  %2332 = vmatprep.subr.mxu0 0.0
  %2333 = vmatpush1.msra.mxu0 0.0
  %2334 = vmatprep.subr.mxu0 0.0
  %2335 = vmatpush1.msra.mxu0 0.0
  %2336 = vmatprep.subr.mxu0 0.0
  %2337 = vmatpush1.msra.mxu0 0.0
  %2338 = vmatprep.subr.mxu0 0.0
  %2339 = vmatpush1.msra.mxu0 0.0
  %2340 = vmatprep.subr.mxu0 0.0
  %2341 = vmatpush1.msra.mxu0 0.0
  %2342 = vmatprep.subr.mxu0 0.0
  %2343 = vmatpush1.msra.mxu0 0.0
  %2344 = vmatprep.subr.mxu0 0.0
  %2345 = vmatpush1.msra.mxu0 0.0
  %2346 = vmatprep.subr.mxu0 0.0
  %2347 = vmatpush1.msra.mxu0 0.0
  %2348 = vmatprep.subr.mxu0 0.0
  %2349 = vmatpush1.msra.mxu0 0.0
  %2350 = vmatprep.subr.mxu0 0.0
  %2351 = vmatpush1.msra.mxu0 0.0
  %2352 = vmatprep.subr.mxu0 0.0
  %2353 = vmatpush1.msra.mxu0 0.0
  %2354 = vmatprep.subr.mxu0 0.0
  %2355 = vmatpush1.msra.mxu0 0.0
  %2356 = vmatprep.subr.mxu0 0.0
  %2357 = vmatpush1.msra.mxu0 0.0
  %2358 = vmatprep.subr.mxu0 0.0
  %2359 = vmatpush1.msra.mxu0 0.0
  %2360 = vmatprep.subr.mxu0 0.0
  %2361 = vmatpush1.msra.mxu0 0.0
  %2362 = vmatprep.subr.mxu0 0.0
  %2363 = vmatpush1.msra.mxu0 0.0
  %2364 = vmatprep.subr.mxu0 0.0
  %2365 = vmatpush1.msra.mxu0 0.0
  %2366 = vmatprep.subr.mxu0 0.0
  %2367 = vmatpush1.msra.mxu0 0.0
  %2368 = vmatprep.subr.mxu0 0.0
  %2369 = vmatpush1.msra.mxu0 0.0
  %2370 = vmatprep.subr.mxu0 0.0
  %2371 = vmatpush1.msra.mxu0 0.0
  %2372 = vmatprep.subr.mxu0 0.0
  %2373 = vmatpush1.msra.mxu0 0.0
  %2374 = vmatprep.mubr.f32.mxu0 0.0
  %2375 = vmatmul.mubr.f32.gmra.mrb[0].mxu0 %v2308
  %v2376 = vpop.f32.mrb[0].mxu0
  %v2377 = vadd.f32 0.0, %v2376
  %v2378 = vpop.f32.mrb[0].mxu0
  %2379 = vdwg.mxu0
  %s2380 = scalar_lea.vmem %s12, 128
  %v2381 = vld [vmem:[%s2380] sm:$0xff]
  %v2382 = vld [vmem:[%s2380 + $0x8] sm:$0xff]
  %v2383 = vld [vmem:[%s2380 + $0x10] sm:$0xff]
  %v2384 = vld [vmem:[%s2380 + $0x18] sm:$0xff]
  %v2385 = vld [vmem:[%s2380 + $0x20] sm:$0xff]
  %v2386 = vld [vmem:[%s2380 + $0x28] sm:$0xff]
  %v2387 = vld [vmem:[%s2380 + $0x30] sm:$0xff]
  %v2388 = vld [vmem:[%s2380 + $0x38] sm:$0xff]
  %v2390 = vsel %vm277, %v2377, 0
  %2392 = vmatprep.subr.mxu0 0.0
  %2393 = vmatpush1.msra.mxu0 %v2381
  %2394 = vmatprep.subr.mxu0 0.0
  %2395 = vmatpush1.msra.mxu0 %v2382
  %2396 = vmatprep.subr.mxu0 0.0
  %2397 = vmatpush1.msra.mxu0 %v2383
  %2398 = vmatprep.subr.mxu0 0.0
  %2399 = vmatpush1.msra.mxu0 %v2384
  %2400 = vmatprep.subr.mxu0 0.0
  %2401 = vmatpush1.msra.mxu0 %v2385
  %2402 = vmatprep.subr.mxu0 0.0
  %2403 = vmatpush1.msra.mxu0 %v2386
  %2404 = vmatprep.subr.mxu0 0.0
  %2405 = vmatpush1.msra.mxu0 %v2387
  %2406 = vmatprep.subr.mxu0 0.0
  %2407 = vmatpush1.msra.mxu0 %v2388
  %2408 = vmatprep.subr.mxu0 0.0
  %2409 = vmatpush1.msra.mxu0 0.0
  %2410 = vmatprep.subr.mxu0 0.0
  %2411 = vmatpush1.msra.mxu0 0.0
  %2412 = vmatprep.subr.mxu0 0.0
  %2413 = vmatpush1.msra.mxu0 0.0
  %2414 = vmatprep.subr.mxu0 0.0
  %2415 = vmatpush1.msra.mxu0 0.0
  %2416 = vmatprep.subr.mxu0 0.0
  %2417 = vmatpush1.msra.mxu0 0.0
  %2418 = vmatprep.subr.mxu0 0.0
  %2419 = vmatpush1.msra.mxu0 0.0
  %2420 = vmatprep.subr.mxu0 0.0
  %2421 = vmatpush1.msra.mxu0 0.0
  %2422 = vmatprep.subr.mxu0 0.0
  %2423 = vmatpush1.msra.mxu0 0.0
  %2424 = vmatprep.subr.mxu0 0.0
  %2425 = vmatpush1.msra.mxu0 0.0
  %2426 = vmatprep.subr.mxu0 0.0
  %2427 = vmatpush1.msra.mxu0 0.0
  %2428 = vmatprep.subr.mxu0 0.0
  %2429 = vmatpush1.msra.mxu0 0.0
  %2430 = vmatprep.subr.mxu0 0.0
  %2431 = vmatpush1.msra.mxu0 0.0
  %2432 = vmatprep.subr.mxu0 0.0
  %2433 = vmatpush1.msra.mxu0 0.0
  %2434 = vmatprep.subr.mxu0 0.0
  %2435 = vmatpush1.msra.mxu0 0.0
  %2436 = vmatprep.subr.mxu0 0.0
  %2437 = vmatpush1.msra.mxu0 0.0
  %2438 = vmatprep.subr.mxu0 0.0
  %2439 = vmatpush1.msra.mxu0 0.0
  %2440 = vmatprep.subr.mxu0 0.0
  %2441 = vmatpush1.msra.mxu0 0.0
  %2442 = vmatprep.subr.mxu0 0.0
  %2443 = vmatpush1.msra.mxu0 0.0
  %2444 = vmatprep.subr.mxu0 0.0
  %2445 = vmatpush1.msra.mxu0 0.0
  %2446 = vmatprep.subr.mxu0 0.0
  %2447 = vmatpush1.msra.mxu0 0.0
  %2448 = vmatprep.subr.mxu0 0.0
  %2449 = vmatpush1.msra.mxu0 0.0
  %2450 = vmatprep.subr.mxu0 0.0
  %2451 = vmatpush1.msra.mxu0 0.0
  %2452 = vmatprep.subr.mxu0 0.0
  %2453 = vmatpush1.msra.mxu0 0.0
  %2454 = vmatprep.subr.mxu0 0.0
  %2455 = vmatpush1.msra.mxu0 0.0
  %2456 = vmatprep.mubr.f32.mxu0 0.0
  %2457 = vmatmul.mubr.f32.gmra.mrb[0].mxu0 %v2390
  %v2458 = vpop.f32.mrb[0].mxu0
  %v2459 = vadd.f32 0.0, %v2458
  %v2460 = vpop.f32.mrb[0].mxu0
  %2461 = vdwg.mxu0
  %v2462 = vadd.f32 %v2302, %v2459
  %s2463 = scalar_lea.vmem %s11, 12
  %v2464 = vld [vmem:[%s2463] sm:$0xf]
  %v2466 = vsel %vm1993, %v2464, 0
  %2468 = vmatprep.subr.mxu0 0.0
  %2469 = vmatpush1.msra.mxu0 %v1991
  %2470 = vmatprep.subr.mxu0 0.0
  %2471 = vmatpush1.msra.mxu0 0.0
  %2472 = vmatprep.subr.mxu0 0.0
  %2473 = vmatpush1.msra.mxu0 0.0
  %2474 = vmatprep.subr.mxu0 0.0
  %2475 = vmatpush1.msra.mxu0 0.0
  %2476 = vmatprep.subr.mxu0 0.0
  %2477 = vmatpush1.msra.mxu0 0.0
  %2478 = vmatprep.subr.mxu0 0.0
  %2479 = vmatpush1.msra.mxu0 0.0
  %2480 = vmatprep.subr.mxu0 0.0
  %2481 = vmatpush1.msra.mxu0 0.0
  %2482 = vmatprep.subr.mxu0 0.0
  %2483 = vmatpush1.msra.mxu0 0.0
  %2484 = vmatprep.subr.mxu0 0.0
  %2485 = vmatpush1.msra.mxu0 0.0
  %2486 = vmatprep.subr.mxu0 0.0
  %2487 = vmatpush1.msra.mxu0 0.0
  %2488 = vmatprep.subr.mxu0 0.0
  %2489 = vmatpush1.msra.mxu0 0.0
  %2490 = vmatprep.subr.mxu0 0.0
  %2491 = vmatpush1.msra.mxu0 0.0
  %2492 = vmatprep.subr.mxu0 0.0
  %2493 = vmatpush1.msra.mxu0 0.0
  %2494 = vmatprep.subr.mxu0 0.0
  %2495 = vmatpush1.msra.mxu0 0.0
  %2496 = vmatprep.subr.mxu0 0.0
  %2497 = vmatpush1.msra.mxu0 0.0
  %2498 = vmatprep.subr.mxu0 0.0
  %2499 = vmatpush1.msra.mxu0 0.0
  %2500 = vmatprep.subr.mxu0 0.0
  %2501 = vmatpush1.msra.mxu0 0.0
  %2502 = vmatprep.subr.mxu0 0.0
  %2503 = vmatpush1.msra.mxu0 0.0
  %2504 = vmatprep.subr.mxu0 0.0
  %2505 = vmatpush1.msra.mxu0 0.0
  %2506 = vmatprep.subr.mxu0 0.0
  %2507 = vmatpush1.msra.mxu0 0.0
  %2508 = vmatprep.subr.mxu0 0.0
  %2509 = vmatpush1.msra.mxu0 0.0
  %2510 = vmatprep.subr.mxu0 0.0
  %2511 = vmatpush1.msra.mxu0 0.0
  %2512 = vmatprep.subr.mxu0 0.0
  %2513 = vmatpush1.msra.mxu0 0.0
  %2514 = vmatprep.subr.mxu0 0.0
  %2515 = vmatpush1.msra.mxu0 0.0
  %2516 = vmatprep.subr.mxu0 0.0
  %2517 = vmatpush1.msra.mxu0 0.0
  %2518 = vmatprep.subr.mxu0 0.0
  %2519 = vmatpush1.msra.mxu0 0.0
  %2520 = vmatprep.subr.mxu0 0.0
  %2521 = vmatpush1.msra.mxu0 0.0
  %2522 = vmatprep.subr.mxu0 0.0
  %2523 = vmatpush1.msra.mxu0 0.0
  %2524 = vmatprep.subr.mxu0 0.0
  %2525 = vmatpush1.msra.mxu0 0.0
  %2526 = vmatprep.subr.mxu0 0.0
  %2527 = vmatpush1.msra.mxu0 0.0
  %2528 = vmatprep.subr.mxu0 0.0
  %2529 = vmatpush1.msra.mxu0 0.0
  %2530 = vmatprep.subr.mxu0 0.0
  %2531 = vmatpush1.msra.mxu0 0.0
  %2532 = vmatprep.mubr.f32.mxu0 0.0
  %2533 = vmatmul.mubr.f32.gmra.mrb[0].mxu0 %v2466
  %v2534 = vpop.f32.mrb[0].mxu0
  %v2535 = vadd.f32 0.0, %v2534
  %v2536 = vpop.f32.mrb[0].mxu0
  %2537 = vdwg.mxu0
  %s2538 = scalar_lea.vmem %s12, 192
  %v2539 = vld [vmem:[%s2538] sm:$0xff]
  %v2540 = vld [vmem:[%s2538 + $0x8] sm:$0xff]
  %v2541 = vld [vmem:[%s2538 + $0x10] sm:$0xff]
  %v2542 = vld [vmem:[%s2538 + $0x18] sm:$0xff]
  %v2543 = vld [vmem:[%s2538 + $0x20] sm:$0xff]
  %v2544 = vld [vmem:[%s2538 + $0x28] sm:$0xff]
  %v2545 = vld [vmem:[%s2538 + $0x30] sm:$0xff]
  %v2546 = vld [vmem:[%s2538 + $0x38] sm:$0xff]
  %v2548 = vsel %vm277, %v2535, 0
  %2550 = vmatprep.subr.mxu0 0.0
  %2551 = vmatpush1.msra.mxu0 %v2539
  %2552 = vmatprep.subr.mxu0 0.0
  %2553 = vmatpush1.msra.mxu0 %v2540
  %2554 = vmatprep.subr.mxu0 0.0
  %2555 = vmatpush1.msra.mxu0 %v2541
  %2556 = vmatprep.subr.mxu0 0.0
  %2557 = vmatpush1.msra.mxu0 %v2542
  %2558 = vmatprep.subr.mxu0 0.0
  %2559 = vmatpush1.msra.mxu0 %v2543
  %2560 = vmatprep.subr.mxu0 0.0
  %2561 = vmatpush1.msra.mxu0 %v2544
  %2562 = vmatprep.subr.mxu0 0.0
  %2563 = vmatpush1.msra.mxu0 %v2545
  %2564 = vmatprep.subr.mxu0 0.0
  %2565 = vmatpush1.msra.mxu0 %v2546
  %2566 = vmatprep.subr.mxu0 0.0
  %2567 = vmatpush1.msra.mxu0 0.0
  %2568 = vmatprep.subr.mxu0 0.0
  %2569 = vmatpush1.msra.mxu0 0.0
  %2570 = vmatprep.subr.mxu0 0.0
  %2571 = vmatpush1.msra.mxu0 0.0
  %2572 = vmatprep.subr.mxu0 0.0
  %2573 = vmatpush1.msra.mxu0 0.0
  %2574 = vmatprep.subr.mxu0 0.0
  %2575 = vmatpush1.msra.mxu0 0.0
  %2576 = vmatprep.subr.mxu0 0.0
  %2577 = vmatpush1.msra.mxu0 0.0
  %2578 = vmatprep.subr.mxu0 0.0
  %2579 = vmatpush1.msra.mxu0 0.0
  %2580 = vmatprep.subr.mxu0 0.0
  %2581 = vmatpush1.msra.mxu0 0.0
  %2582 = vmatprep.subr.mxu0 0.0
  %2583 = vmatpush1.msra.mxu0 0.0
  %2584 = vmatprep.subr.mxu0 0.0
  %2585 = vmatpush1.msra.mxu0 0.0
  %2586 = vmatprep.subr.mxu0 0.0
  %2587 = vmatpush1.msra.mxu0 0.0
  %2588 = vmatprep.subr.mxu0 0.0
  %2589 = vmatpush1.msra.mxu0 0.0
  %2590 = vmatprep.subr.mxu0 0.0
  %2591 = vmatpush1.msra.mxu0 0.0
  %2592 = vmatprep.subr.mxu0 0.0
  %2593 = vmatpush1.msra.mxu0 0.0
  %2594 = vmatprep.subr.mxu0 0.0
  %2595 = vmatpush1.msra.mxu0 0.0
  %2596 = vmatprep.subr.mxu0 0.0
  %2597 = vmatpush1.msra.mxu0 0.0
  %2598 = vmatprep.subr.mxu0 0.0
  %2599 = vmatpush1.msra.mxu0 0.0
  %2600 = vmatprep.subr.mxu0 0.0
  %2601 = vmatpush1.msra.mxu0 0.0
  %2602 = vmatprep.subr.mxu0 0.0
  %2603 = vmatpush1.msra.mxu0 0.0
  %2604 = vmatprep.subr.mxu0 0.0
  %2605 = vmatpush1.msra.mxu0 0.0
  %2606 = vmatprep.subr.mxu0 0.0
  %2607 = vmatpush1.msra.mxu0 0.0
  %2608 = vmatprep.subr.mxu0 0.0
  %2609 = vmatpush1.msra.mxu0 0.0
  %2610 = vmatprep.subr.mxu0 0.0
  %2611 = vmatpush1.msra.mxu0 0.0
  %2612 = vmatprep.subr.mxu0 0.0
  %2613 = vmatpush1.msra.mxu0 0.0
  %2614 = vmatprep.mubr.f32.mxu0 0.0
  %2615 = vmatmul.mubr.f32.gmra.mrb[0].mxu0 %v2548
  %v2616 = vpop.f32.mrb[0].mxu0
  %v2617 = vadd.f32 0.0, %v2616
  %v2618 = vpop.f32.mrb[0].mxu0
  %2619 = vdwg.mxu0
  %v2620 = vadd.f32 %v2462, %v2617
  %s2621 = scalar_lea.vmem %s11, 16
  %v2622 = vld [vmem:[%s2621] sm:$0xf]
  %v2624 = vsel %vm1993, %v2622, 0
  %2626 = vmatprep.subr.mxu0 0.0
  %2627 = vmatpush1.msra.mxu0 %v1991
  %2628 = vmatprep.subr.mxu0 0.0
  %2629 = vmatpush1.msra.mxu0 0.0
  %2630 = vmatprep.subr.mxu0 0.0
  %2631 = vmatpush1.msra.mxu0 0.0
  %2632 = vmatprep.subr.mxu0 0.0
  %2633 = vmatpush1.msra.mxu0 0.0
  %2634 = vmatprep.subr.mxu0 0.0
  %2635 = vmatpush1.msra.mxu0 0.0
  %2636 = vmatprep.subr.mxu0 0.0
  %2637 = vmatpush1.msra.mxu0 0.0
  %2638 = vmatprep.subr.mxu0 0.0
  %2639 = vmatpush1.msra.mxu0 0.0
  %2640 = vmatprep.subr.mxu0 0.0
  %2641 = vmatpush1.msra.mxu0 0.0
  %2642 = vmatprep.subr.mxu0 0.0
  %2643 = vmatpush1.msra.mxu0 0.0
  %2644 = vmatprep.subr.mxu0 0.0
  %2645 = vmatpush1.msra.mxu0 0.0
  %2646 = vmatprep.subr.mxu0 0.0
  %2647 = vmatpush1.msra.mxu0 0.0
  %2648 = vmatprep.subr.mxu0 0.0
  %2649 = vmatpush1.msra.mxu0 0.0
  %2650 = vmatprep.subr.mxu0 0.0
  %2651 = vmatpush1.msra.mxu0 0.0
  %2652 = vmatprep.subr.mxu0 0.0
  %2653 = vmatpush1.msra.mxu0 0.0
  %2654 = vmatprep.subr.mxu0 0.0
  %2655 = vmatpush1.msra.mxu0 0.0
  %2656 = vmatprep.subr.mxu0 0.0
  %2657 = vmatpush1.msra.mxu0 0.0
  %2658 = vmatprep.subr.mxu0 0.0
  %2659 = vmatpush1.msra.mxu0 0.0
  %2660 = vmatprep.subr.mxu0 0.0
  %2661 = vmatpush1.msra.mxu0 0.0
  %2662 = vmatprep.subr.mxu0 0.0
  %2663 = vmatpush1.msra.mxu0 0.0
  %2664 = vmatprep.subr.mxu0 0.0
  %2665 = vmatpush1.msra.mxu0 0.0
  %2666 = vmatprep.subr.mxu0 0.0
  %2667 = vmatpush1.msra.mxu0 0.0
  %2668 = vmatprep.subr.mxu0 0.0
  %2669 = vmatpush1.msra.mxu0 0.0
  %2670 = vmatprep.subr.mxu0 0.0
  %2671 = vmatpush1.msra.mxu0 0.0
  %2672 = vmatprep.subr.mxu0 0.0
  %2673 = vmatpush1.msra.mxu0 0.0
  %2674 = vmatprep.subr.mxu0 0.0
  %2675 = vmatpush1.msra.mxu0 0.0
  %2676 = vmatprep.subr.mxu0 0.0
  %2677 = vmatpush1.msra.mxu0 0.0
  %2678 = vmatprep.subr.mxu0 0.0
  %2679 = vmatpush1.msra.mxu0 0.0
  %2680 = vmatprep.subr.mxu0 0.0
  %2681 = vmatpush1.msra.mxu0 0.0
  %2682 = vmatprep.subr.mxu0 0.0
  %2683 = vmatpush1.msra.mxu0 0.0
  %2684 = vmatprep.subr.mxu0 0.0
  %2685 = vmatpush1.msra.mxu0 0.0
  %2686 = vmatprep.subr.mxu0 0.0
  %2687 = vmatpush1.msra.mxu0 0.0
  %2688 = vmatprep.subr.mxu0 0.0
  %2689 = vmatpush1.msra.mxu0 0.0
  %2690 = vmatprep.mubr.f32.mxu0 0.0
  %2691 = vmatmul.mubr.f32.gmra.mrb[0].mxu0 %v2624
  %v2692 = vpop.f32.mrb[0].mxu0
  %v2693 = vadd.f32 0.0, %v2692
  %v2694 = vpop.f32.mrb[0].mxu0
  %2695 = vdwg.mxu0
  %s2696 = scalar_lea.vmem %s12, 256
  %v2697 = vld [vmem:[%s2696] sm:$0xff]
  %v2698 = vld [vmem:[%s2696 + $0x8] sm:$0xff]
  %v2699 = vld [vmem:[%s2696 + $0x10] sm:$0xff]
  %v2700 = vld [vmem:[%s2696 + $0x18] sm:$0xff]
  %v2701 = vld [vmem:[%s2696 + $0x20] sm:$0xff]
  %v2702 = vld [vmem:[%s2696 + $0x28] sm:$0xff]
  %v2703 = vld [vmem:[%s2696 + $0x30] sm:$0xff]
  %v2704 = vld [vmem:[%s2696 + $0x38] sm:$0xff]
  %v2706 = vsel %vm277, %v2693, 0
  %2708 = vmatprep.subr.mxu0 0.0
  %2709 = vmatpush1.msra.mxu0 %v2697
  %2710 = vmatprep.subr.mxu0 0.0
  %2711 = vmatpush1.msra.mxu0 %v2698
  %2712 = vmatprep.subr.mxu0 0.0
  %2713 = vmatpush1.msra.mxu0 %v2699
  %2714 = vmatprep.subr.mxu0 0.0
  %2715 = vmatpush1.msra.mxu0 %v2700
  %2716 = vmatprep.subr.mxu0 0.0
  %2717 = vmatpush1.msra.mxu0 %v2701
  %2718 = vmatprep.subr.mxu0 0.0
  %2719 = vmatpush1.msra.mxu0 %v2702
  %2720 = vmatprep.subr.mxu0 0.0
  %2721 = vmatpush1.msra.mxu0 %v2703
  %2722 = vmatprep.subr.mxu0 0.0
  %2723 = vmatpush1.msra.mxu0 %v2704
  %2724 = vmatprep.subr.mxu0 0.0
  %2725 = vmatpush1.msra.mxu0 0.0
  %2726 = vmatprep.subr.mxu0 0.0
  %2727 = vmatpush1.msra.mxu0 0.0
  %2728 = vmatprep.subr.mxu0 0.0
  %2729 = vmatpush1.msra.mxu0 0.0
  %2730 = vmatprep.subr.mxu0 0.0
  %2731 = vmatpush1.msra.mxu0 0.0
  %2732 = vmatprep.subr.mxu0 0.0
  %2733 = vmatpush1.msra.mxu0 0.0
  %2734 = vmatprep.subr.mxu0 0.0
  %2735 = vmatpush1.msra.mxu0 0.0
  %2736 = vmatprep.subr.mxu0 0.0
  %2737 = vmatpush1.msra.mxu0 0.0
  %2738 = vmatprep.subr.mxu0 0.0
  %2739 = vmatpush1.msra.mxu0 0.0
  %2740 = vmatprep.subr.mxu0 0.0
  %2741 = vmatpush1.msra.mxu0 0.0
  %2742 = vmatprep.subr.mxu0 0.0
  %2743 = vmatpush1.msra.mxu0 0.0
  %2744 = vmatprep.subr.mxu0 0.0
  %2745 = vmatpush1.msra.mxu0 0.0
  %2746 = vmatprep.subr.mxu0 0.0
  %2747 = vmatpush1.msra.mxu0 0.0
  %2748 = vmatprep.subr.mxu0 0.0
  %2749 = vmatpush1.msra.mxu0 0.0
  %2750 = vmatprep.subr.mxu0 0.0
  %2751 = vmatpush1.msra.mxu0 0.0
  %2752 = vmatprep.subr.mxu0 0.0
  %2753 = vmatpush1.msra.mxu0 0.0
  %2754 = vmatprep.subr.mxu0 0.0
  %2755 = vmatpush1.msra.mxu0 0.0
  %2756 = vmatprep.subr.mxu0 0.0
  %2757 = vmatpush1.msra.mxu0 0.0
  %2758 = vmatprep.subr.mxu0 0.0
  %2759 = vmatpush1.msra.mxu0 0.0
  %2760 = vmatprep.subr.mxu0 0.0
  %2761 = vmatpush1.msra.mxu0 0.0
  %2762 = vmatprep.subr.mxu0 0.0
  %2763 = vmatpush1.msra.mxu0 0.0
  %2764 = vmatprep.subr.mxu0 0.0
  %2765 = vmatpush1.msra.mxu0 0.0
  %2766 = vmatprep.subr.mxu0 0.0
  %2767 = vmatpush1.msra.mxu0 0.0
  %2768 = vmatprep.subr.mxu0 0.0
  %2769 = vmatpush1.msra.mxu0 0.0
  %2770 = vmatprep.subr.mxu0 0.0
  %2771 = vmatpush1.msra.mxu0 0.0
  %2772 = vmatprep.mubr.f32.mxu0 0.0
  %2773 = vmatmul.mubr.f32.gmra.mrb[0].mxu0 %v2706
  %v2774 = vpop.f32.mrb[0].mxu0
  %v2775 = vadd.f32 0.0, %v2774
  %v2776 = vpop.f32.mrb[0].mxu0
  %2777 = vdwg.mxu0
  %v2778 = vadd.f32 %v2620, %v2775
  %v2779 = vld [vmem:[%s13] sm:$0x1]
  %v2781 = vlaneseq
  %v2782 = vshrl.u32 %v2781, 7
  %v2783 = vsub.s32 0, %v2782
  %v2784 = vrot.slane %v2779, %v2783
  %v2786 = vadd.f32 %v2778, %v2784
  %vm2787 = vcmask 257024
  %2788 = vst.msk [vmem:[%s27] sm:$0xf] %vm2787, %v2786
  %v2789 = vld [vmem:[%s14] sm:$0xff]
  %vm2790 = vcmask 31744
  %v2792 = vsel %vm2790, %v2789, 0
  %vm2794 = vcmask 1043456
  %v2796 = vsel %vm2794, %v2786, 0
  %2798 = vmatprep.subr.mxu0 0.0
  %2799 = vmatpush1.msra.mxu0 %v2796
  %2800 = vmatprep.subr.mxu0 0.0
  %2801 = vmatpush1.msra.mxu0 0.0
  %2802 = vmatprep.subr.mxu0 0.0
  %2803 = vmatpush1.msra.mxu0 0.0
  %2804 = vmatprep.subr.mxu0 0.0
  %2805 = vmatpush1.msra.mxu0 0.0
  %2806 = vmatprep.subr.mxu0 0.0
  %2807 = vmatpush1.msra.mxu0 0.0
  %2808 = vmatprep.subr.mxu0 0.0
  %2809 = vmatpush1.msra.mxu0 0.0
  %2810 = vmatprep.subr.mxu0 0.0
  %2811 = vmatpush1.msra.mxu0 0.0
  %2812 = vmatprep.subr.mxu0 0.0
  %2813 = vmatpush1.msra.mxu0 0.0
  %2814 = vmatprep.subr.mxu0 0.0
  %2815 = vmatpush1.msra.mxu0 0.0
  %2816 = vmatprep.subr.mxu0 0.0
  %2817 = vmatpush1.msra.mxu0 0.0
  %2818 = vmatprep.subr.mxu0 0.0
  %2819 = vmatpush1.msra.mxu0 0.0
  %2820 = vmatprep.subr.mxu0 0.0
  %2821 = vmatpush1.msra.mxu0 0.0
  %2822 = vmatprep.subr.mxu0 0.0
  %2823 = vmatpush1.msra.mxu0 0.0
  %2824 = vmatprep.subr.mxu0 0.0
  %2825 = vmatpush1.msra.mxu0 0.0
  %2826 = vmatprep.subr.mxu0 0.0
  %2827 = vmatpush1.msra.mxu0 0.0
  %2828 = vmatprep.subr.mxu0 0.0
  %2829 = vmatpush1.msra.mxu0 0.0
  %2830 = vmatprep.subr.mxu0 0.0
  %2831 = vmatpush1.msra.mxu0 0.0
  %2832 = vmatprep.subr.mxu0 0.0
  %2833 = vmatpush1.msra.mxu0 0.0
  %2834 = vmatprep.subr.mxu0 0.0
  %2835 = vmatpush1.msra.mxu0 0.0
  %2836 = vmatprep.subr.mxu0 0.0
  %2837 = vmatpush1.msra.mxu0 0.0
  %2838 = vmatprep.subr.mxu0 0.0
  %2839 = vmatpush1.msra.mxu0 0.0
  %2840 = vmatprep.subr.mxu0 0.0
  %2841 = vmatpush1.msra.mxu0 0.0
  %2842 = vmatprep.subr.mxu0 0.0
  %2843 = vmatpush1.msra.mxu0 0.0
  %2844 = vmatprep.subr.mxu0 0.0
  %2845 = vmatpush1.msra.mxu0 0.0
  %2846 = vmatprep.subr.mxu0 0.0
  %2847 = vmatpush1.msra.mxu0 0.0
  %2848 = vmatprep.subr.mxu0 0.0
  %2849 = vmatpush1.msra.mxu0 0.0
  %2850 = vmatprep.subr.mxu0 0.0
  %2851 = vmatpush1.msra.mxu0 0.0
  %2852 = vmatprep.subr.mxu0 0.0
  %2853 = vmatpush1.msra.mxu0 0.0
  %2854 = vmatprep.subr.mxu0 0.0
  %2855 = vmatpush1.msra.mxu0 0.0
  %2856 = vmatprep.subr.mxu0 0.0
  %2857 = vmatpush1.msra.mxu0 0.0
  %2858 = vmatprep.subr.mxu0 0.0
  %2859 = vmatpush1.msra.mxu0 0.0
  %2860 = vmatprep.subr.mxu0 0.0
  %2861 = vmatpush1.msra.mxu0 0.0
  %2862 = vmatprep.mubr.f32.mxu0 0.0
  %2863 = vmatmul.mubr.f32.gmra.mrb[0].mxu0 %v2792
  %v2864 = vpop.f32.mrb[0].mxu0
  %v2865 = vadd.f32 0.0, %v2864
  %v2866 = vpop.f32.mrb[0].mxu0
  %2867 = vdwg.mxu0
  %v2868 = vld [vmem:[%s15] sm:$0xff]
  %v2869 = vld [vmem:[%s15 + $0x8] sm:$0xff]
  %v2870 = vld [vmem:[%s15 + $0x10] sm:$0xff]
  %v2871 = vld [vmem:[%s15 + $0x18] sm:$0xff]
  %s2872 = scalar_lea.vmem %s14, 8
  %v2873 = vld [vmem:[%s2872] sm:$0xff]
  %v2875 = vsel %vm2790, %v2873, 0
  %2877 = vmatprep.subr.mxu0 0.0
  %2878 = vmatpush1.msra.mxu0 %v2796
  %2879 = vmatprep.subr.mxu0 0.0
  %2880 = vmatpush1.msra.mxu0 0.0
  %2881 = vmatprep.subr.mxu0 0.0
  %2882 = vmatpush1.msra.mxu0 0.0
  %2883 = vmatprep.subr.mxu0 0.0
  %2884 = vmatpush1.msra.mxu0 0.0
  %2885 = vmatprep.subr.mxu0 0.0
  %2886 = vmatpush1.msra.mxu0 0.0
  %2887 = vmatprep.subr.mxu0 0.0
  %2888 = vmatpush1.msra.mxu0 0.0
  %2889 = vmatprep.subr.mxu0 0.0
  %2890 = vmatpush1.msra.mxu0 0.0
  %2891 = vmatprep.subr.mxu0 0.0
  %2892 = vmatpush1.msra.mxu0 0.0
  %2893 = vmatprep.subr.mxu0 0.0
  %2894 = vmatpush1.msra.mxu0 0.0
  %2895 = vmatprep.subr.mxu0 0.0
  %2896 = vmatpush1.msra.mxu0 0.0
  %2897 = vmatprep.subr.mxu0 0.0
  %2898 = vmatpush1.msra.mxu0 0.0
  %2899 = vmatprep.subr.mxu0 0.0
  %2900 = vmatpush1.msra.mxu0 0.0
  %2901 = vmatprep.subr.mxu0 0.0
  %2902 = vmatpush1.msra.mxu0 0.0
  %2903 = vmatprep.subr.mxu0 0.0
  %2904 = vmatpush1.msra.mxu0 0.0
  %2905 = vmatprep.subr.mxu0 0.0
  %2906 = vmatpush1.msra.mxu0 0.0
  %2907 = vmatprep.subr.mxu0 0.0
  %2908 = vmatpush1.msra.mxu0 0.0
  %2909 = vmatprep.subr.mxu0 0.0
  %2910 = vmatpush1.msra.mxu0 0.0
  %2911 = vmatprep.subr.mxu0 0.0
  %2912 = vmatpush1.msra.mxu0 0.0
  %2913 = vmatprep.subr.mxu0 0.0
  %2914 = vmatpush1.msra.mxu0 0.0
  %2915 = vmatprep.subr.mxu0 0.0
  %2916 = vmatpush1.msra.mxu0 0.0
  %2917 = vmatprep.subr.mxu0 0.0
  %2918 = vmatpush1.msra.mxu0 0.0
  %2919 = vmatprep.subr.mxu0 0.0
  %2920 = vmatpush1.msra.mxu0 0.0
  %2921 = vmatprep.subr.mxu0 0.0
  %2922 = vmatpush1.msra.mxu0 0.0
  %2923 = vmatprep.subr.mxu0 0.0
  %2924 = vmatpush1.msra.mxu0 0.0
  %2925 = vmatprep.subr.mxu0 0.0
  %2926 = vmatpush1.msra.mxu0 0.0
  %2927 = vmatprep.subr.mxu0 0.0
  %2928 = vmatpush1.msra.mxu0 0.0
  %2929 = vmatprep.subr.mxu0 0.0
  %2930 = vmatpush1.msra.mxu0 0.0
  %2931 = vmatprep.subr.mxu0 0.0
  %2932 = vmatpush1.msra.mxu0 0.0
  %2933 = vmatprep.subr.mxu0 0.0
  %2934 = vmatpush1.msra.mxu0 0.0
  %2935 = vmatprep.subr.mxu0 0.0
  %2936 = vmatpush1.msra.mxu0 0.0
  %2937 = vmatprep.subr.mxu0 0.0
  %2938 = vmatpush1.msra.mxu0 0.0
  %2939 = vmatprep.subr.mxu0 0.0
  %2940 = vmatpush1.msra.mxu0 0.0
  %2941 = vmatprep.mubr.f32.mxu0 0.0
  %2942 = vmatmul.mubr.f32.gmra.mrb[0].mxu0 %v2875
  %v2943 = vpop.f32.mrb[0].mxu0
  %v2944 = vadd.f32 0.0, %v2943
  %v2945 = vpop.f32.mrb[0].mxu0
  %2946 = vdwg.mxu0
  %s2947 = scalar_lea.vmem %s15, 32
  %v2948 = vld [vmem:[%s2947] sm:$0xff]
  %v2949 = vld [vmem:[%s2947 + $0x8] sm:$0xff]
  %v2950 = vld [vmem:[%s2947 + $0x10] sm:$0xff]
  %v2951 = vld [vmem:[%s2947 + $0x18] sm:$0xff]
  %v2953 = vsel %vm94, %v2944, 0
  %2955 = vmatprep.subr.mxu0 0.0
  %2956 = vmatpush1.msra.mxu0 %v2948
  %2957 = vmatprep.subr.mxu0 0.0
  %2958 = vmatpush1.msra.mxu0 %v2949
  %2959 = vmatprep.subr.mxu0 0.0
  %2960 = vmatpush1.msra.mxu0 %v2950
  %2961 = vmatprep.subr.mxu0 0.0
  %2962 = vmatpush1.msra.mxu0 %v2951
  %2963 = vmatprep.subr.mxu0 0.0
  %2964 = vmatpush1.msra.mxu0 0.0
  %2965 = vmatprep.subr.mxu0 0.0
  %2966 = vmatpush1.msra.mxu0 0.0
  %2967 = vmatprep.subr.mxu0 0.0
  %2968 = vmatpush1.msra.mxu0 0.0
  %2969 = vmatprep.subr.mxu0 0.0
  %2970 = vmatpush1.msra.mxu0 0.0
  %2971 = vmatprep.subr.mxu0 0.0
  %2972 = vmatpush1.msra.mxu0 0.0
  %2973 = vmatprep.subr.mxu0 0.0
  %2974 = vmatpush1.msra.mxu0 0.0
  %2975 = vmatprep.subr.mxu0 0.0
  %2976 = vmatpush1.msra.mxu0 0.0
  %2977 = vmatprep.subr.mxu0 0.0
  %2978 = vmatpush1.msra.mxu0 0.0
  %2979 = vmatprep.subr.mxu0 0.0
  %2980 = vmatpush1.msra.mxu0 0.0
  %2981 = vmatprep.subr.mxu0 0.0
  %2982 = vmatpush1.msra.mxu0 0.0
  %2983 = vmatprep.subr.mxu0 0.0
  %2984 = vmatpush1.msra.mxu0 0.0
  %2985 = vmatprep.subr.mxu0 0.0
  %2986 = vmatpush1.msra.mxu0 0.0
  %2987 = vmatprep.subr.mxu0 0.0
  %2988 = vmatpush1.msra.mxu0 0.0
  %2989 = vmatprep.subr.mxu0 0.0
  %2990 = vmatpush1.msra.mxu0 0.0
  %2991 = vmatprep.subr.mxu0 0.0
  %2992 = vmatpush1.msra.mxu0 0.0
  %2993 = vmatprep.subr.mxu0 0.0
  %2994 = vmatpush1.msra.mxu0 0.0
  %2995 = vmatprep.subr.mxu0 0.0
  %2996 = vmatpush1.msra.mxu0 0.0
  %2997 = vmatprep.subr.mxu0 0.0
  %2998 = vmatpush1.msra.mxu0 0.0
  %2999 = vmatprep.subr.mxu0 0.0
  %3000 = vmatpush1.msra.mxu0 0.0
  %3001 = vmatprep.subr.mxu0 0.0
  %3002 = vmatpush1.msra.mxu0 0.0
  %3003 = vmatprep.subr.mxu0 0.0
  %3004 = vmatpush1.msra.mxu0 0.0
  %3005 = vmatprep.subr.mxu0 0.0
  %3006 = vmatpush1.msra.mxu0 0.0
  %3007 = vmatprep.subr.mxu0 0.0
  %3008 = vmatpush1.msra.mxu0 0.0
  %3009 = vmatprep.subr.mxu0 0.0
  %3010 = vmatpush1.msra.mxu0 0.0
  %3011 = vmatprep.subr.mxu0 0.0
  %3012 = vmatpush1.msra.mxu0 0.0
  %3013 = vmatprep.subr.mxu0 0.0
  %3014 = vmatpush1.msra.mxu0 0.0
  %3015 = vmatprep.subr.mxu0 0.0
  %3016 = vmatpush1.msra.mxu0 0.0
  %3017 = vmatprep.subr.mxu0 0.0
  %3018 = vmatpush1.msra.mxu0 0.0
  %3019 = vmatprep.mubr.f32.mxu0 0.0
  %3020 = vmatmul.mubr.f32.gmra.mrb[0].mxu0 %v2953
  %v3021 = vpop.f32.mrb[0].mxu0
  %v3022 = vadd.f32 0.0, %v3021
  %v3023 = vpop.f32.mrb[0].mxu0
  %3024 = vdwg.mxu0
  %v3026 = vsel %vm94, %v2865, 0
  %3028 = vmatprep.subr.mxu0 0.0
  %3029 = vmatpush1.msra.mxu0 %v2868
  %3030 = vmatprep.subr.mxu0 0.0
  %3031 = vmatpush1.msra.mxu0 %v2869
  %3032 = vmatprep.subr.mxu0 0.0
  %3033 = vmatpush1.msra.mxu0 %v2870
  %3034 = vmatprep.subr.mxu0 0.0
  %3035 = vmatpush1.msra.mxu0 %v2871
  %3036 = vmatprep.subr.mxu0 0.0
  %3037 = vmatpush1.msra.mxu0 0.0
  %3038 = vmatprep.subr.mxu0 0.0
  %3039 = vmatpush1.msra.mxu0 0.0
  %3040 = vmatprep.subr.mxu0 0.0
  %3041 = vmatpush1.msra.mxu0 0.0
  %3042 = vmatprep.subr.mxu0 0.0
  %3043 = vmatpush1.msra.mxu0 0.0
  %3044 = vmatprep.subr.mxu0 0.0
  %3045 = vmatpush1.msra.mxu0 0.0
  %3046 = vmatprep.subr.mxu0 0.0
  %3047 = vmatpush1.msra.mxu0 0.0
  %3048 = vmatprep.subr.mxu0 0.0
  %3049 = vmatpush1.msra.mxu0 0.0
  %3050 = vmatprep.subr.mxu0 0.0
  %3051 = vmatpush1.msra.mxu0 0.0
  %3052 = vmatprep.subr.mxu0 0.0
  %3053 = vmatpush1.msra.mxu0 0.0
  %3054 = vmatprep.subr.mxu0 0.0
  %3055 = vmatpush1.msra.mxu0 0.0
  %3056 = vmatprep.subr.mxu0 0.0
  %3057 = vmatpush1.msra.mxu0 0.0
  %3058 = vmatprep.subr.mxu0 0.0
  %3059 = vmatpush1.msra.mxu0 0.0
  %3060 = vmatprep.subr.mxu0 0.0
  %3061 = vmatpush1.msra.mxu0 0.0
  %3062 = vmatprep.subr.mxu0 0.0
  %3063 = vmatpush1.msra.mxu0 0.0
  %3064 = vmatprep.subr.mxu0 0.0
  %3065 = vmatpush1.msra.mxu0 0.0
  %3066 = vmatprep.subr.mxu0 0.0
  %3067 = vmatpush1.msra.mxu0 0.0
  %3068 = vmatprep.subr.mxu0 0.0
  %3069 = vmatpush1.msra.mxu0 0.0
  %3070 = vmatprep.subr.mxu0 0.0
  %3071 = vmatpush1.msra.mxu0 0.0
  %3072 = vmatprep.subr.mxu0 0.0
  %3073 = vmatpush1.msra.mxu0 0.0
  %3074 = vmatprep.subr.mxu0 0.0
  %3075 = vmatpush1.msra.mxu0 0.0
  %3076 = vmatprep.subr.mxu0 0.0
  %3077 = vmatpush1.msra.mxu0 0.0
  %3078 = vmatprep.subr.mxu0 0.0
  %3079 = vmatpush1.msra.mxu0 0.0
  %3080 = vmatprep.subr.mxu0 0.0
  %3081 = vmatpush1.msra.mxu0 0.0
  %3082 = vmatprep.subr.mxu0 0.0
  %3083 = vmatpush1.msra.mxu0 0.0
  %3084 = vmatprep.subr.mxu0 0.0
  %3085 = vmatpush1.msra.mxu0 0.0
  %3086 = vmatprep.subr.mxu0 0.0
  %3087 = vmatpush1.msra.mxu0 0.0
  %3088 = vmatprep.subr.mxu0 0.0
  %3089 = vmatpush1.msra.mxu0 0.0
  %3090 = vmatprep.subr.mxu0 0.0
  %3091 = vmatpush1.msra.mxu0 0.0
  %3092 = vmatprep.mubr.f32.mxu0 0.0
  %3093 = vmatmul.mubr.f32.gmra.mrb[0].mxu0 %v3026
  %v3094 = vpop.f32.mrb[0].mxu0
  %v3095 = vadd.f32 %v3022, %v3094
  %v3096 = vpop.f32.mrb[0].mxu0
  %3097 = vdwg.mxu0
  %s3098 = scalar_lea.vmem %s14, 16
  %v3099 = vld [vmem:[%s3098] sm:$0xff]
  %v3101 = vsel %vm2790, %v3099, 0
  %3103 = vmatprep.subr.mxu0 0.0
  %3104 = vmatpush1.msra.mxu0 %v2796
  %3105 = vmatprep.subr.mxu0 0.0
  %3106 = vmatpush1.msra.mxu0 0.0
  %3107 = vmatprep.subr.mxu0 0.0
  %3108 = vmatpush1.msra.mxu0 0.0
  %3109 = vmatprep.subr.mxu0 0.0
  %3110 = vmatpush1.msra.mxu0 0.0
  %3111 = vmatprep.subr.mxu0 0.0
  %3112 = vmatpush1.msra.mxu0 0.0
  %3113 = vmatprep.subr.mxu0 0.0
  %3114 = vmatpush1.msra.mxu0 0.0
  %3115 = vmatprep.subr.mxu0 0.0
  %3116 = vmatpush1.msra.mxu0 0.0
  %3117 = vmatprep.subr.mxu0 0.0
  %3118 = vmatpush1.msra.mxu0 0.0
  %3119 = vmatprep.subr.mxu0 0.0
  %3120 = vmatpush1.msra.mxu0 0.0
  %3121 = vmatprep.subr.mxu0 0.0
  %3122 = vmatpush1.msra.mxu0 0.0
  %3123 = vmatprep.subr.mxu0 0.0
  %3124 = vmatpush1.msra.mxu0 0.0
  %3125 = vmatprep.subr.mxu0 0.0
  %3126 = vmatpush1.msra.mxu0 0.0
  %3127 = vmatprep.subr.mxu0 0.0
  %3128 = vmatpush1.msra.mxu0 0.0
  %3129 = vmatprep.subr.mxu0 0.0
  %3130 = vmatpush1.msra.mxu0 0.0
  %3131 = vmatprep.subr.mxu0 0.0
  %3132 = vmatpush1.msra.mxu0 0.0
  %3133 = vmatprep.subr.mxu0 0.0
  %3134 = vmatpush1.msra.mxu0 0.0
  %3135 = vmatprep.subr.mxu0 0.0
  %3136 = vmatpush1.msra.mxu0 0.0
  %3137 = vmatprep.subr.mxu0 0.0
  %3138 = vmatpush1.msra.mxu0 0.0
  %3139 = vmatprep.subr.mxu0 0.0
  %3140 = vmatpush1.msra.mxu0 0.0
  %3141 = vmatprep.subr.mxu0 0.0
  %3142 = vmatpush1.msra.mxu0 0.0
  %3143 = vmatprep.subr.mxu0 0.0
  %3144 = vmatpush1.msra.mxu0 0.0
  %3145 = vmatprep.subr.mxu0 0.0
  %3146 = vmatpush1.msra.mxu0 0.0
  %3147 = vmatprep.subr.mxu0 0.0
  %3148 = vmatpush1.msra.mxu0 0.0
  %3149 = vmatprep.subr.mxu0 0.0
  %3150 = vmatpush1.msra.mxu0 0.0
  %3151 = vmatprep.subr.mxu0 0.0
  %3152 = vmatpush1.msra.mxu0 0.0
  %3153 = vmatprep.subr.mxu0 0.0
  %3154 = vmatpush1.msra.mxu0 0.0
  %3155 = vmatprep.subr.mxu0 0.0
  %3156 = vmatpush1.msra.mxu0 0.0
  %3157 = vmatprep.subr.mxu0 0.0
  %3158 = vmatpush1.msra.mxu0 0.0
  %3159 = vmatprep.subr.mxu0 0.0
  %3160 = vmatpush1.msra.mxu0 0.0
  %3161 = vmatprep.subr.mxu0 0.0
  %3162 = vmatpush1.msra.mxu0 0.0
  %3163 = vmatprep.subr.mxu0 0.0
  %3164 = vmatpush1.msra.mxu0 0.0
  %3165 = vmatprep.subr.mxu0 0.0
  %3166 = vmatpush1.msra.mxu0 0.0
  %3167 = vmatprep.mubr.f32.mxu0 0.0
  %3168 = vmatmul.mubr.f32.gmra.mrb[0].mxu0 %v3101
  %v3169 = vpop.f32.mrb[0].mxu0
  %v3170 = vadd.f32 0.0, %v3169
  %v3171 = vpop.f32.mrb[0].mxu0
  %3172 = vdwg.mxu0
  %s3173 = scalar_lea.vmem %s15, 64
  %v3174 = vld [vmem:[%s3173] sm:$0xff]
  %v3175 = vld [vmem:[%s3173 + $0x8] sm:$0xff]
  %v3176 = vld [vmem:[%s3173 + $0x10] sm:$0xff]
  %v3177 = vld [vmem:[%s3173 + $0x18] sm:$0xff]
  %v3179 = vsel %vm94, %v3170, 0
  %3181 = vmatprep.subr.mxu0 0.0
  %3182 = vmatpush1.msra.mxu0 %v3174
  %3183 = vmatprep.subr.mxu0 0.0
  %3184 = vmatpush1.msra.mxu0 %v3175
  %3185 = vmatprep.subr.mxu0 0.0
  %3186 = vmatpush1.msra.mxu0 %v3176
  %3187 = vmatprep.subr.mxu0 0.0
  %3188 = vmatpush1.msra.mxu0 %v3177
  %3189 = vmatprep.subr.mxu0 0.0
  %3190 = vmatpush1.msra.mxu0 0.0
  %3191 = vmatprep.subr.mxu0 0.0
  %3192 = vmatpush1.msra.mxu0 0.0
  %3193 = vmatprep.subr.mxu0 0.0
  %3194 = vmatpush1.msra.mxu0 0.0
  %3195 = vmatprep.subr.mxu0 0.0
  %3196 = vmatpush1.msra.mxu0 0.0
  %3197 = vmatprep.subr.mxu0 0.0
  %3198 = vmatpush1.msra.mxu0 0.0
  %3199 = vmatprep.subr.mxu0 0.0
  %3200 = vmatpush1.msra.mxu0 0.0
  %3201 = vmatprep.subr.mxu0 0.0
  %3202 = vmatpush1.msra.mxu0 0.0
  %3203 = vmatprep.subr.mxu0 0.0
  %3204 = vmatpush1.msra.mxu0 0.0
  %3205 = vmatprep.subr.mxu0 0.0
  %3206 = vmatpush1.msra.mxu0 0.0
  %3207 = vmatprep.subr.mxu0 0.0
  %3208 = vmatpush1.msra.mxu0 0.0
  %3209 = vmatprep.subr.mxu0 0.0
  %3210 = vmatpush1.msra.mxu0 0.0
  %3211 = vmatprep.subr.mxu0 0.0
  %3212 = vmatpush1.msra.mxu0 0.0
  %3213 = vmatprep.subr.mxu0 0.0
  %3214 = vmatpush1.msra.mxu0 0.0
  %3215 = vmatprep.subr.mxu0 0.0
  %3216 = vmatpush1.msra.mxu0 0.0
  %3217 = vmatprep.subr.mxu0 0.0
  %3218 = vmatpush1.msra.mxu0 0.0
  %3219 = vmatprep.subr.mxu0 0.0
  %3220 = vmatpush1.msra.mxu0 0.0
  %3221 = vmatprep.subr.mxu0 0.0
  %3222 = vmatpush1.msra.mxu0 0.0
  %3223 = vmatprep.subr.mxu0 0.0
  %3224 = vmatpush1.msra.mxu0 0.0
  %3225 = vmatprep.subr.mxu0 0.0
  %3226 = vmatpush1.msra.mxu0 0.0
  %3227 = vmatprep.subr.mxu0 0.0
  %3228 = vmatpush1.msra.mxu0 0.0
  %3229 = vmatprep.subr.mxu0 0.0
  %3230 = vmatpush1.msra.mxu0 0.0
  %3231 = vmatprep.subr.mxu0 0.0
  %3232 = vmatpush1.msra.mxu0 0.0
  %3233 = vmatprep.subr.mxu0 0.0
  %3234 = vmatpush1.msra.mxu0 0.0
  %3235 = vmatprep.subr.mxu0 0.0
  %3236 = vmatpush1.msra.mxu0 0.0
  %3237 = vmatprep.subr.mxu0 0.0
  %3238 = vmatpush1.msra.mxu0 0.0
  %3239 = vmatprep.subr.mxu0 0.0
  %3240 = vmatpush1.msra.mxu0 0.0
  %3241 = vmatprep.subr.mxu0 0.0
  %3242 = vmatpush1.msra.mxu0 0.0
  %3243 = vmatprep.subr.mxu0 0.0
  %3244 = vmatpush1.msra.mxu0 0.0
  %3245 = vmatprep.mubr.f32.mxu0 0.0
  %3246 = vmatmul.mubr.f32.gmra.mrb[0].mxu0 %v3179
  %v3247 = vpop.f32.mrb[0].mxu0
  %v3248 = vadd.f32 0.0, %v3247
  %v3249 = vpop.f32.mrb[0].mxu0
  %3250 = vdwg.mxu0
  %v3251 = vadd.f32 %v3095, %v3248
  %s3252 = scalar_lea.vmem %s14, 24
  %v3253 = vld [vmem:[%s3252] sm:$0xff]
  %v3255 = vsel %vm2790, %v3253, 0
  %3257 = vmatprep.subr.mxu0 0.0
  %3258 = vmatpush1.msra.mxu0 %v2796
  %3259 = vmatprep.subr.mxu0 0.0
  %3260 = vmatpush1.msra.mxu0 0.0
  %3261 = vmatprep.subr.mxu0 0.0
  %3262 = vmatpush1.msra.mxu0 0.0
  %3263 = vmatprep.subr.mxu0 0.0
  %3264 = vmatpush1.msra.mxu0 0.0
  %3265 = vmatprep.subr.mxu0 0.0
  %3266 = vmatpush1.msra.mxu0 0.0
  %3267 = vmatprep.subr.mxu0 0.0
  %3268 = vmatpush1.msra.mxu0 0.0
  %3269 = vmatprep.subr.mxu0 0.0
  %3270 = vmatpush1.msra.mxu0 0.0
  %3271 = vmatprep.subr.mxu0 0.0
  %3272 = vmatpush1.msra.mxu0 0.0
  %3273 = vmatprep.subr.mxu0 0.0
  %3274 = vmatpush1.msra.mxu0 0.0
  %3275 = vmatprep.subr.mxu0 0.0
  %3276 = vmatpush1.msra.mxu0 0.0
  %3277 = vmatprep.subr.mxu0 0.0
  %3278 = vmatpush1.msra.mxu0 0.0
  %3279 = vmatprep.subr.mxu0 0.0
  %3280 = vmatpush1.msra.mxu0 0.0
  %3281 = vmatprep.subr.mxu0 0.0
  %3282 = vmatpush1.msra.mxu0 0.0
  %3283 = vmatprep.subr.mxu0 0.0
  %3284 = vmatpush1.msra.mxu0 0.0
  %3285 = vmatprep.subr.mxu0 0.0
  %3286 = vmatpush1.msra.mxu0 0.0
  %3287 = vmatprep.subr.mxu0 0.0
  %3288 = vmatpush1.msra.mxu0 0.0
  %3289 = vmatprep.subr.mxu0 0.0
  %3290 = vmatpush1.msra.mxu0 0.0
  %3291 = vmatprep.subr.mxu0 0.0
  %3292 = vmatpush1.msra.mxu0 0.0
  %3293 = vmatprep.subr.mxu0 0.0
  %3294 = vmatpush1.msra.mxu0 0.0
  %3295 = vmatprep.subr.mxu0 0.0
  %3296 = vmatpush1.msra.mxu0 0.0
  %3297 = vmatprep.subr.mxu0 0.0
  %3298 = vmatpush1.msra.mxu0 0.0
  %3299 = vmatprep.subr.mxu0 0.0
  %3300 = vmatpush1.msra.mxu0 0.0
  %3301 = vmatprep.subr.mxu0 0.0
  %3302 = vmatpush1.msra.mxu0 0.0
  %3303 = vmatprep.subr.mxu0 0.0
  %3304 = vmatpush1.msra.mxu0 0.0
  %3305 = vmatprep.subr.mxu0 0.0
  %3306 = vmatpush1.msra.mxu0 0.0
  %3307 = vmatprep.subr.mxu0 0.0
  %3308 = vmatpush1.msra.mxu0 0.0
  %3309 = vmatprep.subr.mxu0 0.0
  %3310 = vmatpush1.msra.mxu0 0.0
  %3311 = vmatprep.subr.mxu0 0.0
  %3312 = vmatpush1.msra.mxu0 0.0
  %3313 = vmatprep.subr.mxu0 0.0
  %3314 = vmatpush1.msra.mxu0 0.0
  %3315 = vmatprep.subr.mxu0 0.0
  %3316 = vmatpush1.msra.mxu0 0.0
  %3317 = vmatprep.subr.mxu0 0.0
  %3318 = vmatpush1.msra.mxu0 0.0
  %3319 = vmatprep.subr.mxu0 0.0
  %3320 = vmatpush1.msra.mxu0 0.0
  %3321 = vmatprep.mubr.f32.mxu0 0.0
  %3322 = vmatmul.mubr.f32.gmra.mrb[0].mxu0 %v3255
  %v3323 = vpop.f32.mrb[0].mxu0
  %v3324 = vadd.f32 0.0, %v3323
  %v3325 = vpop.f32.mrb[0].mxu0
  %3326 = vdwg.mxu0
  %s3327 = scalar_lea.vmem %s15, 96
  %v3328 = vld [vmem:[%s3327] sm:$0xff]
  %v3329 = vld [vmem:[%s3327 + $0x8] sm:$0xff]
  %v3330 = vld [vmem:[%s3327 + $0x10] sm:$0xff]
  %v3331 = vld [vmem:[%s3327 + $0x18] sm:$0xff]
  %v3333 = vsel %vm94, %v3324, 0
  %3335 = vmatprep.subr.mxu0 0.0
  %3336 = vmatpush1.msra.mxu0 %v3328
  %3337 = vmatprep.subr.mxu0 0.0
  %3338 = vmatpush1.msra.mxu0 %v3329
  %3339 = vmatprep.subr.mxu0 0.0
  %3340 = vmatpush1.msra.mxu0 %v3330
  %3341 = vmatprep.subr.mxu0 0.0
  %3342 = vmatpush1.msra.mxu0 %v3331
  %3343 = vmatprep.subr.mxu0 0.0
  %3344 = vmatpush1.msra.mxu0 0.0
  %3345 = vmatprep.subr.mxu0 0.0
  %3346 = vmatpush1.msra.mxu0 0.0
  %3347 = vmatprep.subr.mxu0 0.0
  %3348 = vmatpush1.msra.mxu0 0.0
  %3349 = vmatprep.subr.mxu0 0.0
  %3350 = vmatpush1.msra.mxu0 0.0
  %3351 = vmatprep.subr.mxu0 0.0
  %3352 = vmatpush1.msra.mxu0 0.0
  %3353 = vmatprep.subr.mxu0 0.0
  %3354 = vmatpush1.msra.mxu0 0.0
  %3355 = vmatprep.subr.mxu0 0.0
  %3356 = vmatpush1.msra.mxu0 0.0
  %3357 = vmatprep.subr.mxu0 0.0
  %3358 = vmatpush1.msra.mxu0 0.0
  %3359 = vmatprep.subr.mxu0 0.0
  %3360 = vmatpush1.msra.mxu0 0.0
  %3361 = vmatprep.subr.mxu0 0.0
  %3362 = vmatpush1.msra.mxu0 0.0
  %3363 = vmatprep.subr.mxu0 0.0
  %3364 = vmatpush1.msra.mxu0 0.0
  %3365 = vmatprep.subr.mxu0 0.0
  %3366 = vmatpush1.msra.mxu0 0.0
  %3367 = vmatprep.subr.mxu0 0.0
  %3368 = vmatpush1.msra.mxu0 0.0
  %3369 = vmatprep.subr.mxu0 0.0
  %3370 = vmatpush1.msra.mxu0 0.0
  %3371 = vmatprep.subr.mxu0 0.0
  %3372 = vmatpush1.msra.mxu0 0.0
  %3373 = vmatprep.subr.mxu0 0.0
  %3374 = vmatpush1.msra.mxu0 0.0
  %3375 = vmatprep.subr.mxu0 0.0
  %3376 = vmatpush1.msra.mxu0 0.0
  %3377 = vmatprep.subr.mxu0 0.0
  %3378 = vmatpush1.msra.mxu0 0.0
  %3379 = vmatprep.subr.mxu0 0.0
  %3380 = vmatpush1.msra.mxu0 0.0
  %3381 = vmatprep.subr.mxu0 0.0
  %3382 = vmatpush1.msra.mxu0 0.0
  %3383 = vmatprep.subr.mxu0 0.0
  %3384 = vmatpush1.msra.mxu0 0.0
  %3385 = vmatprep.subr.mxu0 0.0
  %3386 = vmatpush1.msra.mxu0 0.0
  %3387 = vmatprep.subr.mxu0 0.0
  %3388 = vmatpush1.msra.mxu0 0.0
  %3389 = vmatprep.subr.mxu0 0.0
  %3390 = vmatpush1.msra.mxu0 0.0
  %3391 = vmatprep.subr.mxu0 0.0
  %3392 = vmatpush1.msra.mxu0 0.0
  %3393 = vmatprep.subr.mxu0 0.0
  %3394 = vmatpush1.msra.mxu0 0.0
  %3395 = vmatprep.subr.mxu0 0.0
  %3396 = vmatpush1.msra.mxu0 0.0
  %3397 = vmatprep.subr.mxu0 0.0
  %3398 = vmatpush1.msra.mxu0 0.0
  %3399 = vmatprep.mubr.f32.mxu0 0.0
  %3400 = vmatmul.mubr.f32.gmra.mrb[0].mxu0 %v3333
  %v3401 = vpop.f32.mrb[0].mxu0
  %v3402 = vadd.f32 0.0, %v3401
  %v3403 = vpop.f32.mrb[0].mxu0
  %3404 = vdwg.mxu0
  %v3405 = vadd.f32 %v3251, %v3402
  %s3406 = scalar_lea.vmem %s14, 32
  %v3407 = vld [vmem:[%s3406] sm:$0xff]
  %v3409 = vsel %vm2790, %v3407, 0
  %3411 = vmatprep.subr.mxu0 0.0
  %3412 = vmatpush1.msra.mxu0 %v2796
  %3413 = vmatprep.subr.mxu0 0.0
  %3414 = vmatpush1.msra.mxu0 0.0
  %3415 = vmatprep.subr.mxu0 0.0
  %3416 = vmatpush1.msra.mxu0 0.0
  %3417 = vmatprep.subr.mxu0 0.0
  %3418 = vmatpush1.msra.mxu0 0.0
  %3419 = vmatprep.subr.mxu0 0.0
  %3420 = vmatpush1.msra.mxu0 0.0
  %3421 = vmatprep.subr.mxu0 0.0
  %3422 = vmatpush1.msra.mxu0 0.0
  %3423 = vmatprep.subr.mxu0 0.0
  %3424 = vmatpush1.msra.mxu0 0.0
  %3425 = vmatprep.subr.mxu0 0.0
  %3426 = vmatpush1.msra.mxu0 0.0
  %3427 = vmatprep.subr.mxu0 0.0
  %3428 = vmatpush1.msra.mxu0 0.0
  %3429 = vmatprep.subr.mxu0 0.0
  %3430 = vmatpush1.msra.mxu0 0.0
  %3431 = vmatprep.subr.mxu0 0.0
  %3432 = vmatpush1.msra.mxu0 0.0
  %3433 = vmatprep.subr.mxu0 0.0
  %3434 = vmatpush1.msra.mxu0 0.0
  %3435 = vmatprep.subr.mxu0 0.0
  %3436 = vmatpush1.msra.mxu0 0.0
  %3437 = vmatprep.subr.mxu0 0.0
  %3438 = vmatpush1.msra.mxu0 0.0
  %3439 = vmatprep.subr.mxu0 0.0
  %3440 = vmatpush1.msra.mxu0 0.0
  %3441 = vmatprep.subr.mxu0 0.0
  %3442 = vmatpush1.msra.mxu0 0.0
  %3443 = vmatprep.subr.mxu0 0.0
  %3444 = vmatpush1.msra.mxu0 0.0
  %3445 = vmatprep.subr.mxu0 0.0
  %3446 = vmatpush1.msra.mxu0 0.0
  %3447 = vmatprep.subr.mxu0 0.0
  %3448 = vmatpush1.msra.mxu0 0.0
  %3449 = vmatprep.subr.mxu0 0.0
  %3450 = vmatpush1.msra.mxu0 0.0
  %3451 = vmatprep.subr.mxu0 0.0
  %3452 = vmatpush1.msra.mxu0 0.0
  %3453 = vmatprep.subr.mxu0 0.0
  %3454 = vmatpush1.msra.mxu0 0.0
  %3455 = vmatprep.subr.mxu0 0.0
  %3456 = vmatpush1.msra.mxu0 0.0
  %3457 = vmatprep.subr.mxu0 0.0
  %3458 = vmatpush1.msra.mxu0 0.0
  %3459 = vmatprep.subr.mxu0 0.0
  %3460 = vmatpush1.msra.mxu0 0.0
  %3461 = vmatprep.subr.mxu0 0.0
  %3462 = vmatpush1.msra.mxu0 0.0
  %3463 = vmatprep.subr.mxu0 0.0
  %3464 = vmatpush1.msra.mxu0 0.0
  %3465 = vmatprep.subr.mxu0 0.0
  %3466 = vmatpush1.msra.mxu0 0.0
  %3467 = vmatprep.subr.mxu0 0.0
  %3468 = vmatpush1.msra.mxu0 0.0
  %3469 = vmatprep.subr.mxu0 0.0
  %3470 = vmatpush1.msra.mxu0 0.0
  %3471 = vmatprep.subr.mxu0 0.0
  %3472 = vmatpush1.msra.mxu0 0.0
  %3473 = vmatprep.subr.mxu0 0.0
  %3474 = vmatpush1.msra.mxu0 0.0
  %3475 = vmatprep.mubr.f32.mxu0 0.0
  %3476 = vmatmul.mubr.f32.gmra.mrb[0].mxu0 %v3409
  %v3477 = vpop.f32.mrb[0].mxu0
  %v3478 = vadd.f32 0.0, %v3477
  %v3479 = vpop.f32.mrb[0].mxu0
  %3480 = vdwg.mxu0
  %s3481 = scalar_lea.vmem %s15, 128
  %v3482 = vld [vmem:[%s3481] sm:$0xff]
  %v3483 = vld [vmem:[%s3481 + $0x8] sm:$0xff]
  %v3484 = vld [vmem:[%s3481 + $0x10] sm:$0xff]
  %v3485 = vld [vmem:[%s3481 + $0x18] sm:$0xff]
  %v3487 = vsel %vm94, %v3478, 0
  %3489 = vmatprep.subr.mxu0 0.0
  %3490 = vmatpush1.msra.mxu0 %v3482
  %3491 = vmatprep.subr.mxu0 0.0
  %3492 = vmatpush1.msra.mxu0 %v3483
  %3493 = vmatprep.subr.mxu0 0.0
  %3494 = vmatpush1.msra.mxu0 %v3484
  %3495 = vmatprep.subr.mxu0 0.0
  %3496 = vmatpush1.msra.mxu0 %v3485
  %3497 = vmatprep.subr.mxu0 0.0
  %3498 = vmatpush1.msra.mxu0 0.0
  %3499 = vmatprep.subr.mxu0 0.0
  %3500 = vmatpush1.msra.mxu0 0.0
  %3501 = vmatprep.subr.mxu0 0.0
  %3502 = vmatpush1.msra.mxu0 0.0
  %3503 = vmatprep.subr.mxu0 0.0
  %3504 = vmatpush1.msra.mxu0 0.0
  %3505 = vmatprep.subr.mxu0 0.0
  %3506 = vmatpush1.msra.mxu0 0.0
  %3507 = vmatprep.subr.mxu0 0.0
  %3508 = vmatpush1.msra.mxu0 0.0
  %3509 = vmatprep.subr.mxu0 0.0
  %3510 = vmatpush1.msra.mxu0 0.0
  %3511 = vmatprep.subr.mxu0 0.0
  %3512 = vmatpush1.msra.mxu0 0.0
  %3513 = vmatprep.subr.mxu0 0.0
  %3514 = vmatpush1.msra.mxu0 0.0
  %3515 = vmatprep.subr.mxu0 0.0
  %3516 = vmatpush1.msra.mxu0 0.0
  %3517 = vmatprep.subr.mxu0 0.0
  %3518 = vmatpush1.msra.mxu0 0.0
  %3519 = vmatprep.subr.mxu0 0.0
  %3520 = vmatpush1.msra.mxu0 0.0
  %3521 = vmatprep.subr.mxu0 0.0
  %3522 = vmatpush1.msra.mxu0 0.0
  %3523 = vmatprep.subr.mxu0 0.0
  %3524 = vmatpush1.msra.mxu0 0.0
  %3525 = vmatprep.subr.mxu0 0.0
  %3526 = vmatpush1.msra.mxu0 0.0
  %3527 = vmatprep.subr.mxu0 0.0
  %3528 = vmatpush1.msra.mxu0 0.0
  %3529 = vmatprep.subr.mxu0 0.0
  %3530 = vmatpush1.msra.mxu0 0.0
  %3531 = vmatprep.subr.mxu0 0.0
  %3532 = vmatpush1.msra.mxu0 0.0
  %3533 = vmatprep.subr.mxu0 0.0
  %3534 = vmatpush1.msra.mxu0 0.0
  %3535 = vmatprep.subr.mxu0 0.0
  %3536 = vmatpush1.msra.mxu0 0.0
  %3537 = vmatprep.subr.mxu0 0.0
  %3538 = vmatpush1.msra.mxu0 0.0
  %3539 = vmatprep.subr.mxu0 0.0
  %3540 = vmatpush1.msra.mxu0 0.0
  %3541 = vmatprep.subr.mxu0 0.0
  %3542 = vmatpush1.msra.mxu0 0.0
  %3543 = vmatprep.subr.mxu0 0.0
  %3544 = vmatpush1.msra.mxu0 0.0
  %3545 = vmatprep.subr.mxu0 0.0
  %3546 = vmatpush1.msra.mxu0 0.0
  %3547 = vmatprep.subr.mxu0 0.0
  %3548 = vmatpush1.msra.mxu0 0.0
  %3549 = vmatprep.subr.mxu0 0.0
  %3550 = vmatpush1.msra.mxu0 0.0
  %3551 = vmatprep.subr.mxu0 0.0
  %3552 = vmatpush1.msra.mxu0 0.0
  %3553 = vmatprep.mubr.f32.mxu0 0.0
  %3554 = vmatmul.mubr.f32.gmra.mrb[0].mxu0 %v3487
  %v3555 = vpop.f32.mrb[0].mxu0
  %v3556 = vadd.f32 0.0, %v3555
  %v3557 = vpop.f32.mrb[0].mxu0
  %3558 = vdwg.mxu0
  %v3559 = vadd.f32 %v3405, %v3556
  %v3560 = vld [vmem:[%s16] sm:$0x1]
  %v3562 = vlaneseq
  %v3563 = vshrl.u32 %v3562, 7
  %v3564 = vsub.s32 0, %v3563
  %v3565 = vrot.slane %v3560, %v3564
  %v3567 = vadd.f32 %v3559, %v3565
  %v3568 = vmul.f32 %v3567, %v3567
  %v3569 = vld [vmem:[%s17] sm:$0xff]
  %v3570 = vld [vmem:[%s17 + $0x8] sm:$0xff]
  %v3571 = vld [vmem:[%s17 + $0x10] sm:$0xff]
  %v3572 = vld [vmem:[%s17 + $0x18] sm:$0xff]
  %v3573 = vld [vmem:[%s17 + $0x20] sm:$0xff]
  %v3574 = vld [vmem:[%s17 + $0x28] sm:$0xff]
  %v3575 = vld [vmem:[%s17 + $0x30] sm:$0xff]
  %v3576 = vld [vmem:[%s17 + $0x38] sm:$0xff]
  %v3577 = vld [vmem:[%s18] sm:$0x1]
  %v3579 = vlaneseq
  %v3580 = vshrl.u32 %v3579, 7
  %v3581 = vsub.s32 0, %v3580
  %v3582 = vrot.slane %v3577, %v3581
  %v3585 = vsel %vm277, %v3568, 0
  %3587 = vmatprep.subr.mxu0 0.0
  %3588 = vmatpush1.msra.mxu0 %v3569
  %3589 = vmatprep.subr.mxu0 0.0
  %3590 = vmatpush1.msra.mxu0 %v3570
  %3591 = vmatprep.subr.mxu0 0.0
  %3592 = vmatpush1.msra.mxu0 %v3571
  %3593 = vmatprep.subr.mxu0 0.0
  %3594 = vmatpush1.msra.mxu0 %v3572
  %3595 = vmatprep.subr.mxu0 0.0
  %3596 = vmatpush1.msra.mxu0 %v3573
  %3597 = vmatprep.subr.mxu0 0.0
  %3598 = vmatpush1.msra.mxu0 %v3574
  %3599 = vmatprep.subr.mxu0 0.0
  %3600 = vmatpush1.msra.mxu0 %v3575
  %3601 = vmatprep.subr.mxu0 0.0
  %3602 = vmatpush1.msra.mxu0 %v3576
  %3603 = vmatprep.subr.mxu0 0.0
  %3604 = vmatpush1.msra.mxu0 0.0
  %3605 = vmatprep.subr.mxu0 0.0
  %3606 = vmatpush1.msra.mxu0 0.0
  %3607 = vmatprep.subr.mxu0 0.0
  %3608 = vmatpush1.msra.mxu0 0.0
  %3609 = vmatprep.subr.mxu0 0.0
  %3610 = vmatpush1.msra.mxu0 0.0
  %3611 = vmatprep.subr.mxu0 0.0
  %3612 = vmatpush1.msra.mxu0 0.0
  %3613 = vmatprep.subr.mxu0 0.0
  %3614 = vmatpush1.msra.mxu0 0.0
  %3615 = vmatprep.subr.mxu0 0.0
  %3616 = vmatpush1.msra.mxu0 0.0
  %3617 = vmatprep.subr.mxu0 0.0
  %3618 = vmatpush1.msra.mxu0 0.0
  %3619 = vmatprep.subr.mxu0 0.0
  %3620 = vmatpush1.msra.mxu0 0.0
  %3621 = vmatprep.subr.mxu0 0.0
  %3622 = vmatpush1.msra.mxu0 0.0
  %3623 = vmatprep.subr.mxu0 0.0
  %3624 = vmatpush1.msra.mxu0 0.0
  %3625 = vmatprep.subr.mxu0 0.0
  %3626 = vmatpush1.msra.mxu0 0.0
  %3627 = vmatprep.subr.mxu0 0.0
  %3628 = vmatpush1.msra.mxu0 0.0
  %3629 = vmatprep.subr.mxu0 0.0
  %3630 = vmatpush1.msra.mxu0 0.0
  %3631 = vmatprep.subr.mxu0 0.0
  %3632 = vmatpush1.msra.mxu0 0.0
  %3633 = vmatprep.subr.mxu0 0.0
  %3634 = vmatpush1.msra.mxu0 0.0
  %3635 = vmatprep.subr.mxu0 0.0
  %3636 = vmatpush1.msra.mxu0 0.0
  %3637 = vmatprep.subr.mxu0 0.0
  %3638 = vmatpush1.msra.mxu0 0.0
  %3639 = vmatprep.subr.mxu0 0.0
  %3640 = vmatpush1.msra.mxu0 0.0
  %3641 = vmatprep.subr.mxu0 0.0
  %3642 = vmatpush1.msra.mxu0 0.0
  %3643 = vmatprep.subr.mxu0 0.0
  %3644 = vmatpush1.msra.mxu0 0.0
  %3645 = vmatprep.subr.mxu0 0.0
  %3646 = vmatpush1.msra.mxu0 0.0
  %3647 = vmatprep.subr.mxu0 0.0
  %3648 = vmatpush1.msra.mxu0 0.0
  %3649 = vmatprep.subr.mxu0 0.0
  %3650 = vmatpush1.msra.mxu0 0.0
  %3651 = vmatprep.mubr.f32.mxu0 0.0
  %3652 = vmatmul.mubr.f32.gmra.mrb[0].mxu0 %v3585
  %v3653 = vpop.f32.mrb[0].mxu0
  %v3654 = vadd.f32 %v3582, %v3653
  %v3655 = vpop.f32.mrb[0].mxu0
  %3656 = vdwg.mxu0
  %v3657 = vrsqrt.pop %v3654
  %v3658 = vmul.f32 %v3654, %v3657
  %vm3659 = vcmp.eq.f32.partialorder %v3654, inf
  %v3660 = vsel %vm3659, %v3654, %v3658
  %vm3661 = vcmp.eq.f32.partialorder %v3654, 0.0
  %v3662 = vand.u32 %v3654, 2147483648
  %v3663 = vsel %vm3661, %v3662, %v3660
  %v3664 = vmul.f32 %v3567, %v3663
  %v3665 = vld [vmem:[%s19] sm:$0xff]
  %v3666 = vld [vmem:[%s19 + $0x8] sm:$0xff]
  %v3668 = vsel %vm1993, %v3665, 0
  %v3671 = vsel %vm1993, %v3666, 0
  %3673 = vmatprep.subr.mxu0 0.0
  %3674 = vmatpush1.msra.mxu0 %v3664
  %3675 = vmatprep.subr.mxu0 0.0
  %3676 = vmatpush1.msra.mxu0 0.0
  %3677 = vmatprep.subr.mxu0 0.0
  %3678 = vmatpush1.msra.mxu0 0.0
  %3679 = vmatprep.subr.mxu0 0.0
  %3680 = vmatpush1.msra.mxu0 0.0
  %3681 = vmatprep.subr.mxu0 0.0
  %3682 = vmatpush1.msra.mxu0 0.0
  %3683 = vmatprep.subr.mxu0 0.0
  %3684 = vmatpush1.msra.mxu0 0.0
  %3685 = vmatprep.subr.mxu0 0.0
  %3686 = vmatpush1.msra.mxu0 0.0
  %3687 = vmatprep.subr.mxu0 0.0
  %3688 = vmatpush1.msra.mxu0 0.0
  %3689 = vmatprep.subr.mxu0 0.0
  %3690 = vmatpush1.msra.mxu0 0.0
  %3691 = vmatprep.subr.mxu0 0.0
  %3692 = vmatpush1.msra.mxu0 0.0
  %3693 = vmatprep.subr.mxu0 0.0
  %3694 = vmatpush1.msra.mxu0 0.0
  %3695 = vmatprep.subr.mxu0 0.0
  %3696 = vmatpush1.msra.mxu0 0.0
  %3697 = vmatprep.subr.mxu0 0.0
  %3698 = vmatpush1.msra.mxu0 0.0
  %3699 = vmatprep.subr.mxu0 0.0
  %3700 = vmatpush1.msra.mxu0 0.0
  %3701 = vmatprep.subr.mxu0 0.0
  %3702 = vmatpush1.msra.mxu0 0.0
  %3703 = vmatprep.subr.mxu0 0.0
  %3704 = vmatpush1.msra.mxu0 0.0
  %3705 = vmatprep.subr.mxu0 0.0
  %3706 = vmatpush1.msra.mxu0 0.0
  %3707 = vmatprep.subr.mxu0 0.0
  %3708 = vmatpush1.msra.mxu0 0.0
  %3709 = vmatprep.subr.mxu0 0.0
  %3710 = vmatpush1.msra.mxu0 0.0
  %3711 = vmatprep.subr.mxu0 0.0
  %3712 = vmatpush1.msra.mxu0 0.0
  %3713 = vmatprep.subr.mxu0 0.0
  %3714 = vmatpush1.msra.mxu0 0.0
  %3715 = vmatprep.subr.mxu0 0.0
  %3716 = vmatpush1.msra.mxu0 0.0
  %3717 = vmatprep.subr.mxu0 0.0
  %3718 = vmatpush1.msra.mxu0 0.0
  %3719 = vmatprep.subr.mxu0 0.0
  %3720 = vmatpush1.msra.mxu0 0.0
  %3721 = vmatprep.subr.mxu0 0.0
  %3722 = vmatpush1.msra.mxu0 0.0
  %3723 = vmatprep.subr.mxu0 0.0
  %3724 = vmatpush1.msra.mxu0 0.0
  %3725 = vmatprep.subr.mxu0 0.0
  %3726 = vmatpush1.msra.mxu0 0.0
  %3727 = vmatprep.subr.mxu0 0.0
  %3728 = vmatpush1.msra.mxu0 0.0
  %3729 = vmatprep.subr.mxu0 0.0
  %3730 = vmatpush1.msra.mxu0 0.0
  %3731 = vmatprep.subr.mxu0 0.0
  %3732 = vmatpush1.msra.mxu0 0.0
  %3733 = vmatprep.subr.mxu0 0.0
  %3734 = vmatpush1.msra.mxu0 0.0
  %3735 = vmatprep.subr.mxu0 0.0
  %3736 = vmatpush1.msra.mxu0 0.0
  %3737 = vmatprep.mubr.f32.mxu0 0.0
  %3738 = vmatmul.mubr.f32.gmra.mrb[0].mxu0 %v3668
  %v3739 = vpop.f32.mrb[0].mxu0
  %v3740 = vadd.f32 0.0, %v3739
  %v3741 = vpop.f32.mrb[0].mxu0
  %3742 = vmatprep.mubr.f32.mxu0 0.0
  %3743 = vmatmul.mubr.f32.gmra.mrb[0].mxu0 %v3671
  %v3744 = vpop.f32.mrb[0].mxu0
  %v3745 = vadd.f32 0.0, %v3744
  %v3746 = vpop.f32.mrb[0].mxu0
  %3747 = vdwg.mxu0
  %v3748 = vld [vmem:[%s20] sm:$0xff]
  %v3749 = vld [vmem:[%s20 + $0x8] sm:$0xff]
  %v3750 = vld [vmem:[%s20 + $0x10] sm:$0xff]
  %v3751 = vld [vmem:[%s20 + $0x18] sm:$0xff]
  %v3752 = vld [vmem:[%s20 + $0x20] sm:$0xff]
  %v3753 = vld [vmem:[%s20 + $0x28] sm:$0xff]
  %v3754 = vld [vmem:[%s20 + $0x30] sm:$0xff]
  %v3755 = vld [vmem:[%s20 + $0x38] sm:$0xff]
  %s3756 = scalar_lea.vmem %s19, 16
  %v3757 = vld [vmem:[%s3756] sm:$0xff]
  %v3758 = vld [vmem:[%s3756 + $0x8] sm:$0xff]
  %v3760 = vsel %vm1993, %v3757, 0
  %v3763 = vsel %vm1993, %v3758, 0
  %3765 = vmatprep.subr.mxu0 0.0
  %3766 = vmatpush1.msra.mxu0 %v3664
  %3767 = vmatprep.subr.mxu0 0.0
  %3768 = vmatpush1.msra.mxu0 0.0
  %3769 = vmatprep.subr.mxu0 0.0
  %3770 = vmatpush1.msra.mxu0 0.0
  %3771 = vmatprep.subr.mxu0 0.0
  %3772 = vmatpush1.msra.mxu0 0.0
  %3773 = vmatprep.subr.mxu0 0.0
  %3774 = vmatpush1.msra.mxu0 0.0
  %3775 = vmatprep.subr.mxu0 0.0
  %3776 = vmatpush1.msra.mxu0 0.0
  %3777 = vmatprep.subr.mxu0 0.0
  %3778 = vmatpush1.msra.mxu0 0.0
  %3779 = vmatprep.subr.mxu0 0.0
  %3780 = vmatpush1.msra.mxu0 0.0
  %3781 = vmatprep.subr.mxu0 0.0
  %3782 = vmatpush1.msra.mxu0 0.0
  %3783 = vmatprep.subr.mxu0 0.0
  %3784 = vmatpush1.msra.mxu0 0.0
  %3785 = vmatprep.subr.mxu0 0.0
  %3786 = vmatpush1.msra.mxu0 0.0
  %3787 = vmatprep.subr.mxu0 0.0
  %3788 = vmatpush1.msra.mxu0 0.0
  %3789 = vmatprep.subr.mxu0 0.0
  %3790 = vmatpush1.msra.mxu0 0.0
  %3791 = vmatprep.subr.mxu0 0.0
  %3792 = vmatpush1.msra.mxu0 0.0
  %3793 = vmatprep.subr.mxu0 0.0
  %3794 = vmatpush1.msra.mxu0 0.0
  %3795 = vmatprep.subr.mxu0 0.0
  %3796 = vmatpush1.msra.mxu0 0.0
  %3797 = vmatprep.subr.mxu0 0.0
  %3798 = vmatpush1.msra.mxu0 0.0
  %3799 = vmatprep.subr.mxu0 0.0
  %3800 = vmatpush1.msra.mxu0 0.0
  %3801 = vmatprep.subr.mxu0 0.0
  %3802 = vmatpush1.msra.mxu0 0.0
  %3803 = vmatprep.subr.mxu0 0.0
  %3804 = vmatpush1.msra.mxu0 0.0
  %3805 = vmatprep.subr.mxu0 0.0
  %3806 = vmatpush1.msra.mxu0 0.0
  %3807 = vmatprep.subr.mxu0 0.0
  %3808 = vmatpush1.msra.mxu0 0.0
  %3809 = vmatprep.subr.mxu0 0.0
  %3810 = vmatpush1.msra.mxu0 0.0
  %3811 = vmatprep.subr.mxu0 0.0
  %3812 = vmatpush1.msra.mxu0 0.0
  %3813 = vmatprep.subr.mxu0 0.0
  %3814 = vmatpush1.msra.mxu0 0.0
  %3815 = vmatprep.subr.mxu0 0.0
  %3816 = vmatpush1.msra.mxu0 0.0
  %3817 = vmatprep.subr.mxu0 0.0
  %3818 = vmatpush1.msra.mxu0 0.0
  %3819 = vmatprep.subr.mxu0 0.0
  %3820 = vmatpush1.msra.mxu0 0.0
  %3821 = vmatprep.subr.mxu0 0.0
  %3822 = vmatpush1.msra.mxu0 0.0
  %3823 = vmatprep.subr.mxu0 0.0
  %3824 = vmatpush1.msra.mxu0 0.0
  %3825 = vmatprep.subr.mxu0 0.0
  %3826 = vmatpush1.msra.mxu0 0.0
  %3827 = vmatprep.subr.mxu0 0.0
  %3828 = vmatpush1.msra.mxu0 0.0
  %3829 = vmatprep.mubr.f32.mxu0 0.0
  %3830 = vmatmul.mubr.f32.gmra.mrb[0].mxu0 %v3760
  %v3831 = vpop.f32.mrb[0].mxu0
  %v3832 = vadd.f32 0.0, %v3831
  %v3833 = vpop.f32.mrb[0].mxu0
  %3834 = vmatprep.mubr.f32.mxu0 0.0
  %3835 = vmatmul.mubr.f32.gmra.mrb[0].mxu0 %v3763
  %v3836 = vpop.f32.mrb[0].mxu0
  %v3837 = vadd.f32 0.0, %v3836
  %v3838 = vpop.f32.mrb[0].mxu0
  %3839 = vdwg.mxu0
  %s3840 = scalar_lea.vmem %s20, 64
  %v3841 = vld [vmem:[%s3840] sm:$0xff]
  %v3842 = vld [vmem:[%s3840 + $0x8] sm:$0xff]
  %v3843 = vld [vmem:[%s3840 + $0x10] sm:$0xff]
  %v3844 = vld [vmem:[%s3840 + $0x18] sm:$0xff]
  %v3845 = vld [vmem:[%s3840 + $0x20] sm:$0xff]
  %v3846 = vld [vmem:[%s3840 + $0x28] sm:$0xff]
  %v3847 = vld [vmem:[%s3840 + $0x30] sm:$0xff]
  %v3848 = vld [vmem:[%s3840 + $0x38] sm:$0xff]
  %v3850 = vsel %vm277, %v3832, 0
  %v3853 = vsel %vm277, %v3837, 0
  %3855 = vmatprep.subr.mxu0 0.0
  %3856 = vmatpush1.msra.mxu0 %v3841
  %3857 = vmatprep.subr.mxu0 0.0
  %3858 = vmatpush1.msra.mxu0 %v3842
  %3859 = vmatprep.subr.mxu0 0.0
  %3860 = vmatpush1.msra.mxu0 %v3843
  %3861 = vmatprep.subr.mxu0 0.0
  %3862 = vmatpush1.msra.mxu0 %v3844
  %3863 = vmatprep.subr.mxu0 0.0
  %3864 = vmatpush1.msra.mxu0 %v3845
  %3865 = vmatprep.subr.mxu0 0.0
  %3866 = vmatpush1.msra.mxu0 %v3846
  %3867 = vmatprep.subr.mxu0 0.0
  %3868 = vmatpush1.msra.mxu0 %v3847
  %3869 = vmatprep.subr.mxu0 0.0
  %3870 = vmatpush1.msra.mxu0 %v3848
  %3871 = vmatprep.subr.mxu0 0.0
  %3872 = vmatpush1.msra.mxu0 0.0
  %3873 = vmatprep.subr.mxu0 0.0
  %3874 = vmatpush1.msra.mxu0 0.0
  %3875 = vmatprep.subr.mxu0 0.0
  %3876 = vmatpush1.msra.mxu0 0.0
  %3877 = vmatprep.subr.mxu0 0.0
  %3878 = vmatpush1.msra.mxu0 0.0
  %3879 = vmatprep.subr.mxu0 0.0
  %3880 = vmatpush1.msra.mxu0 0.0
  %3881 = vmatprep.subr.mxu0 0.0
  %3882 = vmatpush1.msra.mxu0 0.0
  %3883 = vmatprep.subr.mxu0 0.0
  %3884 = vmatpush1.msra.mxu0 0.0
  %3885 = vmatprep.subr.mxu0 0.0
  %3886 = vmatpush1.msra.mxu0 0.0
  %3887 = vmatprep.subr.mxu0 0.0
  %3888 = vmatpush1.msra.mxu0 0.0
  %3889 = vmatprep.subr.mxu0 0.0
  %3890 = vmatpush1.msra.mxu0 0.0
  %3891 = vmatprep.subr.mxu0 0.0
  %3892 = vmatpush1.msra.mxu0 0.0
  %3893 = vmatprep.subr.mxu0 0.0
  %3894 = vmatpush1.msra.mxu0 0.0
  %3895 = vmatprep.subr.mxu0 0.0
  %3896 = vmatpush1.msra.mxu0 0.0
  %3897 = vmatprep.subr.mxu0 0.0
  %3898 = vmatpush1.msra.mxu0 0.0
  %3899 = vmatprep.subr.mxu0 0.0
  %3900 = vmatpush1.msra.mxu0 0.0
  %3901 = vmatprep.subr.mxu0 0.0
  %3902 = vmatpush1.msra.mxu0 0.0
  %3903 = vmatprep.subr.mxu0 0.0
  %3904 = vmatpush1.msra.mxu0 0.0
  %3905 = vmatprep.subr.mxu0 0.0
  %3906 = vmatpush1.msra.mxu0 0.0
  %3907 = vmatprep.subr.mxu0 0.0
  %3908 = vmatpush1.msra.mxu0 0.0
  %3909 = vmatprep.subr.mxu0 0.0
  %3910 = vmatpush1.msra.mxu0 0.0
  %3911 = vmatprep.subr.mxu0 0.0
  %3912 = vmatpush1.msra.mxu0 0.0
  %3913 = vmatprep.subr.mxu0 0.0
  %3914 = vmatpush1.msra.mxu0 0.0
  %3915 = vmatprep.subr.mxu0 0.0
  %3916 = vmatpush1.msra.mxu0 0.0
  %3917 = vmatprep.subr.mxu0 0.0
  %3918 = vmatpush1.msra.mxu0 0.0
  %3919 = vmatprep.mubr.f32.mxu0 0.0
  %3920 = vmatmul.mubr.f32.gmra.mrb[0].mxu0 %v3850
  %v3921 = vpop.f32.mrb[0].mxu0
  %v3922 = vadd.f32 0.0, %v3921
  %v3923 = vpop.f32.mrb[0].mxu0
  %3924 = vmatprep.mubr.f32.mxu0 0.0
  %3925 = vmatmul.mubr.f32.gmra.mrb[0].mxu0 %v3853
  %v3926 = vpop.f32.mrb[0].mxu0
  %v3927 = vadd.f32 0.0, %v3926
  %v3928 = vpop.f32.mrb[0].mxu0
  %3929 = vdwg.mxu0
  %v3931 = vsel %vm277, %v3740, 0
  %v3934 = vsel %vm277, %v3745, 0
  %3936 = vmatprep.subr.mxu0 0.0
  %3937 = vmatpush1.msra.mxu0 %v3748
  %3938 = vmatprep.subr.mxu0 0.0
  %3939 = vmatpush1.msra.mxu0 %v3749
  %3940 = vmatprep.subr.mxu0 0.0
  %3941 = vmatpush1.msra.mxu0 %v3750
  %3942 = vmatprep.subr.mxu0 0.0
  %3943 = vmatpush1.msra.mxu0 %v3751
  %3944 = vmatprep.subr.mxu0 0.0
  %3945 = vmatpush1.msra.mxu0 %v3752
  %3946 = vmatprep.subr.mxu0 0.0
  %3947 = vmatpush1.msra.mxu0 %v3753
  %3948 = vmatprep.subr.mxu0 0.0
  %3949 = vmatpush1.msra.mxu0 %v3754
  %3950 = vmatprep.subr.mxu0 0.0
  %3951 = vmatpush1.msra.mxu0 %v3755
  %3952 = vmatprep.subr.mxu0 0.0
  %3953 = vmatpush1.msra.mxu0 0.0
  %3954 = vmatprep.subr.mxu0 0.0
  %3955 = vmatpush1.msra.mxu0 0.0
  %3956 = vmatprep.subr.mxu0 0.0
  %3957 = vmatpush1.msra.mxu0 0.0
  %3958 = vmatprep.subr.mxu0 0.0
  %3959 = vmatpush1.msra.mxu0 0.0
  %3960 = vmatprep.subr.mxu0 0.0
  %3961 = vmatpush1.msra.mxu0 0.0
  %3962 = vmatprep.subr.mxu0 0.0
  %3963 = vmatpush1.msra.mxu0 0.0
  %3964 = vmatprep.subr.mxu0 0.0
  %3965 = vmatpush1.msra.mxu0 0.0
  %3966 = vmatprep.subr.mxu0 0.0
  %3967 = vmatpush1.msra.mxu0 0.0
  %3968 = vmatprep.subr.mxu0 0.0
  %3969 = vmatpush1.msra.mxu0 0.0
  %3970 = vmatprep.subr.mxu0 0.0
  %3971 = vmatpush1.msra.mxu0 0.0
  %3972 = vmatprep.subr.mxu0 0.0
  %3973 = vmatpush1.msra.mxu0 0.0
  %3974 = vmatprep.subr.mxu0 0.0
  %3975 = vmatpush1.msra.mxu0 0.0
  %3976 = vmatprep.subr.mxu0 0.0
  %3977 = vmatpush1.msra.mxu0 0.0
  %3978 = vmatprep.subr.mxu0 0.0
  %3979 = vmatpush1.msra.mxu0 0.0
  %3980 = vmatprep.subr.mxu0 0.0
  %3981 = vmatpush1.msra.mxu0 0.0
  %3982 = vmatprep.subr.mxu0 0.0
  %3983 = vmatpush1.msra.mxu0 0.0
  %3984 = vmatprep.subr.mxu0 0.0
  %3985 = vmatpush1.msra.mxu0 0.0
  %3986 = vmatprep.subr.mxu0 0.0
  %3987 = vmatpush1.msra.mxu0 0.0
  %3988 = vmatprep.subr.mxu0 0.0
  %3989 = vmatpush1.msra.mxu0 0.0
  %3990 = vmatprep.subr.mxu0 0.0
  %3991 = vmatpush1.msra.mxu0 0.0
  %3992 = vmatprep.subr.mxu0 0.0
  %3993 = vmatpush1.msra.mxu0 0.0
  %3994 = vmatprep.subr.mxu0 0.0
  %3995 = vmatpush1.msra.mxu0 0.0
  %3996 = vmatprep.subr.mxu0 0.0
  %3997 = vmatpush1.msra.mxu0 0.0
  %3998 = vmatprep.subr.mxu0 0.0
  %3999 = vmatpush1.msra.mxu0 0.0
  %4000 = vmatprep.mubr.f32.mxu0 0.0
  %4001 = vmatmul.mubr.f32.gmra.mrb[0].mxu0 %v3931
  %v4002 = vpop.f32.mrb[0].mxu0
  %v4003 = vadd.f32 %v3922, %v4002
  %v4004 = vpop.f32.mrb[0].mxu0
  %4005 = vmatprep.mubr.f32.mxu0 0.0
  %4006 = vmatmul.mubr.f32.gmra.mrb[0].mxu0 %v3934
  %v4007 = vpop.f32.mrb[0].mxu0
  %v4008 = vadd.f32 %v3927, %v4007
  %v4009 = vpop.f32.mrb[0].mxu0
  %4010 = vdwg.mxu0
  %s4011 = scalar_lea.vmem %s19, 32
  %v4012 = vld [vmem:[%s4011] sm:$0xff]
  %v4013 = vld [vmem:[%s4011 + $0x8] sm:$0xff]
  %v4015 = vsel %vm1993, %v4012, 0
  %v4018 = vsel %vm1993, %v4013, 0
  %4020 = vmatprep.subr.mxu0 0.0
  %4021 = vmatpush1.msra.mxu0 %v3664
  %4022 = vmatprep.subr.mxu0 0.0
  %4023 = vmatpush1.msra.mxu0 0.0
  %4024 = vmatprep.subr.mxu0 0.0
  %4025 = vmatpush1.msra.mxu0 0.0
  %4026 = vmatprep.subr.mxu0 0.0
  %4027 = vmatpush1.msra.mxu0 0.0
  %4028 = vmatprep.subr.mxu0 0.0
  %4029 = vmatpush1.msra.mxu0 0.0
  %4030 = vmatprep.subr.mxu0 0.0
  %4031 = vmatpush1.msra.mxu0 0.0
  %4032 = vmatprep.subr.mxu0 0.0
  %4033 = vmatpush1.msra.mxu0 0.0
  %4034 = vmatprep.subr.mxu0 0.0
  %4035 = vmatpush1.msra.mxu0 0.0
  %4036 = vmatprep.subr.mxu0 0.0
  %4037 = vmatpush1.msra.mxu0 0.0
  %4038 = vmatprep.subr.mxu0 0.0
  %4039 = vmatpush1.msra.mxu0 0.0
  %4040 = vmatprep.subr.mxu0 0.0
  %4041 = vmatpush1.msra.mxu0 0.0
  %4042 = vmatprep.subr.mxu0 0.0
  %4043 = vmatpush1.msra.mxu0 0.0
  %4044 = vmatprep.subr.mxu0 0.0
  %4045 = vmatpush1.msra.mxu0 0.0
  %4046 = vmatprep.subr.mxu0 0.0
  %4047 = vmatpush1.msra.mxu0 0.0
  %4048 = vmatprep.subr.mxu0 0.0
  %4049 = vmatpush1.msra.mxu0 0.0
  %4050 = vmatprep.subr.mxu0 0.0
  %4051 = vmatpush1.msra.mxu0 0.0
  %4052 = vmatprep.subr.mxu0 0.0
  %4053 = vmatpush1.msra.mxu0 0.0
  %4054 = vmatprep.subr.mxu0 0.0
  %4055 = vmatpush1.msra.mxu0 0.0
  %4056 = vmatprep.subr.mxu0 0.0
  %4057 = vmatpush1.msra.mxu0 0.0
  %4058 = vmatprep.subr.mxu0 0.0
  %4059 = vmatpush1.msra.mxu0 0.0
  %4060 = vmatprep.subr.mxu0 0.0
  %4061 = vmatpush1.msra.mxu0 0.0
  %4062 = vmatprep.subr.mxu0 0.0
  %4063 = vmatpush1.msra.mxu0 0.0
  %4064 = vmatprep.subr.mxu0 0.0
  %4065 = vmatpush1.msra.mxu0 0.0
  %4066 = vmatprep.subr.mxu0 0.0
  %4067 = vmatpush1.msra.mxu0 0.0
  %4068 = vmatprep.subr.mxu0 0.0
  %4069 = vmatpush1.msra.mxu0 0.0
  %4070 = vmatprep.subr.mxu0 0.0
  %4071 = vmatpush1.msra.mxu0 0.0
  %4072 = vmatprep.subr.mxu0 0.0
  %4073 = vmatpush1.msra.mxu0 0.0
  %4074 = vmatprep.subr.mxu0 0.0
  %4075 = vmatpush1.msra.mxu0 0.0
  %4076 = vmatprep.subr.mxu0 0.0
  %4077 = vmatpush1.msra.mxu0 0.0
  %4078 = vmatprep.subr.mxu0 0.0
  %4079 = vmatpush1.msra.mxu0 0.0
  %4080 = vmatprep.subr.mxu0 0.0
  %4081 = vmatpush1.msra.mxu0 0.0
  %4082 = vmatprep.subr.mxu0 0.0
  %4083 = vmatpush1.msra.mxu0 0.0
  %4084 = vmatprep.mubr.f32.mxu0 0.0
  %4085 = vmatmul.mubr.f32.gmra.mrb[0].mxu0 %v4015
  %v4086 = vpop.f32.mrb[0].mxu0
  %v4087 = vadd.f32 0.0, %v4086
  %v4088 = vpop.f32.mrb[0].mxu0
  %4089 = vmatprep.mubr.f32.mxu0 0.0
  %4090 = vmatmul.mubr.f32.gmra.mrb[0].mxu0 %v4018
  %v4091 = vpop.f32.mrb[0].mxu0
  %v4092 = vadd.f32 0.0, %v4091
  %v4093 = vpop.f32.mrb[0].mxu0
  %4094 = vdwg.mxu0
  %s4095 = scalar_lea.vmem %s20, 128
  %v4096 = vld [vmem:[%s4095] sm:$0xff]
  %v4097 = vld [vmem:[%s4095 + $0x8] sm:$0xff]
  %v4098 = vld [vmem:[%s4095 + $0x10] sm:$0xff]
  %v4099 = vld [vmem:[%s4095 + $0x18] sm:$0xff]
  %v4100 = vld [vmem:[%s4095 + $0x20] sm:$0xff]
  %v4101 = vld [vmem:[%s4095 + $0x28] sm:$0xff]
  %v4102 = vld [vmem:[%s4095 + $0x30] sm:$0xff]
  %v4103 = vld [vmem:[%s4095 + $0x38] sm:$0xff]
  %v4105 = vsel %vm277, %v4087, 0
  %v4108 = vsel %vm277, %v4092, 0
  %4110 = vmatprep.subr.mxu0 0.0
  %4111 = vmatpush1.msra.mxu0 %v4096
  %4112 = vmatprep.subr.mxu0 0.0
  %4113 = vmatpush1.msra.mxu0 %v4097
  %4114 = vmatprep.subr.mxu0 0.0
  %4115 = vmatpush1.msra.mxu0 %v4098
  %4116 = vmatprep.subr.mxu0 0.0
  %4117 = vmatpush1.msra.mxu0 %v4099
  %4118 = vmatprep.subr.mxu0 0.0
  %4119 = vmatpush1.msra.mxu0 %v4100
  %4120 = vmatprep.subr.mxu0 0.0
  %4121 = vmatpush1.msra.mxu0 %v4101
  %4122 = vmatprep.subr.mxu0 0.0
  %4123 = vmatpush1.msra.mxu0 %v4102
  %4124 = vmatprep.subr.mxu0 0.0
  %4125 = vmatpush1.msra.mxu0 %v4103
  %4126 = vmatprep.subr.mxu0 0.0
  %4127 = vmatpush1.msra.mxu0 0.0
  %4128 = vmatprep.subr.mxu0 0.0
  %4129 = vmatpush1.msra.mxu0 0.0
  %4130 = vmatprep.subr.mxu0 0.0
  %4131 = vmatpush1.msra.mxu0 0.0
  %4132 = vmatprep.subr.mxu0 0.0
  %4133 = vmatpush1.msra.mxu0 0.0
  %4134 = vmatprep.subr.mxu0 0.0
  %4135 = vmatpush1.msra.mxu0 0.0
  %4136 = vmatprep.subr.mxu0 0.0
  %4137 = vmatpush1.msra.mxu0 0.0
  %4138 = vmatprep.subr.mxu0 0.0
  %4139 = vmatpush1.msra.mxu0 0.0
  %4140 = vmatprep.subr.mxu0 0.0
  %4141 = vmatpush1.msra.mxu0 0.0
  %4142 = vmatprep.subr.mxu0 0.0
  %4143 = vmatpush1.msra.mxu0 0.0
  %4144 = vmatprep.subr.mxu0 0.0
  %4145 = vmatpush1.msra.mxu0 0.0
  %4146 = vmatprep.subr.mxu0 0.0
  %4147 = vmatpush1.msra.mxu0 0.0
  %4148 = vmatprep.subr.mxu0 0.0
  %4149 = vmatpush1.msra.mxu0 0.0
  %4150 = vmatprep.subr.mxu0 0.0
  %4151 = vmatpush1.msra.mxu0 0.0
  %4152 = vmatprep.subr.mxu0 0.0
  %4153 = vmatpush1.msra.mxu0 0.0
  %4154 = vmatprep.subr.mxu0 0.0
  %4155 = vmatpush1.msra.mxu0 0.0
  %4156 = vmatprep.subr.mxu0 0.0
  %4157 = vmatpush1.msra.mxu0 0.0
  %4158 = vmatprep.subr.mxu0 0.0
  %4159 = vmatpush1.msra.mxu0 0.0
  %4160 = vmatprep.subr.mxu0 0.0
  %4161 = vmatpush1.msra.mxu0 0.0
  %4162 = vmatprep.subr.mxu0 0.0
  %4163 = vmatpush1.msra.mxu0 0.0
  %4164 = vmatprep.subr.mxu0 0.0
  %4165 = vmatpush1.msra.mxu0 0.0
  %4166 = vmatprep.subr.mxu0 0.0
  %4167 = vmatpush1.msra.mxu0 0.0
  %4168 = vmatprep.subr.mxu0 0.0
  %4169 = vmatpush1.msra.mxu0 0.0
  %4170 = vmatprep.subr.mxu0 0.0
  %4171 = vmatpush1.msra.mxu0 0.0
  %4172 = vmatprep.subr.mxu0 0.0
  %4173 = vmatpush1.msra.mxu0 0.0
  %4174 = vmatprep.mubr.f32.mxu0 0.0
  %4175 = vmatmul.mubr.f32.gmra.mrb[0].mxu0 %v4105
  %v4176 = vpop.f32.mrb[0].mxu0
  %v4177 = vadd.f32 0.0, %v4176
  %v4178 = vpop.f32.mrb[0].mxu0
  %4179 = vmatprep.mubr.f32.mxu0 0.0
  %4180 = vmatmul.mubr.f32.gmra.mrb[0].mxu0 %v4108
  %v4181 = vpop.f32.mrb[0].mxu0
  %v4182 = vadd.f32 0.0, %v4181
  %v4183 = vpop.f32.mrb[0].mxu0
  %4184 = vdwg.mxu0
  %v4185 = vadd.f32 %v4003, %v4177
  %v4186 = vadd.f32 %v4008, %v4182
  %s4187 = scalar_lea.vmem %s19, 48
  %v4188 = vld [vmem:[%s4187] sm:$0xff]
  %v4189 = vld [vmem:[%s4187 + $0x8] sm:$0xff]
  %v4191 = vsel %vm1993, %v4188, 0
  %v4194 = vsel %vm1993, %v4189, 0
  %4196 = vmatprep.subr.mxu0 0.0
  %4197 = vmatpush1.msra.mxu0 %v3664
  %4198 = vmatprep.subr.mxu0 0.0
  %4199 = vmatpush1.msra.mxu0 0.0
  %4200 = vmatprep.subr.mxu0 0.0
  %4201 = vmatpush1.msra.mxu0 0.0
  %4202 = vmatprep.subr.mxu0 0.0
  %4203 = vmatpush1.msra.mxu0 0.0
  %4204 = vmatprep.subr.mxu0 0.0
  %4205 = vmatpush1.msra.mxu0 0.0
  %4206 = vmatprep.subr.mxu0 0.0
  %4207 = vmatpush1.msra.mxu0 0.0
  %4208 = vmatprep.subr.mxu0 0.0
  %4209 = vmatpush1.msra.mxu0 0.0
  %4210 = vmatprep.subr.mxu0 0.0
  %4211 = vmatpush1.msra.mxu0 0.0
  %4212 = vmatprep.subr.mxu0 0.0
  %4213 = vmatpush1.msra.mxu0 0.0
  %4214 = vmatprep.subr.mxu0 0.0
  %4215 = vmatpush1.msra.mxu0 0.0
  %4216 = vmatprep.subr.mxu0 0.0
  %4217 = vmatpush1.msra.mxu0 0.0
  %4218 = vmatprep.subr.mxu0 0.0
  %4219 = vmatpush1.msra.mxu0 0.0
  %4220 = vmatprep.subr.mxu0 0.0
  %4221 = vmatpush1.msra.mxu0 0.0
  %4222 = vmatprep.subr.mxu0 0.0
  %4223 = vmatpush1.msra.mxu0 0.0
  %4224 = vmatprep.subr.mxu0 0.0
  %4225 = vmatpush1.msra.mxu0 0.0
  %4226 = vmatprep.subr.mxu0 0.0
  %4227 = vmatpush1.msra.mxu0 0.0
  %4228 = vmatprep.subr.mxu0 0.0
  %4229 = vmatpush1.msra.mxu0 0.0
  %4230 = vmatprep.subr.mxu0 0.0
  %4231 = vmatpush1.msra.mxu0 0.0
  %4232 = vmatprep.subr.mxu0 0.0
  %4233 = vmatpush1.msra.mxu0 0.0
  %4234 = vmatprep.subr.mxu0 0.0
  %4235 = vmatpush1.msra.mxu0 0.0
  %4236 = vmatprep.subr.mxu0 0.0
  %4237 = vmatpush1.msra.mxu0 0.0
  %4238 = vmatprep.subr.mxu0 0.0
  %4239 = vmatpush1.msra.mxu0 0.0
  %4240 = vmatprep.subr.mxu0 0.0
  %4241 = vmatpush1.msra.mxu0 0.0
  %4242 = vmatprep.subr.mxu0 0.0
  %4243 = vmatpush1.msra.mxu0 0.0
  %4244 = vmatprep.subr.mxu0 0.0
  %4245 = vmatpush1.msra.mxu0 0.0
  %4246 = vmatprep.subr.mxu0 0.0
  %4247 = vmatpush1.msra.mxu0 0.0
  %4248 = vmatprep.subr.mxu0 0.0
  %4249 = vmatpush1.msra.mxu0 0.0
  %4250 = vmatprep.subr.mxu0 0.0
  %4251 = vmatpush1.msra.mxu0 0.0
  %4252 = vmatprep.subr.mxu0 0.0
  %4253 = vmatpush1.msra.mxu0 0.0
  %4254 = vmatprep.subr.mxu0 0.0
  %4255 = vmatpush1.msra.mxu0 0.0
  %4256 = vmatprep.subr.mxu0 0.0
  %4257 = vmatpush1.msra.mxu0 0.0
  %4258 = vmatprep.subr.mxu0 0.0
  %4259 = vmatpush1.msra.mxu0 0.0
  %4260 = vmatprep.mubr.f32.mxu0 0.0
  %4261 = vmatmul.mubr.f32.gmra.mrb[0].mxu0 %v4191
  %v4262 = vpop.f32.mrb[0].mxu0
  %v4263 = vadd.f32 0.0, %v4262
  %v4264 = vpop.f32.mrb[0].mxu0
  %4265 = vmatprep.mubr.f32.mxu0 0.0
  %4266 = vmatmul.mubr.f32.gmra.mrb[0].mxu0 %v4194
  %v4267 = vpop.f32.mrb[0].mxu0
  %v4268 = vadd.f32 0.0, %v4267
  %v4269 = vpop.f32.mrb[0].mxu0
  %4270 = vdwg.mxu0
  %s4271 = scalar_lea.vmem %s20, 192
  %v4272 = vld [vmem:[%s4271] sm:$0xff]
  %v4273 = vld [vmem:[%s4271 + $0x8] sm:$0xff]
  %v4274 = vld [vmem:[%s4271 + $0x10] sm:$0xff]
  %v4275 = vld [vmem:[%s4271 + $0x18] sm:$0xff]
  %v4276 = vld [vmem:[%s4271 + $0x20] sm:$0xff]
  %v4277 = vld [vmem:[%s4271 + $0x28] sm:$0xff]
  %v4278 = vld [vmem:[%s4271 + $0x30] sm:$0xff]
  %v4279 = vld [vmem:[%s4271 + $0x38] sm:$0xff]
  %v4281 = vsel %vm277, %v4263, 0
  %v4284 = vsel %vm277, %v4268, 0
  %4286 = vmatprep.subr.mxu0 0.0
  %4287 = vmatpush1.msra.mxu0 %v4272
  %4288 = vmatprep.subr.mxu0 0.0
  %4289 = vmatpush1.msra.mxu0 %v4273
  %4290 = vmatprep.subr.mxu0 0.0
  %4291 = vmatpush1.msra.mxu0 %v4274
  %4292 = vmatprep.subr.mxu0 0.0
  %4293 = vmatpush1.msra.mxu0 %v4275
  %4294 = vmatprep.subr.mxu0 0.0
  %4295 = vmatpush1.msra.mxu0 %v4276
  %4296 = vmatprep.subr.mxu0 0.0
  %4297 = vmatpush1.msra.mxu0 %v4277
  %4298 = vmatprep.subr.mxu0 0.0
  %4299 = vmatpush1.msra.mxu0 %v4278
  %4300 = vmatprep.subr.mxu0 0.0
  %4301 = vmatpush1.msra.mxu0 %v4279
  %4302 = vmatprep.subr.mxu0 0.0
  %4303 = vmatpush1.msra.mxu0 0.0
  %4304 = vmatprep.subr.mxu0 0.0
  %4305 = vmatpush1.msra.mxu0 0.0
  %4306 = vmatprep.subr.mxu0 0.0
  %4307 = vmatpush1.msra.mxu0 0.0
  %4308 = vmatprep.subr.mxu0 0.0
  %4309 = vmatpush1.msra.mxu0 0.0
  %4310 = vmatprep.subr.mxu0 0.0
  %4311 = vmatpush1.msra.mxu0 0.0
  %4312 = vmatprep.subr.mxu0 0.0
  %4313 = vmatpush1.msra.mxu0 0.0
  %4314 = vmatprep.subr.mxu0 0.0
  %4315 = vmatpush1.msra.mxu0 0.0
  %4316 = vmatprep.subr.mxu0 0.0
  %4317 = vmatpush1.msra.mxu0 0.0
  %4318 = vmatprep.subr.mxu0 0.0
  %4319 = vmatpush1.msra.mxu0 0.0
  %4320 = vmatprep.subr.mxu0 0.0
  %4321 = vmatpush1.msra.mxu0 0.0
  %4322 = vmatprep.subr.mxu0 0.0
  %4323 = vmatpush1.msra.mxu0 0.0
  %4324 = vmatprep.subr.mxu0 0.0
  %4325 = vmatpush1.msra.mxu0 0.0
  %4326 = vmatprep.subr.mxu0 0.0
  %4327 = vmatpush1.msra.mxu0 0.0
  %4328 = vmatprep.subr.mxu0 0.0
  %4329 = vmatpush1.msra.mxu0 0.0
  %4330 = vmatprep.subr.mxu0 0.0
  %4331 = vmatpush1.msra.mxu0 0.0
  %4332 = vmatprep.subr.mxu0 0.0
  %4333 = vmatpush1.msra.mxu0 0.0
  %4334 = vmatprep.subr.mxu0 0.0
  %4335 = vmatpush1.msra.mxu0 0.0
  %4336 = vmatprep.subr.mxu0 0.0
  %4337 = vmatpush1.msra.mxu0 0.0
  %4338 = vmatprep.subr.mxu0 0.0
  %4339 = vmatpush1.msra.mxu0 0.0
  %4340 = vmatprep.subr.mxu0 0.0
  %4341 = vmatpush1.msra.mxu0 0.0
  %4342 = vmatprep.subr.mxu0 0.0
  %4343 = vmatpush1.msra.mxu0 0.0
  %4344 = vmatprep.subr.mxu0 0.0
  %4345 = vmatpush1.msra.mxu0 0.0
  %4346 = vmatprep.subr.mxu0 0.0
  %4347 = vmatpush1.msra.mxu0 0.0
  %4348 = vmatprep.subr.mxu0 0.0
  %4349 = vmatpush1.msra.mxu0 0.0
  %4350 = vmatprep.mubr.f32.mxu0 0.0
  %4351 = vmatmul.mubr.f32.gmra.mrb[0].mxu0 %v4281
  %v4352 = vpop.f32.mrb[0].mxu0
  %v4353 = vadd.f32 0.0, %v4352
  %v4354 = vpop.f32.mrb[0].mxu0
  %4355 = vmatprep.mubr.f32.mxu0 0.0
  %4356 = vmatmul.mubr.f32.gmra.mrb[0].mxu0 %v4284
  %v4357 = vpop.f32.mrb[0].mxu0
  %v4358 = vadd.f32 0.0, %v4357
  %v4359 = vpop.f32.mrb[0].mxu0
  %4360 = vdwg.mxu0
  %v4361 = vadd.f32 %v4185, %v4353
  %v4362 = vadd.f32 %v4186, %v4358
  %s4363 = scalar_lea.vmem %s19, 64
  %v4364 = vld [vmem:[%s4363] sm:$0xff]
  %v4365 = vld [vmem:[%s4363 + $0x8] sm:$0xff]
  %v4367 = vsel %vm1993, %v4364, 0
  %v4370 = vsel %vm1993, %v4365, 0
  %4372 = vmatprep.subr.mxu0 0.0
  %4373 = vmatpush1.msra.mxu0 %v3664
  %4374 = vmatprep.subr.mxu0 0.0
  %4375 = vmatpush1.msra.mxu0 0.0
  %4376 = vmatprep.subr.mxu0 0.0
  %4377 = vmatpush1.msra.mxu0 0.0
  %4378 = vmatprep.subr.mxu0 0.0
  %4379 = vmatpush1.msra.mxu0 0.0
  %4380 = vmatprep.subr.mxu0 0.0
  %4381 = vmatpush1.msra.mxu0 0.0
  %4382 = vmatprep.subr.mxu0 0.0
  %4383 = vmatpush1.msra.mxu0 0.0
  %4384 = vmatprep.subr.mxu0 0.0
  %4385 = vmatpush1.msra.mxu0 0.0
  %4386 = vmatprep.subr.mxu0 0.0
  %4387 = vmatpush1.msra.mxu0 0.0
  %4388 = vmatprep.subr.mxu0 0.0
  %4389 = vmatpush1.msra.mxu0 0.0
  %4390 = vmatprep.subr.mxu0 0.0
  %4391 = vmatpush1.msra.mxu0 0.0
  %4392 = vmatprep.subr.mxu0 0.0
  %4393 = vmatpush1.msra.mxu0 0.0
  %4394 = vmatprep.subr.mxu0 0.0
  %4395 = vmatpush1.msra.mxu0 0.0
  %4396 = vmatprep.subr.mxu0 0.0
  %4397 = vmatpush1.msra.mxu0 0.0
  %4398 = vmatprep.subr.mxu0 0.0
  %4399 = vmatpush1.msra.mxu0 0.0
  %4400 = vmatprep.subr.mxu0 0.0
  %4401 = vmatpush1.msra.mxu0 0.0
  %4402 = vmatprep.subr.mxu0 0.0
  %4403 = vmatpush1.msra.mxu0 0.0
  %4404 = vmatprep.subr.mxu0 0.0
  %4405 = vmatpush1.msra.mxu0 0.0
  %4406 = vmatprep.subr.mxu0 0.0
  %4407 = vmatpush1.msra.mxu0 0.0
  %4408 = vmatprep.subr.mxu0 0.0
  %4409 = vmatpush1.msra.mxu0 0.0
  %4410 = vmatprep.subr.mxu0 0.0
  %4411 = vmatpush1.msra.mxu0 0.0
  %4412 = vmatprep.subr.mxu0 0.0
  %4413 = vmatpush1.msra.mxu0 0.0
  %4414 = vmatprep.subr.mxu0 0.0
  %4415 = vmatpush1.msra.mxu0 0.0
  %4416 = vmatprep.subr.mxu0 0.0
  %4417 = vmatpush1.msra.mxu0 0.0
  %4418 = vmatprep.subr.mxu0 0.0
  %4419 = vmatpush1.msra.mxu0 0.0
  %4420 = vmatprep.subr.mxu0 0.0
  %4421 = vmatpush1.msra.mxu0 0.0
  %4422 = vmatprep.subr.mxu0 0.0
  %4423 = vmatpush1.msra.mxu0 0.0
  %4424 = vmatprep.subr.mxu0 0.0
  %4425 = vmatpush1.msra.mxu0 0.0
  %4426 = vmatprep.subr.mxu0 0.0
  %4427 = vmatpush1.msra.mxu0 0.0
  %4428 = vmatprep.subr.mxu0 0.0
  %4429 = vmatpush1.msra.mxu0 0.0
  %4430 = vmatprep.subr.mxu0 0.0
  %4431 = vmatpush1.msra.mxu0 0.0
  %4432 = vmatprep.subr.mxu0 0.0
  %4433 = vmatpush1.msra.mxu0 0.0
  %4434 = vmatprep.subr.mxu0 0.0
  %4435 = vmatpush1.msra.mxu0 0.0
  %4436 = vmatprep.mubr.f32.mxu0 0.0
  %4437 = vmatmul.mubr.f32.gmra.mrb[0].mxu0 %v4367
  %v4438 = vpop.f32.mrb[0].mxu0
  %v4439 = vadd.f32 0.0, %v4438
  %v4440 = vpop.f32.mrb[0].mxu0
  %4441 = vmatprep.mubr.f32.mxu0 0.0
  %4442 = vmatmul.mubr.f32.gmra.mrb[0].mxu0 %v4370
  %v4443 = vpop.f32.mrb[0].mxu0
  %v4444 = vadd.f32 0.0, %v4443
  %v4445 = vpop.f32.mrb[0].mxu0
  %4446 = vdwg.mxu0
  %s4447 = scalar_lea.vmem %s20, 256
  %v4448 = vld [vmem:[%s4447] sm:$0xff]
  %v4449 = vld [vmem:[%s4447 + $0x8] sm:$0xff]
  %v4450 = vld [vmem:[%s4447 + $0x10] sm:$0xff]
  %v4451 = vld [vmem:[%s4447 + $0x18] sm:$0xff]
  %v4452 = vld [vmem:[%s4447 + $0x20] sm:$0xff]
  %v4453 = vld [vmem:[%s4447 + $0x28] sm:$0xff]
  %v4454 = vld [vmem:[%s4447 + $0x30] sm:$0xff]
  %v4455 = vld [vmem:[%s4447 + $0x38] sm:$0xff]
  %v4457 = vsel %vm277, %v4439, 0
  %v4460 = vsel %vm277, %v4444, 0
  %4462 = vmatprep.subr.mxu0 0.0
  %4463 = vmatpush1.msra.mxu0 %v4448
  %4464 = vmatprep.subr.mxu0 0.0
  %4465 = vmatpush1.msra.mxu0 %v4449
  %4466 = vmatprep.subr.mxu0 0.0
  %4467 = vmatpush1.msra.mxu0 %v4450
  %4468 = vmatprep.subr.mxu0 0.0
  %4469 = vmatpush1.msra.mxu0 %v4451
  %4470 = vmatprep.subr.mxu0 0.0
  %4471 = vmatpush1.msra.mxu0 %v4452
  %4472 = vmatprep.subr.mxu0 0.0
  %4473 = vmatpush1.msra.mxu0 %v4453
  %4474 = vmatprep.subr.mxu0 0.0
  %4475 = vmatpush1.msra.mxu0 %v4454
  %4476 = vmatprep.subr.mxu0 0.0
  %4477 = vmatpush1.msra.mxu0 %v4455
  %4478 = vmatprep.subr.mxu0 0.0
  %4479 = vmatpush1.msra.mxu0 0.0
  %4480 = vmatprep.subr.mxu0 0.0
  %4481 = vmatpush1.msra.mxu0 0.0
  %4482 = vmatprep.subr.mxu0 0.0
  %4483 = vmatpush1.msra.mxu0 0.0
  %4484 = vmatprep.subr.mxu0 0.0
  %4485 = vmatpush1.msra.mxu0 0.0
  %4486 = vmatprep.subr.mxu0 0.0
  %4487 = vmatpush1.msra.mxu0 0.0
  %4488 = vmatprep.subr.mxu0 0.0
  %4489 = vmatpush1.msra.mxu0 0.0
  %4490 = vmatprep.subr.mxu0 0.0
  %4491 = vmatpush1.msra.mxu0 0.0
  %4492 = vmatprep.subr.mxu0 0.0
  %4493 = vmatpush1.msra.mxu0 0.0
  %4494 = vmatprep.subr.mxu0 0.0
  %4495 = vmatpush1.msra.mxu0 0.0
  %4496 = vmatprep.subr.mxu0 0.0
  %4497 = vmatpush1.msra.mxu0 0.0
  %4498 = vmatprep.subr.mxu0 0.0
  %4499 = vmatpush1.msra.mxu0 0.0
  %4500 = vmatprep.subr.mxu0 0.0
  %4501 = vmatpush1.msra.mxu0 0.0
  %4502 = vmatprep.subr.mxu0 0.0
  %4503 = vmatpush1.msra.mxu0 0.0
  %4504 = vmatprep.subr.mxu0 0.0
  %4505 = vmatpush1.msra.mxu0 0.0
  %4506 = vmatprep.subr.mxu0 0.0
  %4507 = vmatpush1.msra.mxu0 0.0
  %4508 = vmatprep.subr.mxu0 0.0
  %4509 = vmatpush1.msra.mxu0 0.0
  %4510 = vmatprep.subr.mxu0 0.0
  %4511 = vmatpush1.msra.mxu0 0.0
  %4512 = vmatprep.subr.mxu0 0.0
  %4513 = vmatpush1.msra.mxu0 0.0
  %4514 = vmatprep.subr.mxu0 0.0
  %4515 = vmatpush1.msra.mxu0 0.0
  %4516 = vmatprep.subr.mxu0 0.0
  %4517 = vmatpush1.msra.mxu0 0.0
  %4518 = vmatprep.subr.mxu0 0.0
  %4519 = vmatpush1.msra.mxu0 0.0
  %4520 = vmatprep.subr.mxu0 0.0
  %4521 = vmatpush1.msra.mxu0 0.0
  %4522 = vmatprep.subr.mxu0 0.0
  %4523 = vmatpush1.msra.mxu0 0.0
  %4524 = vmatprep.subr.mxu0 0.0
  %4525 = vmatpush1.msra.mxu0 0.0
  %4526 = vmatprep.mubr.f32.mxu0 0.0
  %4527 = vmatmul.mubr.f32.gmra.mrb[0].mxu0 %v4457
  %v4528 = vpop.f32.mrb[0].mxu0
  %v4529 = vadd.f32 0.0, %v4528
  %v4530 = vpop.f32.mrb[0].mxu0
  %4531 = vmatprep.mubr.f32.mxu0 0.0
  %4532 = vmatmul.mubr.f32.gmra.mrb[0].mxu0 %v4460
  %v4533 = vpop.f32.mrb[0].mxu0
  %v4534 = vadd.f32 0.0, %v4533
  %v4535 = vpop.f32.mrb[0].mxu0
  %4536 = vdwg.mxu0
  %v4537 = vadd.f32 %v4361, %v4529
  %v4538 = vadd.f32 %v4362, %v4534
  %v4539 = vld [vmem:[%s21] sm:$0x1]
  %v4541 = vlaneseq
  %v4542 = vshrl.u32 %v4541, 7
  %v4543 = vsub.s32 0, %v4542
  %v4544 = vrot.slane %v4539, %v4543
  %v4546 = vadd.f32 %v4537, %v4544
  %v4547 = vadd.f32 %v4538, %v4544
  %v4548 = vmul.f32 %v4546, %v4546
  %v4549 = vmul.f32 %v4547, %v4547
  %v4550 = vld [vmem:[%s22] sm:$0xff]
  %v4551 = vld [vmem:[%s22 + $0x8] sm:$0xff]
  %v4552 = vld [vmem:[%s22 + $0x10] sm:$0xff]
  %v4553 = vld [vmem:[%s22 + $0x18] sm:$0xff]
  %v4554 = vld [vmem:[%s22 + $0x20] sm:$0xff]
  %v4555 = vld [vmem:[%s22 + $0x28] sm:$0xff]
  %v4556 = vld [vmem:[%s22 + $0x30] sm:$0xff]
  %v4557 = vld [vmem:[%s22 + $0x38] sm:$0xff]
  %v4558 = vld [vmem:[%s22 + $0x40] sm:$0xff]
  %v4559 = vld [vmem:[%s22 + $0x48] sm:$0xff]
  %v4560 = vld [vmem:[%s22 + $0x50] sm:$0xff]
  %v4561 = vld [vmem:[%s22 + $0x58] sm:$0xff]
  %v4562 = vld [vmem:[%s22 + $0x60] sm:$0xff]
  %v4563 = vld [vmem:[%s22 + $0x68] sm:$0xff]
  %v4564 = vld [vmem:[%s22 + $0x70] sm:$0xff]
  %v4565 = vld [vmem:[%s22 + $0x78] sm:$0xff]
  %v4566 = vld [vmem:[%s23] sm:$0x1]
  %v4568 = vlaneseq
  %v4569 = vshrl.u32 %v4568, 7
  %v4570 = vsub.s32 0, %v4569
  %v4571 = vrot.slane %v4566, %v4570
  %4573 = vmatprep.subr.mxu0 0.0
  %4574 = vmatpush1.msra.mxu0 %v4550
  %4575 = vmatprep.subr.mxu0 0.0
  %4576 = vmatpush1.msra.mxu0 %v4551
  %4577 = vmatprep.subr.mxu0 0.0
  %4578 = vmatpush1.msra.mxu0 %v4552
  %4579 = vmatprep.subr.mxu0 0.0
  %4580 = vmatpush1.msra.mxu0 %v4553
  %4581 = vmatprep.subr.mxu0 0.0
  %4582 = vmatpush1.msra.mxu0 %v4554
  %4583 = vmatprep.subr.mxu0 0.0
  %4584 = vmatpush1.msra.mxu0 %v4555
  %4585 = vmatprep.subr.mxu0 0.0
  %4586 = vmatpush1.msra.mxu0 %v4556
  %4587 = vmatprep.subr.mxu0 0.0
  %4588 = vmatpush1.msra.mxu0 %v4557
  %4589 = vmatprep.subr.mxu0 0.0
  %4590 = vmatpush1.msra.mxu0 %v4558
  %4591 = vmatprep.subr.mxu0 0.0
  %4592 = vmatpush1.msra.mxu0 %v4559
  %4593 = vmatprep.subr.mxu0 0.0
  %4594 = vmatpush1.msra.mxu0 %v4560
  %4595 = vmatprep.subr.mxu0 0.0
  %4596 = vmatpush1.msra.mxu0 %v4561
  %4597 = vmatprep.subr.mxu0 0.0
  %4598 = vmatpush1.msra.mxu0 %v4562
  %4599 = vmatprep.subr.mxu0 0.0
  %4600 = vmatpush1.msra.mxu0 %v4563
  %4601 = vmatprep.subr.mxu0 0.0
  %4602 = vmatpush1.msra.mxu0 %v4564
  %4603 = vmatprep.subr.mxu0 0.0
  %4604 = vmatpush1.msra.mxu0 %v4565
  %4605 = vmatprep.subr.mxu0 0.0
  %4606 = vmatpush1.msra.mxu0 0.0
  %4607 = vmatprep.subr.mxu0 0.0
  %4608 = vmatpush1.msra.mxu0 0.0
  %4609 = vmatprep.subr.mxu0 0.0
  %4610 = vmatpush1.msra.mxu0 0.0
  %4611 = vmatprep.subr.mxu0 0.0
  %4612 = vmatpush1.msra.mxu0 0.0
  %4613 = vmatprep.subr.mxu0 0.0
  %4614 = vmatpush1.msra.mxu0 0.0
  %4615 = vmatprep.subr.mxu0 0.0
  %4616 = vmatpush1.msra.mxu0 0.0
  %4617 = vmatprep.subr.mxu0 0.0
  %4618 = vmatpush1.msra.mxu0 0.0
  %4619 = vmatprep.subr.mxu0 0.0
  %4620 = vmatpush1.msra.mxu0 0.0
  %4621 = vmatprep.subr.mxu0 0.0
  %4622 = vmatpush1.msra.mxu0 0.0
  %4623 = vmatprep.subr.mxu0 0.0
  %4624 = vmatpush1.msra.mxu0 0.0
  %4625 = vmatprep.subr.mxu0 0.0
  %4626 = vmatpush1.msra.mxu0 0.0
  %4627 = vmatprep.subr.mxu0 0.0
  %4628 = vmatpush1.msra.mxu0 0.0
  %4629 = vmatprep.subr.mxu0 0.0
  %4630 = vmatpush1.msra.mxu0 0.0
  %4631 = vmatprep.subr.mxu0 0.0
  %4632 = vmatpush1.msra.mxu0 0.0
  %4633 = vmatprep.subr.mxu0 0.0
  %4634 = vmatpush1.msra.mxu0 0.0
  %4635 = vmatprep.subr.mxu0 0.0
  %4636 = vmatpush1.msra.mxu0 0.0
  %4637 = vmatprep.mubr.f32.mxu0 0.0
  %4638 = vmatmul.mubr.f32.gmra.mrb[0].mxu0 %v4548
  %v4639 = vpop.f32.mrb[0].mxu0
  %v4640 = vadd.f32 %v4571, %v4639
  %v4641 = vpop.f32.mrb[0].mxu0
  %4642 = vmatprep.mubr.f32.mxu0 0.0
  %4643 = vmatmul.mubr.f32.gmra.mrb[0].mxu0 %v4549
  %v4644 = vpop.f32.mrb[0].mxu0
  %v4645 = vadd.f32 %v4571, %v4644
  %v4646 = vpop.f32.mrb[0].mxu0
  %4647 = vdwg.mxu0
  %v4648 = vrsqrt.pop %v4640
  %v4649 = vmul.f32 %v4640, %v4648
  %vm4650 = vcmp.eq.f32.partialorder %v4640, inf
  %v4651 = vsel %vm4650, %v4640, %v4649
  %vm4652 = vcmp.eq.f32.partialorder %v4640, 0.0
  %v4653 = vand.u32 %v4640, 2147483648
  %v4654 = vsel %vm4652, %v4653, %v4651
  %v4655 = vrsqrt.pop %v4645
  %v4656 = vmul.f32 %v4645, %v4655
  %vm4657 = vcmp.eq.f32.partialorder %v4645, inf
  %v4658 = vsel %vm4657, %v4645, %v4656
  %vm4659 = vcmp.eq.f32.partialorder %v4645, 0.0
  %v4660 = vand.u32 %v4645, 2147483648
  %v4661 = vsel %vm4659, %v4660, %v4658
  %v4662 = vmul.f32 %v4546, %v4654
  %v4663 = vmul.f32 %v4547, %v4661
  %v4664 = vld [vmem:[%s24] sm:$0xff]
  %v4665 = vld [vmem:[%s24 + $0x8] sm:$0xff]
  %v4666 = vld [vmem:[%s24 + $0x10] sm:$0xff]
  %v4667 = vld [vmem:[%s24 + $0x18] sm:$0xff]
  %v4669 = vsel %vm1082, %v4664, 0
  %v4672 = vsel %vm1082, %v4665, 0
  %v4675 = vsel %vm1082, %v4666, 0
  %v4678 = vsel %vm1082, %v4667, 0
  %4680 = vmatprep.subr.mxu0 0.0
  %4681 = vmatpush1.msra.mxu0 %v4662
  %4682 = vmatprep.subr.mxu0 0.0
  %4683 = vmatpush1.msra.mxu0 %v4663
  %4684 = vmatprep.subr.mxu0 0.0
  %4685 = vmatpush1.msra.mxu0 0.0
  %4686 = vmatprep.subr.mxu0 0.0
  %4687 = vmatpush1.msra.mxu0 0.0
  %4688 = vmatprep.subr.mxu0 0.0
  %4689 = vmatpush1.msra.mxu0 0.0
  %4690 = vmatprep.subr.mxu0 0.0
  %4691 = vmatpush1.msra.mxu0 0.0
  %4692 = vmatprep.subr.mxu0 0.0
  %4693 = vmatpush1.msra.mxu0 0.0
  %4694 = vmatprep.subr.mxu0 0.0
  %4695 = vmatpush1.msra.mxu0 0.0
  %4696 = vmatprep.subr.mxu0 0.0
  %4697 = vmatpush1.msra.mxu0 0.0
  %4698 = vmatprep.subr.mxu0 0.0
  %4699 = vmatpush1.msra.mxu0 0.0
  %4700 = vmatprep.subr.mxu0 0.0
  %4701 = vmatpush1.msra.mxu0 0.0
  %4702 = vmatprep.subr.mxu0 0.0
  %4703 = vmatpush1.msra.mxu0 0.0
  %4704 = vmatprep.subr.mxu0 0.0
  %4705 = vmatpush1.msra.mxu0 0.0
  %4706 = vmatprep.subr.mxu0 0.0
  %4707 = vmatpush1.msra.mxu0 0.0
  %4708 = vmatprep.subr.mxu0 0.0
  %4709 = vmatpush1.msra.mxu0 0.0
  %4710 = vmatprep.subr.mxu0 0.0
  %4711 = vmatpush1.msra.mxu0 0.0
  %4712 = vmatprep.subr.mxu0 0.0
  %4713 = vmatpush1.msra.mxu0 0.0
  %4714 = vmatprep.subr.mxu0 0.0
  %4715 = vmatpush1.msra.mxu0 0.0
  %4716 = vmatprep.subr.mxu0 0.0
  %4717 = vmatpush1.msra.mxu0 0.0
  %4718 = vmatprep.subr.mxu0 0.0
  %4719 = vmatpush1.msra.mxu0 0.0
  %4720 = vmatprep.subr.mxu0 0.0
  %4721 = vmatpush1.msra.mxu0 0.0
  %4722 = vmatprep.subr.mxu0 0.0
  %4723 = vmatpush1.msra.mxu0 0.0
  %4724 = vmatprep.subr.mxu0 0.0
  %4725 = vmatpush1.msra.mxu0 0.0
  %4726 = vmatprep.subr.mxu0 0.0
  %4727 = vmatpush1.msra.mxu0 0.0
  %4728 = vmatprep.subr.mxu0 0.0
  %4729 = vmatpush1.msra.mxu0 0.0
  %4730 = vmatprep.subr.mxu0 0.0
  %4731 = vmatpush1.msra.mxu0 0.0
  %4732 = vmatprep.subr.mxu0 0.0
  %4733 = vmatpush1.msra.mxu0 0.0
  %4734 = vmatprep.subr.mxu0 0.0
  %4735 = vmatpush1.msra.mxu0 0.0
  %4736 = vmatprep.subr.mxu0 0.0
  %4737 = vmatpush1.msra.mxu0 0.0
  %4738 = vmatprep.subr.mxu0 0.0
  %4739 = vmatpush1.msra.mxu0 0.0
  %4740 = vmatprep.subr.mxu0 0.0
  %4741 = vmatpush1.msra.mxu0 0.0
  %4742 = vmatprep.subr.mxu0 0.0
  %4743 = vmatpush1.msra.mxu0 0.0
  %4744 = vmatprep.mubr.f32.mxu0 0.0
  %4745 = vmatmul.mubr.f32.gmra.mrb[0].mxu0 %v4669
  %v4746 = vpop.f32.mrb[0].mxu0
  %v4747 = vadd.f32 0.0, %v4746
  %v4748 = vpop.f32.mrb[0].mxu0
  %4749 = vmatprep.mubr.f32.mxu0 0.0
  %4750 = vmatmul.mubr.f32.gmra.mrb[0].mxu0 %v4672
  %v4751 = vpop.f32.mrb[0].mxu0
  %v4752 = vadd.f32 0.0, %v4751
  %v4753 = vpop.f32.mrb[0].mxu0
  %4754 = vmatprep.mubr.f32.mxu0 0.0
  %4755 = vmatmul.mubr.f32.gmra.mrb[0].mxu0 %v4675
  %v4756 = vpop.f32.mrb[0].mxu0
  %v4757 = vadd.f32 0.0, %v4756
  %v4758 = vpop.f32.mrb[0].mxu0
  %4759 = vmatprep.mubr.f32.mxu0 0.0
  %4760 = vmatmul.mubr.f32.gmra.mrb[0].mxu0 %v4678
  %v4761 = vpop.f32.mrb[0].mxu0
  %v4762 = vadd.f32 0.0, %v4761
  %v4763 = vpop.f32.mrb[0].mxu0
  %4764 = vdwg.mxu0
  %v4765 = vld [vmem:[%s25] sm:$0xff]
  %v4766 = vld [vmem:[%s25 + $0x8] sm:$0xff]
  %v4767 = vld [vmem:[%s25 + $0x10] sm:$0xff]
  %v4768 = vld [vmem:[%s25 + $0x18] sm:$0xff]
  %v4769 = vld [vmem:[%s25 + $0x20] sm:$0xff]
  %v4770 = vld [vmem:[%s25 + $0x28] sm:$0xff]
  %v4771 = vld [vmem:[%s25 + $0x30] sm:$0xff]
  %v4772 = vld [vmem:[%s25 + $0x38] sm:$0xff]
  %v4773 = vld [vmem:[%s25 + $0x40] sm:$0xff]
  %v4774 = vld [vmem:[%s25 + $0x48] sm:$0xff]
  %v4775 = vld [vmem:[%s25 + $0x50] sm:$0xff]
  %v4776 = vld [vmem:[%s25 + $0x58] sm:$0xff]
  %v4777 = vld [vmem:[%s25 + $0x60] sm:$0xff]
  %v4778 = vld [vmem:[%s25 + $0x68] sm:$0xff]
  %v4779 = vld [vmem:[%s25 + $0x70] sm:$0xff]
  %v4780 = vld [vmem:[%s25 + $0x78] sm:$0xff]
  %s4781 = scalar_lea.vmem %s24, 32
  %v4782 = vld [vmem:[%s4781] sm:$0xff]
  %v4783 = vld [vmem:[%s4781 + $0x8] sm:$0xff]
  %v4784 = vld [vmem:[%s4781 + $0x10] sm:$0xff]
  %v4785 = vld [vmem:[%s4781 + $0x18] sm:$0xff]
  %v4787 = vsel %vm1082, %v4782, 0
  %v4790 = vsel %vm1082, %v4783, 0
  %v4793 = vsel %vm1082, %v4784, 0
  %v4796 = vsel %vm1082, %v4785, 0
  %4798 = vmatprep.subr.mxu0 0.0
  %4799 = vmatpush1.msra.mxu0 %v4662
  %4800 = vmatprep.subr.mxu0 0.0
  %4801 = vmatpush1.msra.mxu0 %v4663
  %4802 = vmatprep.subr.mxu0 0.0
  %4803 = vmatpush1.msra.mxu0 0.0
  %4804 = vmatprep.subr.mxu0 0.0
  %4805 = vmatpush1.msra.mxu0 0.0
  %4806 = vmatprep.subr.mxu0 0.0
  %4807 = vmatpush1.msra.mxu0 0.0
  %4808 = vmatprep.subr.mxu0 0.0
  %4809 = vmatpush1.msra.mxu0 0.0
  %4810 = vmatprep.subr.mxu0 0.0
  %4811 = vmatpush1.msra.mxu0 0.0
  %4812 = vmatprep.subr.mxu0 0.0
  %4813 = vmatpush1.msra.mxu0 0.0
  %4814 = vmatprep.subr.mxu0 0.0
  %4815 = vmatpush1.msra.mxu0 0.0
  %4816 = vmatprep.subr.mxu0 0.0
  %4817 = vmatpush1.msra.mxu0 0.0
  %4818 = vmatprep.subr.mxu0 0.0
  %4819 = vmatpush1.msra.mxu0 0.0
  %4820 = vmatprep.subr.mxu0 0.0
  %4821 = vmatpush1.msra.mxu0 0.0
  %4822 = vmatprep.subr.mxu0 0.0
  %4823 = vmatpush1.msra.mxu0 0.0
  %4824 = vmatprep.subr.mxu0 0.0
  %4825 = vmatpush1.msra.mxu0 0.0
  %4826 = vmatprep.subr.mxu0 0.0
  %4827 = vmatpush1.msra.mxu0 0.0
  %4828 = vmatprep.subr.mxu0 0.0
  %4829 = vmatpush1.msra.mxu0 0.0
  %4830 = vmatprep.subr.mxu0 0.0
  %4831 = vmatpush1.msra.mxu0 0.0
  %4832 = vmatprep.subr.mxu0 0.0
  %4833 = vmatpush1.msra.mxu0 0.0
  %4834 = vmatprep.subr.mxu0 0.0
  %4835 = vmatpush1.msra.mxu0 0.0
  %4836 = vmatprep.subr.mxu0 0.0
  %4837 = vmatpush1.msra.mxu0 0.0
  %4838 = vmatprep.subr.mxu0 0.0
  %4839 = vmatpush1.msra.mxu0 0.0
  %4840 = vmatprep.subr.mxu0 0.0
  %4841 = vmatpush1.msra.mxu0 0.0
  %4842 = vmatprep.subr.mxu0 0.0
  %4843 = vmatpush1.msra.mxu0 0.0
  %4844 = vmatprep.subr.mxu0 0.0
  %4845 = vmatpush1.msra.mxu0 0.0
  %4846 = vmatprep.subr.mxu0 0.0
  %4847 = vmatpush1.msra.mxu0 0.0
  %4848 = vmatprep.subr.mxu0 0.0
  %4849 = vmatpush1.msra.mxu0 0.0
  %4850 = vmatprep.subr.mxu0 0.0
  %4851 = vmatpush1.msra.mxu0 0.0
  %4852 = vmatprep.subr.mxu0 0.0
  %4853 = vmatpush1.msra.mxu0 0.0
  %4854 = vmatprep.subr.mxu0 0.0
  %4855 = vmatpush1.msra.mxu0 0.0
  %4856 = vmatprep.subr.mxu0 0.0
  %4857 = vmatpush1.msra.mxu0 0.0
  %4858 = vmatprep.subr.mxu0 0.0
  %4859 = vmatpush1.msra.mxu0 0.0
  %4860 = vmatprep.subr.mxu0 0.0
  %4861 = vmatpush1.msra.mxu0 0.0
  %4862 = vmatprep.mubr.f32.mxu0 0.0
  %4863 = vmatmul.mubr.f32.gmra.mrb[0].mxu0 %v4787
  %v4864 = vpop.f32.mrb[0].mxu0
  %v4865 = vadd.f32 0.0, %v4864
  %v4866 = vpop.f32.mrb[0].mxu0
  %4867 = vmatprep.mubr.f32.mxu0 0.0
  %4868 = vmatmul.mubr.f32.gmra.mrb[0].mxu0 %v4790
  %v4869 = vpop.f32.mrb[0].mxu0
  %v4870 = vadd.f32 0.0, %v4869
  %v4871 = vpop.f32.mrb[0].mxu0
  %4872 = vmatprep.mubr.f32.mxu0 0.0
  %4873 = vmatmul.mubr.f32.gmra.mrb[0].mxu0 %v4793
  %v4874 = vpop.f32.mrb[0].mxu0
  %v4875 = vadd.f32 0.0, %v4874
  %v4876 = vpop.f32.mrb[0].mxu0
  %4877 = vmatprep.mubr.f32.mxu0 0.0
  %4878 = vmatmul.mubr.f32.gmra.mrb[0].mxu0 %v4796
  %v4879 = vpop.f32.mrb[0].mxu0
  %v4880 = vadd.f32 0.0, %v4879
  %v4881 = vpop.f32.mrb[0].mxu0
  %4882 = vdwg.mxu0
  %s4883 = scalar_lea.vmem %s25, 128
  %v4884 = vld [vmem:[%s4883] sm:$0xff]
  %v4885 = vld [vmem:[%s4883 + $0x8] sm:$0xff]
  %v4886 = vld [vmem:[%s4883 + $0x10] sm:$0xff]
  %v4887 = vld [vmem:[%s4883 + $0x18] sm:$0xff]
  %v4888 = vld [vmem:[%s4883 + $0x20] sm:$0xff]
  %v4889 = vld [vmem:[%s4883 + $0x28] sm:$0xff]
  %v4890 = vld [vmem:[%s4883 + $0x30] sm:$0xff]
  %v4891 = vld [vmem:[%s4883 + $0x38] sm:$0xff]
  %v4892 = vld [vmem:[%s4883 + $0x40] sm:$0xff]
  %v4893 = vld [vmem:[%s4883 + $0x48] sm:$0xff]
  %v4894 = vld [vmem:[%s4883 + $0x50] sm:$0xff]
  %v4895 = vld [vmem:[%s4883 + $0x58] sm:$0xff]
  %v4896 = vld [vmem:[%s4883 + $0x60] sm:$0xff]
  %v4897 = vld [vmem:[%s4883 + $0x68] sm:$0xff]
  %v4898 = vld [vmem:[%s4883 + $0x70] sm:$0xff]
  %v4899 = vld [vmem:[%s4883 + $0x78] sm:$0xff]
  %4900 = vmatprep.subr.mxu0 0.0
  %4901 = vmatpush1.msra.mxu0 %v4884
  %4902 = vmatprep.subr.mxu0 0.0
  %4903 = vmatpush1.msra.mxu0 %v4885
  %4904 = vmatprep.subr.mxu0 0.0
  %4905 = vmatpush1.msra.mxu0 %v4886
  %4906 = vmatprep.subr.mxu0 0.0
  %4907 = vmatpush1.msra.mxu0 %v4887
  %4908 = vmatprep.subr.mxu0 0.0
  %4909 = vmatpush1.msra.mxu0 %v4888
  %4910 = vmatprep.subr.mxu0 0.0
  %4911 = vmatpush1.msra.mxu0 %v4889
  %4912 = vmatprep.subr.mxu0 0.0
  %4913 = vmatpush1.msra.mxu0 %v4890
  %4914 = vmatprep.subr.mxu0 0.0
  %4915 = vmatpush1.msra.mxu0 %v4891
  %4916 = vmatprep.subr.mxu0 0.0
  %4917 = vmatpush1.msra.mxu0 %v4892
  %4918 = vmatprep.subr.mxu0 0.0
  %4919 = vmatpush1.msra.mxu0 %v4893
  %4920 = vmatprep.subr.mxu0 0.0
  %4921 = vmatpush1.msra.mxu0 %v4894
  %4922 = vmatprep.subr.mxu0 0.0
  %4923 = vmatpush1.msra.mxu0 %v4895
  %4924 = vmatprep.subr.mxu0 0.0
  %4925 = vmatpush1.msra.mxu0 %v4896
  %4926 = vmatprep.subr.mxu0 0.0
  %4927 = vmatpush1.msra.mxu0 %v4897
  %4928 = vmatprep.subr.mxu0 0.0
  %4929 = vmatpush1.msra.mxu0 %v4898
  %4930 = vmatprep.subr.mxu0 0.0
  %4931 = vmatpush1.msra.mxu0 %v4899
  %4932 = vmatprep.subr.mxu0 0.0
  %4933 = vmatpush1.msra.mxu0 0.0
  %4934 = vmatprep.subr.mxu0 0.0
  %4935 = vmatpush1.msra.mxu0 0.0
  %4936 = vmatprep.subr.mxu0 0.0
  %4937 = vmatpush1.msra.mxu0 0.0
  %4938 = vmatprep.subr.mxu0 0.0
  %4939 = vmatpush1.msra.mxu0 0.0
  %4940 = vmatprep.subr.mxu0 0.0
  %4941 = vmatpush1.msra.mxu0 0.0
  %4942 = vmatprep.subr.mxu0 0.0
  %4943 = vmatpush1.msra.mxu0 0.0
  %4944 = vmatprep.subr.mxu0 0.0
  %4945 = vmatpush1.msra.mxu0 0.0
  %4946 = vmatprep.subr.mxu0 0.0
  %4947 = vmatpush1.msra.mxu0 0.0
  %4948 = vmatprep.subr.mxu0 0.0
  %4949 = vmatpush1.msra.mxu0 0.0
  %4950 = vmatprep.subr.mxu0 0.0
  %4951 = vmatpush1.msra.mxu0 0.0
  %4952 = vmatprep.subr.mxu0 0.0
  %4953 = vmatpush1.msra.mxu0 0.0
  %4954 = vmatprep.subr.mxu0 0.0
  %4955 = vmatpush1.msra.mxu0 0.0
  %4956 = vmatprep.subr.mxu0 0.0
  %4957 = vmatpush1.msra.mxu0 0.0
  %4958 = vmatprep.subr.mxu0 0.0
  %4959 = vmatpush1.msra.mxu0 0.0
  %4960 = vmatprep.subr.mxu0 0.0
  %4961 = vmatpush1.msra.mxu0 0.0
  %4962 = vmatprep.subr.mxu0 0.0
  %4963 = vmatpush1.msra.mxu0 0.0
  %4964 = vmatprep.mubr.f32.mxu0 0.0
  %4965 = vmatmul.mubr.f32.gmra.mrb[0].mxu0 %v4865
  %v4966 = vpop.f32.mrb[0].mxu0
  %v4967 = vadd.f32 0.0, %v4966
  %v4968 = vpop.f32.mrb[0].mxu0
  %4969 = vmatprep.mubr.f32.mxu0 0.0
  %4970 = vmatmul.mubr.f32.gmra.mrb[0].mxu0 %v4870
  %v4971 = vpop.f32.mrb[0].mxu0
  %v4972 = vadd.f32 0.0, %v4971
  %v4973 = vpop.f32.mrb[0].mxu0
  %4974 = vmatprep.mubr.f32.mxu0 0.0
  %4975 = vmatmul.mubr.f32.gmra.mrb[0].mxu0 %v4875
  %v4976 = vpop.f32.mrb[0].mxu0
  %v4977 = vadd.f32 0.0, %v4976
  %v4978 = vpop.f32.mrb[0].mxu0
  %4979 = vmatprep.mubr.f32.mxu0 0.0
  %4980 = vmatmul.mubr.f32.gmra.mrb[0].mxu0 %v4880
  %v4981 = vpop.f32.mrb[0].mxu0
  %v4982 = vadd.f32 0.0, %v4981
  %v4983 = vpop.f32.mrb[0].mxu0
  %4984 = vdwg.mxu0
  %4985 = vmatprep.subr.mxu0 0.0
  %4986 = vmatpush1.msra.mxu0 %v4765
  %4987 = vmatprep.subr.mxu0 0.0
  %4988 = vmatpush1.msra.mxu0 %v4766
  %4989 = vmatprep.subr.mxu0 0.0
  %4990 = vmatpush1.msra.mxu0 %v4767
  %4991 = vmatprep.subr.mxu0 0.0
  %4992 = vmatpush1.msra.mxu0 %v4768
  %4993 = vmatprep.subr.mxu0 0.0
  %4994 = vmatpush1.msra.mxu0 %v4769
  %4995 = vmatprep.subr.mxu0 0.0
  %4996 = vmatpush1.msra.mxu0 %v4770
  %4997 = vmatprep.subr.mxu0 0.0
  %4998 = vmatpush1.msra.mxu0 %v4771
  %4999 = vmatprep.subr.mxu0 0.0
  %5000 = vmatpush1.msra.mxu0 %v4772
  %5001 = vmatprep.subr.mxu0 0.0
  %5002 = vmatpush1.msra.mxu0 %v4773
  %5003 = vmatprep.subr.mxu0 0.0
  %5004 = vmatpush1.msra.mxu0 %v4774
  %5005 = vmatprep.subr.mxu0 0.0
  %5006 = vmatpush1.msra.mxu0 %v4775
  %5007 = vmatprep.subr.mxu0 0.0
  %5008 = vmatpush1.msra.mxu0 %v4776
  %5009 = vmatprep.subr.mxu0 0.0
  %5010 = vmatpush1.msra.mxu0 %v4777
  %5011 = vmatprep.subr.mxu0 0.0
  %5012 = vmatpush1.msra.mxu0 %v4778
  %5013 = vmatprep.subr.mxu0 0.0
  %5014 = vmatpush1.msra.mxu0 %v4779
  %5015 = vmatprep.subr.mxu0 0.0
  %5016 = vmatpush1.msra.mxu0 %v4780
  %5017 = vmatprep.subr.mxu0 0.0
  %5018 = vmatpush1.msra.mxu0 0.0
  %5019 = vmatprep.subr.mxu0 0.0
  %5020 = vmatpush1.msra.mxu0 0.0
  %5021 = vmatprep.subr.mxu0 0.0
  %5022 = vmatpush1.msra.mxu0 0.0
  %5023 = vmatprep.subr.mxu0 0.0
  %5024 = vmatpush1.msra.mxu0 0.0
  %5025 = vmatprep.subr.mxu0 0.0
  %5026 = vmatpush1.msra.mxu0 0.0
  %5027 = vmatprep.subr.mxu0 0.0
  %5028 = vmatpush1.msra.mxu0 0.0
  %5029 = vmatprep.subr.mxu0 0.0
  %5030 = vmatpush1.msra.mxu0 0.0
  %5031 = vmatprep.subr.mxu0 0.0
  %5032 = vmatpush1.msra.mxu0 0.0
  %5033 = vmatprep.subr.mxu0 0.0
  %5034 = vmatpush1.msra.mxu0 0.0
  %5035 = vmatprep.subr.mxu0 0.0
  %5036 = vmatpush1.msra.mxu0 0.0
  %5037 = vmatprep.subr.mxu0 0.0
  %5038 = vmatpush1.msra.mxu0 0.0
  %5039 = vmatprep.subr.mxu0 0.0
  %5040 = vmatpush1.msra.mxu0 0.0
  %5041 = vmatprep.subr.mxu0 0.0
  %5042 = vmatpush1.msra.mxu0 0.0
  %5043 = vmatprep.subr.mxu0 0.0
  %5044 = vmatpush1.msra.mxu0 0.0
  %5045 = vmatprep.subr.mxu0 0.0
  %5046 = vmatpush1.msra.mxu0 0.0
  %5047 = vmatprep.subr.mxu0 0.0
  %5048 = vmatpush1.msra.mxu0 0.0
  %5049 = vmatprep.mubr.f32.mxu0 0.0
  %5050 = vmatmul.mubr.f32.gmra.mrb[0].mxu0 %v4747
  %v5051 = vpop.f32.mrb[0].mxu0
  %v5052 = vadd.f32 %v4967, %v5051
  %v5053 = vpop.f32.mrb[0].mxu0
  %5054 = vmatprep.mubr.f32.mxu0 0.0
  %5055 = vmatmul.mubr.f32.gmra.mrb[0].mxu0 %v4752
  %v5056 = vpop.f32.mrb[0].mxu0
  %v5057 = vadd.f32 %v4972, %v5056
  %v5058 = vpop.f32.mrb[0].mxu0
  %5059 = vmatprep.mubr.f32.mxu0 0.0
  %5060 = vmatmul.mubr.f32.gmra.mrb[0].mxu0 %v4757
  %v5061 = vpop.f32.mrb[0].mxu0
  %v5062 = vadd.f32 %v4977, %v5061
  %v5063 = vpop.f32.mrb[0].mxu0
  %5064 = vmatprep.mubr.f32.mxu0 0.0
  %5065 = vmatmul.mubr.f32.gmra.mrb[0].mxu0 %v4762
  %v5066 = vpop.f32.mrb[0].mxu0
  %v5067 = vadd.f32 %v4982, %v5066
  %v5068 = vpop.f32.mrb[0].mxu0
  %5069 = vdwg.mxu0
  %s5070 = scalar_lea.vmem %s24, 64
  %v5071 = vld [vmem:[%s5070] sm:$0xff]
  %v5072 = vld [vmem:[%s5070 + $0x8] sm:$0xff]
  %v5073 = vld [vmem:[%s5070 + $0x10] sm:$0xff]
  %v5074 = vld [vmem:[%s5070 + $0x18] sm:$0xff]
  %v5076 = vsel %vm1082, %v5071, 0
  %v5079 = vsel %vm1082, %v5072, 0
  %v5082 = vsel %vm1082, %v5073, 0
  %v5085 = vsel %vm1082, %v5074, 0
  %5087 = vmatprep.subr.mxu0 0.0
  %5088 = vmatpush1.msra.mxu0 %v4662
  %5089 = vmatprep.subr.mxu0 0.0
  %5090 = vmatpush1.msra.mxu0 %v4663
  %5091 = vmatprep.subr.mxu0 0.0
  %5092 = vmatpush1.msra.mxu0 0.0
  %5093 = vmatprep.subr.mxu0 0.0
  %5094 = vmatpush1.msra.mxu0 0.0
  %5095 = vmatprep.subr.mxu0 0.0
  %5096 = vmatpush1.msra.mxu0 0.0
  %5097 = vmatprep.subr.mxu0 0.0
  %5098 = vmatpush1.msra.mxu0 0.0
  %5099 = vmatprep.subr.mxu0 0.0
  %5100 = vmatpush1.msra.mxu0 0.0
  %5101 = vmatprep.subr.mxu0 0.0
  %5102 = vmatpush1.msra.mxu0 0.0
  %5103 = vmatprep.subr.mxu0 0.0
  %5104 = vmatpush1.msra.mxu0 0.0
  %5105 = vmatprep.subr.mxu0 0.0
  %5106 = vmatpush1.msra.mxu0 0.0
  %5107 = vmatprep.subr.mxu0 0.0
  %5108 = vmatpush1.msra.mxu0 0.0
  %5109 = vmatprep.subr.mxu0 0.0
  %5110 = vmatpush1.msra.mxu0 0.0
  %5111 = vmatprep.subr.mxu0 0.0
  %5112 = vmatpush1.msra.mxu0 0.0
  %5113 = vmatprep.subr.mxu0 0.0
  %5114 = vmatpush1.msra.mxu0 0.0
  %5115 = vmatprep.subr.mxu0 0.0
  %5116 = vmatpush1.msra.mxu0 0.0
  %5117 = vmatprep.subr.mxu0 0.0
  %5118 = vmatpush1.msra.mxu0 0.0
  %5119 = vmatprep.subr.mxu0 0.0
  %5120 = vmatpush1.msra.mxu0 0.0
  %5121 = vmatprep.subr.mxu0 0.0
  %5122 = vmatpush1.msra.mxu0 0.0
  %5123 = vmatprep.subr.mxu0 0.0
  %5124 = vmatpush1.msra.mxu0 0.0
  %5125 = vmatprep.subr.mxu0 0.0
  %5126 = vmatpush1.msra.mxu0 0.0
  %5127 = vmatprep.subr.mxu0 0.0
  %5128 = vmatpush1.msra.mxu0 0.0
  %5129 = vmatprep.subr.mxu0 0.0
  %5130 = vmatpush1.msra.mxu0 0.0
  %5131 = vmatprep.subr.mxu0 0.0
  %5132 = vmatpush1.msra.mxu0 0.0
  %5133 = vmatprep.subr.mxu0 0.0
  %5134 = vmatpush1.msra.mxu0 0.0
  %5135 = vmatprep.subr.mxu0 0.0
  %5136 = vmatpush1.msra.mxu0 0.0
  %5137 = vmatprep.subr.mxu0 0.0
  %5138 = vmatpush1.msra.mxu0 0.0
  %5139 = vmatprep.subr.mxu0 0.0
  %5140 = vmatpush1.msra.mxu0 0.0
  %5141 = vmatprep.subr.mxu0 0.0
  %5142 = vmatpush1.msra.mxu0 0.0
  %5143 = vmatprep.subr.mxu0 0.0
  %5144 = vmatpush1.msra.mxu0 0.0
  %5145 = vmatprep.subr.mxu0 0.0
  %5146 = vmatpush1.msra.mxu0 0.0
  %5147 = vmatprep.subr.mxu0 0.0
  %5148 = vmatpush1.msra.mxu0 0.0
  %5149 = vmatprep.subr.mxu0 0.0
  %5150 = vmatpush1.msra.mxu0 0.0
  %5151 = vmatprep.mubr.f32.mxu0 0.0
  %5152 = vmatmul.mubr.f32.gmra.mrb[0].mxu0 %v5076
  %v5153 = vpop.f32.mrb[0].mxu0
  %v5154 = vadd.f32 0.0, %v5153
  %v5155 = vpop.f32.mrb[0].mxu0
  %5156 = vmatprep.mubr.f32.mxu0 0.0
  %5157 = vmatmul.mubr.f32.gmra.mrb[0].mxu0 %v5079
  %v5158 = vpop.f32.mrb[0].mxu0
  %v5159 = vadd.f32 0.0, %v5158
  %v5160 = vpop.f32.mrb[0].mxu0
  %5161 = vmatprep.mubr.f32.mxu0 0.0
  %5162 = vmatmul.mubr.f32.gmra.mrb[0].mxu0 %v5082
  %v5163 = vpop.f32.mrb[0].mxu0
  %v5164 = vadd.f32 0.0, %v5163
  %v5165 = vpop.f32.mrb[0].mxu0
  %5166 = vmatprep.mubr.f32.mxu0 0.0
  %5167 = vmatmul.mubr.f32.gmra.mrb[0].mxu0 %v5085
  %v5168 = vpop.f32.mrb[0].mxu0
  %v5169 = vadd.f32 0.0, %v5168
  %v5170 = vpop.f32.mrb[0].mxu0
  %5171 = vdwg.mxu0
  %s5172 = scalar_lea.vmem %s25, 256
  %v5173 = vld [vmem:[%s5172] sm:$0xff]
  %v5174 = vld [vmem:[%s5172 + $0x8] sm:$0xff]
  %v5175 = vld [vmem:[%s5172 + $0x10] sm:$0xff]
  %v5176 = vld [vmem:[%s5172 + $0x18] sm:$0xff]
  %v5177 = vld [vmem:[%s5172 + $0x20] sm:$0xff]
  %v5178 = vld [vmem:[%s5172 + $0x28] sm:$0xff]
  %v5179 = vld [vmem:[%s5172 + $0x30] sm:$0xff]
  %v5180 = vld [vmem:[%s5172 + $0x38] sm:$0xff]
  %v5181 = vld [vmem:[%s5172 + $0x40] sm:$0xff]
  %v5182 = vld [vmem:[%s5172 + $0x48] sm:$0xff]
  %v5183 = vld [vmem:[%s5172 + $0x50] sm:$0xff]
  %v5184 = vld [vmem:[%s5172 + $0x58] sm:$0xff]
  %v5185 = vld [vmem:[%s5172 + $0x60] sm:$0xff]
  %v5186 = vld [vmem:[%s5172 + $0x68] sm:$0xff]
  %v5187 = vld [vmem:[%s5172 + $0x70] sm:$0xff]
  %v5188 = vld [vmem:[%s5172 + $0x78] sm:$0xff]
  %5189 = vmatprep.subr.mxu0 0.0
  %5190 = vmatpush1.msra.mxu0 %v5173
  %5191 = vmatprep.subr.mxu0 0.0
  %5192 = vmatpush1.msra.mxu0 %v5174
  %5193 = vmatprep.subr.mxu0 0.0
  %5194 = vmatpush1.msra.mxu0 %v5175
  %5195 = vmatprep.subr.mxu0 0.0
  %5196 = vmatpush1.msra.mxu0 %v5176
  %5197 = vmatprep.subr.mxu0 0.0
  %5198 = vmatpush1.msra.mxu0 %v5177
  %5199 = vmatprep.subr.mxu0 0.0
  %5200 = vmatpush1.msra.mxu0 %v5178
  %5201 = vmatprep.subr.mxu0 0.0
  %5202 = vmatpush1.msra.mxu0 %v5179
  %5203 = vmatprep.subr.mxu0 0.0
  %5204 = vmatpush1.msra.mxu0 %v5180
  %5205 = vmatprep.subr.mxu0 0.0
  %5206 = vmatpush1.msra.mxu0 %v5181
  %5207 = vmatprep.subr.mxu0 0.0
  %5208 = vmatpush1.msra.mxu0 %v5182
  %5209 = vmatprep.subr.mxu0 0.0
  %5210 = vmatpush1.msra.mxu0 %v5183
  %5211 = vmatprep.subr.mxu0 0.0
  %5212 = vmatpush1.msra.mxu0 %v5184
  %5213 = vmatprep.subr.mxu0 0.0
  %5214 = vmatpush1.msra.mxu0 %v5185
  %5215 = vmatprep.subr.mxu0 0.0
  %5216 = vmatpush1.msra.mxu0 %v5186
  %5217 = vmatprep.subr.mxu0 0.0
  %5218 = vmatpush1.msra.mxu0 %v5187
  %5219 = vmatprep.subr.mxu0 0.0
  %5220 = vmatpush1.msra.mxu0 %v5188
  %5221 = vmatprep.subr.mxu0 0.0
  %5222 = vmatpush1.msra.mxu0 0.0
  %5223 = vmatprep.subr.mxu0 0.0
  %5224 = vmatpush1.msra.mxu0 0.0
  %5225 = vmatprep.subr.mxu0 0.0
  %5226 = vmatpush1.msra.mxu0 0.0
  %5227 = vmatprep.subr.mxu0 0.0
  %5228 = vmatpush1.msra.mxu0 0.0
  %5229 = vmatprep.subr.mxu0 0.0
  %5230 = vmatpush1.msra.mxu0 0.0
  %5231 = vmatprep.subr.mxu0 0.0
  %5232 = vmatpush1.msra.mxu0 0.0
  %5233 = vmatprep.subr.mxu0 0.0
  %5234 = vmatpush1.msra.mxu0 0.0
  %5235 = vmatprep.subr.mxu0 0.0
  %5236 = vmatpush1.msra.mxu0 0.0
  %5237 = vmatprep.subr.mxu0 0.0
  %5238 = vmatpush1.msra.mxu0 0.0
  %5239 = vmatprep.subr.mxu0 0.0
  %5240 = vmatpush1.msra.mxu0 0.0
  %5241 = vmatprep.subr.mxu0 0.0
  %5242 = vmatpush1.msra.mxu0 0.0
  %5243 = vmatprep.subr.mxu0 0.0
  %5244 = vmatpush1.msra.mxu0 0.0
  %5245 = vmatprep.subr.mxu0 0.0
  %5246 = vmatpush1.msra.mxu0 0.0
  %5247 = vmatprep.subr.mxu0 0.0
  %5248 = vmatpush1.msra.mxu0 0.0
  %5249 = vmatprep.subr.mxu0 0.0
  %5250 = vmatpush1.msra.mxu0 0.0
  %5251 = vmatprep.subr.mxu0 0.0
  %5252 = vmatpush1.msra.mxu0 0.0
  %5253 = vmatprep.mubr.f32.mxu0 0.0
  %5254 = vmatmul.mubr.f32.gmra.mrb[0].mxu0 %v5154
  %v5255 = vpop.f32.mrb[0].mxu0
  %v5256 = vadd.f32 0.0, %v5255
  %v5257 = vpop.f32.mrb[0].mxu0
  %5258 = vmatprep.mubr.f32.mxu0 0.0
  %5259 = vmatmul.mubr.f32.gmra.mrb[0].mxu0 %v5159
  %v5260 = vpop.f32.mrb[0].mxu0
  %v5261 = vadd.f32 0.0, %v5260
  %v5262 = vpop.f32.mrb[0].mxu0
  %5263 = vmatprep.mubr.f32.mxu0 0.0
  %5264 = vmatmul.mubr.f32.gmra.mrb[0].mxu0 %v5164
  %v5265 = vpop.f32.mrb[0].mxu0
  %v5266 = vadd.f32 0.0, %v5265
  %v5267 = vpop.f32.mrb[0].mxu0
  %5268 = vmatprep.mubr.f32.mxu0 0.0
  %5269 = vmatmul.mubr.f32.gmra.mrb[0].mxu0 %v5169
  %v5270 = vpop.f32.mrb[0].mxu0
  %v5271 = vadd.f32 0.0, %v5270
  %v5272 = vpop.f32.mrb[0].mxu0
  %5273 = vdwg.mxu0
  %v5274 = vadd.f32 %v5052, %v5256
  %v5275 = vadd.f32 %v5057, %v5261
  %v5276 = vadd.f32 %v5062, %v5266
  %v5277 = vadd.f32 %v5067, %v5271
  %s5278 = scalar_lea.vmem %s24, 96
  %v5279 = vld [vmem:[%s5278] sm:$0xff]
  %v5280 = vld [vmem:[%s5278 + $0x8] sm:$0xff]
  %v5281 = vld [vmem:[%s5278 + $0x10] sm:$0xff]
  %v5282 = vld [vmem:[%s5278 + $0x18] sm:$0xff]
  %v5284 = vsel %vm1082, %v5279, 0
  %v5287 = vsel %vm1082, %v5280, 0
  %v5290 = vsel %vm1082, %v5281, 0
  %v5293 = vsel %vm1082, %v5282, 0
  %5295 = vmatprep.subr.mxu0 0.0
  %5296 = vmatpush1.msra.mxu0 %v4662
  %5297 = vmatprep.subr.mxu0 0.0
  %5298 = vmatpush1.msra.mxu0 %v4663
  %5299 = vmatprep.subr.mxu0 0.0
  %5300 = vmatpush1.msra.mxu0 0.0
  %5301 = vmatprep.subr.mxu0 0.0
  %5302 = vmatpush1.msra.mxu0 0.0
  %5303 = vmatprep.subr.mxu0 0.0
  %5304 = vmatpush1.msra.mxu0 0.0
  %5305 = vmatprep.subr.mxu0 0.0
  %5306 = vmatpush1.msra.mxu0 0.0
  %5307 = vmatprep.subr.mxu0 0.0
  %5308 = vmatpush1.msra.mxu0 0.0
  %5309 = vmatprep.subr.mxu0 0.0
  %5310 = vmatpush1.msra.mxu0 0.0
  %5311 = vmatprep.subr.mxu0 0.0
  %5312 = vmatpush1.msra.mxu0 0.0
  %5313 = vmatprep.subr.mxu0 0.0
  %5314 = vmatpush1.msra.mxu0 0.0
  %5315 = vmatprep.subr.mxu0 0.0
  %5316 = vmatpush1.msra.mxu0 0.0
  %5317 = vmatprep.subr.mxu0 0.0
  %5318 = vmatpush1.msra.mxu0 0.0
  %5319 = vmatprep.subr.mxu0 0.0
  %5320 = vmatpush1.msra.mxu0 0.0
  %5321 = vmatprep.subr.mxu0 0.0
  %5322 = vmatpush1.msra.mxu0 0.0
  %5323 = vmatprep.subr.mxu0 0.0
  %5324 = vmatpush1.msra.mxu0 0.0
  %5325 = vmatprep.subr.mxu0 0.0
  %5326 = vmatpush1.msra.mxu0 0.0
  %5327 = vmatprep.subr.mxu0 0.0
  %5328 = vmatpush1.msra.mxu0 0.0
  %5329 = vmatprep.subr.mxu0 0.0
  %5330 = vmatpush1.msra.mxu0 0.0
  %5331 = vmatprep.subr.mxu0 0.0
  %5332 = vmatpush1.msra.mxu0 0.0
  %5333 = vmatprep.subr.mxu0 0.0
  %5334 = vmatpush1.msra.mxu0 0.0
  %5335 = vmatprep.subr.mxu0 0.0
  %5336 = vmatpush1.msra.mxu0 0.0
  %5337 = vmatprep.subr.mxu0 0.0
  %5338 = vmatpush1.msra.mxu0 0.0
  %5339 = vmatprep.subr.mxu0 0.0
  %5340 = vmatpush1.msra.mxu0 0.0
  %5341 = vmatprep.subr.mxu0 0.0
  %5342 = vmatpush1.msra.mxu0 0.0
  %5343 = vmatprep.subr.mxu0 0.0
  %5344 = vmatpush1.msra.mxu0 0.0
  %5345 = vmatprep.subr.mxu0 0.0
  %5346 = vmatpush1.msra.mxu0 0.0
  %5347 = vmatprep.subr.mxu0 0.0
  %5348 = vmatpush1.msra.mxu0 0.0
  %5349 = vmatprep.subr.mxu0 0.0
  %5350 = vmatpush1.msra.mxu0 0.0
  %5351 = vmatprep.subr.mxu0 0.0
  %5352 = vmatpush1.msra.mxu0 0.0
  %5353 = vmatprep.subr.mxu0 0.0
  %5354 = vmatpush1.msra.mxu0 0.0
  %5355 = vmatprep.subr.mxu0 0.0
  %5356 = vmatpush1.msra.mxu0 0.0
  %5357 = vmatprep.subr.mxu0 0.0
  %5358 = vmatpush1.msra.mxu0 0.0
  %5359 = vmatprep.mubr.f32.mxu0 0.0
  %5360 = vmatmul.mubr.f32.gmra.mrb[0].mxu0 %v5284
  %v5361 = vpop.f32.mrb[0].mxu0
  %v5362 = vadd.f32 0.0, %v5361
  %v5363 = vpop.f32.mrb[0].mxu0
  %5364 = vmatprep.mubr.f32.mxu0 0.0
  %5365 = vmatmul.mubr.f32.gmra.mrb[0].mxu0 %v5287
  %v5366 = vpop.f32.mrb[0].mxu0
  %v5367 = vadd.f32 0.0, %v5366
  %v5368 = vpop.f32.mrb[0].mxu0
  %5369 = vmatprep.mubr.f32.mxu0 0.0
  %5370 = vmatmul.mubr.f32.gmra.mrb[0].mxu0 %v5290
  %v5371 = vpop.f32.mrb[0].mxu0
  %v5372 = vadd.f32 0.0, %v5371
  %v5373 = vpop.f32.mrb[0].mxu0
  %5374 = vmatprep.mubr.f32.mxu0 0.0
  %5375 = vmatmul.mubr.f32.gmra.mrb[0].mxu0 %v5293
  %v5376 = vpop.f32.mrb[0].mxu0
  %v5377 = vadd.f32 0.0, %v5376
  %v5378 = vpop.f32.mrb[0].mxu0
  %5379 = vdwg.mxu0
  %s5380 = scalar_lea.vmem %s25, 384
  %v5381 = vld [vmem:[%s5380] sm:$0xff]
  %v5382 = vld [vmem:[%s5380 + $0x8] sm:$0xff]
  %v5383 = vld [vmem:[%s5380 + $0x10] sm:$0xff]
  %v5384 = vld [vmem:[%s5380 + $0x18] sm:$0xff]
  %v5385 = vld [vmem:[%s5380 + $0x20] sm:$0xff]
  %v5386 = vld [vmem:[%s5380 + $0x28] sm:$0xff]
  %v5387 = vld [vmem:[%s5380 + $0x30] sm:$0xff]
  %v5388 = vld [vmem:[%s5380 + $0x38] sm:$0xff]
  %v5389 = vld [vmem:[%s5380 + $0x40] sm:$0xff]
  %v5390 = vld [vmem:[%s5380 + $0x48] sm:$0xff]
  %v5391 = vld [vmem:[%s5380 + $0x50] sm:$0xff]
  %v5392 = vld [vmem:[%s5380 + $0x58] sm:$0xff]
  %v5393 = vld [vmem:[%s5380 + $0x60] sm:$0xff]
  %v5394 = vld [vmem:[%s5380 + $0x68] sm:$0xff]
  %v5395 = vld [vmem:[%s5380 + $0x70] sm:$0xff]
  %v5396 = vld [vmem:[%s5380 + $0x78] sm:$0xff]
  %5397 = vmatprep.subr.mxu0 0.0
  %5398 = vmatpush1.msra.mxu0 %v5381
  %5399 = vmatprep.subr.mxu0 0.0
  %5400 = vmatpush1.msra.mxu0 %v5382
  %5401 = vmatprep.subr.mxu0 0.0
  %5402 = vmatpush1.msra.mxu0 %v5383
  %5403 = vmatprep.subr.mxu0 0.0
  %5404 = vmatpush1.msra.mxu0 %v5384
  %5405 = vmatprep.subr.mxu0 0.0
  %5406 = vmatpush1.msra.mxu0 %v5385
  %5407 = vmatprep.subr.mxu0 0.0
  %5408 = vmatpush1.msra.mxu0 %v5386
  %5409 = vmatprep.subr.mxu0 0.0
  %5410 = vmatpush1.msra.mxu0 %v5387
  %5411 = vmatprep.subr.mxu0 0.0
  %5412 = vmatpush1.msra.mxu0 %v5388
  %5413 = vmatprep.subr.mxu0 0.0
  %5414 = vmatpush1.msra.mxu0 %v5389
  %5415 = vmatprep.subr.mxu0 0.0
  %5416 = vmatpush1.msra.mxu0 %v5390
  %5417 = vmatprep.subr.mxu0 0.0
  %5418 = vmatpush1.msra.mxu0 %v5391
  %5419 = vmatprep.subr.mxu0 0.0
  %5420 = vmatpush1.msra.mxu0 %v5392
  %5421 = vmatprep.subr.mxu0 0.0
  %5422 = vmatpush1.msra.mxu0 %v5393
  %5423 = vmatprep.subr.mxu0 0.0
  %5424 = vmatpush1.msra.mxu0 %v5394
  %5425 = vmatprep.subr.mxu0 0.0
  %5426 = vmatpush1.msra.mxu0 %v5395
  %5427 = vmatprep.subr.mxu0 0.0
  %5428 = vmatpush1.msra.mxu0 %v5396
  %5429 = vmatprep.subr.mxu0 0.0
  %5430 = vmatpush1.msra.mxu0 0.0
  %5431 = vmatprep.subr.mxu0 0.0
  %5432 = vmatpush1.msra.mxu0 0.0
  %5433 = vmatprep.subr.mxu0 0.0
  %5434 = vmatpush1.msra.mxu0 0.0
  %5435 = vmatprep.subr.mxu0 0.0
  %5436 = vmatpush1.msra.mxu0 0.0
  %5437 = vmatprep.subr.mxu0 0.0
  %5438 = vmatpush1.msra.mxu0 0.0
  %5439 = vmatprep.subr.mxu0 0.0
  %5440 = vmatpush1.msra.mxu0 0.0
  %5441 = vmatprep.subr.mxu0 0.0
  %5442 = vmatpush1.msra.mxu0 0.0
  %5443 = vmatprep.subr.mxu0 0.0
  %5444 = vmatpush1.msra.mxu0 0.0
  %5445 = vmatprep.subr.mxu0 0.0
  %5446 = vmatpush1.msra.mxu0 0.0
  %5447 = vmatprep.subr.mxu0 0.0
  %5448 = vmatpush1.msra.mxu0 0.0
  %5449 = vmatprep.subr.mxu0 0.0
  %5450 = vmatpush1.msra.mxu0 0.0
  %5451 = vmatprep.subr.mxu0 0.0
  %5452 = vmatpush1.msra.mxu0 0.0
  %5453 = vmatprep.subr.mxu0 0.0
  %5454 = vmatpush1.msra.mxu0 0.0
  %5455 = vmatprep.subr.mxu0 0.0
  %5456 = vmatpush1.msra.mxu0 0.0
  %5457 = vmatprep.subr.mxu0 0.0
  %5458 = vmatpush1.msra.mxu0 0.0
  %5459 = vmatprep.subr.mxu0 0.0
  %5460 = vmatpush1.msra.mxu0 0.0
  %5461 = vmatprep.mubr.f32.mxu0 0.0
  %5462 = vmatmul.mubr.f32.gmra.mrb[0].mxu0 %v5362
  %v5463 = vpop.f32.mrb[0].mxu0
  %v5464 = vadd.f32 0.0, %v5463
  %v5465 = vpop.f32.mrb[0].mxu0
  %5466 = vmatprep.mubr.f32.mxu0 0.0
  %5467 = vmatmul.mubr.f32.gmra.mrb[0].mxu0 %v5367
  %v5468 = vpop.f32.mrb[0].mxu0
  %v5469 = vadd.f32 0.0, %v5468
  %v5470 = vpop.f32.mrb[0].mxu0
  %5471 = vmatprep.mubr.f32.mxu0 0.0
  %5472 = vmatmul.mubr.f32.gmra.mrb[0].mxu0 %v5372
  %v5473 = vpop.f32.mrb[0].mxu0
  %v5474 = vadd.f32 0.0, %v5473
  %v5475 = vpop.f32.mrb[0].mxu0
  %5476 = vmatprep.mubr.f32.mxu0 0.0
  %5477 = vmatmul.mubr.f32.gmra.mrb[0].mxu0 %v5377
  %v5478 = vpop.f32.mrb[0].mxu0
  %v5479 = vadd.f32 0.0, %v5478
  %v5480 = vpop.f32.mrb[0].mxu0
  %5481 = vdwg.mxu0
  %v5482 = vadd.f32 %v5274, %v5464
  %v5483 = vadd.f32 %v5275, %v5469
  %v5484 = vadd.f32 %v5276, %v5474
  %v5485 = vadd.f32 %v5277, %v5479
  %s5486 = scalar_lea.vmem %s24, 128
  %v5487 = vld [vmem:[%s5486] sm:$0xff]
  %v5488 = vld [vmem:[%s5486 + $0x8] sm:$0xff]
  %v5489 = vld [vmem:[%s5486 + $0x10] sm:$0xff]
  %v5490 = vld [vmem:[%s5486 + $0x18] sm:$0xff]
  %v5492 = vsel %vm1082, %v5487, 0
  %v5495 = vsel %vm1082, %v5488, 0
  %v5498 = vsel %vm1082, %v5489, 0
  %v5501 = vsel %vm1082, %v5490, 0
  %5503 = vmatprep.subr.mxu0 0.0
  %5504 = vmatpush1.msra.mxu0 %v4662
  %5505 = vmatprep.subr.mxu0 0.0
  %5506 = vmatpush1.msra.mxu0 %v4663
  %5507 = vmatprep.subr.mxu0 0.0
  %5508 = vmatpush1.msra.mxu0 0.0
  %5509 = vmatprep.subr.mxu0 0.0
  %5510 = vmatpush1.msra.mxu0 0.0
  %5511 = vmatprep.subr.mxu0 0.0
  %5512 = vmatpush1.msra.mxu0 0.0
  %5513 = vmatprep.subr.mxu0 0.0
  %5514 = vmatpush1.msra.mxu0 0.0
  %5515 = vmatprep.subr.mxu0 0.0
  %5516 = vmatpush1.msra.mxu0 0.0
  %5517 = vmatprep.subr.mxu0 0.0
  %5518 = vmatpush1.msra.mxu0 0.0
  %5519 = vmatprep.subr.mxu0 0.0
  %5520 = vmatpush1.msra.mxu0 0.0
  %5521 = vmatprep.subr.mxu0 0.0
  %5522 = vmatpush1.msra.mxu0 0.0
  %5523 = vmatprep.subr.mxu0 0.0
  %5524 = vmatpush1.msra.mxu0 0.0
  %5525 = vmatprep.subr.mxu0 0.0
  %5526 = vmatpush1.msra.mxu0 0.0
  %5527 = vmatprep.subr.mxu0 0.0
  %5528 = vmatpush1.msra.mxu0 0.0
  %5529 = vmatprep.subr.mxu0 0.0
  %5530 = vmatpush1.msra.mxu0 0.0
  %5531 = vmatprep.subr.mxu0 0.0
  %5532 = vmatpush1.msra.mxu0 0.0
  %5533 = vmatprep.subr.mxu0 0.0
  %5534 = vmatpush1.msra.mxu0 0.0
  %5535 = vmatprep.subr.mxu0 0.0
  %5536 = vmatpush1.msra.mxu0 0.0
  %5537 = vmatprep.subr.mxu0 0.0
  %5538 = vmatpush1.msra.mxu0 0.0
  %5539 = vmatprep.subr.mxu0 0.0
  %5540 = vmatpush1.msra.mxu0 0.0
  %5541 = vmatprep.subr.mxu0 0.0
  %5542 = vmatpush1.msra.mxu0 0.0
  %5543 = vmatprep.subr.mxu0 0.0
  %5544 = vmatpush1.msra.mxu0 0.0
  %5545 = vmatprep.subr.mxu0 0.0
  %5546 = vmatpush1.msra.mxu0 0.0
  %5547 = vmatprep.subr.mxu0 0.0
  %5548 = vmatpush1.msra.mxu0 0.0
  %5549 = vmatprep.subr.mxu0 0.0
  %5550 = vmatpush1.msra.mxu0 0.0
  %5551 = vmatprep.subr.mxu0 0.0
  %5552 = vmatpush1.msra.mxu0 0.0
  %5553 = vmatprep.subr.mxu0 0.0
  %5554 = vmatpush1.msra.mxu0 0.0
  %5555 = vmatprep.subr.mxu0 0.0
  %5556 = vmatpush1.msra.mxu0 0.0
  %5557 = vmatprep.subr.mxu0 0.0
  %5558 = vmatpush1.msra.mxu0 0.0
  %5559 = vmatprep.subr.mxu0 0.0
  %5560 = vmatpush1.msra.mxu0 0.0
  %5561 = vmatprep.subr.mxu0 0.0
  %5562 = vmatpush1.msra.mxu0 0.0
  %5563 = vmatprep.subr.mxu0 0.0
  %5564 = vmatpush1.msra.mxu0 0.0
  %5565 = vmatprep.subr.mxu0 0.0
  %5566 = vmatpush1.msra.mxu0 0.0
  %5567 = vmatprep.mubr.f32.mxu0 0.0
  %5568 = vmatmul.mubr.f32.gmra.mrb[0].mxu0 %v5492
  %v5569 = vpop.f32.mrb[0].mxu0
  %v5570 = vadd.f32 0.0, %v5569
  %v5571 = vpop.f32.mrb[0].mxu0
  %5572 = vmatprep.mubr.f32.mxu0 0.0
  %5573 = vmatmul.mubr.f32.gmra.mrb[0].mxu0 %v5495
  %v5574 = vpop.f32.mrb[0].mxu0
  %v5575 = vadd.f32 0.0, %v5574
  %v5576 = vpop.f32.mrb[0].mxu0
  %5577 = vmatprep.mubr.f32.mxu0 0.0
  %5578 = vmatmul.mubr.f32.gmra.mrb[0].mxu0 %v5498
  %v5579 = vpop.f32.mrb[0].mxu0
  %v5580 = vadd.f32 0.0, %v5579
  %v5581 = vpop.f32.mrb[0].mxu0
  %5582 = vmatprep.mubr.f32.mxu0 0.0
  %5583 = vmatmul.mubr.f32.gmra.mrb[0].mxu0 %v5501
  %v5584 = vpop.f32.mrb[0].mxu0
  %v5585 = vadd.f32 0.0, %v5584
  %v5586 = vpop.f32.mrb[0].mxu0
  %5587 = vdwg.mxu0
  %s5588 = scalar_lea.vmem %s25, 512
  %v5589 = vld [vmem:[%s5588] sm:$0xff]
  %v5590 = vld [vmem:[%s5588 + $0x8] sm:$0xff]
  %v5591 = vld [vmem:[%s5588 + $0x10] sm:$0xff]
  %v5592 = vld [vmem:[%s5588 + $0x18] sm:$0xff]
  %v5593 = vld [vmem:[%s5588 + $0x20] sm:$0xff]
  %v5594 = vld [vmem:[%s5588 + $0x28] sm:$0xff]
  %v5595 = vld [vmem:[%s5588 + $0x30] sm:$0xff]
  %v5596 = vld [vmem:[%s5588 + $0x38] sm:$0xff]
  %v5597 = vld [vmem:[%s5588 + $0x40] sm:$0xff]
  %v5598 = vld [vmem:[%s5588 + $0x48] sm:$0xff]
  %v5599 = vld [vmem:[%s5588 + $0x50] sm:$0xff]
  %v5600 = vld [vmem:[%s5588 + $0x58] sm:$0xff]
  %v5601 = vld [vmem:[%s5588 + $0x60] sm:$0xff]
  %v5602 = vld [vmem:[%s5588 + $0x68] sm:$0xff]
  %v5603 = vld [vmem:[%s5588 + $0x70] sm:$0xff]
  %v5604 = vld [vmem:[%s5588 + $0x78] sm:$0xff]
  %5605 = vmatprep.subr.mxu0 0.0
  %5606 = vmatpush1.msra.mxu0 %v5589
  %5607 = vmatprep.subr.mxu0 0.0
  %5608 = vmatpush1.msra.mxu0 %v5590
  %5609 = vmatprep.subr.mxu0 0.0
  %5610 = vmatpush1.msra.mxu0 %v5591
  %5611 = vmatprep.subr.mxu0 0.0
  %5612 = vmatpush1.msra.mxu0 %v5592
  %5613 = vmatprep.subr.mxu0 0.0
  %5614 = vmatpush1.msra.mxu0 %v5593
  %5615 = vmatprep.subr.mxu0 0.0
  %5616 = vmatpush1.msra.mxu0 %v5594
  %5617 = vmatprep.subr.mxu0 0.0
  %5618 = vmatpush1.msra.mxu0 %v5595
  %5619 = vmatprep.subr.mxu0 0.0
  %5620 = vmatpush1.msra.mxu0 %v5596
  %5621 = vmatprep.subr.mxu0 0.0
  %5622 = vmatpush1.msra.mxu0 %v5597
  %5623 = vmatprep.subr.mxu0 0.0
  %5624 = vmatpush1.msra.mxu0 %v5598
  %5625 = vmatprep.subr.mxu0 0.0
  %5626 = vmatpush1.msra.mxu0 %v5599
  %5627 = vmatprep.subr.mxu0 0.0
  %5628 = vmatpush1.msra.mxu0 %v5600
  %5629 = vmatprep.subr.mxu0 0.0
  %5630 = vmatpush1.msra.mxu0 %v5601
  %5631 = vmatprep.subr.mxu0 0.0
  %5632 = vmatpush1.msra.mxu0 %v5602
  %5633 = vmatprep.subr.mxu0 0.0
  %5634 = vmatpush1.msra.mxu0 %v5603
  %5635 = vmatprep.subr.mxu0 0.0
  %5636 = vmatpush1.msra.mxu0 %v5604
  %5637 = vmatprep.subr.mxu0 0.0
  %5638 = vmatpush1.msra.mxu0 0.0
  %5639 = vmatprep.subr.mxu0 0.0
  %5640 = vmatpush1.msra.mxu0 0.0
  %5641 = vmatprep.subr.mxu0 0.0
  %5642 = vmatpush1.msra.mxu0 0.0
  %5643 = vmatprep.subr.mxu0 0.0
  %5644 = vmatpush1.msra.mxu0 0.0
  %5645 = vmatprep.subr.mxu0 0.0
  %5646 = vmatpush1.msra.mxu0 0.0
  %5647 = vmatprep.subr.mxu0 0.0
  %5648 = vmatpush1.msra.mxu0 0.0
  %5649 = vmatprep.subr.mxu0 0.0
  %5650 = vmatpush1.msra.mxu0 0.0
  %5651 = vmatprep.subr.mxu0 0.0
  %5652 = vmatpush1.msra.mxu0 0.0
  %5653 = vmatprep.subr.mxu0 0.0
  %5654 = vmatpush1.msra.mxu0 0.0
  %5655 = vmatprep.subr.mxu0 0.0
  %5656 = vmatpush1.msra.mxu0 0.0
  %5657 = vmatprep.subr.mxu0 0.0
  %5658 = vmatpush1.msra.mxu0 0.0
  %5659 = vmatprep.subr.mxu0 0.0
  %5660 = vmatpush1.msra.mxu0 0.0
  %5661 = vmatprep.subr.mxu0 0.0
  %5662 = vmatpush1.msra.mxu0 0.0
  %5663 = vmatprep.subr.mxu0 0.0
  %5664 = vmatpush1.msra.mxu0 0.0
  %5665 = vmatprep.subr.mxu0 0.0
  %5666 = vmatpush1.msra.mxu0 0.0
  %5667 = vmatprep.subr.mxu0 0.0
  %5668 = vmatpush1.msra.mxu0 0.0
  %5669 = vmatprep.mubr.f32.mxu0 0.0
  %5670 = vmatmul.mubr.f32.gmra.mrb[0].mxu0 %v5570
  %v5671 = vpop.f32.mrb[0].mxu0
  %v5672 = vadd.f32 0.0, %v5671
  %v5673 = vpop.f32.mrb[0].mxu0
  %5674 = vmatprep.mubr.f32.mxu0 0.0
  %5675 = vmatmul.mubr.f32.gmra.mrb[0].mxu0 %v5575
  %v5676 = vpop.f32.mrb[0].mxu0
  %v5677 = vadd.f32 0.0, %v5676
  %v5678 = vpop.f32.mrb[0].mxu0
  %5679 = vmatprep.mubr.f32.mxu0 0.0
  %5680 = vmatmul.mubr.f32.gmra.mrb[0].mxu0 %v5580
  %v5681 = vpop.f32.mrb[0].mxu0
  %v5682 = vadd.f32 0.0, %v5681
  %v5683 = vpop.f32.mrb[0].mxu0
  %5684 = vmatprep.mubr.f32.mxu0 0.0
  %5685 = vmatmul.mubr.f32.gmra.mrb[0].mxu0 %v5585
  %v5686 = vpop.f32.mrb[0].mxu0
  %v5687 = vadd.f32 0.0, %v5686
  %v5688 = vpop.f32.mrb[0].mxu0
  %5689 = vdwg.mxu0
  %v5690 = vadd.f32 %v5482, %v5672
  %v5691 = vadd.f32 %v5483, %v5677
  %v5692 = vadd.f32 %v5484, %v5682
  %v5693 = vadd.f32 %v5485, %v5687
  %v5694 = vld [vmem:[%s26] sm:$0x1]
  %v5696 = vlaneseq
  %v5697 = vshrl.u32 %v5696, 7
  %v5698 = vsub.s32 0, %v5697
  %v5699 = vrot.slane %v5694, %v5698
  %v5701 = vadd.f32 %v5690, %v5699
  %v5702 = vadd.f32 %v5691, %v5699
  %v5703 = vadd.f32 %v5692, %v5699
  %v5704 = vadd.f32 %v5693, %v5699
  %5705 = vst.msk [vmem:[%s28] sm:$0xff] %vm277, %v5701
  %5706 = vst.msk [vmem:[%s28 + $0x8] sm:$0xff] %vm277, %v5702
  %5707 = vst.msk [vmem:[%s28 + $0x10] sm:$0xff] %vm277, %v5703
  %5708 = vst.msk [vmem:[%s28 + $0x18] sm:$0xff] %vm277, %v5704
  // Predicated region
  $region110: #{sae_forward.1} parent=0 // pred_check
    _
  $region111: #{sae_forward.1} parent=0 // pred_check_branch
    %5710 = sbr.rel (0) target = $region113
  $region112: #{sae_forward.1} parent=0 // pred_region
    _
  $region113: #{sae_forward.1} parent=0 // pred_fallthru
    _
  // Predicated region
  $region114: #{sae_forward.1} parent=0 // pred_check
    _
  $region115: #{sae_forward.1} parent=0 // pred_check_branch
    %5712 = sbr.rel (0) target = $region117
  $region116: #{sae_forward.1} parent=0 // pred_region
    _
  $region117: #{sae_forward.1} parent=0 // pred_fallthru
    _
  // Predicated region
  $region118: #{sae_forward.1} parent=0 // pred_check
    _
  $region119: #{sae_forward.1} parent=0 // pred_check_branch
    %5714 = sbr.rel (0) target = $region121
  $region120: #{sae_forward.1} parent=0 // pred_region
    _
  $region121: #{sae_forward.1} parent=0 // pred_fallthru
    _
  // Predicated region
  $region122: #{sae_forward.1} parent=0 // pred_check
    _
  $region123: #{sae_forward.1} parent=0 // pred_check_branch
    %5716 = sbr.rel (0) target = $region125
  $region124: #{sae_forward.1} parent=0 // pred_region
    _
  $region125: #{sae_forward.1} parent=0 // pred_fallthru
    _

</llo_original>
